<compile_context>
chip_gen: v5e
topology: v5e:2x2
jax: 0.10.0
libtpu: 0.0.40
codegen_flags: <defaults>
</compile_context>

<pallas_src>
import functools

import jax
import jax.numpy as jnp
from jax.experimental import pallas as pl
from jax.experimental.pallas import tpu as pltpu

LRELU_SLOPE = 0.2
BN_EPS = 1e-5
MXU_DTYPE = jnp.bfloat16            # matmul / activation dtype (accum is f32)
MAX_TM = 512                        # max GEMM row tile
WEIGHT_RESIDENT_BYTES = 8 * 1024 * 1024   # single resident K block below this
ROWS_PER_STEP_TARGET = 512          # target output rows per s2d-conv grid step


def _vmem_limit_bytes():
    """Generation-aware scoped-VMEM budget (stay well under physical on v7x)."""
    try:
        cap = int(pltpu.get_tpu_info().vmem_capacity_bytes)
        if cap <= 64 * 1024 * 1024:          # v7x-class: 64 MiB physical VMEM
            return 48 * 1024 * 1024
        return 64 * 1024 * 1024              # v5e / v6e: 128 MiB physical VMEM
    except Exception:
        return 32 * 1024 * 1024              # safe everywhere


VMEM_LIMIT = _vmem_limit_bytes()


def _round_up(x, m):
    return ((x + m - 1) // m) * m


def _pad2d(x, rows, cols):
    r, c = x.shape
    if r == rows and c == cols:
        return x
    return jnp.pad(x, ((0, rows - r), (0, cols - c)))


# ------------------------------ kernel bodies --------------------------------

def _conv_epilogue(acc, o_ref, stats_ref, apply_lrelu, with_stats):
    """Optional LeakyReLU, lane-dense store, optional per-channel stats rows."""
    if apply_lrelu:
        acc = jnp.where(acc >= 0, acc, LRELU_SLOPE * acc)
    o_ref[...] = acc.astype(o_ref.dtype)
    if with_stats:
        stats_ref[...] = jnp.zeros_like(stats_ref)
        s1 = jnp.sum(acc, axis=0, keepdims=True)          # (1, Cp)
        s2 = jnp.sum(acc * acc, axis=0, keepdims=True)    # (1, Cp)
        stats_ref[:, 0:1, :] = s1[None]                   # direct row stores
        stats_ref[:, 1:2, :] = s2[None]


def _s2d_conv_kernel(x_ref, w_ref, o_ref, *rest, oh, ow,
                     apply_lrelu, with_stats):
    """In-kernel im2col: 2x2 stride-1 conv over the space-to-depth input view.

    x_ref: (nb, oh+1, ow+1, C4p)   w_ref: (2, 2, C4p, Cp)   o_ref: (nb*oh*ow, Cp)
    """
    nb = x_ref.shape[0]
    c4 = x_ref.shape[3]
    cp = o_ref.shape[1]
    acc = jnp.zeros((nb * oh * ow, cp), jnp.float32)
    for ai in range(2):
        for aj in range(2):
            sl = x_ref[:, ai:ai + oh, aj:aj + ow, :]       # contiguous slice
            sl = sl.reshape(nb * oh * ow, c4)
            acc = acc + jnp.dot(sl, w_ref[ai, aj, :, :],
                                preferred_element_type=jnp.float32)
    _conv_epilogue(acc, o_ref, rest[0] if with_stats else None,
                   apply_lrelu, with_stats)


def _gemm_kernel(a_ref, b_ref, o_ref, *rest, apply_lrelu, with_stats, multi_k):
    stats_ref = rest[0] if with_stats else None
    if multi_k:
        # Fallback path for very large K: f32 VMEM accumulator over the K axis.
        acc_ref = rest[-1]
        k = pl.program_id(1)

        @pl.when(k == 0)
        def _():
            acc_ref[...] = jnp.zeros_like(acc_ref)

        acc_ref[...] += jnp.dot(a_ref[...], b_ref[...],
                                preferred_element_type=jnp.float32)

        @pl.when(k == pl.num_programs(1) - 1)
        def _():
            _conv_epilogue(acc_ref[...], o_ref, stats_ref,
                           apply_lrelu, with_stats)
    else:
        # Single resident K block: no scratch, weights fetched once.
        acc = jnp.dot(a_ref[...], b_ref[...],
                      preferred_element_type=jnp.float32)
        _conv_epilogue(acc, o_ref, stats_ref, apply_lrelu, with_stats)


def _bn_lrelu_kernel(x_ref, scale_ref, shift_ref, o_ref):
    y = x_ref[...].astype(jnp.float32) * scale_ref[...] + shift_ref[...]
    o_ref[...] = jnp.where(y >= 0, y, LRELU_SLOPE * y).astype(o_ref.dtype)


# ------------------------------ tiling helpers -------------------------------

def _choose_m_tiling(m):
    if m < 16:
        mp = _round_up(m, 8)
        return mp, mp
    # keep at least two row tiles so the "parallel" axis can use both v7x cores
    tm = min(MAX_TM, _round_up(m // 2, 8))
    mp = _round_up(m, tm)
    return mp, tm


def _choose_k_tiling(k, cp):
    kp = _round_up(k, 8)
    if kp * cp * jnp.dtype(MXU_DTYPE).itemsize <= WEIGHT_RESIDENT_BYTES:
        return kp, kp            # single resident K block: weights DMA'd once
    kp = _round_up(k, 1024)      # fallback: K-tiled with f32 scratch accumulator
    return kp, 1024


def _choose_images_per_step(n, rows_per_image):
    best = 1
    for nb in range(1, n + 1):
        if n % nb:
            continue
        if nb * rows_per_image > ROWS_PER_STEP_TARGET:
            continue
        if n >= 2 and n // nb < 2:
            continue             # keep >=2 grid steps for dual-TensorCore sharding
        best = nb
    return best


def _finalize_batch_stats(part, cout, m):
    s1 = jnp.sum(part[:, 0, :cout], axis=0)
    s2 = jnp.sum(part[:, 1, :cout], axis=0)
    mean = s1 / m
    # Training-mode (biased) variance; clamp tiny negative cancellation error.
    var = jnp.maximum(s2 / m - mean * mean, 0.0)
    return mean, var


# ----------------------------- Pallas wrappers --------------------------------

def gemm_pallas(a_p, b_p, tm, tk, *, apply_lrelu, with_stats):
    """a_p: (Mp, Kp) bf16; b_p: (Kp, Cp) bf16 -> (out (Mp, Cp) f32 [, stats])."""
    Mp, Kp = a_p.shape
    Cp = b_p.shape[1]
    gm, gk = Mp // tm, Kp // tk
    multi_k = gk > 1

    out_shapes = [jax.ShapeDtypeStruct((Mp, Cp), jnp.float32)]
    if multi_k:
        out_specs = [pl.BlockSpec((tm, Cp), lambda i, k: (i, 0))]
        if with_stats:
            out_shapes.append(jax.ShapeDtypeStruct((gm, 8, Cp), jnp.float32))
            out_specs.append(pl.BlockSpec((1, 8, Cp), lambda i, k: (i, 0, 0)))
        grid = (gm, gk)
        in_specs = [pl.BlockSpec((tm, tk), lambda i, k: (i, k)),
                    pl.BlockSpec((tk, Cp), lambda i, k: (k, 0))]
        scratch = [pltpu.VMEM((tm, Cp), jnp.float32)]
        dims = ("parallel", "arbitrary")
        b_fetches = gm
    else:
        out_specs = [pl.BlockSpec((tm, Cp), lambda i: (i, 0))]
        if with_stats:
            out_shapes.append(jax.ShapeDtypeStruct((gm, 8, Cp), jnp.float32))
            out_specs.append(pl.BlockSpec((1, 8, Cp), lambda i: (i, 0, 0)))
        grid = (gm,)
        in_specs = [pl.BlockSpec((tm, tk), lambda i: (i, 0)),
                    # constant block index -> weights are DMA'd exactly once
                    pl.BlockSpec((tk, Cp), lambda i: (0, 0))]
        scratch = []
        dims = ("parallel",)
        b_fetches = 1

    cost = pl.CostEstimate(
        flops=2 * Mp * Kp * Cp, transcendentals=0,
        bytes_accessed=int(Mp * Kp * a_p.dtype.itemsize
                           + b_fetches * Kp * Cp * b_p.dtype.itemsize
                           + Mp * Cp * 4))

    return pl.pallas_call(
        functools.partial(_gemm_kernel, apply_lrelu=apply_lrelu,
                          with_stats=with_stats, multi_k=multi_k),
        out_shape=tuple(out_shapes),
        grid=grid,
        in_specs=in_specs,
        out_specs=tuple(out_specs),
        scratch_shapes=scratch,
        compiler_params=pltpu.CompilerParams(
            dimension_semantics=dims, vmem_limit_bytes=VMEM_LIMIT),
        cost_estimate=cost,
    )(a_p, b_p)


def bn_lrelu_pallas(x_p, scale_p, shift_p, tm):
    """x_p: (Mp, Cp); scale/shift: (1, Cp) f32 -> (Mp, Cp) bf16 (next-layer dtype)."""
    Mp, Cp = x_p.shape
    gm = Mp // tm
    cost = pl.CostEstimate(
        flops=3 * Mp * Cp, transcendentals=0,
        bytes_accessed=int(Mp * Cp * (x_p.dtype.itemsize
                                      + jnp.dtype(MXU_DTYPE).itemsize)
                           + 2 * Cp * 4))
    return pl.pallas_call(
        _bn_lrelu_kernel,
        out_shape=jax.ShapeDtypeStruct((Mp, Cp), MXU_DTYPE),
        grid=(gm,),
        in_specs=[
            pl.BlockSpec((tm, Cp), lambda i: (i, 0)),
            pl.BlockSpec((1, Cp), lambda i: (0, 0)),
            pl.BlockSpec((1, Cp), lambda i: (0, 0)),
        ],
        out_specs=pl.BlockSpec((tm, Cp), lambda i: (i, 0)),
        compiler_params=pltpu.CompilerParams(
            dimension_semantics=("parallel",),
            vmem_limit_bytes=VMEM_LIMIT),
        cost_estimate=cost,
    )(x_p, scale_p, shift_p)


# ------------------------------ conv layers ----------------------------------

def s2d_conv_layer(x_nhwc, weight, *, apply_lrelu, with_stats):
    """4x4 / stride-2 / pad-1 conv with im2col performed inside the kernel.

    The stride-2 conv is rewritten as a 2x2 stride-1 conv over a space-to-depth
    view of the input (pure layout transform in XLA — no 4x patches tensor in
    HBM).  Weights: w2[ai, aj, (pi*2+pj)*C + c, o] = W[o, c, 2*ai+pi, 2*aj+pj].
    """
    N, H, W, C = x_nhwc.shape
    OH, OW = H // 2, W // 2
    Cout = weight.shape[0]
    Cp = _round_up(Cout, 128)
    C4 = 4 * C
    C4p = _round_up(C4, 8)

    # xs[n, a, b, (pi*2+pj)*C + c] = x_pad[n, 2a+pi, 2b+pj, c]
    xs = jnp.pad(x_nhwc.astype(MXU_DTYPE), ((0, 0), (1, 1), (1, 1), (0, 0)))
    xs = xs.reshape(N, OH + 1, 2, OW + 1, 2, C)
    xs = xs.transpose(0, 1, 3, 2, 4, 5).reshape(N, OH + 1, OW + 1, C4)
    if C4p != C4:
        xs = jnp.pad(xs, ((0, 0), (0, 0), (0, 0), (0, C4p - C4)))

    w2 = (weight.reshape(Cout, C, 2, 2, 2, 2)     # (o, c, ai, pi, aj, pj)
          .transpose(2, 4, 3, 5, 1, 0)            # (ai, aj, pi, pj, c, o)
          .reshape(2, 2, C4, Cout))
    w2 = jnp.pad(w2, ((0, 0), (0, 0), (0, C4p - C4), (0, Cp - Cout)))
    w2 = w2.astype(MXU_DTYPE)

    nb = _choose_images_per_step(N, OH * OW)
    gm = N // nb
    mblk = nb * OH * OW
    M = N * OH * OW

    out_shapes = [jax.ShapeDtypeStruct((M, Cp), MXU_DTYPE)]
    out_specs = [pl.BlockSpec((mblk, Cp), lambda b: (b, 0))]
    if with_stats:
        out_shapes.append(jax.ShapeDtypeStruct((gm, 8, Cp), jnp.float32))
        out_specs.append(pl.BlockSpec((1, 8, Cp), lambda b: (b, 0, 0)))

    isz = jnp.dtype(MXU_DTYPE).itemsize
    cost = pl.CostEstimate(
        flops=2 * M * 16 * C * Cp, transcendentals=0,
        bytes_accessed=int(xs.size * isz + w2.size * isz + M * Cp * isz))

    res = pl.pallas_call(
        functools.partial(_s2d_conv_kernel, oh=OH, ow=OW,
                          apply_lrelu=apply_lrelu, with_stats=with_stats),
        out_shape=tuple(out_shapes),
        grid=(gm,),
        in_specs=[
            pl.BlockSpec((nb, OH + 1, OW + 1, C4p), lambda b: (b, 0, 0, 0)),
            # constant block index -> weights are DMA'd exactly once
            pl.BlockSpec((2, 2, C4p, Cp), lambda b: (0, 0, 0, 0)),
        ],
        out_specs=tuple(out_specs),
        compiler_params=pltpu.CompilerParams(
            dimension_semantics=("parallel",),
            vmem_limit_bytes=VMEM_LIMIT),
        cost_estimate=cost,
    )(xs, w2)

    meta = dict(N=N, OH=OH, OW=OW, Cout=Cout, M=M, Cp=Cp, tm=mblk)
    if with_stats:
        out_p, part = res
        mean, var = _finalize_batch_stats(part, Cout, M)
        return out_p, meta, mean, var
    (out_p,) = res
    return out_p, meta


def im2col_nhwc(x, k, stride, pad):
    """x: (N, H, W, C) -> patches (N*OH*OW, k*k*C), feature order (kh, kw, c)."""
    N, H, W, C = x.shape
    xp = jnp.pad(x, ((0, 0), (pad, pad), (pad, pad), (0, 0)))
    OH = (H + 2 * pad - k) // stride + 1
    OW = (W + 2 * pad - k) // stride + 1
    cols = []
    for i in range(k):
        for j in range(k):
            cols.append(
                xp[:, i:i + stride * OH:stride, j:j + stride * OW:stride, :])
    p = jnp.stack(cols, axis=3)                    # (N, OH, OW, k*k, C)
    p = p.reshape(N * OH * OW, k * k * C)
    return p, (N, OH, OW)


def gemm_conv_layer(x_nhwc, weight, stride, pad, *, apply_lrelu, with_stats):
    """Small-tensor path (layers 3-4): bf16 im2col patches + resident-B GEMM."""
    Cout, Cin, kh, kw = weight.shape
    patches, (N, OH, OW) = im2col_nhwc(x_nhwc.astype(MXU_DTYPE), kh, stride, pad)
    M, K = patches.shape
    Mp, tm = _choose_m_tiling(M)
    Cp = _round_up(Cout, 128)
    Kp, tk = _choose_k_tiling(K, Cp)

    a_p = _pad2d(patches, Mp, Kp)                                  # bf16 pad
    wmat = weight.transpose(2, 3, 1, 0).reshape(K, Cout).astype(MXU_DTYPE)
    b_p = _pad2d(wmat, Kp, Cp)

    res = gemm_pallas(a_p, b_p, tm, tk,
                      apply_lrelu=apply_lrelu, with_stats=with_stats)
    meta = dict(N=N, OH=OH, OW=OW, Cout=Cout, M=M, Cp=Cp, tm=tm)
    if with_stats:
        out_p, part = res
        mean, var = _finalize_batch_stats(part, Cout, M)
        return out_p, meta, mean, var
    (out_p,) = res
    return out_p, meta


def conv_forward(x_nhwc, weight, stride, pad, *, apply_lrelu, with_stats):
    N, H, W, _ = x_nhwc.shape
    kh = weight.shape[2]
    use_s2d = (stride == 2 and pad == 1 and kh == 4
               and H % 2 == 0 and W % 2 == 0
               and (H // 2) % 8 == 0 and (W // 2) % 8 == 0)
    if use_s2d:
        return s2d_conv_layer(x_nhwc, weight,
                              apply_lrelu=apply_lrelu, with_stats=with_stats)
    return gemm_conv_layer(x_nhwc, weight, stride, pad,
                           apply_lrelu=apply_lrelu, with_stats=with_stats)


def flat_to_nhwc(out_p, meta):
    return out_p[:meta["M"], :meta["Cout"]].reshape(
        meta["N"], meta["OH"], meta["OW"], meta["Cout"])


# ----------------------------- model definition ------------------------------

def init_params(key, d_dis, d_embed, d_ch):
    ks = jax.random.split(key, 8)
    conv_shapes = [
        (d_dis, d_ch, 4, 4),
        (d_dis * 2, d_dis, 4, 4),
        (d_dis * 4, d_dis * 2, 4, 4),
        (d_dis * 8, d_dis * 4, 4, 4),
        (d_embed, d_dis * 8, 4, 4),
    ]
    params = {}
    for idx, shp in enumerate(conv_shapes):
        params[f"conv{idx}"] = 0.02 * jax.random.normal(ks[idx], shp, jnp.float32)
    bn_channels = [d_dis * 2, d_dis * 4, d_dis * 8]
    for idx, c in enumerate(bn_channels):
        params[f"bn{idx}_gamma"] = (
            1.0 + 0.02 * jax.random.normal(ks[5 + idx], (c,), jnp.float32))
        params[f"bn{idx}_beta"] = jnp.zeros((c,), jnp.float32)
    return params


def image_discriminator64_forward(params, x_nchw):
    # NHWC / bf16 internally; single boundary transpose + cast.
    x = jnp.transpose(x_nchw, (0, 2, 3, 1)).astype(MXU_DTYPE)

    # layer 0: conv(stride 2, pad 1) + LeakyReLU fused in the kernel epilogue.
    out_p, meta = conv_forward(x, params["conv0"], 2, 1,
                               apply_lrelu=True, with_stats=False)
    x = flat_to_nhwc(out_p, meta)

    # layers 1..3: conv (+ fused batch stats) -> BatchNorm + LeakyReLU (bf16 out).
    for li in range(1, 4):
        out_p, meta, mean, var = conv_forward(x, params[f"conv{li}"], 2, 1,
                                              apply_lrelu=False, with_stats=True)
        gamma = params[f"bn{li - 1}_gamma"]
        beta = params[f"bn{li - 1}_beta"]
        scale = gamma * jax.lax.rsqrt(var + BN_EPS)
        shift = beta - mean * scale
        Cp, Cout = meta["Cp"], meta["Cout"]
        scale_p = jnp.zeros((1, Cp), jnp.float32).at[0, :Cout].set(scale)
        shift_p = jnp.zeros((1, Cp), jnp.float32).at[0, :Cout].set(shift)
        act_p = bn_lrelu_pallas(out_p, scale_p, shift_p, meta["tm"])
        x = flat_to_nhwc(act_p, meta)

    # layer 4: conv(kernel 4, stride 1, pad 0) -> (N, d_embed, 1, 1)
    out_p, meta = conv_forward(x, params["conv4"], 1, 0,
                               apply_lrelu=False, with_stats=False)
    y = flat_to_nhwc(out_p, meta).astype(jnp.float32)   # (N, 1, 1, d_embed)
    return jnp.transpose(y, (0, 3, 1, 2))               # back to NCHW


# ---------------------------------- main --------------------------------------

if __name__ == "__main__":
    # 64x64 images are required by the architecture (64->32->16->8->4->1).
    batch, d_ch, d_dis, d_embed = 2, 3, 8, 16

    key = jax.random.PRNGKey(0)
    k_param, k_input = jax.random.split(key)
    params = init_params(k_param, d_dis, d_embed, d_ch)
    x = jax.random.normal(k_input, (batch, d_ch, 64, 64), jnp.float32)

    out = jax.jit(image_discriminator64_forward)(params, x)
    out = jax.block_until_ready(out)

    assert out.shape == (batch, d_embed, 1, 1), out.shape
    assert out.dtype == jnp.float32
    print("KERNEL_OK")
</pallas_src>

<mosaic_0001>
module attributes {stable_mosaic.version = 11 : i64} {
  func.func @_s2d_conv_kernel(%arg0: i32, %arg1: memref<1x33x33x16xbf16, #tpu.memory_space<vmem>>, %arg2: memref<2x2x16x128xbf16, #tpu.memory_space<vmem>>, %arg3: memref<1024x128xbf16, #tpu.memory_space<vmem>>) attributes {dimension_semantics = [#tpu.dimension_semantics<parallel>], iteration_bounds = array<i64: 2>, scalar_prefetch = 0 : i64, scratch_operands = 0 : i64, tpu.core_type = #tpu.core_type<tc>, window_params = [{transform_indices = @transform_0, window_bounds = array<i64: 1, 33, 33, 16>}, {pipeline_mode = #tpu.pipeline_mode<synchronous>, transform_indices = @transform_1, window_bounds = array<i64: 2, 2, 16, 128>}, {transform_indices = @transform_2, window_bounds = array<i64: 1024, 128>}]} {
    %cst = arith.constant 0.000000e+00 : f32
    %0 = vector.broadcast %cst : f32 to vector<1024x128xf32>
    %c0 = arith.constant 0 : index
    %c0_0 = arith.constant 0 : index
    %c0_1 = arith.constant 0 : index
    %c0_2 = arith.constant 0 : index
    %1 = vector.load %arg1[%c0, %c0_0, %c0_1, %c0_2] : memref<1x33x33x16xbf16, #tpu.memory_space<vmem>>, vector<1x32x32x16xbf16>
    %2 = vector.shape_cast %1 : vector<1x32x32x16xbf16> to vector<1024x16xbf16>
    %c0_3 = arith.constant 0 : index
    %c0_4 = arith.constant 0 : index
    %c0_5 = arith.constant 0 : index
    %c0_6 = arith.constant 0 : index
    %3 = vector.load %arg2[%c0_3, %c0_4, %c0_5, %c0_6] : memref<2x2x16x128xbf16, #tpu.memory_space<vmem>>, vector<1x1x16x128xbf16>
    %4 = vector.shape_cast %3 : vector<1x1x16x128xbf16> to vector<16x128xbf16>
    %cst_7 = arith.constant dense<0.000000e+00> : vector<1024x128xf32>
    %5 = tpu.matmul %2, %4, %cst_7 {dimension_numbers = #tpu.dot_dimension_numbers<[1], [0], [0], [1], [0, 0, 1, 1], [], []>} : vector<1024x16xbf16>, vector<16x128xbf16>, vector<1024x128xf32> -> vector<1024x128xf32>
    %6 = arith.addf %0, %5 : vector<1024x128xf32>
    %c0_8 = arith.constant 0 : index
    %c0_9 = arith.constant 0 : index
    %c1 = arith.constant 1 : index
    %c0_10 = arith.constant 0 : index
    %7 = vector.load %arg1[%c0_8, %c0_9, %c1, %c0_10] : memref<1x33x33x16xbf16, #tpu.memory_space<vmem>>, vector<1x32x32x16xbf16>
    %8 = vector.shape_cast %7 : vector<1x32x32x16xbf16> to vector<1024x16xbf16>
    %c0_11 = arith.constant 0 : index
    %c1_12 = arith.constant 1 : index
    %c0_13 = arith.constant 0 : index
    %c0_14 = arith.constant 0 : index
    %9 = vector.load %arg2[%c0_11, %c1_12, %c0_13, %c0_14] : memref<2x2x16x128xbf16, #tpu.memory_space<vmem>>, vector<1x1x16x128xbf16>
    %10 = vector.shape_cast %9 : vector<1x1x16x128xbf16> to vector<16x128xbf16>
    %cst_15 = arith.constant dense<0.000000e+00> : vector<1024x128xf32>
    %11 = tpu.matmul %8, %10, %cst_15 {dimension_numbers = #tpu.dot_dimension_numbers<[1], [0], [0], [1], [0, 0, 1, 1], [], []>} : vector<1024x16xbf16>, vector<16x128xbf16>, vector<1024x128xf32> -> vector<1024x128xf32>
    %12 = arith.addf %6, %11 : vector<1024x128xf32>
    %c0_16 = arith.constant 0 : index
    %c1_17 = arith.constant 1 : index
    %c0_18 = arith.constant 0 : index
    %c0_19 = arith.constant 0 : index
    %13 = vector.load %arg1[%c0_16, %c1_17, %c0_18, %c0_19] : memref<1x33x33x16xbf16, #tpu.memory_space<vmem>>, vector<1x32x32x16xbf16>
    %14 = vector.shape_cast %13 : vector<1x32x32x16xbf16> to vector<1024x16xbf16>
    %c1_20 = arith.constant 1 : index
    %c0_21 = arith.constant 0 : index
    %c0_22 = arith.constant 0 : index
    %c0_23 = arith.constant 0 : index
    %15 = vector.load %arg2[%c1_20, %c0_21, %c0_22, %c0_23] : memref<2x2x16x128xbf16, #tpu.memory_space<vmem>>, vector<1x1x16x128xbf16>
    %16 = vector.shape_cast %15 : vector<1x1x16x128xbf16> to vector<16x128xbf16>
    %cst_24 = arith.constant dense<0.000000e+00> : vector<1024x128xf32>
    %17 = tpu.matmul %14, %16, %cst_24 {dimension_numbers = #tpu.dot_dimension_numbers<[1], [0], [0], [1], [0, 0, 1, 1], [], []>} : vector<1024x16xbf16>, vector<16x128xbf16>, vector<1024x128xf32> -> vector<1024x128xf32>
    %18 = arith.addf %12, %17 : vector<1024x128xf32>
    %c0_25 = arith.constant 0 : index
    %c1_26 = arith.constant 1 : index
    %c1_27 = arith.constant 1 : index
    %c0_28 = arith.constant 0 : index
    %19 = vector.load %arg1[%c0_25, %c1_26, %c1_27, %c0_28] : memref<1x33x33x16xbf16, #tpu.memory_space<vmem>>, vector<1x32x32x16xbf16>
    %20 = vector.shape_cast %19 : vector<1x32x32x16xbf16> to vector<1024x16xbf16>
    %c1_29 = arith.constant 1 : index
    %c1_30 = arith.constant 1 : index
    %c0_31 = arith.constant 0 : index
    %c0_32 = arith.constant 0 : index
    %21 = vector.load %arg2[%c1_29, %c1_30, %c0_31, %c0_32] : memref<2x2x16x128xbf16, #tpu.memory_space<vmem>>, vector<1x1x16x128xbf16>
    %22 = vector.shape_cast %21 : vector<1x1x16x128xbf16> to vector<16x128xbf16>
    %cst_33 = arith.constant dense<0.000000e+00> : vector<1024x128xf32>
    %23 = tpu.matmul %20, %22, %cst_33 {dimension_numbers = #tpu.dot_dimension_numbers<[1], [0], [0], [1], [0, 0, 1, 1], [], []>} : vector<1024x16xbf16>, vector<16x128xbf16>, vector<1024x128xf32> -> vector<1024x128xf32>
    %24 = arith.addf %18, %23 : vector<1024x128xf32>
    %cst_34 = arith.constant 0.000000e+00 : f32
    %25 = vector.broadcast %cst_34 : f32 to vector<1024x128xf32>
    %26 = arith.cmpf oge, %24, %25 : vector<1024x128xf32>
    %cst_35 = arith.constant 2.000000e-01 : f32
    %27 = vector.broadcast %cst_35 : f32 to vector<1024x128xf32>
    %28 = arith.mulf %27, %24 : vector<1024x128xf32>
    %29 = arith.select %26, %24, %28 : vector<1024x128xi1>, vector<1024x128xf32>
    %30 = arith.truncf %29 : vector<1024x128xf32> to vector<1024x128xbf16>
    %c0_36 = arith.constant 0 : index
    %c0_37 = arith.constant 0 : index
    %31 = vector.load %arg3[%c0_36, %c0_37] : memref<1024x128xbf16, #tpu.memory_space<vmem>>, vector<1024x128xbf16>
    tpu.vector_store %arg3[%c0_36, %c0_37], %30 {strides = array<i32>} : memref<1024x128xbf16, #tpu.memory_space<vmem>>, vector<1024x128xbf16>,
    return
  }
  func.func @transform_0(%arg0: i32) -> (i32, i32, i32, i32) {
    %c0_i32 = arith.constant 0 : i32
    %c0_i32_0 = arith.constant 0 : i32
    %c0_i32_1 = arith.constant 0 : i32
    %c0_i32_2 = arith.constant 0 : i32
    return %arg0, %c0_i32, %c0_i32_0, %c0_i32_1 : i32, i32, i32, i32
  }
  func.func @transform_1(%arg0: i32) -> (i32, i32, i32, i32) {
    %c0_i32 = arith.constant 0 : i32
    %c0_i32_0 = arith.constant 0 : i32
    %c0_i32_1 = arith.constant 0 : i32
    %c0_i32_2 = arith.constant 0 : i32
    %c0_i32_3 = arith.constant 0 : i32
    return %c0_i32, %c0_i32_0, %c0_i32_1, %c0_i32_2 : i32, i32, i32, i32
  }
  func.func @transform_2(%arg0: i32) -> (i32, i32) {
    %c0_i32 = arith.constant 0 : i32
    %c0_i32_0 = arith.constant 0 : i32
    return %arg0, %c0_i32 : i32, i32
  }
}

module attributes {stable_mosaic.version = 11 : i64} {
  func.func @_s2d_conv_kernel(%arg0: i32, %arg1: memref<1x17x17x32xbf16, #tpu.memory_space<vmem>>, %arg2: memref<2x2x32x128xbf16, #tpu.memory_space<vmem>>, %arg3: memref<256x128xbf16, #tpu.memory_space<vmem>>, %arg4: memref<1x8x128xf32, #tpu.memory_space<vmem>>) attributes {dimension_semantics = [#tpu.dimension_semantics<parallel>], iteration_bounds = array<i64: 2>, scalar_prefetch = 0 : i64, scratch_operands = 0 : i64, tpu.core_type = #tpu.core_type<tc>, window_params = [{transform_indices = @transform_0, window_bounds = array<i64: 1, 17, 17, 32>}, {pipeline_mode = #tpu.pipeline_mode<synchronous>, transform_indices = @transform_1, window_bounds = array<i64: 2, 2, 32, 128>}, {transform_indices = @transform_2, window_bounds = array<i64: 256, 128>}, {transform_indices = @transform_3, window_bounds = array<i64: 1, 8, 128>}]} {
    %cst = arith.constant 0.000000e+00 : f32
    %0 = vector.broadcast %cst : f32 to vector<256x128xf32>
    %c0 = arith.constant 0 : index
    %c0_0 = arith.constant 0 : index
    %c0_1 = arith.constant 0 : index
    %c0_2 = arith.constant 0 : index
    %1 = vector.load %arg1[%c0, %c0_0, %c0_1, %c0_2] : memref<1x17x17x32xbf16, #tpu.memory_space<vmem>>, vector<1x16x16x32xbf16>
    %2 = vector.shape_cast %1 : vector<1x16x16x32xbf16> to vector<256x32xbf16>
    %c0_3 = arith.constant 0 : index
    %c0_4 = arith.constant 0 : index
    %c0_5 = arith.constant 0 : index
    %c0_6 = arith.constant 0 : index
    %3 = vector.load %arg2[%c0_3, %c0_4, %c0_5, %c0_6] : memref<2x2x32x128xbf16, #tpu.memory_space<vmem>>, vector<1x1x32x128xbf16>
    %4 = vector.shape_cast %3 : vector<1x1x32x128xbf16> to vector<32x128xbf16>
    %cst_7 = arith.constant dense<0.000000e+00> : vector<256x128xf32>
    %5 = tpu.matmul %2, %4, %cst_7 {dimension_numbers = #tpu.dot_dimension_numbers<[1], [0], [0], [1], [0, 0, 1, 1], [], []>} : vector<256x32xbf16>, vector<32x128xbf16>, vector<256x128xf32> -> vector<256x128xf32>
    %6 = arith.addf %0, %5 : vector<256x128xf32>
    %c0_8 = arith.constant 0 : index
    %c0_9 = arith.constant 0 : index
    %c1 = arith.constant 1 : index
    %c0_10 = arith.constant 0 : index
    %7 = vector.load %arg1[%c0_8, %c0_9, %c1, %c0_10] : memref<1x17x17x32xbf16, #tpu.memory_space<vmem>>, vector<1x16x16x32xbf16>
    %8 = vector.shape_cast %7 : vector<1x16x16x32xbf16> to vector<256x32xbf16>
    %c0_11 = arith.constant 0 : index
    %c1_12 = arith.constant 1 : index
    %c0_13 = arith.constant 0 : index
    %c0_14 = arith.constant 0 : index
    %9 = vector.load %arg2[%c0_11, %c1_12, %c0_13, %c0_14] : memref<2x2x32x128xbf16, #tpu.memory_space<vmem>>, vector<1x1x32x128xbf16>
    %10 = vector.shape_cast %9 : vector<1x1x32x128xbf16> to vector<32x128xbf16>
    %cst_15 = arith.constant dense<0.000000e+00> : vector<256x128xf32>
    %11 = tpu.matmul %8, %10, %cst_15 {dimension_numbers = #tpu.dot_dimension_numbers<[1], [0], [0], [1], [0, 0, 1, 1], [], []>} : vector<256x32xbf16>, vector<32x128xbf16>, vector<256x128xf32> -> vector<256x128xf32>
    %12 = arith.addf %6, %11 : vector<256x128xf32>
    %c0_16 = arith.constant 0 : index
    %c1_17 = arith.constant 1 : index
    %c0_18 = arith.constant 0 : index
    %c0_19 = arith.constant 0 : index
    %13 = vector.load %arg1[%c0_16, %c1_17, %c0_18, %c0_19] : memref<1x17x17x32xbf16, #tpu.memory_space<vmem>>, vector<1x16x16x32xbf16>
    %14 = vector.shape_cast %13 : vector<1x16x16x32xbf16> to vector<256x32xbf16>
    %c1_20 = arith.constant 1 : index
    %c0_21 = arith.constant 0 : index
    %c0_22 = arith.constant 0 : index
    %c0_23 = arith.constant 0 : index
    %15 = vector.load %arg2[%c1_20, %c0_21, %c0_22, %c0_23] : memref<2x2x32x128xbf16, #tpu.memory_space<vmem>>, vector<1x1x32x128xbf16>
    %16 = vector.shape_cast %15 : vector<1x1x32x128xbf16> to vector<32x128xbf16>
    %cst_24 = arith.constant dense<0.000000e+00> : vector<256x128xf32>
    %17 = tpu.matmul %14, %16, %cst_24 {dimension_numbers = #tpu.dot_dimension_numbers<[1], [0], [0], [1], [0, 0, 1, 1], [], []>} : vector<256x32xbf16>, vector<32x128xbf16>, vector<256x128xf32> -> vector<256x128xf32>
    %18 = arith.addf %12, %17 : vector<256x128xf32>
    %c0_25 = arith.constant 0 : index
    %c1_26 = arith.constant 1 : index
    %c1_27 = arith.constant 1 : index
    %c0_28 = arith.constant 0 : index
    %19 = vector.load %arg1[%c0_25, %c1_26, %c1_27, %c0_28] : memref<1x17x17x32xbf16, #tpu.memory_space<vmem>>, vector<1x16x16x32xbf16>
    %20 = vector.shape_cast %19 : vector<1x16x16x32xbf16> to vector<256x32xbf16>
    %c1_29 = arith.constant 1 : index
    %c1_30 = arith.constant 1 : index
    %c0_31 = arith.constant 0 : index
    %c0_32 = arith.constant 0 : index
    %21 = vector.load %arg2[%c1_29, %c1_30, %c0_31, %c0_32] : memref<2x2x32x128xbf16, #tpu.memory_space<vmem>>, vector<1x1x32x128xbf16>
    %22 = vector.shape_cast %21 : vector<1x1x32x128xbf16> to vector<32x128xbf16>
    %cst_33 = arith.constant dense<0.000000e+00> : vector<256x128xf32>
    %23 = tpu.matmul %20, %22, %cst_33 {dimension_numbers = #tpu.dot_dimension_numbers<[1], [0], [0], [1], [0, 0, 1, 1], [], []>} : vector<256x32xbf16>, vector<32x128xbf16>, vector<256x128xf32> -> vector<256x128xf32>
    %24 = arith.addf %18, %23 : vector<256x128xf32>
    %25 = arith.truncf %24 : vector<256x128xf32> to vector<256x128xbf16>
    %c0_34 = arith.constant 0 : index
    %c0_35 = arith.constant 0 : index
    %26 = vector.load %arg3[%c0_34, %c0_35] : memref<256x128xbf16, #tpu.memory_space<vmem>>, vector<256x128xbf16>
    tpu.vector_store %arg3[%c0_34, %c0_35], %25 {strides = array<i32>} : memref<256x128xbf16, #tpu.memory_space<vmem>>, vector<256x128xbf16>,
    %cst_36 = arith.constant 0.000000e+00 : f32
    %27 = vector.broadcast %cst_36 : f32 to vector<1x8x128xf32>
    %c0_37 = arith.constant 0 : index
    %c0_38 = arith.constant 0 : index
    %c0_39 = arith.constant 0 : index
    %28 = vector.load %arg4[%c0_37, %c0_38, %c0_39] : memref<1x8x128xf32, #tpu.memory_space<vmem>>, vector<1x8x128xf32>
    tpu.vector_store %arg4[%c0_37, %c0_38, %c0_39], %27 {strides = array<i32>} : memref<1x8x128xf32, #tpu.memory_space<vmem>>, vector<1x8x128xf32>,
    %cst_40 = arith.constant dense<0.000000e+00> : vector<128xf32>
    %29 = vector.multi_reduction <add>, %24, %cst_40 [0] : vector<256x128xf32> to vector<128xf32>
    %30 = vector.shape_cast %29 : vector<128xf32> to vector<1x128xf32>
    %31 = arith.mulf %24, %24 : vector<256x128xf32>
    %cst_41 = arith.constant dense<0.000000e+00> : vector<128xf32>
    %32 = vector.multi_reduction <add>, %31, %cst_41 [0] : vector<256x128xf32> to vector<128xf32>
    %33 = vector.shape_cast %32 : vector<128xf32> to vector<1x128xf32>
    %34 = vector.shape_cast %30 : vector<1x128xf32> to vector<1x1x128xf32>
    %c0_42 = arith.constant 0 : index
    %c0_43 = arith.constant 0 : index
    %c0_44 = arith.constant 0 : index
    %35 = vector.load %arg4[%c0_42, %c0_43, %c0_44] : memref<1x8x128xf32, #tpu.memory_space<vmem>>, vector<1x1x128xf32>
    tpu.vector_store %arg4[%c0_42, %c0_43, %c0_44], %34 {strides = array<i32>} : memref<1x8x128xf32, #tpu.memory_space<vmem>>, vector<1x1x128xf32>,
    %36 = vector.shape_cast %33 : vector<1x128xf32> to vector<1x1x128xf32>
    %c0_45 = arith.constant 0 : index
    %c1_46 = arith.constant 1 : index
    %c0_47 = arith.constant 0 : index
    %37 = vector.load %arg4[%c0_45, %c1_46, %c0_47] : memref<1x8x128xf32, #tpu.memory_space<vmem>>, vector<1x1x128xf32>
    tpu.vector_store %arg4[%c0_45, %c1_46, %c0_47], %36 {strides = array<i32>} : memref<1x8x128xf32, #tpu.memory_space<vmem>>, vector<1x1x128xf32>,
    return
  }
  func.func @transform_0(%arg0: i32) -> (i32, i32, i32, i32) {
    %c0_i32 = arith.constant 0 : i32
    %c0_i32_0 = arith.constant 0 : i32
    %c0_i32_1 = arith.constant 0 : i32
    %c0_i32_2 = arith.constant 0 : i32
    return %arg0, %c0_i32, %c0_i32_0, %c0_i32_1 : i32, i32, i32, i32
  }
  func.func @transform_1(%arg0: i32) -> (i32, i32, i32, i32) {
    %c0_i32 = arith.constant 0 : i32
    %c0_i32_0 = arith.constant 0 : i32
    %c0_i32_1 = arith.constant 0 : i32
    %c0_i32_2 = arith.constant 0 : i32
    %c0_i32_3 = arith.constant 0 : i32
    return %c0_i32, %c0_i32_0, %c0_i32_1, %c0_i32_2 : i32, i32, i32, i32
  }
  func.func @transform_2(%arg0: i32) -> (i32, i32) {
    %c0_i32 = arith.constant 0 : i32
    %c0_i32_0 = arith.constant 0 : i32
    return %arg0, %c0_i32 : i32, i32
  }
  func.func @transform_3(%arg0: i32) -> (i32, i32, i32) {
    %c0_i32 = arith.constant 0 : i32
    %c0_i32_0 = arith.constant 0 : i32
    %c0_i32_1 = arith.constant 0 : i32
    return %arg0, %c0_i32, %c0_i32_0 : i32, i32, i32
  }
}

module attributes {stable_mosaic.version = 11 : i64} {
  func.func @_bn_lrelu_kernel(%arg0: i32, %arg1: memref<256x128xbf16, #tpu.memory_space<vmem>>, %arg2: memref<1x128xf32, #tpu.memory_space<vmem>>, %arg3: memref<1x128xf32, #tpu.memory_space<vmem>>, %arg4: memref<256x128xbf16, #tpu.memory_space<vmem>>) attributes {dimension_semantics = [#tpu.dimension_semantics<parallel>], iteration_bounds = array<i64: 2>, scalar_prefetch = 0 : i64, scratch_operands = 0 : i64, tpu.core_type = #tpu.core_type<tc>, window_params = [{transform_indices = @transform_0, window_bounds = array<i64: 256, 128>}, {pipeline_mode = #tpu.pipeline_mode<synchronous>, transform_indices = @transform_1, window_bounds = array<i64: 1, 128>}, {pipeline_mode = #tpu.pipeline_mode<synchronous>, transform_indices = @transform_2, window_bounds = array<i64: 1, 128>}, {transform_indices = @transform_3, window_bounds = array<i64: 256, 128>}]} {
    %c0 = arith.constant 0 : index
    %c0_0 = arith.constant 0 : index
    %0 = vector.load %arg1[%c0, %c0_0] : memref<256x128xbf16, #tpu.memory_space<vmem>>, vector<256x128xbf16>
    %1 = arith.extf %0 : vector<256x128xbf16> to vector<256x128xf32>
    %c0_1 = arith.constant 0 : index
    %c0_2 = arith.constant 0 : index
    %2 = vector.load %arg2[%c0_1, %c0_2] : memref<1x128xf32, #tpu.memory_space<vmem>>, vector<1x128xf32>
    %3 = vector.broadcast %2 : vector<1x128xf32> to vector<256x128xf32>
    %4 = arith.mulf %1, %3 : vector<256x128xf32>
    %c0_3 = arith.constant 0 : index
    %c0_4 = arith.constant 0 : index
    %5 = vector.load %arg3[%c0_3, %c0_4] : memref<1x128xf32, #tpu.memory_space<vmem>>, vector<1x128xf32>
    %6 = vector.broadcast %5 : vector<1x128xf32> to vector<256x128xf32>
    %7 = arith.addf %4, %6 : vector<256x128xf32>
    %cst = arith.constant 0.000000e+00 : f32
    %8 = vector.broadcast %cst : f32 to vector<256x128xf32>
    %9 = arith.cmpf oge, %7, %8 : vector<256x128xf32>
    %cst_5 = arith.constant 2.000000e-01 : f32
    %10 = vector.broadcast %cst_5 : f32 to vector<256x128xf32>
    %11 = arith.mulf %10, %7 : vector<256x128xf32>
    %12 = arith.select %9, %7, %11 : vector<256x128xi1>, vector<256x128xf32>
    %13 = arith.truncf %12 : vector<256x128xf32> to vector<256x128xbf16>
    %c0_6 = arith.constant 0 : index
    %c0_7 = arith.constant 0 : index
    %14 = vector.load %arg4[%c0_6, %c0_7] : memref<256x128xbf16, #tpu.memory_space<vmem>>, vector<256x128xbf16>
    tpu.vector_store %arg4[%c0_6, %c0_7], %13 {strides = array<i32>} : memref<256x128xbf16, #tpu.memory_space<vmem>>, vector<256x128xbf16>,
    return
  }
  func.func @transform_0(%arg0: i32) -> (i32, i32) {
    %c0_i32 = arith.constant 0 : i32
    %c0_i32_0 = arith.constant 0 : i32
    return %arg0, %c0_i32 : i32, i32
  }
  func.func @transform_1(%arg0: i32) -> (i32, i32) {
    %c0_i32 = arith.constant 0 : i32
    %c0_i32_0 = arith.constant 0 : i32
    %c0_i32_1 = arith.constant 0 : i32
    return %c0_i32, %c0_i32_0 : i32, i32
  }
  func.func @transform_2(%arg0: i32) -> (i32, i32) {
    %c0_i32 = arith.constant 0 : i32
    %c0_i32_0 = arith.constant 0 : i32
    %c0_i32_1 = arith.constant 0 : i32
    return %c0_i32, %c0_i32_0 : i32, i32
  }
  func.func @transform_3(%arg0: i32) -> (i32, i32) {
    %c0_i32 = arith.constant 0 : i32
    %c0_i32_0 = arith.constant 0 : i32
    return %arg0, %c0_i32 : i32, i32
  }
}

module attributes {stable_mosaic.version = 11 : i64} {
  func.func @_bn_lrelu_kernel(%arg0: i32, %arg1: memref<64x128xbf16, #tpu.memory_space<vmem>>, %arg2: memref<1x128xf32, #tpu.memory_space<vmem>>, %arg3: memref<1x128xf32, #tpu.memory_space<vmem>>, %arg4: memref<64x128xbf16, #tpu.memory_space<vmem>>) attributes {dimension_semantics = [#tpu.dimension_semantics<parallel>], iteration_bounds = array<i64: 2>, scalar_prefetch = 0 : i64, scratch_operands = 0 : i64, tpu.core_type = #tpu.core_type<tc>, window_params = [{transform_indices = @transform_0, window_bounds = array<i64: 64, 128>}, {pipeline_mode = #tpu.pipeline_mode<synchronous>, transform_indices = @transform_1, window_bounds = array<i64: 1, 128>}, {pipeline_mode = #tpu.pipeline_mode<synchronous>, transform_indices = @transform_2, window_bounds = array<i64: 1, 128>}, {transform_indices = @transform_3, window_bounds = array<i64: 64, 128>}]} {
    %c0 = arith.constant 0 : index
    %c0_0 = arith.constant 0 : index
    %0 = vector.load %arg1[%c0, %c0_0] : memref<64x128xbf16, #tpu.memory_space<vmem>>, vector<64x128xbf16>
    %1 = arith.extf %0 : vector<64x128xbf16> to vector<64x128xf32>
    %c0_1 = arith.constant 0 : index
    %c0_2 = arith.constant 0 : index
    %2 = vector.load %arg2[%c0_1, %c0_2] : memref<1x128xf32, #tpu.memory_space<vmem>>, vector<1x128xf32>
    %3 = vector.broadcast %2 : vector<1x128xf32> to vector<64x128xf32>
    %4 = arith.mulf %1, %3 : vector<64x128xf32>
    %c0_3 = arith.constant 0 : index
    %c0_4 = arith.constant 0 : index
    %5 = vector.load %arg3[%c0_3, %c0_4] : memref<1x128xf32, #tpu.memory_space<vmem>>, vector<1x128xf32>
    %6 = vector.broadcast %5 : vector<1x128xf32> to vector<64x128xf32>
    %7 = arith.addf %4, %6 : vector<64x128xf32>
    %cst = arith.constant 0.000000e+00 : f32
    %8 = vector.broadcast %cst : f32 to vector<64x128xf32>
    %9 = arith.cmpf oge, %7, %8 : vector<64x128xf32>
    %cst_5 = arith.constant 2.000000e-01 : f32
    %10 = vector.broadcast %cst_5 : f32 to vector<64x128xf32>
    %11 = arith.mulf %10, %7 : vector<64x128xf32>
    %12 = arith.select %9, %7, %11 : vector<64x128xi1>, vector<64x128xf32>
    %13 = arith.truncf %12 : vector<64x128xf32> to vector<64x128xbf16>
    %c0_6 = arith.constant 0 : index
    %c0_7 = arith.constant 0 : index
    %14 = vector.load %arg4[%c0_6, %c0_7] : memref<64x128xbf16, #tpu.memory_space<vmem>>, vector<64x128xbf16>
    tpu.vector_store %arg4[%c0_6, %c0_7], %13 {strides = array<i32>} : memref<64x128xbf16, #tpu.memory_space<vmem>>, vector<64x128xbf16>,
    return
  }
  func.func @transform_0(%arg0: i32) -> (i32, i32) {
    %c0_i32 = arith.constant 0 : i32
    %c0_i32_0 = arith.constant 0 : i32
    return %arg0, %c0_i32 : i32, i32
  }
  func.func @transform_1(%arg0: i32) -> (i32, i32) {
    %c0_i32 = arith.constant 0 : i32
    %c0_i32_0 = arith.constant 0 : i32
    %c0_i32_1 = arith.constant 0 : i32
    return %c0_i32, %c0_i32_0 : i32, i32
  }
  func.func @transform_2(%arg0: i32) -> (i32, i32) {
    %c0_i32 = arith.constant 0 : i32
    %c0_i32_0 = arith.constant 0 : i32
    %c0_i32_1 = arith.constant 0 : i32
    return %c0_i32, %c0_i32_0 : i32, i32
  }
  func.func @transform_3(%arg0: i32) -> (i32, i32) {
    %c0_i32 = arith.constant 0 : i32
    %c0_i32_0 = arith.constant 0 : i32
    return %arg0, %c0_i32 : i32, i32
  }
}

module attributes {stable_mosaic.version = 11 : i64} {
  func.func @_s2d_conv_kernel(%arg0: i32, %arg1: memref<1x9x9x64xbf16, #tpu.memory_space<vmem>>, %arg2: memref<2x2x64x128xbf16, #tpu.memory_space<vmem>>, %arg3: memref<64x128xbf16, #tpu.memory_space<vmem>>, %arg4: memref<1x8x128xf32, #tpu.memory_space<vmem>>) attributes {dimension_semantics = [#tpu.dimension_semantics<parallel>], iteration_bounds = array<i64: 2>, scalar_prefetch = 0 : i64, scratch_operands = 0 : i64, tpu.core_type = #tpu.core_type<tc>, window_params = [{transform_indices = @transform_0, window_bounds = array<i64: 1, 9, 9, 64>}, {pipeline_mode = #tpu.pipeline_mode<synchronous>, transform_indices = @transform_1, window_bounds = array<i64: 2, 2, 64, 128>}, {transform_indices = @transform_2, window_bounds = array<i64: 64, 128>}, {transform_indices = @transform_3, window_bounds = array<i64: 1, 8, 128>}]} {
    %cst = arith.constant 0.000000e+00 : f32
    %0 = vector.broadcast %cst : f32 to vector<64x128xf32>
    %c0 = arith.constant 0 : index
    %c0_0 = arith.constant 0 : index
    %c0_1 = arith.constant 0 : index
    %c0_2 = arith.constant 0 : index
    %1 = vector.load %arg1[%c0, %c0_0, %c0_1, %c0_2] : memref<1x9x9x64xbf16, #tpu.memory_space<vmem>>, vector<1x8x8x64xbf16>
    %2 = vector.shape_cast %1 : vector<1x8x8x64xbf16> to vector<64x64xbf16>
    %c0_3 = arith.constant 0 : index
    %c0_4 = arith.constant 0 : index
    %c0_5 = arith.constant 0 : index
    %c0_6 = arith.constant 0 : index
    %3 = vector.load %arg2[%c0_3, %c0_4, %c0_5, %c0_6] : memref<2x2x64x128xbf16, #tpu.memory_space<vmem>>, vector<1x1x64x128xbf16>
    %4 = vector.shape_cast %3 : vector<1x1x64x128xbf16> to vector<64x128xbf16>
    %cst_7 = arith.constant dense<0.000000e+00> : vector<64x128xf32>
    %5 = tpu.matmul %2, %4, %cst_7 {dimension_numbers = #tpu.dot_dimension_numbers<[1], [0], [0], [1], [0, 0, 1, 1], [], []>} : vector<64x64xbf16>, vector<64x128xbf16>, vector<64x128xf32> -> vector<64x128xf32>
    %6 = arith.addf %0, %5 : vector<64x128xf32>
    %c0_8 = arith.constant 0 : index
    %c0_9 = arith.constant 0 : index
    %c1 = arith.constant 1 : index
    %c0_10 = arith.constant 0 : index
    %7 = vector.load %arg1[%c0_8, %c0_9, %c1, %c0_10] : memref<1x9x9x64xbf16, #tpu.memory_space<vmem>>, vector<1x8x8x64xbf16>
    %8 = vector.shape_cast %7 : vector<1x8x8x64xbf16> to vector<64x64xbf16>
    %c0_11 = arith.constant 0 : index
    %c1_12 = arith.constant 1 : index
    %c0_13 = arith.constant 0 : index
    %c0_14 = arith.constant 0 : index
    %9 = vector.load %arg2[%c0_11, %c1_12, %c0_13, %c0_14] : memref<2x2x64x128xbf16, #tpu.memory_space<vmem>>, vector<1x1x64x128xbf16>
    %10 = vector.shape_cast %9 : vector<1x1x64x128xbf16> to vector<64x128xbf16>
    %cst_15 = arith.constant dense<0.000000e+00> : vector<64x128xf32>
    %11 = tpu.matmul %8, %10, %cst_15 {dimension_numbers = #tpu.dot_dimension_numbers<[1], [0], [0], [1], [0, 0, 1, 1], [], []>} : vector<64x64xbf16>, vector<64x128xbf16>, vector<64x128xf32> -> vector<64x128xf32>
    %12 = arith.addf %6, %11 : vector<64x128xf32>
    %c0_16 = arith.constant 0 : index
    %c1_17 = arith.constant 1 : index
    %c0_18 = arith.constant 0 : index
    %c0_19 = arith.constant 0 : index
    %13 = vector.load %arg1[%c0_16, %c1_17, %c0_18, %c0_19] : memref<1x9x9x64xbf16, #tpu.memory_space<vmem>>, vector<1x8x8x64xbf16>
    %14 = vector.shape_cast %13 : vector<1x8x8x64xbf16> to vector<64x64xbf16>
    %c1_20 = arith.constant 1 : index
    %c0_21 = arith.constant 0 : index
    %c0_22 = arith.constant 0 : index
    %c0_23 = arith.constant 0 : index
    %15 = vector.load %arg2[%c1_20, %c0_21, %c0_22, %c0_23] : memref<2x2x64x128xbf16, #tpu.memory_space<vmem>>, vector<1x1x64x128xbf16>
    %16 = vector.shape_cast %15 : vector<1x1x64x128xbf16> to vector<64x128xbf16>
    %cst_24 = arith.constant dense<0.000000e+00> : vector<64x128xf32>
    %17 = tpu.matmul %14, %16, %cst_24 {dimension_numbers = #tpu.dot_dimension_numbers<[1], [0], [0], [1], [0, 0, 1, 1], [], []>} : vector<64x64xbf16>, vector<64x128xbf16>, vector<64x128xf32> -> vector<64x128xf32>
    %18 = arith.addf %12, %17 : vector<64x128xf32>
    %c0_25 = arith.constant 0 : index
    %c1_26 = arith.constant 1 : index
    %c1_27 = arith.constant 1 : index
    %c0_28 = arith.constant 0 : index
    %19 = vector.load %arg1[%c0_25, %c1_26, %c1_27, %c0_28] : memref<1x9x9x64xbf16, #tpu.memory_space<vmem>>, vector<1x8x8x64xbf16>
    %20 = vector.shape_cast %19 : vector<1x8x8x64xbf16> to vector<64x64xbf16>
    %c1_29 = arith.constant 1 : index
    %c1_30 = arith.constant 1 : index
    %c0_31 = arith.constant 0 : index
    %c0_32 = arith.constant 0 : index
    %21 = vector.load %arg2[%c1_29, %c1_30, %c0_31, %c0_32] : memref<2x2x64x128xbf16, #tpu.memory_space<vmem>>, vector<1x1x64x128xbf16>
    %22 = vector.shape_cast %21 : vector<1x1x64x128xbf16> to vector<64x128xbf16>
    %cst_33 = arith.constant dense<0.000000e+00> : vector<64x128xf32>
    %23 = tpu.matmul %20, %22, %cst_33 {dimension_numbers = #tpu.dot_dimension_numbers<[1], [0], [0], [1], [0, 0, 1, 1], [], []>} : vector<64x64xbf16>, vector<64x128xbf16>, vector<64x128xf32> -> vector<64x128xf32>
    %24 = arith.addf %18, %23 : vector<64x128xf32>
    %25 = arith.truncf %24 : vector<64x128xf32> to vector<64x128xbf16>
    %c0_34 = arith.constant 0 : index
    %c0_35 = arith.constant 0 : index
    %26 = vector.load %arg3[%c0_34, %c0_35] : memref<64x128xbf16, #tpu.memory_space<vmem>>, vector<64x128xbf16>
    tpu.vector_store %arg3[%c0_34, %c0_35], %25 {strides = array<i32>} : memref<64x128xbf16, #tpu.memory_space<vmem>>, vector<64x128xbf16>,
    %cst_36 = arith.constant 0.000000e+00 : f32
    %27 = vector.broadcast %cst_36 : f32 to vector<1x8x128xf32>
    %c0_37 = arith.constant 0 : index
    %c0_38 = arith.constant 0 : index
    %c0_39 = arith.constant 0 : index
    %28 = vector.load %arg4[%c0_37, %c0_38, %c0_39] : memref<1x8x128xf32, #tpu.memory_space<vmem>>, vector<1x8x128xf32>
    tpu.vector_store %arg4[%c0_37, %c0_38, %c0_39], %27 {strides = array<i32>} : memref<1x8x128xf32, #tpu.memory_space<vmem>>, vector<1x8x128xf32>,
    %cst_40 = arith.constant dense<0.000000e+00> : vector<128xf32>
    %29 = vector.multi_reduction <add>, %24, %cst_40 [0] : vector<64x128xf32> to vector<128xf32>
    %30 = vector.shape_cast %29 : vector<128xf32> to vector<1x128xf32>
    %31 = arith.mulf %24, %24 : vector<64x128xf32>
    %cst_41 = arith.constant dense<0.000000e+00> : vector<128xf32>
    %32 = vector.multi_reduction <add>, %31, %cst_41 [0] : vector<64x128xf32> to vector<128xf32>
    %33 = vector.shape_cast %32 : vector<128xf32> to vector<1x128xf32>
    %34 = vector.shape_cast %30 : vector<1x128xf32> to vector<1x1x128xf32>
    %c0_42 = arith.constant 0 : index
    %c0_43 = arith.constant 0 : index
    %c0_44 = arith.constant 0 : index
    %35 = vector.load %arg4[%c0_42, %c0_43, %c0_44] : memref<1x8x128xf32, #tpu.memory_space<vmem>>, vector<1x1x128xf32>
    tpu.vector_store %arg4[%c0_42, %c0_43, %c0_44], %34 {strides = array<i32>} : memref<1x8x128xf32, #tpu.memory_space<vmem>>, vector<1x1x128xf32>,
    %36 = vector.shape_cast %33 : vector<1x128xf32> to vector<1x1x128xf32>
    %c0_45 = arith.constant 0 : index
    %c1_46 = arith.constant 1 : index
    %c0_47 = arith.constant 0 : index
    %37 = vector.load %arg4[%c0_45, %c1_46, %c0_47] : memref<1x8x128xf32, #tpu.memory_space<vmem>>, vector<1x1x128xf32>
    tpu.vector_store %arg4[%c0_45, %c1_46, %c0_47], %36 {strides = array<i32>} : memref<1x8x128xf32, #tpu.memory_space<vmem>>, vector<1x1x128xf32>,
    return
  }
  func.func @transform_0(%arg0: i32) -> (i32, i32, i32, i32) {
    %c0_i32 = arith.constant 0 : i32
    %c0_i32_0 = arith.constant 0 : i32
    %c0_i32_1 = arith.constant 0 : i32
    %c0_i32_2 = arith.constant 0 : i32
    return %arg0, %c0_i32, %c0_i32_0, %c0_i32_1 : i32, i32, i32, i32
  }
  func.func @transform_1(%arg0: i32) -> (i32, i32, i32, i32) {
    %c0_i32 = arith.constant 0 : i32
    %c0_i32_0 = arith.constant 0 : i32
    %c0_i32_1 = arith.constant 0 : i32
    %c0_i32_2 = arith.constant 0 : i32
    %c0_i32_3 = arith.constant 0 : i32
    return %c0_i32, %c0_i32_0, %c0_i32_1, %c0_i32_2 : i32, i32, i32, i32
  }
  func.func @transform_2(%arg0: i32) -> (i32, i32) {
    %c0_i32 = arith.constant 0 : i32
    %c0_i32_0 = arith.constant 0 : i32
    return %arg0, %c0_i32 : i32, i32
  }
  func.func @transform_3(%arg0: i32) -> (i32, i32, i32) {
    %c0_i32 = arith.constant 0 : i32
    %c0_i32_0 = arith.constant 0 : i32
    %c0_i32_1 = arith.constant 0 : i32
    return %arg0, %c0_i32, %c0_i32_0 : i32, i32, i32
  }
}

module attributes {stable_mosaic.version = 11 : i64} {
  func.func @_gemm_kernel(%arg0: i32, %arg1: memref<16x512xbf16, #tpu.memory_space<vmem>>, %arg2: memref<512x128xbf16, #tpu.memory_space<vmem>>, %arg3: memref<16x128xf32, #tpu.memory_space<vmem>>, %arg4: memref<1x8x128xf32, #tpu.memory_space<vmem>>) attributes {dimension_semantics = [#tpu.dimension_semantics<parallel>], iteration_bounds = array<i64: 2>, scalar_prefetch = 0 : i64, scratch_operands = 0 : i64, tpu.core_type = #tpu.core_type<tc>, window_params = [{transform_indices = @transform_0, window_bounds = array<i64: 16, 512>}, {pipeline_mode = #tpu.pipeline_mode<synchronous>, transform_indices = @transform_1, window_bounds = array<i64: 512, 128>}, {transform_indices = @transform_2, window_bounds = array<i64: 16, 128>}, {transform_indices = @transform_3, window_bounds = array<i64: 1, 8, 128>}]} {
    %c0 = arith.constant 0 : index
    %c0_0 = arith.constant 0 : index
    %0 = vector.load %arg1[%c0, %c0_0] : memref<16x512xbf16, #tpu.memory_space<vmem>>, vector<16x512xbf16>
    %c0_1 = arith.constant 0 : index
    %c0_2 = arith.constant 0 : index
    %1 = vector.load %arg2[%c0_1, %c0_2] : memref<512x128xbf16, #tpu.memory_space<vmem>>, vector<512x128xbf16>
    %cst = arith.constant dense<0.000000e+00> : vector<16x128xf32>
    %2 = tpu.matmul %0, %1, %cst {dimension_numbers = #tpu.dot_dimension_numbers<[1], [0], [0], [1], [0, 0, 1, 1], [], []>} : vector<16x512xbf16>, vector<512x128xbf16>, vector<16x128xf32> -> vector<16x128xf32>
    %c0_3 = arith.constant 0 : index
    %c0_4 = arith.constant 0 : index
    %3 = vector.load %arg3[%c0_3, %c0_4] : memref<16x128xf32, #tpu.memory_space<vmem>>, vector<16x128xf32>
    tpu.vector_store %arg3[%c0_3, %c0_4], %2 {strides = array<i32>} : memref<16x128xf32, #tpu.memory_space<vmem>>, vector<16x128xf32>,
    %cst_5 = arith.constant 0.000000e+00 : f32
    %4 = vector.broadcast %cst_5 : f32 to vector<1x8x128xf32>
    %c0_6 = arith.constant 0 : index
    %c0_7 = arith.constant 0 : index
    %c0_8 = arith.constant 0 : index
    %5 = vector.load %arg4[%c0_6, %c0_7, %c0_8] : memref<1x8x128xf32, #tpu.memory_space<vmem>>, vector<1x8x128xf32>
    tpu.vector_store %arg4[%c0_6, %c0_7, %c0_8], %4 {strides = array<i32>} : memref<1x8x128xf32, #tpu.memory_space<vmem>>, vector<1x8x128xf32>,
    %cst_9 = arith.constant dense<0.000000e+00> : vector<128xf32>
    %6 = vector.multi_reduction <add>, %2, %cst_9 [0] : vector<16x128xf32> to vector<128xf32>
    %7 = vector.shape_cast %6 : vector<128xf32> to vector<1x128xf32>
    %8 = arith.mulf %2, %2 : vector<16x128xf32>
    %cst_10 = arith.constant dense<0.000000e+00> : vector<128xf32>
    %9 = vector.multi_reduction <add>, %8, %cst_10 [0] : vector<16x128xf32> to vector<128xf32>
    %10 = vector.shape_cast %9 : vector<128xf32> to vector<1x128xf32>
    %11 = vector.shape_cast %7 : vector<1x128xf32> to vector<1x1x128xf32>
    %c0_11 = arith.constant 0 : index
    %c0_12 = arith.constant 0 : index
    %c0_13 = arith.constant 0 : index
    %12 = vector.load %arg4[%c0_11, %c0_12, %c0_13] : memref<1x8x128xf32, #tpu.memory_space<vmem>>, vector<1x1x128xf32>
    tpu.vector_store %arg4[%c0_11, %c0_12, %c0_13], %11 {strides = array<i32>} : memref<1x8x128xf32, #tpu.memory_space<vmem>>, vector<1x1x128xf32>,
    %13 = vector.shape_cast %10 : vector<1x128xf32> to vector<1x1x128xf32>
    %c0_14 = arith.constant 0 : index
    %c1 = arith.constant 1 : index
    %c0_15 = arith.constant 0 : index
    %14 = vector.load %arg4[%c0_14, %c1, %c0_15] : memref<1x8x128xf32, #tpu.memory_space<vmem>>, vector<1x1x128xf32>
    tpu.vector_store %arg4[%c0_14, %c1, %c0_15], %13 {strides = array<i32>} : memref<1x8x128xf32, #tpu.memory_space<vmem>>, vector<1x1x128xf32>,
    return
  }
  func.func @transform_0(%arg0: i32) -> (i32, i32) {
    %c0_i32 = arith.constant 0 : i32
    %c0_i32_0 = arith.constant 0 : i32
    return %arg0, %c0_i32 : i32, i32
  }
  func.func @transform_1(%arg0: i32) -> (i32, i32) {
    %c0_i32 = arith.constant 0 : i32
    %c0_i32_0 = arith.constant 0 : i32
    %c0_i32_1 = arith.constant 0 : i32
    return %c0_i32, %c0_i32_0 : i32, i32
  }
  func.func @transform_2(%arg0: i32) -> (i32, i32) {
    %c0_i32 = arith.constant 0 : i32
    %c0_i32_0 = arith.constant 0 : i32
    return %arg0, %c0_i32 : i32, i32
  }
  func.func @transform_3(%arg0: i32) -> (i32, i32, i32) {
    %c0_i32 = arith.constant 0 : i32
    %c0_i32_0 = arith.constant 0 : i32
    %c0_i32_1 = arith.constant 0 : i32
    return %arg0, %c0_i32, %c0_i32_0 : i32, i32, i32
  }
}

module attributes {stable_mosaic.version = 11 : i64} {
  func.func @_bn_lrelu_kernel(%arg0: i32, %arg1: memref<16x128xf32, #tpu.memory_space<vmem>>, %arg2: memref<1x128xf32, #tpu.memory_space<vmem>>, %arg3: memref<1x128xf32, #tpu.memory_space<vmem>>, %arg4: memref<16x128xbf16, #tpu.memory_space<vmem>>) attributes {dimension_semantics = [#tpu.dimension_semantics<parallel>], iteration_bounds = array<i64: 2>, scalar_prefetch = 0 : i64, scratch_operands = 0 : i64, tpu.core_type = #tpu.core_type<tc>, window_params = [{transform_indices = @transform_0, window_bounds = array<i64: 16, 128>}, {pipeline_mode = #tpu.pipeline_mode<synchronous>, transform_indices = @transform_1, window_bounds = array<i64: 1, 128>}, {pipeline_mode = #tpu.pipeline_mode<synchronous>, transform_indices = @transform_2, window_bounds = array<i64: 1, 128>}, {transform_indices = @transform_3, window_bounds = array<i64: 16, 128>}]} {
    %c0 = arith.constant 0 : index
    %c0_0 = arith.constant 0 : index
    %0 = vector.load %arg1[%c0, %c0_0] : memref<16x128xf32, #tpu.memory_space<vmem>>, vector<16x128xf32>
    %c0_1 = arith.constant 0 : index
    %c0_2 = arith.constant 0 : index
    %1 = vector.load %arg2[%c0_1, %c0_2] : memref<1x128xf32, #tpu.memory_space<vmem>>, vector<1x128xf32>
    %2 = vector.broadcast %1 : vector<1x128xf32> to vector<16x128xf32>
    %3 = arith.mulf %0, %2 : vector<16x128xf32>
    %c0_3 = arith.constant 0 : index
    %c0_4 = arith.constant 0 : index
    %4 = vector.load %arg3[%c0_3, %c0_4] : memref<1x128xf32, #tpu.memory_space<vmem>>, vector<1x128xf32>
    %5 = vector.broadcast %4 : vector<1x128xf32> to vector<16x128xf32>
    %6 = arith.addf %3, %5 : vector<16x128xf32>
    %cst = arith.constant 0.000000e+00 : f32
    %7 = vector.broadcast %cst : f32 to vector<16x128xf32>
    %8 = arith.cmpf oge, %6, %7 : vector<16x128xf32>
    %cst_5 = arith.constant 2.000000e-01 : f32
    %9 = vector.broadcast %cst_5 : f32 to vector<16x128xf32>
    %10 = arith.mulf %9, %6 : vector<16x128xf32>
    %11 = arith.select %8, %6, %10 : vector<16x128xi1>, vector<16x128xf32>
    %12 = arith.truncf %11 : vector<16x128xf32> to vector<16x128xbf16>
    %c0_6 = arith.constant 0 : index
    %c0_7 = arith.constant 0 : index
    %13 = vector.load %arg4[%c0_6, %c0_7] : memref<16x128xbf16, #tpu.memory_space<vmem>>, vector<16x128xbf16>
    tpu.vector_store %arg4[%c0_6, %c0_7], %12 {strides = array<i32>} : memref<16x128xbf16, #tpu.memory_space<vmem>>, vector<16x128xbf16>,
    return
  }
  func.func @transform_0(%arg0: i32) -> (i32, i32) {
    %c0_i32 = arith.constant 0 : i32
    %c0_i32_0 = arith.constant 0 : i32
    return %arg0, %c0_i32 : i32, i32
  }
  func.func @transform_1(%arg0: i32) -> (i32, i32) {
    %c0_i32 = arith.constant 0 : i32
    %c0_i32_0 = arith.constant 0 : i32
    %c0_i32_1 = arith.constant 0 : i32
    return %c0_i32, %c0_i32_0 : i32, i32
  }
  func.func @transform_2(%arg0: i32) -> (i32, i32) {
    %c0_i32 = arith.constant 0 : i32
    %c0_i32_0 = arith.constant 0 : i32
    %c0_i32_1 = arith.constant 0 : i32
    return %c0_i32, %c0_i32_0 : i32, i32
  }
  func.func @transform_3(%arg0: i32) -> (i32, i32) {
    %c0_i32 = arith.constant 0 : i32
    %c0_i32_0 = arith.constant 0 : i32
    return %arg0, %c0_i32 : i32, i32
  }
}

module attributes {stable_mosaic.version = 11 : i64} {
  func.func @_gemm_kernel(%arg0: i32, %arg1: memref<8x1024xbf16, #tpu.memory_space<vmem>>, %arg2: memref<1024x128xbf16, #tpu.memory_space<vmem>>, %arg3: memref<8x128xf32, #tpu.memory_space<vmem>>) attributes {dimension_semantics = [#tpu.dimension_semantics<parallel>], iteration_bounds = array<i64: 1>, scalar_prefetch = 0 : i64, scratch_operands = 0 : i64, tpu.core_type = #tpu.core_type<tc>, window_params = [{transform_indices = @transform_0, window_bounds = array<i64: 8, 1024>}, {pipeline_mode = #tpu.pipeline_mode<synchronous>, transform_indices = @transform_1, window_bounds = array<i64: 1024, 128>}, {transform_indices = @transform_2, window_bounds = array<i64: 8, 128>}]} {
    %c0 = arith.constant 0 : index
    %c0_0 = arith.constant 0 : index
    %0 = vector.load %arg1[%c0, %c0_0] : memref<8x1024xbf16, #tpu.memory_space<vmem>>, vector<8x1024xbf16>
    %c0_1 = arith.constant 0 : index
    %c0_2 = arith.constant 0 : index
    %1 = vector.load %arg2[%c0_1, %c0_2] : memref<1024x128xbf16, #tpu.memory_space<vmem>>, vector<1024x128xbf16>
    %cst = arith.constant dense<0.000000e+00> : vector<8x128xf32>
    %2 = tpu.matmul %0, %1, %cst {dimension_numbers = #tpu.dot_dimension_numbers<[1], [0], [0], [1], [0, 0, 1, 1], [], []>} : vector<8x1024xbf16>, vector<1024x128xbf16>, vector<8x128xf32> -> vector<8x128xf32>
    %c0_3 = arith.constant 0 : index
    %c0_4 = arith.constant 0 : index
    %3 = vector.load %arg3[%c0_3, %c0_4] : memref<8x128xf32, #tpu.memory_space<vmem>>, vector<8x128xf32>
    tpu.vector_store %arg3[%c0_3, %c0_4], %2 {strides = array<i32>} : memref<8x128xf32, #tpu.memory_space<vmem>>, vector<8x128xf32>,
    return
  }
  func.func @transform_0(%arg0: i32) -> (i32, i32) {
    %c0_i32 = arith.constant 0 : i32
    %c0_i32_0 = arith.constant 0 : i32
    return %arg0, %c0_i32 : i32, i32
  }
  func.func @transform_1(%arg0: i32) -> (i32, i32) {
    %c0_i32 = arith.constant 0 : i32
    %c0_i32_0 = arith.constant 0 : i32
    %c0_i32_1 = arith.constant 0 : i32
    return %c0_i32, %c0_i32_0 : i32, i32
  }
  func.func @transform_2(%arg0: i32) -> (i32, i32) {
    %c0_i32 = arith.constant 0 : i32
    %c0_i32_0 = arith.constant 0 : i32
    return %arg0, %c0_i32 : i32, i32
  }
}

</mosaic_0001>

<llo_original>
// kernel: image_discriminator64_forward.10
$region0: #{image_discriminator64_forward.10}
  #allocation0 [shape = 'u32[]', space=smem, size = 0x4, offset = 0x4, fixed_abs, tag = 'smem constant byte address 0x4 - core index']
  #allocation1 [shape = 'u32[72,128]{1,0:T(1,128)}', space=vmem, size = 0x9000, scoped, tag = 'internal scratch']
  %s0 = inlined_call_operand.vmem [shape: bf16[512,128], index: 0, kind: input, shape index: {}]
  %s1 = inlined_call_operand.vmem [shape: f32[1,128], index: 1, kind: input, shape index: {}]
  %s2 = inlined_call_operand.vmem [shape: f32[1,128], index: 2, kind: input, shape index: {}]
  %s3 = inlined_call_operand.vmem [shape: bf16[512,128], index: 3, kind: output, shape index: {}]
  %s4 = sld [smem:[#allocation0]]
  $region45: #{image_discriminator64_forward.10} parent=0
    _
  %s6 = ssub.s32 1, %s4
  %s7 = scalar_select 0, %s6, %s4
  loop: start=0, step=1, limit=4
  $region2: #{image_discriminator64_forward.10} parent=0 // loop_pre_header
    _
  $region3: #{image_discriminator64_forward.10} parent=0 // loop_header
    %s9 = sphi 0, %s13
    %p10 = scmp.ge.s32.totalorder %s9, 4
    %s19 = sphi 0, %s21
    %s22 = sphi 0, %s19
    %s23 = sphi 0, %s22
    %s39 = sphi 0, %s23
    %s43 = sphi 0, %s43
    %s45 = sphi 0, %s43
    %s46 = sphi 0, %s45
    %s60 = sphi 0, %s46
    %s64 = sphi 0, %s64
    %s66 = sphi 0, %s64
    %s67 = sphi 0, %s66
    %s81 = sphi 0, %s67
    %s87 = sphi 0, %s89
    %s90 = sphi 0, %s87
    %s91 = sphi 0, %s90
    %s107 = sphi 0, %s91
  $region4: #{image_discriminator64_forward.10} parent=0 // loop_header_branch
    %12 = sbr.rel (%p10) target = $region8
  $region5: #{image_discriminator64_forward.10} parent=0 // loop_body
    %s14 = ssub.s32 %s9, 1
    %s15 = ssub.s32 %s9, 2
    %s16 = sadd.s32 %s9, 1
    %s17 = ssub.s32 %s9, %s16
    %p18 = scmp.eq.s32.totalorder %s17, 0
    %s20 = sadd.s32 %s19, 1
    %s21 = scalar_select %p18, %s19, %s20
    %p24 = pneg %p18
    %p25 = scmp.eq.s32.totalorder %s9, 1
    %p26 = por %p24, %p25
    %p27 = scmp.ne.s32.totalorder %s19, %s22
    %p28 = scmp.eq.s32.totalorder %s9, 0
    %p29 = por %p27, %p28
    %p30 = scmp.ne.s32.totalorder %s19, %s22
    %p31 = scmp.eq.s32.totalorder %s14, 1
    %p32 = por %p30, %p31
    %p33 = scmp.ne.s32.totalorder %s22, %s23
    %p34 = scmp.eq.s32.totalorder %s14, 0
    %p35 = por %p33, %p34
    %p36 = scmp.ne.s32.totalorder %s22, %s23
    %p37 = scmp.eq.s32.totalorder %s15, 1
    %p38 = por %p36, %p37
    %p40 = scmp.ne.s32.totalorder %s23, %s39
    %p41 = scmp.eq.s32.totalorder %s15, 0
    %p42 = por %p40, %p41
    %s44 = sadd.s32 %s43, 1
    %p47 = scmp.eq.s32.totalorder %s9, 1
    %p48 = scmp.ne.s32.totalorder %s43, %s45
    %p49 = scmp.eq.s32.totalorder %s9, 0
    %p50 = por %p48, %p49
    %p51 = scmp.ne.s32.totalorder %s43, %s45
    %p52 = scmp.eq.s32.totalorder %s14, 1
    %p53 = por %p51, %p52
    %p54 = scmp.ne.s32.totalorder %s45, %s46
    %p55 = scmp.eq.s32.totalorder %s14, 0
    %p56 = por %p54, %p55
    %p57 = scmp.ne.s32.totalorder %s45, %s46
    %p58 = scmp.eq.s32.totalorder %s15, 1
    %p59 = por %p57, %p58
    %p61 = scmp.ne.s32.totalorder %s46, %s60
    %p62 = scmp.eq.s32.totalorder %s15, 0
    %p63 = por %p61, %p62
    %s65 = sadd.s32 %s64, 1
    %p68 = scmp.eq.s32.totalorder %s9, 1
    %p69 = scmp.ne.s32.totalorder %s64, %s66
    %p70 = scmp.eq.s32.totalorder %s9, 0
    %p71 = por %p69, %p70
    %p72 = scmp.ne.s32.totalorder %s64, %s66
    %p73 = scmp.eq.s32.totalorder %s14, 1
    %p74 = por %p72, %p73
    %p75 = scmp.ne.s32.totalorder %s66, %s67
    %p76 = scmp.eq.s32.totalorder %s14, 0
    %p77 = por %p75, %p76
    %p78 = scmp.ne.s32.totalorder %s66, %s67
    %p79 = scmp.eq.s32.totalorder %s15, 1
    %p80 = por %p78, %p79
    %p82 = scmp.ne.s32.totalorder %s67, %s81
    %p83 = scmp.eq.s32.totalorder %s15, 0
    %p84 = por %p82, %p83
    %s85 = ssub.s32 %s9, %s16
    %p86 = scmp.eq.s32.totalorder %s85, 0
    %s88 = sadd.s32 %s87, 1
    %s89 = scalar_select %p86, %s87, %s88
    %p92 = pneg %p86
    %p93 = scmp.eq.s32.totalorder %s9, 1
    %p94 = por %p92, %p93
    %p95 = scmp.ne.s32.totalorder %s87, %s90
    %p96 = scmp.eq.s32.totalorder %s9, 0
    %p97 = por %p95, %p96
    %p98 = scmp.ne.s32.totalorder %s87, %s90
    %p99 = scmp.eq.s32.totalorder %s14, 1
    %p100 = por %p98, %p99
    %p101 = scmp.ne.s32.totalorder %s90, %s91
    %p102 = scmp.eq.s32.totalorder %s14, 0
    %p103 = por %p101, %p102
    %p104 = scmp.ne.s32.totalorder %s90, %s91
    %p105 = scmp.eq.s32.totalorder %s15, 1
    %p106 = por %p104, %p105
    %p108 = scmp.ne.s32.totalorder %s91, %s107
    %p109 = scmp.eq.s32.totalorder %s15, 0
    %p110 = por %p108, %p109
    %p111 = scmp.le.s32.totalorder 1, %s9
    %p112 = scmp.lt.s32.totalorder %s9, 3
    %p113 = pnand %p111, %p112
    %p114 = pneg %p113
    // Predicated region
    $region9: #{image_discriminator64_forward.10} parent=5 // pred_check
      _
    $region10: #{image_discriminator64_forward.10} parent=5 // pred_check_branch
      %116 = sbr.rel (%p113) target = $region12
    $region11: #{image_discriminator64_forward.10} parent=5 // pred_region
      %s117 = ssub.s32 %s9, 1
      // Predicated region
      $region13: #{image_discriminator64_forward.10} parent=11 // pred_check
        %p118 = pneg %p56
      $region14: #{image_discriminator64_forward.10} parent=11 // pred_check_branch
        %120 = sbr.rel (%p118) target = $region16
      $region15: #{image_discriminator64_forward.10} parent=11 // pred_region
        _
      $region16: #{image_discriminator64_forward.10} parent=11 // pred_fallthru
        _
      // Predicated region
      $region17: #{image_discriminator64_forward.10} parent=11 // pred_check
        %p121 = pneg %p77
      $region18: #{image_discriminator64_forward.10} parent=11 // pred_check_branch
        %123 = sbr.rel (%p121) target = $region20
      $region19: #{image_discriminator64_forward.10} parent=11 // pred_region
        _
      $region20: #{image_discriminator64_forward.10} parent=11 // pred_fallthru
        _
    $region12: #{image_discriminator64_forward.10} parent=5 // pred_fallthru
      _
    %p124 = scmp.lt.s32.totalorder %s9, 2
    // Predicated region
    $region21: #{image_discriminator64_forward.10} parent=5 // pred_check
      %p125 = pneg %p124
    $region22: #{image_discriminator64_forward.10} parent=5 // pred_check_branch
      %127 = sbr.rel (%p125) target = $region24
    $region23: #{image_discriminator64_forward.10} parent=5 // pred_region
      // Predicated region
      $region25: #{image_discriminator64_forward.10} parent=23 // pred_check
        %p128 = pneg %p29
      $region26: #{image_discriminator64_forward.10} parent=23 // pred_check_branch
        %130 = sbr.rel (%p128) target = $region28
      $region27: #{image_discriminator64_forward.10} parent=23 // pred_region
        %s131 = smul.u32 32, %s9
        %p132 = scmp.lt.s32.totalorder %s131, 63
        %s133 = scalar_select %p132, %s131, 63
        %s134 = smul.addr %s133, 4
        %s135 = scalar_lea.vmem %s0, %s134
        %s136 = smul.u32 32, %s9
      $region28: #{image_discriminator64_forward.10} parent=23 // pred_fallthru
        _
    $region24: #{image_discriminator64_forward.10} parent=5 // pred_fallthru
      _
    %p137 = scmp.le.s32.totalorder 1, %s9
    %p138 = scmp.lt.s32.totalorder %s9, 3
    %p139 = pnand %p137, %p138
    %p140 = pneg %p139
    // Predicated region
    $region29: #{image_discriminator64_forward.10} parent=5 // pred_check
      _
    $region30: #{image_discriminator64_forward.10} parent=5 // pred_check_branch
      %142 = sbr.rel (%p139) target = $region32
    $region31: #{image_discriminator64_forward.10} parent=5 // pred_region
      %s143 = ssub.s32 %s9, 1
      %s144 = smul.u32 32, %s14
      %p145 = scmp.lt.s32.totalorder %s144, 63
      %s146 = scalar_select %p145, %s144, 63
      %s147 = smul.addr %s146, 4
      %s148 = scalar_lea.vmem %s0, %s147
      %p149 = pneg %p35
      %p150 = pneg %p32
      %p151 = pneg %p56
      %p152 = pneg %p53
      %p153 = pneg %p77
      %p154 = pneg %p74
      %p155 = pneg %p103
      %p156 = pneg %p100
      %s157 = smul.u32 32, %s14
      %p158 = scmp.lt.s32.totalorder %s157, 63
      %s159 = scalar_select %p158, %s157, 63
      %s160 = smul.addr %s159, 4
      %s161 = scalar_lea.vmem %s3, %s160
      %s162 = smul.u32 32, %s14
      %p163 = scmp.lt.s32.totalorder %s162, 63
      %s164 = scalar_select %p163, %s162, 63
      %s165 = smul.addr %s164, 4
      %s166 = scalar_lea.vmem %s0, %s165
      %s167 = smul.u32 32, %s14
      %s168 = smul.u32 32, %s14
      %p169 = scmp.lt.s32.totalorder %s168, 63
      %s170 = scalar_select %p169, %s168, 63
      %s171 = smul.addr %s170, 4
      %s172 = scalar_lea.vmem %s3, %s171
      %s173 = smul.u32 32, %s14
      %v174 = vld [vmem:[%s166] sm:$0xf]
      %v175 = vld [vmem:[%s166 + $0x4] sm:$0xf]
      %v176 = vld [vmem:[%s166 + $0x8] sm:$0xf]
      %v177 = vld [vmem:[%s166 + $0xc] sm:$0xf]
      %v178 = vld [vmem:[%s166 + $0x10] sm:$0xf]
      %v179 = vld [vmem:[%s166 + $0x14] sm:$0xf]
      %v180 = vld [vmem:[%s166 + $0x18] sm:$0xf]
      %v181 = vld [vmem:[%s166 + $0x1c] sm:$0xf]
      %v182 = vld [vmem:[%s166 + $0x20] sm:$0xf]
      %v183 = vld [vmem:[%s166 + $0x24] sm:$0xf]
      %v184 = vld [vmem:[%s166 + $0x28] sm:$0xf]
      %v185 = vld [vmem:[%s166 + $0x2c] sm:$0xf]
      %v186 = vld [vmem:[%s166 + $0x30] sm:$0xf]
      %v187 = vld [vmem:[%s166 + $0x34] sm:$0xf]
      %v188 = vld [vmem:[%s166 + $0x38] sm:$0xf]
      %v189 = vld [vmem:[%s166 + $0x3c] sm:$0xf]
      %v190 = vld [vmem:[%s166 + $0x40] sm:$0xf]
      %v191 = vld [vmem:[%s166 + $0x44] sm:$0xf]
      %v192 = vld [vmem:[%s166 + $0x48] sm:$0xf]
      %v193 = vld [vmem:[%s166 + $0x4c] sm:$0xf]
      %v194 = vld [vmem:[%s166 + $0x50] sm:$0xf]
      %v195 = vld [vmem:[%s166 + $0x54] sm:$0xf]
      %v196 = vld [vmem:[%s166 + $0x58] sm:$0xf]
      %v197 = vld [vmem:[%s166 + $0x5c] sm:$0xf]
      %v198 = vld [vmem:[%s166 + $0x60] sm:$0xf]
      %v199 = vld [vmem:[%s166 + $0x64] sm:$0xf]
      %v200 = vld [vmem:[%s166 + $0x68] sm:$0xf]
      %v201 = vld [vmem:[%s166 + $0x6c] sm:$0xf]
      %v202 = vld [vmem:[%s166 + $0x70] sm:$0xf]
      %v203 = vld [vmem:[%s166 + $0x74] sm:$0xf]
      %v204 = vld [vmem:[%s166 + $0x78] sm:$0xf]
      %v205 = vld [vmem:[%s166 + $0x7c] sm:$0xf]
      %v206 = vunpack.c.l.bf16 %v174
      %v207 = vunpack.c.l.bf16 %v175
      %v208 = vunpack.c.l.bf16 %v176
      %v209 = vunpack.c.l.bf16 %v177
      %v210 = vunpack.c.l.bf16 %v178
      %v211 = vunpack.c.l.bf16 %v179
      %v212 = vunpack.c.l.bf16 %v180
      %v213 = vunpack.c.l.bf16 %v181
      %v214 = vunpack.c.l.bf16 %v182
      %v215 = vunpack.c.l.bf16 %v183
      %v216 = vunpack.c.l.bf16 %v184
      %v217 = vunpack.c.l.bf16 %v185
      %v218 = vunpack.c.l.bf16 %v186
      %v219 = vunpack.c.l.bf16 %v187
      %v220 = vunpack.c.l.bf16 %v188
      %v221 = vunpack.c.l.bf16 %v189
      %v222 = vunpack.c.l.bf16 %v190
      %v223 = vunpack.c.l.bf16 %v191
      %v224 = vunpack.c.l.bf16 %v192
      %v225 = vunpack.c.l.bf16 %v193
      %v226 = vunpack.c.l.bf16 %v194
      %v227 = vunpack.c.l.bf16 %v195
      %v228 = vunpack.c.l.bf16 %v196
      %v229 = vunpack.c.l.bf16 %v197
      %v230 = vunpack.c.l.bf16 %v198
      %v231 = vunpack.c.l.bf16 %v199
      %v232 = vunpack.c.l.bf16 %v200
      %v233 = vunpack.c.l.bf16 %v201
      %v234 = vunpack.c.l.bf16 %v202
      %v235 = vunpack.c.l.bf16 %v203
      %v236 = vunpack.c.l.bf16 %v204
      %v237 = vunpack.c.l.bf16 %v205
      %v238 = vld [vmem:[%s1] sm:$0x1]
      %v240 = vperm.slane %v238, 0
      %v242 = vmul.f32 %v206, %v240
      %v243 = vmul.f32 %v207, %v240
      %v244 = vmul.f32 %v208, %v240
      %v245 = vmul.f32 %v209, %v240
      %v246 = vmul.f32 %v210, %v240
      %v247 = vmul.f32 %v211, %v240
      %v248 = vmul.f32 %v212, %v240
      %v249 = vmul.f32 %v213, %v240
      %v250 = vmul.f32 %v214, %v240
      %v251 = vmul.f32 %v215, %v240
      %v252 = vmul.f32 %v216, %v240
      %v253 = vmul.f32 %v217, %v240
      %v254 = vmul.f32 %v218, %v240
      %v255 = vmul.f32 %v219, %v240
      %v256 = vmul.f32 %v220, %v240
      %v257 = vmul.f32 %v221, %v240
      %v258 = vmul.f32 %v222, %v240
      %v259 = vmul.f32 %v223, %v240
      %v260 = vmul.f32 %v224, %v240
      %v261 = vmul.f32 %v225, %v240
      %v262 = vmul.f32 %v226, %v240
      %v263 = vmul.f32 %v227, %v240
      %v264 = vmul.f32 %v228, %v240
      %v265 = vmul.f32 %v229, %v240
      %v266 = vmul.f32 %v230, %v240
      %v267 = vmul.f32 %v231, %v240
      %v268 = vmul.f32 %v232, %v240
      %v269 = vmul.f32 %v233, %v240
      %v270 = vmul.f32 %v234, %v240
      %v271 = vmul.f32 %v235, %v240
      %v272 = vmul.f32 %v236, %v240
      %v273 = vmul.f32 %v237, %v240
      %v274 = vld [vmem:[%s2] sm:$0x1]
      %v276 = vperm.slane %v274, 0
      %v278 = vadd.f32 %v242, %v276
      %v279 = vadd.f32 %v243, %v276
      %v280 = vadd.f32 %v244, %v276
      %v281 = vadd.f32 %v245, %v276
      %v282 = vadd.f32 %v246, %v276
      %v283 = vadd.f32 %v247, %v276
      %v284 = vadd.f32 %v248, %v276
      %v285 = vadd.f32 %v249, %v276
      %v286 = vadd.f32 %v250, %v276
      %v287 = vadd.f32 %v251, %v276
      %v288 = vadd.f32 %v252, %v276
      %v289 = vadd.f32 %v253, %v276
      %v290 = vadd.f32 %v254, %v276
      %v291 = vadd.f32 %v255, %v276
      %v292 = vadd.f32 %v256, %v276
      %v293 = vadd.f32 %v257, %v276
      %v294 = vadd.f32 %v258, %v276
      %v295 = vadd.f32 %v259, %v276
      %v296 = vadd.f32 %v260, %v276
      %v297 = vadd.f32 %v261, %v276
      %v298 = vadd.f32 %v262, %v276
      %v299 = vadd.f32 %v263, %v276
      %v300 = vadd.f32 %v264, %v276
      %v301 = vadd.f32 %v265, %v276
      %v302 = vadd.f32 %v266, %v276
      %v303 = vadd.f32 %v267, %v276
      %v304 = vadd.f32 %v268, %v276
      %v305 = vadd.f32 %v269, %v276
      %v306 = vadd.f32 %v270, %v276
      %v307 = vadd.f32 %v271, %v276
      %v308 = vadd.f32 %v272, %v276
      %v309 = vadd.f32 %v273, %v276
      %vm310 = vcmp.ge.f32.partialorder %v278, 0.0
      %vm311 = vcmp.ge.f32.partialorder %v279, 0.0
      %vm312 = vcmp.ge.f32.partialorder %v280, 0.0
      %vm313 = vcmp.ge.f32.partialorder %v281, 0.0
      %vm314 = vcmp.ge.f32.partialorder %v282, 0.0
      %vm315 = vcmp.ge.f32.partialorder %v283, 0.0
      %vm316 = vcmp.ge.f32.partialorder %v284, 0.0
      %vm317 = vcmp.ge.f32.partialorder %v285, 0.0
      %vm318 = vcmp.ge.f32.partialorder %v286, 0.0
      %vm319 = vcmp.ge.f32.partialorder %v287, 0.0
      %vm320 = vcmp.ge.f32.partialorder %v288, 0.0
      %vm321 = vcmp.ge.f32.partialorder %v289, 0.0
      %vm322 = vcmp.ge.f32.partialorder %v290, 0.0
      %vm323 = vcmp.ge.f32.partialorder %v291, 0.0
      %vm324 = vcmp.ge.f32.partialorder %v292, 0.0
      %vm325 = vcmp.ge.f32.partialorder %v293, 0.0
      %vm326 = vcmp.ge.f32.partialorder %v294, 0.0
      %vm327 = vcmp.ge.f32.partialorder %v295, 0.0
      %vm328 = vcmp.ge.f32.partialorder %v296, 0.0
      %vm329 = vcmp.ge.f32.partialorder %v297, 0.0
      %vm330 = vcmp.ge.f32.partialorder %v298, 0.0
      %vm331 = vcmp.ge.f32.partialorder %v299, 0.0
      %vm332 = vcmp.ge.f32.partialorder %v300, 0.0
      %vm333 = vcmp.ge.f32.partialorder %v301, 0.0
      %vm334 = vcmp.ge.f32.partialorder %v302, 0.0
      %vm335 = vcmp.ge.f32.partialorder %v303, 0.0
      %vm336 = vcmp.ge.f32.partialorder %v304, 0.0
      %vm337 = vcmp.ge.f32.partialorder %v305, 0.0
      %vm338 = vcmp.ge.f32.partialorder %v306, 0.0
      %vm339 = vcmp.ge.f32.partialorder %v307, 0.0
      %vm340 = vcmp.ge.f32.partialorder %v308, 0.0
      %vm341 = vcmp.ge.f32.partialorder %v309, 0.0
      %v342 = vmul.f32 %v278, 0.2
      %v343 = vmul.f32 %v279, 0.2
      %v344 = vmul.f32 %v280, 0.2
      %v345 = vmul.f32 %v281, 0.2
      %v346 = vmul.f32 %v282, 0.2
      %v347 = vmul.f32 %v283, 0.2
      %v348 = vmul.f32 %v284, 0.2
      %v349 = vmul.f32 %v285, 0.2
      %v350 = vmul.f32 %v286, 0.2
      %v351 = vmul.f32 %v287, 0.2
      %v352 = vmul.f32 %v288, 0.2
      %v353 = vmul.f32 %v289, 0.2
      %v354 = vmul.f32 %v290, 0.2
      %v355 = vmul.f32 %v291, 0.2
      %v356 = vmul.f32 %v292, 0.2
      %v357 = vmul.f32 %v293, 0.2
      %v358 = vmul.f32 %v294, 0.2
      %v359 = vmul.f32 %v295, 0.2
      %v360 = vmul.f32 %v296, 0.2
      %v361 = vmul.f32 %v297, 0.2
      %v362 = vmul.f32 %v298, 0.2
      %v363 = vmul.f32 %v299, 0.2
      %v364 = vmul.f32 %v300, 0.2
      %v365 = vmul.f32 %v301, 0.2
      %v366 = vmul.f32 %v302, 0.2
      %v367 = vmul.f32 %v303, 0.2
      %v368 = vmul.f32 %v304, 0.2
      %v369 = vmul.f32 %v305, 0.2
      %v370 = vmul.f32 %v306, 0.2
      %v371 = vmul.f32 %v307, 0.2
      %v372 = vmul.f32 %v308, 0.2
      %v373 = vmul.f32 %v309, 0.2
      %v374 = vsel %vm310, %v278, %v342
      %v375 = vsel %vm311, %v279, %v343
      %v376 = vsel %vm312, %v280, %v344
      %v377 = vsel %vm313, %v281, %v345
      %v378 = vsel %vm314, %v282, %v346
      %v379 = vsel %vm315, %v283, %v347
      %v380 = vsel %vm316, %v284, %v348
      %v381 = vsel %vm317, %v285, %v349
      %v382 = vsel %vm318, %v286, %v350
      %v383 = vsel %vm319, %v287, %v351
      %v384 = vsel %vm320, %v288, %v352
      %v385 = vsel %vm321, %v289, %v353
      %v386 = vsel %vm322, %v290, %v354
      %v387 = vsel %vm323, %v291, %v355
      %v388 = vsel %vm324, %v292, %v356
      %v389 = vsel %vm325, %v293, %v357
      %v390 = vsel %vm326, %v294, %v358
      %v391 = vsel %vm327, %v295, %v359
      %v392 = vsel %vm328, %v296, %v360
      %v393 = vsel %vm329, %v297, %v361
      %v394 = vsel %vm330, %v298, %v362
      %v395 = vsel %vm331, %v299, %v363
      %v396 = vsel %vm332, %v300, %v364
      %v397 = vsel %vm333, %v301, %v365
      %v398 = vsel %vm334, %v302, %v366
      %v399 = vsel %vm335, %v303, %v367
      %v400 = vsel %vm336, %v304, %v368
      %v401 = vsel %vm337, %v305, %v369
      %v402 = vsel %vm338, %v306, %v370
      %v403 = vsel %vm339, %v307, %v371
      %v404 = vsel %vm340, %v308, %v372
      %v405 = vsel %vm341, %v309, %v373
      %v406 = vpack.c.bf16 %v374, %v374
      %v407 = vpack.c.bf16 %v375, %v375
      %v408 = vpack.c.bf16 %v376, %v376
      %v409 = vpack.c.bf16 %v377, %v377
      %v410 = vpack.c.bf16 %v378, %v378
      %v411 = vpack.c.bf16 %v379, %v379
      %v412 = vpack.c.bf16 %v380, %v380
      %v413 = vpack.c.bf16 %v381, %v381
      %v414 = vpack.c.bf16 %v382, %v382
      %v415 = vpack.c.bf16 %v383, %v383
      %v416 = vpack.c.bf16 %v384, %v384
      %v417 = vpack.c.bf16 %v385, %v385
      %v418 = vpack.c.bf16 %v386, %v386
      %v419 = vpack.c.bf16 %v387, %v387
      %v420 = vpack.c.bf16 %v388, %v388
      %v421 = vpack.c.bf16 %v389, %v389
      %v422 = vpack.c.bf16 %v390, %v390
      %v423 = vpack.c.bf16 %v391, %v391
      %v424 = vpack.c.bf16 %v392, %v392
      %v425 = vpack.c.bf16 %v393, %v393
      %v426 = vpack.c.bf16 %v394, %v394
      %v427 = vpack.c.bf16 %v395, %v395
      %v428 = vpack.c.bf16 %v396, %v396
      %v429 = vpack.c.bf16 %v397, %v397
      %v430 = vpack.c.bf16 %v398, %v398
      %v431 = vpack.c.bf16 %v399, %v399
      %v432 = vpack.c.bf16 %v400, %v400
      %v433 = vpack.c.bf16 %v401, %v401
      %v434 = vpack.c.bf16 %v402, %v402
      %v435 = vpack.c.bf16 %v403, %v403
      %v436 = vpack.c.bf16 %v404, %v404
      %v437 = vpack.c.bf16 %v405, %v405
      %438 = vst [vmem:[%s172] sm:$0xf] %v406
      %439 = vst [vmem:[%s172 + $0x4] sm:$0xf] %v407
      %440 = vst [vmem:[%s172 + $0x8] sm:$0xf] %v408
      %441 = vst [vmem:[%s172 + $0xc] sm:$0xf] %v409
      %442 = vst [vmem:[%s172 + $0x10] sm:$0xf] %v410
      %443 = vst [vmem:[%s172 + $0x14] sm:$0xf] %v411
      %444 = vst [vmem:[%s172 + $0x18] sm:$0xf] %v412
      %445 = vst [vmem:[%s172 + $0x1c] sm:$0xf] %v413
      %446 = vst [vmem:[%s172 + $0x20] sm:$0xf] %v414
      %447 = vst [vmem:[%s172 + $0x24] sm:$0xf] %v415
      %448 = vst [vmem:[%s172 + $0x28] sm:$0xf] %v416
      %449 = vst [vmem:[%s172 + $0x2c] sm:$0xf] %v417
      %450 = vst [vmem:[%s172 + $0x30] sm:$0xf] %v418
      %451 = vst [vmem:[%s172 + $0x34] sm:$0xf] %v419
      %452 = vst [vmem:[%s172 + $0x38] sm:$0xf] %v420
      %453 = vst [vmem:[%s172 + $0x3c] sm:$0xf] %v421
      %454 = vst [vmem:[%s172 + $0x40] sm:$0xf] %v422
      %455 = vst [vmem:[%s172 + $0x44] sm:$0xf] %v423
      %456 = vst [vmem:[%s172 + $0x48] sm:$0xf] %v424
      %457 = vst [vmem:[%s172 + $0x4c] sm:$0xf] %v425
      %458 = vst [vmem:[%s172 + $0x50] sm:$0xf] %v426
      %459 = vst [vmem:[%s172 + $0x54] sm:$0xf] %v427
      %460 = vst [vmem:[%s172 + $0x58] sm:$0xf] %v428
      %461 = vst [vmem:[%s172 + $0x5c] sm:$0xf] %v429
      %462 = vst [vmem:[%s172 + $0x60] sm:$0xf] %v430
      %463 = vst [vmem:[%s172 + $0x64] sm:$0xf] %v431
      %464 = vst [vmem:[%s172 + $0x68] sm:$0xf] %v432
      %465 = vst [vmem:[%s172 + $0x6c] sm:$0xf] %v433
      %466 = vst [vmem:[%s172 + $0x70] sm:$0xf] %v434
      %467 = vst [vmem:[%s172 + $0x74] sm:$0xf] %v435
      %468 = vst [vmem:[%s172 + $0x78] sm:$0xf] %v436
      %469 = vst [vmem:[%s172 + $0x7c] sm:$0xf] %v437
      %s470 = smul.u32 32, %s14
      %p471 = scmp.lt.s32.totalorder %s470, 63
      %s472 = scalar_select %p471, %s470, 63
      %s473 = smul.addr %s472, 4
      %s474 = scalar_lea.vmem %s3, %s473
      // Predicated region
      $region33: #{image_discriminator64_forward.10} parent=31 // pred_check
        %p475 = pneg %p100
      $region34: #{image_discriminator64_forward.10} parent=31 // pred_check_branch
        %477 = sbr.rel (%p475) target = $region36
      $region35: #{image_discriminator64_forward.10} parent=31 // pred_region
        %s478 = smul.u32 32, %s14
      $region36: #{image_discriminator64_forward.10} parent=31 // pred_fallthru
        _
    $region32: #{image_discriminator64_forward.10} parent=5 // pred_fallthru
      _
    %p479 = scmp.le.s32.totalorder 2, %s9
    // Predicated region
    $region37: #{image_discriminator64_forward.10} parent=5 // pred_check
      %p480 = pneg %p479
    $region38: #{image_discriminator64_forward.10} parent=5 // pred_check_branch
      %482 = sbr.rel (%p480) target = $region40
    $region39: #{image_discriminator64_forward.10} parent=5 // pred_region
      %s483 = ssub.s32 %s9, 2
      // Predicated region
      $region41: #{image_discriminator64_forward.10} parent=39 // pred_check
        %p484 = pneg %p106
      $region42: #{image_discriminator64_forward.10} parent=39 // pred_check_branch
        %486 = sbr.rel (%p484) target = $region44
      $region43: #{image_discriminator64_forward.10} parent=39 // pred_region
        %s487 = smul.u32 32, %s15
        %p488 = scmp.lt.s32.totalorder %s487, 63
        %s489 = scalar_select %p488, %s487, 63
        %s490 = smul.addr %s489, 4
        %s491 = scalar_lea.vmem %s3, %s490
      $region44: #{image_discriminator64_forward.10} parent=39 // pred_fallthru
        _
    $region40: #{image_discriminator64_forward.10} parent=5 // pred_fallthru
      _
  $region6: #{image_discriminator64_forward.10} parent=0 // loop_footer
    %s13 = sadd.s32 1, %s9
  $region7: #{image_discriminator64_forward.10} parent=0 // loop_footer_branch
    %8 = sbr.rel target = $region3
  $region8: #{image_discriminator64_forward.10} parent=0 // loop_exit
    _

// kernel: image_discriminator64_forward.9
$region0: #{image_discriminator64_forward.9}
  #allocation0 [shape = 'u32[]', space=smem, size = 0x4, offset = 0x4, fixed_abs, tag = 'smem constant byte address 0x4 - core index']
  #allocation1 [shape = 'u32[72,128]{1,0:T(1,128)}', space=vmem, size = 0x9000, scoped, tag = 'internal scratch']
  %s0 = inlined_call_operand.vmem [shape: bf16[2,17,17,32], index: 0, kind: input, shape index: {}]
  %s1 = inlined_call_operand.vmem [shape: bf16[2,2,32,128], index: 1, kind: input, shape index: {}]
  %s2 = inlined_call_operand.vmem [shape: bf16[512,128], index: 2, kind: output, shape index: {0}]
  %s3 = inlined_call_operand.vmem [shape: f32[2,8,128], index: 3, kind: output, shape index: {1}]
  %4 = xla_tuple %s2, %s3
  %s5 = sld [smem:[#allocation0]]
  $region49: #{image_discriminator64_forward.9} parent=0
    _
  %s7 = ssub.s32 1, %s5
  %s8 = scalar_select 0, %s7, %s5
  loop: start=0, step=1, limit=4
  $region2: #{image_discriminator64_forward.9} parent=0 // loop_pre_header
    _
  $region3: #{image_discriminator64_forward.9} parent=0 // loop_header
    %s10 = sphi 0, %s14
    %p11 = scmp.ge.s32.totalorder %s10, 4
    %s20 = sphi 0, %s22
    %s23 = sphi 0, %s20
    %s24 = sphi 0, %s23
    %s40 = sphi 0, %s24
    %s44 = sphi 0, %s44
    %s46 = sphi 0, %s44
    %s47 = sphi 0, %s46
    %s61 = sphi 0, %s47
    %s67 = sphi 0, %s69
    %s70 = sphi 0, %s67
    %s71 = sphi 0, %s70
    %s87 = sphi 0, %s71
    %s93 = sphi 0, %s95
    %s96 = sphi 0, %s93
    %s97 = sphi 0, %s96
    %s113 = sphi 0, %s97
  $region4: #{image_discriminator64_forward.9} parent=0 // loop_header_branch
    %13 = sbr.rel (%p11) target = $region8
  $region5: #{image_discriminator64_forward.9} parent=0 // loop_body
    %s15 = ssub.s32 %s10, 1
    %s16 = ssub.s32 %s10, 2
    %s17 = sadd.s32 %s10, 1
    %s18 = ssub.s32 %s10, %s17
    %p19 = scmp.eq.s32.totalorder %s18, 0
    %s21 = sadd.s32 %s20, 1
    %s22 = scalar_select %p19, %s20, %s21
    %p25 = pneg %p19
    %p26 = scmp.eq.s32.totalorder %s10, 1
    %p27 = por %p25, %p26
    %p28 = scmp.ne.s32.totalorder %s20, %s23
    %p29 = scmp.eq.s32.totalorder %s10, 0
    %p30 = por %p28, %p29
    %p31 = scmp.ne.s32.totalorder %s20, %s23
    %p32 = scmp.eq.s32.totalorder %s15, 1
    %p33 = por %p31, %p32
    %p34 = scmp.ne.s32.totalorder %s23, %s24
    %p35 = scmp.eq.s32.totalorder %s15, 0
    %p36 = por %p34, %p35
    %p37 = scmp.ne.s32.totalorder %s23, %s24
    %p38 = scmp.eq.s32.totalorder %s16, 1
    %p39 = por %p37, %p38
    %p41 = scmp.ne.s32.totalorder %s24, %s40
    %p42 = scmp.eq.s32.totalorder %s16, 0
    %p43 = por %p41, %p42
    %s45 = sadd.s32 %s44, 1
    %p48 = scmp.eq.s32.totalorder %s10, 1
    %p49 = scmp.ne.s32.totalorder %s44, %s46
    %p50 = scmp.eq.s32.totalorder %s10, 0
    %p51 = por %p49, %p50
    %p52 = scmp.ne.s32.totalorder %s44, %s46
    %p53 = scmp.eq.s32.totalorder %s15, 1
    %p54 = por %p52, %p53
    %p55 = scmp.ne.s32.totalorder %s46, %s47
    %p56 = scmp.eq.s32.totalorder %s15, 0
    %p57 = por %p55, %p56
    %p58 = scmp.ne.s32.totalorder %s46, %s47
    %p59 = scmp.eq.s32.totalorder %s16, 1
    %p60 = por %p58, %p59
    %p62 = scmp.ne.s32.totalorder %s47, %s61
    %p63 = scmp.eq.s32.totalorder %s16, 0
    %p64 = por %p62, %p63
    %s65 = ssub.s32 %s10, %s17
    %p66 = scmp.eq.s32.totalorder %s65, 0
    %s68 = sadd.s32 %s67, 1
    %s69 = scalar_select %p66, %s67, %s68
    %p72 = pneg %p66
    %p73 = scmp.eq.s32.totalorder %s10, 1
    %p74 = por %p72, %p73
    %p75 = scmp.ne.s32.totalorder %s67, %s70
    %p76 = scmp.eq.s32.totalorder %s10, 0
    %p77 = por %p75, %p76
    %p78 = scmp.ne.s32.totalorder %s67, %s70
    %p79 = scmp.eq.s32.totalorder %s15, 1
    %p80 = por %p78, %p79
    %p81 = scmp.ne.s32.totalorder %s70, %s71
    %p82 = scmp.eq.s32.totalorder %s15, 0
    %p83 = por %p81, %p82
    %p84 = scmp.ne.s32.totalorder %s70, %s71
    %p85 = scmp.eq.s32.totalorder %s16, 1
    %p86 = por %p84, %p85
    %p88 = scmp.ne.s32.totalorder %s71, %s87
    %p89 = scmp.eq.s32.totalorder %s16, 0
    %p90 = por %p88, %p89
    %s91 = ssub.s32 %s10, %s17
    %p92 = scmp.eq.s32.totalorder %s91, 0
    %s94 = sadd.s32 %s93, 1
    %s95 = scalar_select %p92, %s93, %s94
    %p98 = pneg %p92
    %p99 = scmp.eq.s32.totalorder %s10, 1
    %p100 = por %p98, %p99
    %p101 = scmp.ne.s32.totalorder %s93, %s96
    %p102 = scmp.eq.s32.totalorder %s10, 0
    %p103 = por %p101, %p102
    %p104 = scmp.ne.s32.totalorder %s93, %s96
    %p105 = scmp.eq.s32.totalorder %s15, 1
    %p106 = por %p104, %p105
    %p107 = scmp.ne.s32.totalorder %s96, %s97
    %p108 = scmp.eq.s32.totalorder %s15, 0
    %p109 = por %p107, %p108
    %p110 = scmp.ne.s32.totalorder %s96, %s97
    %p111 = scmp.eq.s32.totalorder %s16, 1
    %p112 = por %p110, %p111
    %p114 = scmp.ne.s32.totalorder %s97, %s113
    %p115 = scmp.eq.s32.totalorder %s16, 0
    %p116 = por %p114, %p115
    %p117 = scmp.le.s32.totalorder 1, %s10
    %p118 = scmp.lt.s32.totalorder %s10, 3
    %p119 = pnand %p117, %p118
    %p120 = pneg %p119
    // Predicated region
    $region9: #{image_discriminator64_forward.9} parent=5 // pred_check
      _
    $region10: #{image_discriminator64_forward.9} parent=5 // pred_check_branch
      %122 = sbr.rel (%p119) target = $region12
    $region11: #{image_discriminator64_forward.9} parent=5 // pred_region
      %s123 = ssub.s32 %s10, 1
      // Predicated region
      $region13: #{image_discriminator64_forward.9} parent=11 // pred_check
        %p124 = pneg %p57
      $region14: #{image_discriminator64_forward.9} parent=11 // pred_check_branch
        %126 = sbr.rel (%p124) target = $region16
      $region15: #{image_discriminator64_forward.9} parent=11 // pred_region
        _
      $region16: #{image_discriminator64_forward.9} parent=11 // pred_fallthru
        _
    $region12: #{image_discriminator64_forward.9} parent=5 // pred_fallthru
      _
    %p127 = scmp.lt.s32.totalorder %s10, 2
    // Predicated region
    $region17: #{image_discriminator64_forward.9} parent=5 // pred_check
      %p128 = pneg %p127
    $region18: #{image_discriminator64_forward.9} parent=5 // pred_check_branch
      %130 = sbr.rel (%p128) target = $region20
    $region19: #{image_discriminator64_forward.9} parent=5 // pred_region
      // Predicated region
      $region21: #{image_discriminator64_forward.9} parent=19 // pred_check
        %p131 = pneg %p30
      $region22: #{image_discriminator64_forward.9} parent=19 // pred_check_branch
        %133 = sbr.rel (%p131) target = $region24
      $region23: #{image_discriminator64_forward.9} parent=19 // pred_region
        %p134 = scmp.lt.s32.totalorder %s10, 1
        %s135 = scalar_select %p134, %s10, 1
        %s136 = smul.addr %s135, 51
        %s137 = smul.addr %s136, 4
        %s138 = scalar_lea.vmem %s0, %s137
      $region24: #{image_discriminator64_forward.9} parent=19 // pred_fallthru
        _
    $region20: #{image_discriminator64_forward.9} parent=5 // pred_fallthru
      _
    %p139 = scmp.le.s32.totalorder 1, %s10
    %p140 = scmp.lt.s32.totalorder %s10, 3
    %p141 = pnand %p139, %p140
    %p142 = pneg %p141
    // Predicated region
    $region25: #{image_discriminator64_forward.9} parent=5 // pred_check
      _
    $region26: #{image_discriminator64_forward.9} parent=5 // pred_check_branch
      %144 = sbr.rel (%p141) target = $region28
    $region27: #{image_discriminator64_forward.9} parent=5 // pred_region
      %s145 = ssub.s32 %s10, 1
      %p146 = scmp.lt.s32.totalorder %s15, 1
      %s147 = scalar_select %p146, %s15, 1
      %s148 = smul.addr %s147, 51
      %s149 = smul.addr %s148, 4
      %s150 = scalar_lea.vmem %s0, %s149
      %p151 = pneg %p36
      %p152 = pneg %p33
      %p153 = pneg %p57
      %p154 = pneg %p54
      %p155 = pneg %p83
      %p156 = pneg %p80
      %s157 = smul.u32 32, %s15
      %p158 = scmp.lt.s32.totalorder %s157, 63
      %s159 = scalar_select %p158, %s157, 63
      %s160 = smul.addr %s159, 4
      %s161 = scalar_lea.vmem %s2, %s160
      %p162 = pneg %p109
      %p163 = pneg %p106
      %p164 = scmp.lt.s32.totalorder %s15, 1
      %s165 = scalar_select %p164, %s15, 1
      %s166 = smul.addr %s165, 8
      %s167 = scalar_lea.vmem %s3, %s166
      %p168 = scmp.lt.s32.totalorder %s15, 1
      %s169 = scalar_select %p168, %s15, 1
      %s170 = smul.addr %s169, 51
      %s171 = smul.addr %s170, 4
      %s172 = scalar_lea.vmem %s0, %s171
      %s173 = smul.u32 32, %s15
      %p174 = scmp.lt.s32.totalorder %s173, 63
      %s175 = scalar_select %p174, %s173, 63
      %s176 = smul.addr %s175, 4
      %s177 = scalar_lea.vmem %s2, %s176
      %s178 = smul.u32 32, %s15
      %p179 = scmp.lt.s32.totalorder %s15, 1
      %s180 = scalar_select %p179, %s15, 1
      %s181 = smul.addr %s180, 8
      %s182 = scalar_lea.vmem %s3, %s181
      %v184 = vld [vmem:[%s172] sm:$0xf]
      %v185 = vld [vmem:[%s172 + $0x4] sm:$0xf]
      %v186 = vld [vmem:[%s172 + $0xc] sm:$0xf]
      %v187 = vld [vmem:[%s172 + $0x10] sm:$0xf]
      %v188 = vld [vmem:[%s172 + $0x18] sm:$0xf]
      %v189 = vld [vmem:[%s172 + $0x1c] sm:$0xf]
      %v190 = vld [vmem:[%s172 + $0x24] sm:$0xf]
      %v191 = vld [vmem:[%s172 + $0x28] sm:$0xf]
      %v192 = vld [vmem:[%s172 + $0x30] sm:$0xf]
      %v193 = vld [vmem:[%s172 + $0x34] sm:$0xf]
      %v194 = vld [vmem:[%s172 + $0x3c] sm:$0xf]
      %v195 = vld [vmem:[%s172 + $0x40] sm:$0xf]
      %v196 = vld [vmem:[%s172 + $0x48] sm:$0xf]
      %v197 = vld [vmem:[%s172 + $0x4c] sm:$0xf]
      %v198 = vld [vmem:[%s172 + $0x54] sm:$0xf]
      %v199 = vld [vmem:[%s172 + $0x58] sm:$0xf]
      %v200 = vld [vmem:[%s172 + $0x60] sm:$0xf]
      %v201 = vld [vmem:[%s172 + $0x64] sm:$0xf]
      %v202 = vld [vmem:[%s172 + $0x6c] sm:$0xf]
      %v203 = vld [vmem:[%s172 + $0x70] sm:$0xf]
      %v204 = vld [vmem:[%s172 + $0x78] sm:$0xf]
      %v205 = vld [vmem:[%s172 + $0x7c] sm:$0xf]
      %v206 = vld [vmem:[%s172 + $0x84] sm:$0xf]
      %v207 = vld [vmem:[%s172 + $0x88] sm:$0xf]
      %v208 = vld [vmem:[%s172 + $0x90] sm:$0xf]
      %v209 = vld [vmem:[%s172 + $0x94] sm:$0xf]
      %v210 = vld [vmem:[%s172 + $0x9c] sm:$0xf]
      %v211 = vld [vmem:[%s172 + $0xa0] sm:$0xf]
      %v212 = vld [vmem:[%s172 + $0xa8] sm:$0xf]
      %v213 = vld [vmem:[%s172 + $0xac] sm:$0xf]
      %v214 = vld [vmem:[%s172 + $0xb4] sm:$0xf]
      %v215 = vld [vmem:[%s172 + $0xb8] sm:$0xf]
      %v216 = vld [vmem:[%s1] sm:$0xf]
      %v217 = vld [vmem:[%s1 + $0x4] sm:$0xf]
      %v218 = vld [vmem:[%s1 + $0x8] sm:$0xf]
      %v219 = vld [vmem:[%s1 + $0xc] sm:$0xf]
      %v220 = vld [vmem:[%s172 + $0x8] sm:$0x1]
      %v221 = vld [vmem:[%s172 + $0x14] sm:$0x1]
      %v222 = vld [vmem:[%s172 + $0x20] sm:$0x1]
      %v223 = vld [vmem:[%s172 + $0x2c] sm:$0x1]
      %v224 = vld [vmem:[%s172 + $0x38] sm:$0x1]
      %v225 = vld [vmem:[%s172 + $0x44] sm:$0x1]
      %v226 = vld [vmem:[%s172 + $0x50] sm:$0x1]
      %v227 = vld [vmem:[%s172 + $0x5c] sm:$0x1]
      %v228 = vld [vmem:[%s172 + $0x68] sm:$0x1]
      %v229 = vld [vmem:[%s172 + $0x74] sm:$0x1]
      %v230 = vld [vmem:[%s172 + $0x80] sm:$0x1]
      %v231 = vld [vmem:[%s172 + $0x8c] sm:$0x1]
      %v232 = vld [vmem:[%s172 + $0x98] sm:$0x1]
      %v233 = vld [vmem:[%s172 + $0xa4] sm:$0x1]
      %v234 = vld [vmem:[%s172 + $0xb0] sm:$0x1]
      %v235 = vld [vmem:[%s172 + $0xbc] sm:$0x1]
      %vm236 = vsmask.f32 3328
      %vm237 = vsmask.f32 7440
      %vm238 = vmor %vm236, %vm237
      %v240 = vshrl.u32 %v184, 16
      %v242 = vrot.slane %v240, 4
      %v243 = vshll.u32 %v184, 16
      %v245 = vrot.slane %v243, 5
      %v246 = vor.u32 %v242, %v245
      %v247 = vrot.slane %v246, 4
      %v249 = vshll.u32 %v185, 16
      %v251 = vrot.slane %v249, 5
      %v252 = vsel %vm238, %v247, %v251
      %v253 = vshrl.u32 %v185, 16
      %v255 = vrot.slane %v253, 4
      %v256 = vor.u32 %v255, %v251
      %v257 = vrot.slane %v256, 4
      %v259 = vshll.u32 %v220, 16
      %v261 = vrot.slane %v259, 5
      %v262 = vsel %vm238, %v257, %v261
      %v264 = vshrl.u32 %v186, 16
      %v266 = vrot.slane %v264, 4
      %v267 = vshll.u32 %v186, 16
      %v269 = vrot.slane %v267, 5
      %v270 = vor.u32 %v266, %v269
      %v271 = vrot.slane %v270, 4
      %v273 = vshll.u32 %v187, 16
      %v275 = vrot.slane %v273, 5
      %v276 = vsel %vm238, %v271, %v275
      %v277 = vshrl.u32 %v187, 16
      %v279 = vrot.slane %v277, 4
      %v280 = vor.u32 %v279, %v275
      %v281 = vrot.slane %v280, 4
      %v283 = vshll.u32 %v221, 16
      %v285 = vrot.slane %v283, 5
      %v286 = vsel %vm238, %v281, %v285
      %v288 = vshrl.u32 %v188, 16
      %v290 = vrot.slane %v288, 4
      %v291 = vshll.u32 %v188, 16
      %v293 = vrot.slane %v291, 5
      %v294 = vor.u32 %v290, %v293
      %v295 = vrot.slane %v294, 4
      %v297 = vshll.u32 %v189, 16
      %v299 = vrot.slane %v297, 5
      %v300 = vsel %vm238, %v295, %v299
      %v301 = vshrl.u32 %v189, 16
      %v303 = vrot.slane %v301, 4
      %v304 = vor.u32 %v303, %v299
      %v305 = vrot.slane %v304, 4
      %v307 = vshll.u32 %v222, 16
      %v309 = vrot.slane %v307, 5
      %v310 = vsel %vm238, %v305, %v309
      %v312 = vshrl.u32 %v190, 16
      %v314 = vrot.slane %v312, 4
      %v315 = vshll.u32 %v190, 16
      %v317 = vrot.slane %v315, 5
      %v318 = vor.u32 %v314, %v317
      %v319 = vrot.slane %v318, 4
      %v321 = vshll.u32 %v191, 16
      %v323 = vrot.slane %v321, 5
      %v324 = vsel %vm238, %v319, %v323
      %v325 = vshrl.u32 %v191, 16
      %v327 = vrot.slane %v325, 4
      %v328 = vor.u32 %v327, %v323
      %v329 = vrot.slane %v328, 4
      %v331 = vshll.u32 %v223, 16
      %v333 = vrot.slane %v331, 5
      %v334 = vsel %vm238, %v329, %v333
      %v336 = vshrl.u32 %v192, 16
      %v338 = vrot.slane %v336, 4
      %v339 = vshll.u32 %v192, 16
      %v341 = vrot.slane %v339, 5
      %v342 = vor.u32 %v338, %v341
      %v343 = vrot.slane %v342, 4
      %v345 = vshll.u32 %v193, 16
      %v347 = vrot.slane %v345, 5
      %v348 = vsel %vm238, %v343, %v347
      %v349 = vshrl.u32 %v193, 16
      %v351 = vrot.slane %v349, 4
      %v352 = vor.u32 %v351, %v347
      %v353 = vrot.slane %v352, 4
      %v355 = vshll.u32 %v224, 16
      %v357 = vrot.slane %v355, 5
      %v358 = vsel %vm238, %v353, %v357
      %v360 = vshrl.u32 %v194, 16
      %v362 = vrot.slane %v360, 4
      %v363 = vshll.u32 %v194, 16
      %v365 = vrot.slane %v363, 5
      %v366 = vor.u32 %v362, %v365
      %v367 = vrot.slane %v366, 4
      %v369 = vshll.u32 %v195, 16
      %v371 = vrot.slane %v369, 5
      %v372 = vsel %vm238, %v367, %v371
      %v373 = vshrl.u32 %v195, 16
      %v375 = vrot.slane %v373, 4
      %v376 = vor.u32 %v375, %v371
      %v377 = vrot.slane %v376, 4
      %v379 = vshll.u32 %v225, 16
      %v381 = vrot.slane %v379, 5
      %v382 = vsel %vm238, %v377, %v381
      %v384 = vshrl.u32 %v196, 16
      %v386 = vrot.slane %v384, 4
      %v387 = vshll.u32 %v196, 16
      %v389 = vrot.slane %v387, 5
      %v390 = vor.u32 %v386, %v389
      %v391 = vrot.slane %v390, 4
      %v393 = vshll.u32 %v197, 16
      %v395 = vrot.slane %v393, 5
      %v396 = vsel %vm238, %v391, %v395
      %v397 = vshrl.u32 %v197, 16
      %v399 = vrot.slane %v397, 4
      %v400 = vor.u32 %v399, %v395
      %v401 = vrot.slane %v400, 4
      %v403 = vshll.u32 %v226, 16
      %v405 = vrot.slane %v403, 5
      %v406 = vsel %vm238, %v401, %v405
      %v408 = vshrl.u32 %v198, 16
      %v410 = vrot.slane %v408, 4
      %v411 = vshll.u32 %v198, 16
      %v413 = vrot.slane %v411, 5
      %v414 = vor.u32 %v410, %v413
      %v415 = vrot.slane %v414, 4
      %v417 = vshll.u32 %v199, 16
      %v419 = vrot.slane %v417, 5
      %v420 = vsel %vm238, %v415, %v419
      %v421 = vshrl.u32 %v199, 16
      %v423 = vrot.slane %v421, 4
      %v424 = vor.u32 %v423, %v419
      %v425 = vrot.slane %v424, 4
      %v427 = vshll.u32 %v227, 16
      %v429 = vrot.slane %v427, 5
      %v430 = vsel %vm238, %v425, %v429
      %v432 = vshrl.u32 %v200, 16
      %v434 = vrot.slane %v432, 4
      %v435 = vshll.u32 %v200, 16
      %v437 = vrot.slane %v435, 5
      %v438 = vor.u32 %v434, %v437
      %v439 = vrot.slane %v438, 4
      %v441 = vshll.u32 %v201, 16
      %v443 = vrot.slane %v441, 5
      %v444 = vsel %vm238, %v439, %v443
      %v445 = vshrl.u32 %v201, 16
      %v447 = vrot.slane %v445, 4
      %v448 = vor.u32 %v447, %v443
      %v449 = vrot.slane %v448, 4
      %v451 = vshll.u32 %v228, 16
      %v453 = vrot.slane %v451, 5
      %v454 = vsel %vm238, %v449, %v453
      %v456 = vshrl.u32 %v202, 16
      %v458 = vrot.slane %v456, 4
      %v459 = vshll.u32 %v202, 16
      %v461 = vrot.slane %v459, 5
      %v462 = vor.u32 %v458, %v461
      %v463 = vrot.slane %v462, 4
      %v465 = vshll.u32 %v203, 16
      %v467 = vrot.slane %v465, 5
      %v468 = vsel %vm238, %v463, %v467
      %v469 = vshrl.u32 %v203, 16
      %v471 = vrot.slane %v469, 4
      %v472 = vor.u32 %v471, %v467
      %v473 = vrot.slane %v472, 4
      %v475 = vshll.u32 %v229, 16
      %v477 = vrot.slane %v475, 5
      %v478 = vsel %vm238, %v473, %v477
      %v480 = vshrl.u32 %v204, 16
      %v482 = vrot.slane %v480, 4
      %v483 = vshll.u32 %v204, 16
      %v485 = vrot.slane %v483, 5
      %v486 = vor.u32 %v482, %v485
      %v487 = vrot.slane %v486, 4
      %v489 = vshll.u32 %v205, 16
      %v491 = vrot.slane %v489, 5
      %v492 = vsel %vm238, %v487, %v491
      %v493 = vshrl.u32 %v205, 16
      %v495 = vrot.slane %v493, 4
      %v496 = vor.u32 %v495, %v491
      %v497 = vrot.slane %v496, 4
      %v499 = vshll.u32 %v230, 16
      %v501 = vrot.slane %v499, 5
      %v502 = vsel %vm238, %v497, %v501
      %v504 = vshrl.u32 %v206, 16
      %v506 = vrot.slane %v504, 4
      %v507 = vshll.u32 %v206, 16
      %v509 = vrot.slane %v507, 5
      %v510 = vor.u32 %v506, %v509
      %v511 = vrot.slane %v510, 4
      %v513 = vshll.u32 %v207, 16
      %v515 = vrot.slane %v513, 5
      %v516 = vsel %vm238, %v511, %v515
      %v517 = vshrl.u32 %v207, 16
      %v519 = vrot.slane %v517, 4
      %v520 = vor.u32 %v519, %v515
      %v521 = vrot.slane %v520, 4
      %v523 = vshll.u32 %v231, 16
      %v525 = vrot.slane %v523, 5
      %v526 = vsel %vm238, %v521, %v525
      %v528 = vshrl.u32 %v208, 16
      %v530 = vrot.slane %v528, 4
      %v531 = vshll.u32 %v208, 16
      %v533 = vrot.slane %v531, 5
      %v534 = vor.u32 %v530, %v533
      %v535 = vrot.slane %v534, 4
      %v537 = vshll.u32 %v209, 16
      %v539 = vrot.slane %v537, 5
      %v540 = vsel %vm238, %v535, %v539
      %v541 = vshrl.u32 %v209, 16
      %v543 = vrot.slane %v541, 4
      %v544 = vor.u32 %v543, %v539
      %v545 = vrot.slane %v544, 4
      %v547 = vshll.u32 %v232, 16
      %v549 = vrot.slane %v547, 5
      %v550 = vsel %vm238, %v545, %v549
      %v552 = vshrl.u32 %v210, 16
      %v554 = vrot.slane %v552, 4
      %v555 = vshll.u32 %v210, 16
      %v557 = vrot.slane %v555, 5
      %v558 = vor.u32 %v554, %v557
      %v559 = vrot.slane %v558, 4
      %v561 = vshll.u32 %v211, 16
      %v563 = vrot.slane %v561, 5
      %v564 = vsel %vm238, %v559, %v563
      %v565 = vshrl.u32 %v211, 16
      %v567 = vrot.slane %v565, 4
      %v568 = vor.u32 %v567, %v563
      %v569 = vrot.slane %v568, 4
      %v571 = vshll.u32 %v233, 16
      %v573 = vrot.slane %v571, 5
      %v574 = vsel %vm238, %v569, %v573
      %v576 = vshrl.u32 %v212, 16
      %v578 = vrot.slane %v576, 4
      %v579 = vshll.u32 %v212, 16
      %v581 = vrot.slane %v579, 5
      %v582 = vor.u32 %v578, %v581
      %v583 = vrot.slane %v582, 4
      %v585 = vshll.u32 %v213, 16
      %v587 = vrot.slane %v585, 5
      %v588 = vsel %vm238, %v583, %v587
      %v589 = vshrl.u32 %v213, 16
      %v591 = vrot.slane %v589, 4
      %v592 = vor.u32 %v591, %v587
      %v593 = vrot.slane %v592, 4
      %v595 = vshll.u32 %v234, 16
      %v597 = vrot.slane %v595, 5
      %v598 = vsel %vm238, %v593, %v597
      %v600 = vshrl.u32 %v214, 16
      %v602 = vrot.slane %v600, 4
      %v603 = vshll.u32 %v214, 16
      %v605 = vrot.slane %v603, 5
      %v606 = vor.u32 %v602, %v605
      %v607 = vrot.slane %v606, 4
      %v609 = vshll.u32 %v215, 16
      %v611 = vrot.slane %v609, 5
      %v612 = vsel %vm238, %v607, %v611
      %v613 = vshrl.u32 %v215, 16
      %v615 = vrot.slane %v613, 4
      %v616 = vor.u32 %v615, %v611
      %v617 = vrot.slane %v616, 4
      %v619 = vshll.u32 %v235, 16
      %v621 = vrot.slane %v619, 5
      %v622 = vsel %vm238, %v617, %v621
      %s623 = scalar_lea.vmem %s1, 16
      %v624 = vld [vmem:[%s623] sm:$0xf]
      %v625 = vld [vmem:[%s623 + $0x4] sm:$0xf]
      %v626 = vld [vmem:[%s623 + $0x8] sm:$0xf]
      %v627 = vld [vmem:[%s623 + $0xc] sm:$0xf]
      %v628 = vunpack.c.l.b16 %v252
      %v629 = vunpack.c.l.b16 %v262
      %v630 = vunpack.c.l.b16 %v276
      %v631 = vunpack.c.l.b16 %v286
      %v632 = vunpack.c.l.b16 %v300
      %v633 = vunpack.c.l.b16 %v310
      %v634 = vunpack.c.l.b16 %v324
      %v635 = vunpack.c.l.b16 %v334
      %v636 = vunpack.c.l.b16 %v348
      %v637 = vunpack.c.l.b16 %v358
      %v638 = vunpack.c.l.b16 %v372
      %v639 = vunpack.c.l.b16 %v382
      %v640 = vunpack.c.l.b16 %v396
      %v641 = vunpack.c.l.b16 %v406
      %v642 = vunpack.c.l.b16 %v420
      %v643 = vunpack.c.l.b16 %v430
      %v644 = vunpack.c.l.b16 %v444
      %v645 = vunpack.c.l.b16 %v454
      %v646 = vunpack.c.l.b16 %v468
      %v647 = vunpack.c.l.b16 %v478
      %v648 = vunpack.c.l.b16 %v492
      %v649 = vunpack.c.l.b16 %v502
      %v650 = vunpack.c.l.b16 %v516
      %v651 = vunpack.c.l.b16 %v526
      %v652 = vunpack.c.l.b16 %v540
      %v653 = vunpack.c.l.b16 %v550
      %v654 = vunpack.c.l.b16 %v564
      %v655 = vunpack.c.l.b16 %v574
      %v656 = vunpack.c.l.b16 %v588
      %v657 = vunpack.c.l.b16 %v598
      %v658 = vunpack.c.l.b16 %v612
      %v659 = vunpack.c.l.b16 %v622
      %v660 = vpack.c.b16 %v629, %v628
      %v661 = vpack.c.b16 %v631, %v630
      %v662 = vpack.c.b16 %v633, %v632
      %v663 = vpack.c.b16 %v635, %v634
      %v664 = vpack.c.b16 %v637, %v636
      %v665 = vpack.c.b16 %v639, %v638
      %v666 = vpack.c.b16 %v641, %v640
      %v667 = vpack.c.b16 %v643, %v642
      %v668 = vpack.c.b16 %v645, %v644
      %v669 = vpack.c.b16 %v647, %v646
      %v670 = vpack.c.b16 %v649, %v648
      %v671 = vpack.c.b16 %v651, %v650
      %v672 = vpack.c.b16 %v653, %v652
      %v673 = vpack.c.b16 %v655, %v654
      %v674 = vpack.c.b16 %v657, %v656
      %v675 = vpack.c.b16 %v659, %v658
      %v680 = vunpack.c.l.b16 %v624
      %v681 = vunpack.c.l.b16 %v625
      %v682 = vunpack.c.l.b16 %v626
      %v683 = vunpack.c.l.b16 %v627
      %v684 = vpack.c.b16 %v681, %v680
      %v685 = vpack.c.b16 %v683, %v682
      %vm688 = vcmask 261120
      %v690 = vsel %vm688, %v660, 0
      %v693 = vsel %vm688, %v661, 0
      %v696 = vsel %vm688, %v662, 0
      %v699 = vsel %vm688, %v663, 0
      %v702 = vsel %vm688, %v664, 0
      %v705 = vsel %vm688, %v665, 0
      %v708 = vsel %vm688, %v666, 0
      %v711 = vsel %vm688, %v667, 0
      %v714 = vsel %vm688, %v668, 0
      %v717 = vsel %vm688, %v669, 0
      %v720 = vsel %vm688, %v670, 0
      %v723 = vsel %vm688, %v671, 0
      %v726 = vsel %vm688, %v672, 0
      %v729 = vsel %vm688, %v673, 0
      %v732 = vsel %vm688, %v674, 0
      %v735 = vsel %vm688, %v675, 0
      %737 = vmatpush.bf16.msra.mxu0 0
      %738 = vmatpush.bf16.msra.mxu0 0
      %739 = vmatpush.bf16.msra.mxu0 0
      %740 = vmatpush.bf16.msra.mxu0 0
      %741 = vmatpush.bf16.msra.mxu0 0
      %742 = vmatpush.bf16.msra.mxu0 0
      %743 = vmatpush.bf16.msra.mxu0 %v685
      %744 = vmatpush.bf16.msra.mxu0 %v684
      %745 = vmatmul.bf16.gmra.mxu0 %v690
      %v746 = vpop.f32.mrf.mxu0
      %v747 = vadd.f32 0.0, %v746
      %v748 = vpop.f32.mrf.mxu0
      %v749 = vadd.f32 0.0, %v748
      %750 = vmatmul.bf16.gmra.mxu0 %v693
      %v751 = vpop.f32.mrf.mxu0
      %v752 = vadd.f32 0.0, %v751
      %v753 = vpop.f32.mrf.mxu0
      %v754 = vadd.f32 0.0, %v753
      %755 = vmatmul.bf16.gmra.mxu0 %v696
      %v756 = vpop.f32.mrf.mxu0
      %v757 = vadd.f32 0.0, %v756
      %v758 = vpop.f32.mrf.mxu0
      %v759 = vadd.f32 0.0, %v758
      %760 = vmatmul.bf16.gmra.mxu0 %v699
      %v761 = vpop.f32.mrf.mxu0
      %v762 = vadd.f32 0.0, %v761
      %v763 = vpop.f32.mrf.mxu0
      %v764 = vadd.f32 0.0, %v763
      %765 = vmatmul.bf16.gmra.mxu0 %v702
      %v766 = vpop.f32.mrf.mxu0
      %v767 = vadd.f32 0.0, %v766
      %v768 = vpop.f32.mrf.mxu0
      %v769 = vadd.f32 0.0, %v768
      %770 = vmatmul.bf16.gmra.mxu0 %v705
      %v771 = vpop.f32.mrf.mxu0
      %v772 = vadd.f32 0.0, %v771
      %v773 = vpop.f32.mrf.mxu0
      %v774 = vadd.f32 0.0, %v773
      %775 = vmatmul.bf16.gmra.mxu0 %v708
      %v776 = vpop.f32.mrf.mxu0
      %v777 = vadd.f32 0.0, %v776
      %v778 = vpop.f32.mrf.mxu0
      %v779 = vadd.f32 0.0, %v778
      %780 = vmatmul.bf16.gmra.mxu0 %v711
      %v781 = vpop.f32.mrf.mxu0
      %v782 = vadd.f32 0.0, %v781
      %v783 = vpop.f32.mrf.mxu0
      %v784 = vadd.f32 0.0, %v783
      %785 = vmatmul.bf16.gmra.mxu0 %v714
      %v786 = vpop.f32.mrf.mxu0
      %v787 = vadd.f32 0.0, %v786
      %v788 = vpop.f32.mrf.mxu0
      %v789 = vadd.f32 0.0, %v788
      %790 = vmatmul.bf16.gmra.mxu0 %v717
      %v791 = vpop.f32.mrf.mxu0
      %v792 = vadd.f32 0.0, %v791
      %v793 = vpop.f32.mrf.mxu0
      %v794 = vadd.f32 0.0, %v793
      %795 = vmatmul.bf16.gmra.mxu0 %v720
      %v796 = vpop.f32.mrf.mxu0
      %v797 = vadd.f32 0.0, %v796
      %v798 = vpop.f32.mrf.mxu0
      %v799 = vadd.f32 0.0, %v798
      %800 = vmatmul.bf16.gmra.mxu0 %v723
      %v801 = vpop.f32.mrf.mxu0
      %v802 = vadd.f32 0.0, %v801
      %v803 = vpop.f32.mrf.mxu0
      %v804 = vadd.f32 0.0, %v803
      %805 = vmatmul.bf16.gmra.mxu0 %v726
      %v806 = vpop.f32.mrf.mxu0
      %v807 = vadd.f32 0.0, %v806
      %v808 = vpop.f32.mrf.mxu0
      %v809 = vadd.f32 0.0, %v808
      %810 = vmatmul.bf16.gmra.mxu0 %v729
      %v811 = vpop.f32.mrf.mxu0
      %v812 = vadd.f32 0.0, %v811
      %v813 = vpop.f32.mrf.mxu0
      %v814 = vadd.f32 0.0, %v813
      %815 = vmatmul.bf16.gmra.mxu0 %v732
      %v816 = vpop.f32.mrf.mxu0
      %v817 = vadd.f32 0.0, %v816
      %v818 = vpop.f32.mrf.mxu0
      %v819 = vadd.f32 0.0, %v818
      %820 = vmatmul.bf16.gmra.mxu0 %v735
      %v821 = vpop.f32.mrf.mxu0
      %v822 = vadd.f32 0.0, %v821
      %v823 = vpop.f32.mrf.mxu0
      %v824 = vadd.f32 0.0, %v823
      %825 = vdwg.mxu0
      %v858 = vunpack.c.l.b16 %v184
      %v859 = vunpack.c.l.b16 %v185
      %v860 = vunpack.c.l.b16 %v186
      %v861 = vunpack.c.l.b16 %v187
      %v862 = vunpack.c.l.b16 %v188
      %v863 = vunpack.c.l.b16 %v189
      %v864 = vunpack.c.l.b16 %v190
      %v865 = vunpack.c.l.b16 %v191
      %v866 = vunpack.c.l.b16 %v192
      %v867 = vunpack.c.l.b16 %v193
      %v868 = vunpack.c.l.b16 %v194
      %v869 = vunpack.c.l.b16 %v195
      %v870 = vunpack.c.l.b16 %v196
      %v871 = vunpack.c.l.b16 %v197
      %v872 = vunpack.c.l.b16 %v198
      %v873 = vunpack.c.l.b16 %v199
      %v874 = vunpack.c.l.b16 %v200
      %v875 = vunpack.c.l.b16 %v201
      %v876 = vunpack.c.l.b16 %v202
      %v877 = vunpack.c.l.b16 %v203
      %v878 = vunpack.c.l.b16 %v204
      %v879 = vunpack.c.l.b16 %v205
      %v880 = vunpack.c.l.b16 %v206
      %v881 = vunpack.c.l.b16 %v207
      %v882 = vunpack.c.l.b16 %v208
      %v883 = vunpack.c.l.b16 %v209
      %v884 = vunpack.c.l.b16 %v210
      %v885 = vunpack.c.l.b16 %v211
      %v886 = vunpack.c.l.b16 %v212
      %v887 = vunpack.c.l.b16 %v213
      %v888 = vunpack.c.l.b16 %v214
      %v889 = vunpack.c.l.b16 %v215
      %v890 = vpack.c.b16 %v859, %v858
      %v891 = vpack.c.b16 %v861, %v860
      %v892 = vpack.c.b16 %v863, %v862
      %v893 = vpack.c.b16 %v865, %v864
      %v894 = vpack.c.b16 %v867, %v866
      %v895 = vpack.c.b16 %v869, %v868
      %v896 = vpack.c.b16 %v871, %v870
      %v897 = vpack.c.b16 %v873, %v872
      %v898 = vpack.c.b16 %v875, %v874
      %v899 = vpack.c.b16 %v877, %v876
      %v900 = vpack.c.b16 %v879, %v878
      %v901 = vpack.c.b16 %v881, %v880
      %v902 = vpack.c.b16 %v883, %v882
      %v903 = vpack.c.b16 %v885, %v884
      %v904 = vpack.c.b16 %v887, %v886
      %v905 = vpack.c.b16 %v889, %v888
      %v910 = vunpack.c.l.b16 %v216
      %v911 = vunpack.c.l.b16 %v217
      %v912 = vunpack.c.l.b16 %v218
      %v913 = vunpack.c.l.b16 %v219
      %v914 = vpack.c.b16 %v911, %v910
      %v915 = vpack.c.b16 %v913, %v912
      %v919 = vsel %vm688, %v890, 0
      %v922 = vsel %vm688, %v891, 0
      %v925 = vsel %vm688, %v892, 0
      %v928 = vsel %vm688, %v893, 0
      %v931 = vsel %vm688, %v894, 0
      %v934 = vsel %vm688, %v895, 0
      %v937 = vsel %vm688, %v896, 0
      %v940 = vsel %vm688, %v897, 0
      %v943 = vsel %vm688, %v898, 0
      %v946 = vsel %vm688, %v899, 0
      %v949 = vsel %vm688, %v900, 0
      %v952 = vsel %vm688, %v901, 0
      %v955 = vsel %vm688, %v902, 0
      %v958 = vsel %vm688, %v903, 0
      %v961 = vsel %vm688, %v904, 0
      %v964 = vsel %vm688, %v905, 0
      %966 = vmatpush.bf16.msra.mxu0 0
      %967 = vmatpush.bf16.msra.mxu0 0
      %968 = vmatpush.bf16.msra.mxu0 0
      %969 = vmatpush.bf16.msra.mxu0 0
      %970 = vmatpush.bf16.msra.mxu0 0
      %971 = vmatpush.bf16.msra.mxu0 0
      %972 = vmatpush.bf16.msra.mxu0 %v915
      %973 = vmatpush.bf16.msra.mxu0 %v914
      %974 = vmatmul.bf16.gmra.mxu0 %v919
      %v975 = vpop.f32.mrf.mxu0
      %v976 = vadd.f32 %v747, %v975
      %v977 = vpop.f32.mrf.mxu0
      %v978 = vadd.f32 %v749, %v977
      %979 = vmatmul.bf16.gmra.mxu0 %v922
      %v980 = vpop.f32.mrf.mxu0
      %v981 = vadd.f32 %v752, %v980
      %v982 = vpop.f32.mrf.mxu0
      %v983 = vadd.f32 %v754, %v982
      %984 = vmatmul.bf16.gmra.mxu0 %v925
      %v985 = vpop.f32.mrf.mxu0
      %v986 = vadd.f32 %v757, %v985
      %v987 = vpop.f32.mrf.mxu0
      %v988 = vadd.f32 %v759, %v987
      %989 = vmatmul.bf16.gmra.mxu0 %v928
      %v990 = vpop.f32.mrf.mxu0
      %v991 = vadd.f32 %v762, %v990
      %v992 = vpop.f32.mrf.mxu0
      %v993 = vadd.f32 %v764, %v992
      %994 = vmatmul.bf16.gmra.mxu0 %v931
      %v995 = vpop.f32.mrf.mxu0
      %v996 = vadd.f32 %v767, %v995
      %v997 = vpop.f32.mrf.mxu0
      %v998 = vadd.f32 %v769, %v997
      %999 = vmatmul.bf16.gmra.mxu0 %v934
      %v1000 = vpop.f32.mrf.mxu0
      %v1001 = vadd.f32 %v772, %v1000
      %v1002 = vpop.f32.mrf.mxu0
      %v1003 = vadd.f32 %v774, %v1002
      %1004 = vmatmul.bf16.gmra.mxu0 %v937
      %v1005 = vpop.f32.mrf.mxu0
      %v1006 = vadd.f32 %v777, %v1005
      %v1007 = vpop.f32.mrf.mxu0
      %v1008 = vadd.f32 %v779, %v1007
      %1009 = vmatmul.bf16.gmra.mxu0 %v940
      %v1010 = vpop.f32.mrf.mxu0
      %v1011 = vadd.f32 %v782, %v1010
      %v1012 = vpop.f32.mrf.mxu0
      %v1013 = vadd.f32 %v784, %v1012
      %1014 = vmatmul.bf16.gmra.mxu0 %v943
      %v1015 = vpop.f32.mrf.mxu0
      %v1016 = vadd.f32 %v787, %v1015
      %v1017 = vpop.f32.mrf.mxu0
      %v1018 = vadd.f32 %v789, %v1017
      %1019 = vmatmul.bf16.gmra.mxu0 %v946
      %v1020 = vpop.f32.mrf.mxu0
      %v1021 = vadd.f32 %v792, %v1020
      %v1022 = vpop.f32.mrf.mxu0
      %v1023 = vadd.f32 %v794, %v1022
      %1024 = vmatmul.bf16.gmra.mxu0 %v949
      %v1025 = vpop.f32.mrf.mxu0
      %v1026 = vadd.f32 %v797, %v1025
      %v1027 = vpop.f32.mrf.mxu0
      %v1028 = vadd.f32 %v799, %v1027
      %1029 = vmatmul.bf16.gmra.mxu0 %v952
      %v1030 = vpop.f32.mrf.mxu0
      %v1031 = vadd.f32 %v802, %v1030
      %v1032 = vpop.f32.mrf.mxu0
      %v1033 = vadd.f32 %v804, %v1032
      %1034 = vmatmul.bf16.gmra.mxu0 %v955
      %v1035 = vpop.f32.mrf.mxu0
      %v1036 = vadd.f32 %v807, %v1035
      %v1037 = vpop.f32.mrf.mxu0
      %v1038 = vadd.f32 %v809, %v1037
      %1039 = vmatmul.bf16.gmra.mxu0 %v958
      %v1040 = vpop.f32.mrf.mxu0
      %v1041 = vadd.f32 %v812, %v1040
      %v1042 = vpop.f32.mrf.mxu0
      %v1043 = vadd.f32 %v814, %v1042
      %1044 = vmatmul.bf16.gmra.mxu0 %v961
      %v1045 = vpop.f32.mrf.mxu0
      %v1046 = vadd.f32 %v817, %v1045
      %v1047 = vpop.f32.mrf.mxu0
      %v1048 = vadd.f32 %v819, %v1047
      %1049 = vmatmul.bf16.gmra.mxu0 %v964
      %v1050 = vpop.f32.mrf.mxu0
      %v1051 = vadd.f32 %v822, %v1050
      %v1052 = vpop.f32.mrf.mxu0
      %v1053 = vadd.f32 %v824, %v1052
      %1054 = vdwg.mxu0
      %s1055 = scalar_lea.vmem %s172, 12
      %v1056 = vld [vmem:[%s1055] sm:$0xf]
      %v1057 = vld [vmem:[%s1055 + $0x4] sm:$0xf]
      %v1058 = vld [vmem:[%s1055 + $0xc] sm:$0xf]
      %v1059 = vld [vmem:[%s1055 + $0x10] sm:$0xf]
      %v1060 = vld [vmem:[%s1055 + $0x18] sm:$0xf]
      %v1061 = vld [vmem:[%s1055 + $0x1c] sm:$0xf]
      %v1062 = vld [vmem:[%s1055 + $0x24] sm:$0xf]
      %v1063 = vld [vmem:[%s1055 + $0x28] sm:$0xf]
      %v1064 = vld [vmem:[%s1055 + $0x30] sm:$0xf]
      %v1065 = vld [vmem:[%s1055 + $0x34] sm:$0xf]
      %v1066 = vld [vmem:[%s1055 + $0x3c] sm:$0xf]
      %v1067 = vld [vmem:[%s1055 + $0x40] sm:$0xf]
      %v1068 = vld [vmem:[%s1055 + $0x48] sm:$0xf]
      %v1069 = vld [vmem:[%s1055 + $0x4c] sm:$0xf]
      %v1070 = vld [vmem:[%s1055 + $0x54] sm:$0xf]
      %v1071 = vld [vmem:[%s1055 + $0x58] sm:$0xf]
      %v1072 = vld [vmem:[%s1055 + $0x60] sm:$0xf]
      %v1073 = vld [vmem:[%s1055 + $0x64] sm:$0xf]
      %v1074 = vld [vmem:[%s1055 + $0x6c] sm:$0xf]
      %v1075 = vld [vmem:[%s1055 + $0x70] sm:$0xf]
      %v1076 = vld [vmem:[%s1055 + $0x78] sm:$0xf]
      %v1077 = vld [vmem:[%s1055 + $0x7c] sm:$0xf]
      %v1078 = vld [vmem:[%s1055 + $0x84] sm:$0xf]
      %v1079 = vld [vmem:[%s1055 + $0x88] sm:$0xf]
      %v1080 = vld [vmem:[%s1055 + $0x90] sm:$0xf]
      %v1081 = vld [vmem:[%s1055 + $0x94] sm:$0xf]
      %v1082 = vld [vmem:[%s1055 + $0x9c] sm:$0xf]
      %v1083 = vld [vmem:[%s1055 + $0xa0] sm:$0xf]
      %v1084 = vld [vmem:[%s1055 + $0xa8] sm:$0xf]
      %v1085 = vld [vmem:[%s1055 + $0xac] sm:$0xf]
      %v1086 = vld [vmem:[%s1055 + $0xb4] sm:$0xf]
      %v1087 = vld [vmem:[%s1055 + $0xb8] sm:$0xf]
      %s1088 = scalar_lea.vmem %s1, 32
      %v1089 = vld [vmem:[%s1088] sm:$0xf]
      %v1090 = vld [vmem:[%s1088 + $0x4] sm:$0xf]
      %v1091 = vld [vmem:[%s1088 + $0x8] sm:$0xf]
      %v1092 = vld [vmem:[%s1088 + $0xc] sm:$0xf]
      %v1125 = vunpack.c.l.b16 %v1056
      %v1126 = vunpack.c.l.b16 %v1057
      %v1127 = vunpack.c.l.b16 %v1058
      %v1128 = vunpack.c.l.b16 %v1059
      %v1129 = vunpack.c.l.b16 %v1060
      %v1130 = vunpack.c.l.b16 %v1061
      %v1131 = vunpack.c.l.b16 %v1062
      %v1132 = vunpack.c.l.b16 %v1063
      %v1133 = vunpack.c.l.b16 %v1064
      %v1134 = vunpack.c.l.b16 %v1065
      %v1135 = vunpack.c.l.b16 %v1066
      %v1136 = vunpack.c.l.b16 %v1067
      %v1137 = vunpack.c.l.b16 %v1068
      %v1138 = vunpack.c.l.b16 %v1069
      %v1139 = vunpack.c.l.b16 %v1070
      %v1140 = vunpack.c.l.b16 %v1071
      %v1141 = vunpack.c.l.b16 %v1072
      %v1142 = vunpack.c.l.b16 %v1073
      %v1143 = vunpack.c.l.b16 %v1074
      %v1144 = vunpack.c.l.b16 %v1075
      %v1145 = vunpack.c.l.b16 %v1076
      %v1146 = vunpack.c.l.b16 %v1077
      %v1147 = vunpack.c.l.b16 %v1078
      %v1148 = vunpack.c.l.b16 %v1079
      %v1149 = vunpack.c.l.b16 %v1080
      %v1150 = vunpack.c.l.b16 %v1081
      %v1151 = vunpack.c.l.b16 %v1082
      %v1152 = vunpack.c.l.b16 %v1083
      %v1153 = vunpack.c.l.b16 %v1084
      %v1154 = vunpack.c.l.b16 %v1085
      %v1155 = vunpack.c.l.b16 %v1086
      %v1156 = vunpack.c.l.b16 %v1087
      %v1157 = vpack.c.b16 %v1126, %v1125
      %v1158 = vpack.c.b16 %v1128, %v1127
      %v1159 = vpack.c.b16 %v1130, %v1129
      %v1160 = vpack.c.b16 %v1132, %v1131
      %v1161 = vpack.c.b16 %v1134, %v1133
      %v1162 = vpack.c.b16 %v1136, %v1135
      %v1163 = vpack.c.b16 %v1138, %v1137
      %v1164 = vpack.c.b16 %v1140, %v1139
      %v1165 = vpack.c.b16 %v1142, %v1141
      %v1166 = vpack.c.b16 %v1144, %v1143
      %v1167 = vpack.c.b16 %v1146, %v1145
      %v1168 = vpack.c.b16 %v1148, %v1147
      %v1169 = vpack.c.b16 %v1150, %v1149
      %v1170 = vpack.c.b16 %v1152, %v1151
      %v1171 = vpack.c.b16 %v1154, %v1153
      %v1172 = vpack.c.b16 %v1156, %v1155
      %v1177 = vunpack.c.l.b16 %v1089
      %v1178 = vunpack.c.l.b16 %v1090
      %v1179 = vunpack.c.l.b16 %v1091
      %v1180 = vunpack.c.l.b16 %v1092
      %v1181 = vpack.c.b16 %v1178, %v1177
      %v1182 = vpack.c.b16 %v1180, %v1179
      %v1186 = vsel %vm688, %v1157, 0
      %v1189 = vsel %vm688, %v1158, 0
      %v1192 = vsel %vm688, %v1159, 0
      %v1195 = vsel %vm688, %v1160, 0
      %v1198 = vsel %vm688, %v1161, 0
      %v1201 = vsel %vm688, %v1162, 0
      %v1204 = vsel %vm688, %v1163, 0
      %v1207 = vsel %vm688, %v1164, 0
      %v1210 = vsel %vm688, %v1165, 0
      %v1213 = vsel %vm688, %v1166, 0
      %v1216 = vsel %vm688, %v1167, 0
      %v1219 = vsel %vm688, %v1168, 0
      %v1222 = vsel %vm688, %v1169, 0
      %v1225 = vsel %vm688, %v1170, 0
      %v1228 = vsel %vm688, %v1171, 0
      %v1231 = vsel %vm688, %v1172, 0
      %1233 = vmatpush.bf16.msra.mxu0 0
      %1234 = vmatpush.bf16.msra.mxu0 0
      %1235 = vmatpush.bf16.msra.mxu0 0
      %1236 = vmatpush.bf16.msra.mxu0 0
      %1237 = vmatpush.bf16.msra.mxu0 0
      %1238 = vmatpush.bf16.msra.mxu0 0
      %1239 = vmatpush.bf16.msra.mxu0 %v1182
      %1240 = vmatpush.bf16.msra.mxu0 %v1181
      %1241 = vmatmul.bf16.gmra.mxu0 %v1186
      %v1242 = vpop.f32.mrf.mxu0
      %v1243 = vadd.f32 0.0, %v1242
      %v1244 = vpop.f32.mrf.mxu0
      %v1245 = vadd.f32 0.0, %v1244
      %1246 = vmatmul.bf16.gmra.mxu0 %v1189
      %v1247 = vpop.f32.mrf.mxu0
      %v1248 = vadd.f32 0.0, %v1247
      %v1249 = vpop.f32.mrf.mxu0
      %v1250 = vadd.f32 0.0, %v1249
      %1251 = vmatmul.bf16.gmra.mxu0 %v1192
      %v1252 = vpop.f32.mrf.mxu0
      %v1253 = vadd.f32 0.0, %v1252
      %v1254 = vpop.f32.mrf.mxu0
      %v1255 = vadd.f32 0.0, %v1254
      %1256 = vmatmul.bf16.gmra.mxu0 %v1195
      %v1257 = vpop.f32.mrf.mxu0
      %v1258 = vadd.f32 0.0, %v1257
      %v1259 = vpop.f32.mrf.mxu0
      %v1260 = vadd.f32 0.0, %v1259
      %1261 = vmatmul.bf16.gmra.mxu0 %v1198
      %v1262 = vpop.f32.mrf.mxu0
      %v1263 = vadd.f32 0.0, %v1262
      %v1264 = vpop.f32.mrf.mxu0
      %v1265 = vadd.f32 0.0, %v1264
      %1266 = vmatmul.bf16.gmra.mxu0 %v1201
      %v1267 = vpop.f32.mrf.mxu0
      %v1268 = vadd.f32 0.0, %v1267
      %v1269 = vpop.f32.mrf.mxu0
      %v1270 = vadd.f32 0.0, %v1269
      %1271 = vmatmul.bf16.gmra.mxu0 %v1204
      %v1272 = vpop.f32.mrf.mxu0
      %v1273 = vadd.f32 0.0, %v1272
      %v1274 = vpop.f32.mrf.mxu0
      %v1275 = vadd.f32 0.0, %v1274
      %1276 = vmatmul.bf16.gmra.mxu0 %v1207
      %v1277 = vpop.f32.mrf.mxu0
      %v1278 = vadd.f32 0.0, %v1277
      %v1279 = vpop.f32.mrf.mxu0
      %v1280 = vadd.f32 0.0, %v1279
      %1281 = vmatmul.bf16.gmra.mxu0 %v1210
      %v1282 = vpop.f32.mrf.mxu0
      %v1283 = vadd.f32 0.0, %v1282
      %v1284 = vpop.f32.mrf.mxu0
      %v1285 = vadd.f32 0.0, %v1284
      %1286 = vmatmul.bf16.gmra.mxu0 %v1213
      %v1287 = vpop.f32.mrf.mxu0
      %v1288 = vadd.f32 0.0, %v1287
      %v1289 = vpop.f32.mrf.mxu0
      %v1290 = vadd.f32 0.0, %v1289
      %1291 = vmatmul.bf16.gmra.mxu0 %v1216
      %v1292 = vpop.f32.mrf.mxu0
      %v1293 = vadd.f32 0.0, %v1292
      %v1294 = vpop.f32.mrf.mxu0
      %v1295 = vadd.f32 0.0, %v1294
      %1296 = vmatmul.bf16.gmra.mxu0 %v1219
      %v1297 = vpop.f32.mrf.mxu0
      %v1298 = vadd.f32 0.0, %v1297
      %v1299 = vpop.f32.mrf.mxu0
      %v1300 = vadd.f32 0.0, %v1299
      %1301 = vmatmul.bf16.gmra.mxu0 %v1222
      %v1302 = vpop.f32.mrf.mxu0
      %v1303 = vadd.f32 0.0, %v1302
      %v1304 = vpop.f32.mrf.mxu0
      %v1305 = vadd.f32 0.0, %v1304
      %1306 = vmatmul.bf16.gmra.mxu0 %v1225
      %v1307 = vpop.f32.mrf.mxu0
      %v1308 = vadd.f32 0.0, %v1307
      %v1309 = vpop.f32.mrf.mxu0
      %v1310 = vadd.f32 0.0, %v1309
      %1311 = vmatmul.bf16.gmra.mxu0 %v1228
      %v1312 = vpop.f32.mrf.mxu0
      %v1313 = vadd.f32 0.0, %v1312
      %v1314 = vpop.f32.mrf.mxu0
      %v1315 = vadd.f32 0.0, %v1314
      %1316 = vmatmul.bf16.gmra.mxu0 %v1231
      %v1317 = vpop.f32.mrf.mxu0
      %v1318 = vadd.f32 0.0, %v1317
      %v1319 = vpop.f32.mrf.mxu0
      %v1320 = vadd.f32 0.0, %v1319
      %1321 = vdwg.mxu0
      %v1322 = vadd.f32 %v976, %v1243
      %v1323 = vadd.f32 %v978, %v1245
      %v1324 = vadd.f32 %v981, %v1248
      %v1325 = vadd.f32 %v983, %v1250
      %v1326 = vadd.f32 %v986, %v1253
      %v1327 = vadd.f32 %v988, %v1255
      %v1328 = vadd.f32 %v991, %v1258
      %v1329 = vadd.f32 %v993, %v1260
      %v1330 = vadd.f32 %v996, %v1263
      %v1331 = vadd.f32 %v998, %v1265
      %v1332 = vadd.f32 %v1001, %v1268
      %v1333 = vadd.f32 %v1003, %v1270
      %v1334 = vadd.f32 %v1006, %v1273
      %v1335 = vadd.f32 %v1008, %v1275
      %v1336 = vadd.f32 %v1011, %v1278
      %v1337 = vadd.f32 %v1013, %v1280
      %v1338 = vadd.f32 %v1016, %v1283
      %v1339 = vadd.f32 %v1018, %v1285
      %v1340 = vadd.f32 %v1021, %v1288
      %v1341 = vadd.f32 %v1023, %v1290
      %v1342 = vadd.f32 %v1026, %v1293
      %v1343 = vadd.f32 %v1028, %v1295
      %v1344 = vadd.f32 %v1031, %v1298
      %v1345 = vadd.f32 %v1033, %v1300
      %v1346 = vadd.f32 %v1036, %v1303
      %v1347 = vadd.f32 %v1038, %v1305
      %v1348 = vadd.f32 %v1041, %v1308
      %v1349 = vadd.f32 %v1043, %v1310
      %v1350 = vadd.f32 %v1046, %v1313
      %v1351 = vadd.f32 %v1048, %v1315
      %v1352 = vadd.f32 %v1051, %v1318
      %v1353 = vadd.f32 %v1053, %v1320
      %v1354 = vld [vmem:[%s1055] sm:$0xf]
      %v1355 = vld [vmem:[%s1055 + $0x4] sm:$0xf]
      %v1356 = vld [vmem:[%s1055 + $0x8] sm:$0x1]
      %v1357 = vld [vmem:[%s1055 + $0xc] sm:$0xf]
      %v1358 = vld [vmem:[%s1055 + $0x10] sm:$0xf]
      %v1359 = vld [vmem:[%s1055 + $0x14] sm:$0x1]
      %v1360 = vld [vmem:[%s1055 + $0x18] sm:$0xf]
      %v1361 = vld [vmem:[%s1055 + $0x1c] sm:$0xf]
      %v1362 = vld [vmem:[%s1055 + $0x20] sm:$0x1]
      %v1363 = vld [vmem:[%s1055 + $0x24] sm:$0xf]
      %v1364 = vld [vmem:[%s1055 + $0x28] sm:$0xf]
      %v1365 = vld [vmem:[%s1055 + $0x2c] sm:$0x1]
      %v1366 = vld [vmem:[%s1055 + $0x30] sm:$0xf]
      %v1367 = vld [vmem:[%s1055 + $0x34] sm:$0xf]
      %v1368 = vld [vmem:[%s1055 + $0x38] sm:$0x1]
      %v1369 = vld [vmem:[%s1055 + $0x3c] sm:$0xf]
      %v1370 = vld [vmem:[%s1055 + $0x40] sm:$0xf]
      %v1371 = vld [vmem:[%s1055 + $0x44] sm:$0x1]
      %v1372 = vld [vmem:[%s1055 + $0x48] sm:$0xf]
      %v1373 = vld [vmem:[%s1055 + $0x4c] sm:$0xf]
      %v1374 = vld [vmem:[%s1055 + $0x50] sm:$0x1]
      %v1375 = vld [vmem:[%s1055 + $0x54] sm:$0xf]
      %v1376 = vld [vmem:[%s1055 + $0x58] sm:$0xf]
      %v1377 = vld [vmem:[%s1055 + $0x5c] sm:$0x1]
      %v1378 = vld [vmem:[%s1055 + $0x60] sm:$0xf]
      %v1379 = vld [vmem:[%s1055 + $0x64] sm:$0xf]
      %v1380 = vld [vmem:[%s1055 + $0x68] sm:$0x1]
      %v1381 = vld [vmem:[%s1055 + $0x6c] sm:$0xf]
      %v1382 = vld [vmem:[%s1055 + $0x70] sm:$0xf]
      %v1383 = vld [vmem:[%s1055 + $0x74] sm:$0x1]
      %v1384 = vld [vmem:[%s1055 + $0x78] sm:$0xf]
      %v1385 = vld [vmem:[%s1055 + $0x7c] sm:$0xf]
      %v1386 = vld [vmem:[%s1055 + $0x80] sm:$0x1]
      %v1387 = vld [vmem:[%s1055 + $0x84] sm:$0xf]
      %v1388 = vld [vmem:[%s1055 + $0x88] sm:$0xf]
      %v1389 = vld [vmem:[%s1055 + $0x8c] sm:$0x1]
      %v1390 = vld [vmem:[%s1055 + $0x90] sm:$0xf]
      %v1391 = vld [vmem:[%s1055 + $0x94] sm:$0xf]
      %v1392 = vld [vmem:[%s1055 + $0x98] sm:$0x1]
      %v1393 = vld [vmem:[%s1055 + $0x9c] sm:$0xf]
      %v1394 = vld [vmem:[%s1055 + $0xa0] sm:$0xf]
      %v1395 = vld [vmem:[%s1055 + $0xa4] sm:$0x1]
      %v1396 = vld [vmem:[%s1055 + $0xa8] sm:$0xf]
      %v1397 = vld [vmem:[%s1055 + $0xac] sm:$0xf]
      %v1398 = vld [vmem:[%s1055 + $0xb0] sm:$0x1]
      %v1399 = vld [vmem:[%s1055 + $0xb4] sm:$0xf]
      %v1400 = vld [vmem:[%s1055 + $0xb8] sm:$0xf]
      %v1401 = vld [vmem:[%s1055 + $0xbc] sm:$0x1]
      %v1403 = vshrl.u32 %v1354, 16
      %v1405 = vrot.slane %v1403, 4
      %v1406 = vshll.u32 %v1354, 16
      %v1408 = vrot.slane %v1406, 5
      %v1409 = vor.u32 %v1405, %v1408
      %v1410 = vrot.slane %v1409, 4
      %v1412 = vshll.u32 %v1355, 16
      %v1414 = vrot.slane %v1412, 5
      %v1415 = vsel %vm238, %v1410, %v1414
      %v1416 = vshrl.u32 %v1355, 16
      %v1418 = vrot.slane %v1416, 4
      %v1419 = vor.u32 %v1418, %v1414
      %v1420 = vrot.slane %v1419, 4
      %v1422 = vshll.u32 %v1356, 16
      %v1424 = vrot.slane %v1422, 5
      %v1425 = vsel %vm238, %v1420, %v1424
      %v1427 = vshrl.u32 %v1357, 16
      %v1429 = vrot.slane %v1427, 4
      %v1430 = vshll.u32 %v1357, 16
      %v1432 = vrot.slane %v1430, 5
      %v1433 = vor.u32 %v1429, %v1432
      %v1434 = vrot.slane %v1433, 4
      %v1436 = vshll.u32 %v1358, 16
      %v1438 = vrot.slane %v1436, 5
      %v1439 = vsel %vm238, %v1434, %v1438
      %v1440 = vshrl.u32 %v1358, 16
      %v1442 = vrot.slane %v1440, 4
      %v1443 = vor.u32 %v1442, %v1438
      %v1444 = vrot.slane %v1443, 4
      %v1446 = vshll.u32 %v1359, 16
      %v1448 = vrot.slane %v1446, 5
      %v1449 = vsel %vm238, %v1444, %v1448
      %v1451 = vshrl.u32 %v1360, 16
      %v1453 = vrot.slane %v1451, 4
      %v1454 = vshll.u32 %v1360, 16
      %v1456 = vrot.slane %v1454, 5
      %v1457 = vor.u32 %v1453, %v1456
      %v1458 = vrot.slane %v1457, 4
      %v1460 = vshll.u32 %v1361, 16
      %v1462 = vrot.slane %v1460, 5
      %v1463 = vsel %vm238, %v1458, %v1462
      %v1464 = vshrl.u32 %v1361, 16
      %v1466 = vrot.slane %v1464, 4
      %v1467 = vor.u32 %v1466, %v1462
      %v1468 = vrot.slane %v1467, 4
      %v1470 = vshll.u32 %v1362, 16
      %v1472 = vrot.slane %v1470, 5
      %v1473 = vsel %vm238, %v1468, %v1472
      %v1475 = vshrl.u32 %v1363, 16
      %v1477 = vrot.slane %v1475, 4
      %v1478 = vshll.u32 %v1363, 16
      %v1480 = vrot.slane %v1478, 5
      %v1481 = vor.u32 %v1477, %v1480
      %v1482 = vrot.slane %v1481, 4
      %v1484 = vshll.u32 %v1364, 16
      %v1486 = vrot.slane %v1484, 5
      %v1487 = vsel %vm238, %v1482, %v1486
      %v1488 = vshrl.u32 %v1364, 16
      %v1490 = vrot.slane %v1488, 4
      %v1491 = vor.u32 %v1490, %v1486
      %v1492 = vrot.slane %v1491, 4
      %v1494 = vshll.u32 %v1365, 16
      %v1496 = vrot.slane %v1494, 5
      %v1497 = vsel %vm238, %v1492, %v1496
      %v1499 = vshrl.u32 %v1366, 16
      %v1501 = vrot.slane %v1499, 4
      %v1502 = vshll.u32 %v1366, 16
      %v1504 = vrot.slane %v1502, 5
      %v1505 = vor.u32 %v1501, %v1504
      %v1506 = vrot.slane %v1505, 4
      %v1508 = vshll.u32 %v1367, 16
      %v1510 = vrot.slane %v1508, 5
      %v1511 = vsel %vm238, %v1506, %v1510
      %v1512 = vshrl.u32 %v1367, 16
      %v1514 = vrot.slane %v1512, 4
      %v1515 = vor.u32 %v1514, %v1510
      %v1516 = vrot.slane %v1515, 4
      %v1518 = vshll.u32 %v1368, 16
      %v1520 = vrot.slane %v1518, 5
      %v1521 = vsel %vm238, %v1516, %v1520
      %v1523 = vshrl.u32 %v1369, 16
      %v1525 = vrot.slane %v1523, 4
      %v1526 = vshll.u32 %v1369, 16
      %v1528 = vrot.slane %v1526, 5
      %v1529 = vor.u32 %v1525, %v1528
      %v1530 = vrot.slane %v1529, 4
      %v1532 = vshll.u32 %v1370, 16
      %v1534 = vrot.slane %v1532, 5
      %v1535 = vsel %vm238, %v1530, %v1534
      %v1536 = vshrl.u32 %v1370, 16
      %v1538 = vrot.slane %v1536, 4
      %v1539 = vor.u32 %v1538, %v1534
      %v1540 = vrot.slane %v1539, 4
      %v1542 = vshll.u32 %v1371, 16
      %v1544 = vrot.slane %v1542, 5
      %v1545 = vsel %vm238, %v1540, %v1544
      %v1547 = vshrl.u32 %v1372, 16
      %v1549 = vrot.slane %v1547, 4
      %v1550 = vshll.u32 %v1372, 16
      %v1552 = vrot.slane %v1550, 5
      %v1553 = vor.u32 %v1549, %v1552
      %v1554 = vrot.slane %v1553, 4
      %v1556 = vshll.u32 %v1373, 16
      %v1558 = vrot.slane %v1556, 5
      %v1559 = vsel %vm238, %v1554, %v1558
      %v1560 = vshrl.u32 %v1373, 16
      %v1562 = vrot.slane %v1560, 4
      %v1563 = vor.u32 %v1562, %v1558
      %v1564 = vrot.slane %v1563, 4
      %v1566 = vshll.u32 %v1374, 16
      %v1568 = vrot.slane %v1566, 5
      %v1569 = vsel %vm238, %v1564, %v1568
      %v1571 = vshrl.u32 %v1375, 16
      %v1573 = vrot.slane %v1571, 4
      %v1574 = vshll.u32 %v1375, 16
      %v1576 = vrot.slane %v1574, 5
      %v1577 = vor.u32 %v1573, %v1576
      %v1578 = vrot.slane %v1577, 4
      %v1580 = vshll.u32 %v1376, 16
      %v1582 = vrot.slane %v1580, 5
      %v1583 = vsel %vm238, %v1578, %v1582
      %v1584 = vshrl.u32 %v1376, 16
      %v1586 = vrot.slane %v1584, 4
      %v1587 = vor.u32 %v1586, %v1582
      %v1588 = vrot.slane %v1587, 4
      %v1590 = vshll.u32 %v1377, 16
      %v1592 = vrot.slane %v1590, 5
      %v1593 = vsel %vm238, %v1588, %v1592
      %v1595 = vshrl.u32 %v1378, 16
      %v1597 = vrot.slane %v1595, 4
      %v1598 = vshll.u32 %v1378, 16
      %v1600 = vrot.slane %v1598, 5
      %v1601 = vor.u32 %v1597, %v1600
      %v1602 = vrot.slane %v1601, 4
      %v1604 = vshll.u32 %v1379, 16
      %v1606 = vrot.slane %v1604, 5
      %v1607 = vsel %vm238, %v1602, %v1606
      %v1608 = vshrl.u32 %v1379, 16
      %v1610 = vrot.slane %v1608, 4
      %v1611 = vor.u32 %v1610, %v1606
      %v1612 = vrot.slane %v1611, 4
      %v1614 = vshll.u32 %v1380, 16
      %v1616 = vrot.slane %v1614, 5
      %v1617 = vsel %vm238, %v1612, %v1616
      %v1619 = vshrl.u32 %v1381, 16
      %v1621 = vrot.slane %v1619, 4
      %v1622 = vshll.u32 %v1381, 16
      %v1624 = vrot.slane %v1622, 5
      %v1625 = vor.u32 %v1621, %v1624
      %v1626 = vrot.slane %v1625, 4
      %v1628 = vshll.u32 %v1382, 16
      %v1630 = vrot.slane %v1628, 5
      %v1631 = vsel %vm238, %v1626, %v1630
      %v1632 = vshrl.u32 %v1382, 16
      %v1634 = vrot.slane %v1632, 4
      %v1635 = vor.u32 %v1634, %v1630
      %v1636 = vrot.slane %v1635, 4
      %v1638 = vshll.u32 %v1383, 16
      %v1640 = vrot.slane %v1638, 5
      %v1641 = vsel %vm238, %v1636, %v1640
      %v1643 = vshrl.u32 %v1384, 16
      %v1645 = vrot.slane %v1643, 4
      %v1646 = vshll.u32 %v1384, 16
      %v1648 = vrot.slane %v1646, 5
      %v1649 = vor.u32 %v1645, %v1648
      %v1650 = vrot.slane %v1649, 4
      %v1652 = vshll.u32 %v1385, 16
      %v1654 = vrot.slane %v1652, 5
      %v1655 = vsel %vm238, %v1650, %v1654
      %v1656 = vshrl.u32 %v1385, 16
      %v1658 = vrot.slane %v1656, 4
      %v1659 = vor.u32 %v1658, %v1654
      %v1660 = vrot.slane %v1659, 4
      %v1662 = vshll.u32 %v1386, 16
      %v1664 = vrot.slane %v1662, 5
      %v1665 = vsel %vm238, %v1660, %v1664
      %v1667 = vshrl.u32 %v1387, 16
      %v1669 = vrot.slane %v1667, 4
      %v1670 = vshll.u32 %v1387, 16
      %v1672 = vrot.slane %v1670, 5
      %v1673 = vor.u32 %v1669, %v1672
      %v1674 = vrot.slane %v1673, 4
      %v1676 = vshll.u32 %v1388, 16
      %v1678 = vrot.slane %v1676, 5
      %v1679 = vsel %vm238, %v1674, %v1678
      %v1680 = vshrl.u32 %v1388, 16
      %v1682 = vrot.slane %v1680, 4
      %v1683 = vor.u32 %v1682, %v1678
      %v1684 = vrot.slane %v1683, 4
      %v1686 = vshll.u32 %v1389, 16
      %v1688 = vrot.slane %v1686, 5
      %v1689 = vsel %vm238, %v1684, %v1688
      %v1691 = vshrl.u32 %v1390, 16
      %v1693 = vrot.slane %v1691, 4
      %v1694 = vshll.u32 %v1390, 16
      %v1696 = vrot.slane %v1694, 5
      %v1697 = vor.u32 %v1693, %v1696
      %v1698 = vrot.slane %v1697, 4
      %v1700 = vshll.u32 %v1391, 16
      %v1702 = vrot.slane %v1700, 5
      %v1703 = vsel %vm238, %v1698, %v1702
      %v1704 = vshrl.u32 %v1391, 16
      %v1706 = vrot.slane %v1704, 4
      %v1707 = vor.u32 %v1706, %v1702
      %v1708 = vrot.slane %v1707, 4
      %v1710 = vshll.u32 %v1392, 16
      %v1712 = vrot.slane %v1710, 5
      %v1713 = vsel %vm238, %v1708, %v1712
      %v1715 = vshrl.u32 %v1393, 16
      %v1717 = vrot.slane %v1715, 4
      %v1718 = vshll.u32 %v1393, 16
      %v1720 = vrot.slane %v1718, 5
      %v1721 = vor.u32 %v1717, %v1720
      %v1722 = vrot.slane %v1721, 4
      %v1724 = vshll.u32 %v1394, 16
      %v1726 = vrot.slane %v1724, 5
      %v1727 = vsel %vm238, %v1722, %v1726
      %v1728 = vshrl.u32 %v1394, 16
      %v1730 = vrot.slane %v1728, 4
      %v1731 = vor.u32 %v1730, %v1726
      %v1732 = vrot.slane %v1731, 4
      %v1734 = vshll.u32 %v1395, 16
      %v1736 = vrot.slane %v1734, 5
      %v1737 = vsel %vm238, %v1732, %v1736
      %v1739 = vshrl.u32 %v1396, 16
      %v1741 = vrot.slane %v1739, 4
      %v1742 = vshll.u32 %v1396, 16
      %v1744 = vrot.slane %v1742, 5
      %v1745 = vor.u32 %v1741, %v1744
      %v1746 = vrot.slane %v1745, 4
      %v1748 = vshll.u32 %v1397, 16
      %v1750 = vrot.slane %v1748, 5
      %v1751 = vsel %vm238, %v1746, %v1750
      %v1752 = vshrl.u32 %v1397, 16
      %v1754 = vrot.slane %v1752, 4
      %v1755 = vor.u32 %v1754, %v1750
      %v1756 = vrot.slane %v1755, 4
      %v1758 = vshll.u32 %v1398, 16
      %v1760 = vrot.slane %v1758, 5
      %v1761 = vsel %vm238, %v1756, %v1760
      %v1763 = vshrl.u32 %v1399, 16
      %v1765 = vrot.slane %v1763, 4
      %v1766 = vshll.u32 %v1399, 16
      %v1768 = vrot.slane %v1766, 5
      %v1769 = vor.u32 %v1765, %v1768
      %v1770 = vrot.slane %v1769, 4
      %v1772 = vshll.u32 %v1400, 16
      %v1774 = vrot.slane %v1772, 5
      %v1775 = vsel %vm238, %v1770, %v1774
      %v1776 = vshrl.u32 %v1400, 16
      %v1778 = vrot.slane %v1776, 4
      %v1779 = vor.u32 %v1778, %v1774
      %v1780 = vrot.slane %v1779, 4
      %v1782 = vshll.u32 %v1401, 16
      %v1784 = vrot.slane %v1782, 5
      %v1785 = vsel %vm238, %v1780, %v1784
      %s1786 = scalar_lea.vmem %s1, 48
      %v1787 = vld [vmem:[%s1786] sm:$0xf]
      %v1788 = vld [vmem:[%s1786 + $0x4] sm:$0xf]
      %v1789 = vld [vmem:[%s1786 + $0x8] sm:$0xf]
      %v1790 = vld [vmem:[%s1786 + $0xc] sm:$0xf]
      %v1791 = vunpack.c.l.b16 %v1415
      %v1792 = vunpack.c.l.b16 %v1425
      %v1793 = vunpack.c.l.b16 %v1439
      %v1794 = vunpack.c.l.b16 %v1449
      %v1795 = vunpack.c.l.b16 %v1463
      %v1796 = vunpack.c.l.b16 %v1473
      %v1797 = vunpack.c.l.b16 %v1487
      %v1798 = vunpack.c.l.b16 %v1497
      %v1799 = vunpack.c.l.b16 %v1511
      %v1800 = vunpack.c.l.b16 %v1521
      %v1801 = vunpack.c.l.b16 %v1535
      %v1802 = vunpack.c.l.b16 %v1545
      %v1803 = vunpack.c.l.b16 %v1559
      %v1804 = vunpack.c.l.b16 %v1569
      %v1805 = vunpack.c.l.b16 %v1583
      %v1806 = vunpack.c.l.b16 %v1593
      %v1807 = vunpack.c.l.b16 %v1607
      %v1808 = vunpack.c.l.b16 %v1617
      %v1809 = vunpack.c.l.b16 %v1631
      %v1810 = vunpack.c.l.b16 %v1641
      %v1811 = vunpack.c.l.b16 %v1655
      %v1812 = vunpack.c.l.b16 %v1665
      %v1813 = vunpack.c.l.b16 %v1679
      %v1814 = vunpack.c.l.b16 %v1689
      %v1815 = vunpack.c.l.b16 %v1703
      %v1816 = vunpack.c.l.b16 %v1713
      %v1817 = vunpack.c.l.b16 %v1727
      %v1818 = vunpack.c.l.b16 %v1737
      %v1819 = vunpack.c.l.b16 %v1751
      %v1820 = vunpack.c.l.b16 %v1761
      %v1821 = vunpack.c.l.b16 %v1775
      %v1822 = vunpack.c.l.b16 %v1785
      %v1823 = vpack.c.b16 %v1792, %v1791
      %v1824 = vpack.c.b16 %v1794, %v1793
      %v1825 = vpack.c.b16 %v1796, %v1795
      %v1826 = vpack.c.b16 %v1798, %v1797
      %v1827 = vpack.c.b16 %v1800, %v1799
      %v1828 = vpack.c.b16 %v1802, %v1801
      %v1829 = vpack.c.b16 %v1804, %v1803
      %v1830 = vpack.c.b16 %v1806, %v1805
      %v1831 = vpack.c.b16 %v1808, %v1807
      %v1832 = vpack.c.b16 %v1810, %v1809
      %v1833 = vpack.c.b16 %v1812, %v1811
      %v1834 = vpack.c.b16 %v1814, %v1813
      %v1835 = vpack.c.b16 %v1816, %v1815
      %v1836 = vpack.c.b16 %v1818, %v1817
      %v1837 = vpack.c.b16 %v1820, %v1819
      %v1838 = vpack.c.b16 %v1822, %v1821
      %v1843 = vunpack.c.l.b16 %v1787
      %v1844 = vunpack.c.l.b16 %v1788
      %v1845 = vunpack.c.l.b16 %v1789
      %v1846 = vunpack.c.l.b16 %v1790
      %v1847 = vpack.c.b16 %v1844, %v1843
      %v1848 = vpack.c.b16 %v1846, %v1845
      %v1852 = vsel %vm688, %v1823, 0
      %v1855 = vsel %vm688, %v1824, 0
      %v1858 = vsel %vm688, %v1825, 0
      %v1861 = vsel %vm688, %v1826, 0
      %v1864 = vsel %vm688, %v1827, 0
      %v1867 = vsel %vm688, %v1828, 0
      %v1870 = vsel %vm688, %v1829, 0
      %v1873 = vsel %vm688, %v1830, 0
      %v1876 = vsel %vm688, %v1831, 0
      %v1879 = vsel %vm688, %v1832, 0
      %v1882 = vsel %vm688, %v1833, 0
      %v1885 = vsel %vm688, %v1834, 0
      %v1888 = vsel %vm688, %v1835, 0
      %v1891 = vsel %vm688, %v1836, 0
      %v1894 = vsel %vm688, %v1837, 0
      %v1897 = vsel %vm688, %v1838, 0
      %1899 = vmatpush.bf16.msra.mxu0 0
      %1900 = vmatpush.bf16.msra.mxu0 0
      %1901 = vmatpush.bf16.msra.mxu0 0
      %1902 = vmatpush.bf16.msra.mxu0 0
      %1903 = vmatpush.bf16.msra.mxu0 0
      %1904 = vmatpush.bf16.msra.mxu0 0
      %1905 = vmatpush.bf16.msra.mxu0 %v1848
      %1906 = vmatpush.bf16.msra.mxu0 %v1847
      %1907 = vmatmul.bf16.gmra.mxu0 %v1852
      %v1908 = vpop.f32.mrf.mxu0
      %v1909 = vadd.f32 0.0, %v1908
      %v1910 = vpop.f32.mrf.mxu0
      %v1911 = vadd.f32 0.0, %v1910
      %1912 = vmatmul.bf16.gmra.mxu0 %v1855
      %v1913 = vpop.f32.mrf.mxu0
      %v1914 = vadd.f32 0.0, %v1913
      %v1915 = vpop.f32.mrf.mxu0
      %v1916 = vadd.f32 0.0, %v1915
      %1917 = vmatmul.bf16.gmra.mxu0 %v1858
      %v1918 = vpop.f32.mrf.mxu0
      %v1919 = vadd.f32 0.0, %v1918
      %v1920 = vpop.f32.mrf.mxu0
      %v1921 = vadd.f32 0.0, %v1920
      %1922 = vmatmul.bf16.gmra.mxu0 %v1861
      %v1923 = vpop.f32.mrf.mxu0
      %v1924 = vadd.f32 0.0, %v1923
      %v1925 = vpop.f32.mrf.mxu0
      %v1926 = vadd.f32 0.0, %v1925
      %1927 = vmatmul.bf16.gmra.mxu0 %v1864
      %v1928 = vpop.f32.mrf.mxu0
      %v1929 = vadd.f32 0.0, %v1928
      %v1930 = vpop.f32.mrf.mxu0
      %v1931 = vadd.f32 0.0, %v1930
      %1932 = vmatmul.bf16.gmra.mxu0 %v1867
      %v1933 = vpop.f32.mrf.mxu0
      %v1934 = vadd.f32 0.0, %v1933
      %v1935 = vpop.f32.mrf.mxu0
      %v1936 = vadd.f32 0.0, %v1935
      %1937 = vmatmul.bf16.gmra.mxu0 %v1870
      %v1938 = vpop.f32.mrf.mxu0
      %v1939 = vadd.f32 0.0, %v1938
      %v1940 = vpop.f32.mrf.mxu0
      %v1941 = vadd.f32 0.0, %v1940
      %1942 = vmatmul.bf16.gmra.mxu0 %v1873
      %v1943 = vpop.f32.mrf.mxu0
      %v1944 = vadd.f32 0.0, %v1943
      %v1945 = vpop.f32.mrf.mxu0
      %v1946 = vadd.f32 0.0, %v1945
      %1947 = vmatmul.bf16.gmra.mxu0 %v1876
      %v1948 = vpop.f32.mrf.mxu0
      %v1949 = vadd.f32 0.0, %v1948
      %v1950 = vpop.f32.mrf.mxu0
      %v1951 = vadd.f32 0.0, %v1950
      %1952 = vmatmul.bf16.gmra.mxu0 %v1879
      %v1953 = vpop.f32.mrf.mxu0
      %v1954 = vadd.f32 0.0, %v1953
      %v1955 = vpop.f32.mrf.mxu0
      %v1956 = vadd.f32 0.0, %v1955
      %1957 = vmatmul.bf16.gmra.mxu0 %v1882
      %v1958 = vpop.f32.mrf.mxu0
      %v1959 = vadd.f32 0.0, %v1958
      %v1960 = vpop.f32.mrf.mxu0
      %v1961 = vadd.f32 0.0, %v1960
      %1962 = vmatmul.bf16.gmra.mxu0 %v1885
      %v1963 = vpop.f32.mrf.mxu0
      %v1964 = vadd.f32 0.0, %v1963
      %v1965 = vpop.f32.mrf.mxu0
      %v1966 = vadd.f32 0.0, %v1965
      %1967 = vmatmul.bf16.gmra.mxu0 %v1888
      %v1968 = vpop.f32.mrf.mxu0
      %v1969 = vadd.f32 0.0, %v1968
      %v1970 = vpop.f32.mrf.mxu0
      %v1971 = vadd.f32 0.0, %v1970
      %1972 = vmatmul.bf16.gmra.mxu0 %v1891
      %v1973 = vpop.f32.mrf.mxu0
      %v1974 = vadd.f32 0.0, %v1973
      %v1975 = vpop.f32.mrf.mxu0
      %v1976 = vadd.f32 0.0, %v1975
      %1977 = vmatmul.bf16.gmra.mxu0 %v1894
      %v1978 = vpop.f32.mrf.mxu0
      %v1979 = vadd.f32 0.0, %v1978
      %v1980 = vpop.f32.mrf.mxu0
      %v1981 = vadd.f32 0.0, %v1980
      %1982 = vmatmul.bf16.gmra.mxu0 %v1897
      %v1983 = vpop.f32.mrf.mxu0
      %v1984 = vadd.f32 0.0, %v1983
      %v1985 = vpop.f32.mrf.mxu0
      %v1986 = vadd.f32 0.0, %v1985
      %1987 = vdwg.mxu0
      %v1988 = vadd.f32 %v1322, %v1909
      %v1989 = vadd.f32 %v1323, %v1911
      %v1990 = vadd.f32 %v1324, %v1914
      %v1991 = vadd.f32 %v1325, %v1916
      %v1992 = vadd.f32 %v1326, %v1919
      %v1993 = vadd.f32 %v1327, %v1921
      %v1994 = vadd.f32 %v1328, %v1924
      %v1995 = vadd.f32 %v1329, %v1926
      %v1996 = vadd.f32 %v1330, %v1929
      %v1997 = vadd.f32 %v1331, %v1931
      %v1998 = vadd.f32 %v1332, %v1934
      %v1999 = vadd.f32 %v1333, %v1936
      %v2000 = vadd.f32 %v1334, %v1939
      %v2001 = vadd.f32 %v1335, %v1941
      %v2002 = vadd.f32 %v1336, %v1944
      %v2003 = vadd.f32 %v1337, %v1946
      %v2004 = vadd.f32 %v1338, %v1949
      %v2005 = vadd.f32 %v1339, %v1951
      %v2006 = vadd.f32 %v1340, %v1954
      %v2007 = vadd.f32 %v1341, %v1956
      %v2008 = vadd.f32 %v1342, %v1959
      %v2009 = vadd.f32 %v1343, %v1961
      %v2010 = vadd.f32 %v1344, %v1964
      %v2011 = vadd.f32 %v1345, %v1966
      %v2012 = vadd.f32 %v1346, %v1969
      %v2013 = vadd.f32 %v1347, %v1971
      %v2014 = vadd.f32 %v1348, %v1974
      %v2015 = vadd.f32 %v1349, %v1976
      %v2016 = vadd.f32 %v1350, %v1979
      %v2017 = vadd.f32 %v1351, %v1981
      %v2018 = vadd.f32 %v1352, %v1984
      %v2019 = vadd.f32 %v1353, %v1986
      %v2020 = vpack.c.bf16 %v1988, %v1988
      %v2021 = vpack.c.bf16 %v1989, %v1989
      %v2022 = vpack.c.bf16 %v1990, %v1990
      %v2023 = vpack.c.bf16 %v1991, %v1991
      %v2024 = vpack.c.bf16 %v1992, %v1992
      %v2025 = vpack.c.bf16 %v1993, %v1993
      %v2026 = vpack.c.bf16 %v1994, %v1994
      %v2027 = vpack.c.bf16 %v1995, %v1995
      %v2028 = vpack.c.bf16 %v1996, %v1996
      %v2029 = vpack.c.bf16 %v1997, %v1997
      %v2030 = vpack.c.bf16 %v1998, %v1998
      %v2031 = vpack.c.bf16 %v1999, %v1999
      %v2032 = vpack.c.bf16 %v2000, %v2000
      %v2033 = vpack.c.bf16 %v2001, %v2001
      %v2034 = vpack.c.bf16 %v2002, %v2002
      %v2035 = vpack.c.bf16 %v2003, %v2003
      %v2036 = vpack.c.bf16 %v2004, %v2004
      %v2037 = vpack.c.bf16 %v2005, %v2005
      %v2038 = vpack.c.bf16 %v2006, %v2006
      %v2039 = vpack.c.bf16 %v2007, %v2007
      %v2040 = vpack.c.bf16 %v2008, %v2008
      %v2041 = vpack.c.bf16 %v2009, %v2009
      %v2042 = vpack.c.bf16 %v2010, %v2010
      %v2043 = vpack.c.bf16 %v2011, %v2011
      %v2044 = vpack.c.bf16 %v2012, %v2012
      %v2045 = vpack.c.bf16 %v2013, %v2013
      %v2046 = vpack.c.bf16 %v2014, %v2014
      %v2047 = vpack.c.bf16 %v2015, %v2015
      %v2048 = vpack.c.bf16 %v2016, %v2016
      %v2049 = vpack.c.bf16 %v2017, %v2017
      %v2050 = vpack.c.bf16 %v2018, %v2018
      %v2051 = vpack.c.bf16 %v2019, %v2019
      %2052 = vst [vmem:[%s177] sm:$0xf] %v2020
      %2053 = vst [vmem:[%s177 + $0x4] sm:$0xf] %v2021
      %2054 = vst [vmem:[%s177 + $0x8] sm:$0xf] %v2022
      %2055 = vst [vmem:[%s177 + $0xc] sm:$0xf] %v2023
      %2056 = vst [vmem:[%s177 + $0x10] sm:$0xf] %v2024
      %2057 = vst [vmem:[%s177 + $0x14] sm:$0xf] %v2025
      %2058 = vst [vmem:[%s177 + $0x18] sm:$0xf] %v2026
      %2059 = vst [vmem:[%s177 + $0x1c] sm:$0xf] %v2027
      %2060 = vst [vmem:[%s177 + $0x20] sm:$0xf] %v2028
      %2061 = vst [vmem:[%s177 + $0x24] sm:$0xf] %v2029
      %2062 = vst [vmem:[%s177 + $0x28] sm:$0xf] %v2030
      %2063 = vst [vmem:[%s177 + $0x2c] sm:$0xf] %v2031
      %2064 = vst [vmem:[%s177 + $0x30] sm:$0xf] %v2032
      %2065 = vst [vmem:[%s177 + $0x34] sm:$0xf] %v2033
      %2066 = vst [vmem:[%s177 + $0x38] sm:$0xf] %v2034
      %2067 = vst [vmem:[%s177 + $0x3c] sm:$0xf] %v2035
      %2068 = vst [vmem:[%s177 + $0x40] sm:$0xf] %v2036
      %2069 = vst [vmem:[%s177 + $0x44] sm:$0xf] %v2037
      %2070 = vst [vmem:[%s177 + $0x48] sm:$0xf] %v2038
      %2071 = vst [vmem:[%s177 + $0x4c] sm:$0xf] %v2039
      %2072 = vst [vmem:[%s177 + $0x50] sm:$0xf] %v2040
      %2073 = vst [vmem:[%s177 + $0x54] sm:$0xf] %v2041
      %2074 = vst [vmem:[%s177 + $0x58] sm:$0xf] %v2042
      %2075 = vst [vmem:[%s177 + $0x5c] sm:$0xf] %v2043
      %2076 = vst [vmem:[%s177 + $0x60] sm:$0xf] %v2044
      %2077 = vst [vmem:[%s177 + $0x64] sm:$0xf] %v2045
      %2078 = vst [vmem:[%s177 + $0x68] sm:$0xf] %v2046
      %2079 = vst [vmem:[%s177 + $0x6c] sm:$0xf] %v2047
      %2080 = vst [vmem:[%s177 + $0x70] sm:$0xf] %v2048
      %2081 = vst [vmem:[%s177 + $0x74] sm:$0xf] %v2049
      %2082 = vst [vmem:[%s177 + $0x78] sm:$0xf] %v2050
      %2083 = vst [vmem:[%s177 + $0x7c] sm:$0xf] %v2051
      %2084 = vst [vmem:[%s182] sm:$0xff] 0.0
      %v2085 = vadd.f32 %v1988, %v1989
      %v2086 = vadd.f32 %v2085, %v1990
      %v2087 = vadd.f32 %v2086, %v1991
      %v2088 = vadd.f32 %v2087, %v1992
      %v2089 = vadd.f32 %v2088, %v1993
      %v2090 = vadd.f32 %v2089, %v1994
      %v2091 = vadd.f32 %v2090, %v1995
      %v2092 = vadd.f32 %v2091, %v1996
      %v2093 = vadd.f32 %v2092, %v1997
      %v2094 = vadd.f32 %v2093, %v1998
      %v2095 = vadd.f32 %v2094, %v1999
      %v2096 = vadd.f32 %v2095, %v2000
      %v2097 = vadd.f32 %v2096, %v2001
      %v2098 = vadd.f32 %v2097, %v2002
      %v2099 = vadd.f32 %v2098, %v2003
      %v2100 = vadd.f32 %v2099, %v2004
      %v2101 = vadd.f32 %v2100, %v2005
      %v2102 = vadd.f32 %v2101, %v2006
      %v2103 = vadd.f32 %v2102, %v2007
      %v2104 = vadd.f32 %v2103, %v2008
      %v2105 = vadd.f32 %v2104, %v2009
      %v2106 = vadd.f32 %v2105, %v2010
      %v2107 = vadd.f32 %v2106, %v2011
      %v2108 = vadd.f32 %v2107, %v2012
      %v2109 = vadd.f32 %v2108, %v2013
      %v2110 = vadd.f32 %v2109, %v2014
      %v2111 = vadd.f32 %v2110, %v2015
      %v2112 = vadd.f32 %v2111, %v2016
      %v2113 = vadd.f32 %v2112, %v2017
      %v2114 = vadd.f32 %v2113, %v2018
      %v2115 = vadd.f32 %v2114, %v2019
      %v2116 = vrot.slane %v2115, 4
      %v2117 = vadd.f32 %v2115, %v2116
      %v2118 = vrot.slane %v2117, 2
      %v2119 = vadd.f32 %v2117, %v2118
      %v2120 = vrot.slane %v2119, 1
      %v2121 = vadd.f32 %v2119, %v2120
      %v2122 = vmul.f32 %v1988, %v1988
      %v2123 = vmul.f32 %v1989, %v1989
      %v2124 = vmul.f32 %v1990, %v1990
      %v2125 = vmul.f32 %v1991, %v1991
      %v2126 = vmul.f32 %v1992, %v1992
      %v2127 = vmul.f32 %v1993, %v1993
      %v2128 = vmul.f32 %v1994, %v1994
      %v2129 = vmul.f32 %v1995, %v1995
      %v2130 = vmul.f32 %v1996, %v1996
      %v2131 = vmul.f32 %v1997, %v1997
      %v2132 = vmul.f32 %v1998, %v1998
      %v2133 = vmul.f32 %v1999, %v1999
      %v2134 = vmul.f32 %v2000, %v2000
      %v2135 = vmul.f32 %v2001, %v2001
      %v2136 = vmul.f32 %v2002, %v2002
      %v2137 = vmul.f32 %v2003, %v2003
      %v2138 = vmul.f32 %v2004, %v2004
      %v2139 = vmul.f32 %v2005, %v2005
      %v2140 = vmul.f32 %v2006, %v2006
      %v2141 = vmul.f32 %v2007, %v2007
      %v2142 = vmul.f32 %v2008, %v2008
      %v2143 = vmul.f32 %v2009, %v2009
      %v2144 = vmul.f32 %v2010, %v2010
      %v2145 = vmul.f32 %v2011, %v2011
      %v2146 = vmul.f32 %v2012, %v2012
      %v2147 = vmul.f32 %v2013, %v2013
      %v2148 = vmul.f32 %v2014, %v2014
      %v2149 = vmul.f32 %v2015, %v2015
      %v2150 = vmul.f32 %v2016, %v2016
      %v2151 = vmul.f32 %v2017, %v2017
      %v2152 = vmul.f32 %v2018, %v2018
      %v2153 = vmul.f32 %v2019, %v2019
      %v2154 = vadd.f32 %v2122, %v2123
      %v2155 = vadd.f32 %v2154, %v2124
      %v2156 = vadd.f32 %v2155, %v2125
      %v2157 = vadd.f32 %v2156, %v2126
      %v2158 = vadd.f32 %v2157, %v2127
      %v2159 = vadd.f32 %v2158, %v2128
      %v2160 = vadd.f32 %v2159, %v2129
      %v2161 = vadd.f32 %v2160, %v2130
      %v2162 = vadd.f32 %v2161, %v2131
      %v2163 = vadd.f32 %v2162, %v2132
      %v2164 = vadd.f32 %v2163, %v2133
      %v2165 = vadd.f32 %v2164, %v2134
      %v2166 = vadd.f32 %v2165, %v2135
      %v2167 = vadd.f32 %v2166, %v2136
      %v2168 = vadd.f32 %v2167, %v2137
      %v2169 = vadd.f32 %v2168, %v2138
      %v2170 = vadd.f32 %v2169, %v2139
      %v2171 = vadd.f32 %v2170, %v2140
      %v2172 = vadd.f32 %v2171, %v2141
      %v2173 = vadd.f32 %v2172, %v2142
      %v2174 = vadd.f32 %v2173, %v2143
      %v2175 = vadd.f32 %v2174, %v2144
      %v2176 = vadd.f32 %v2175, %v2145
      %v2177 = vadd.f32 %v2176, %v2146
      %v2178 = vadd.f32 %v2177, %v2147
      %v2179 = vadd.f32 %v2178, %v2148
      %v2180 = vadd.f32 %v2179, %v2149
      %v2181 = vadd.f32 %v2180, %v2150
      %v2182 = vadd.f32 %v2181, %v2151
      %v2183 = vadd.f32 %v2182, %v2152
      %v2184 = vadd.f32 %v2183, %v2153
      %v2185 = vrot.slane %v2184, 4
      %v2186 = vadd.f32 %v2184, %v2185
      %v2187 = vrot.slane %v2186, 2
      %v2188 = vadd.f32 %v2186, %v2187
      %v2189 = vrot.slane %v2188, 1
      %v2190 = vadd.f32 %v2188, %v2189
      %2191 = vst [vmem:[%s182] sm:$0x1] %v2121
      %2192 = vst [vmem:[%s182 + $0x1] sm:$0x1] %v2190
      %s2193 = smul.u32 32, %s15
      %p2194 = scmp.lt.s32.totalorder %s2193, 63
      %s2195 = scalar_select %p2194, %s2193, 63
      %s2196 = smul.addr %s2195, 4
      %s2197 = scalar_lea.vmem %s2, %s2196
      %p2198 = scmp.lt.s32.totalorder %s15, 1
      %s2199 = scalar_select %p2198, %s15, 1
      %s2200 = smul.addr %s2199, 8
      %s2201 = scalar_lea.vmem %s3, %s2200
      // Predicated region
      $region29: #{image_discriminator64_forward.9} parent=27 // pred_check
        %p2202 = pneg %p80
      $region30: #{image_discriminator64_forward.9} parent=27 // pred_check_branch
        %2204 = sbr.rel (%p2202) target = $region32
      $region31: #{image_discriminator64_forward.9} parent=27 // pred_region
        %s2205 = smul.u32 32, %s15
      $region32: #{image_discriminator64_forward.9} parent=27 // pred_fallthru
        _
      // Predicated region
      $region33: #{image_discriminator64_forward.9} parent=27 // pred_check
        %p2206 = pneg %p106
      $region34: #{image_discriminator64_forward.9} parent=27 // pred_check_branch
        %2208 = sbr.rel (%p2206) target = $region36
      $region35: #{image_discriminator64_forward.9} parent=27 // pred_region
        _
      $region36: #{image_discriminator64_forward.9} parent=27 // pred_fallthru
        _
    $region28: #{image_discriminator64_forward.9} parent=5 // pred_fallthru
      _
    %p2209 = scmp.le.s32.totalorder 2, %s10
    // Predicated region
    $region37: #{image_discriminator64_forward.9} parent=5 // pred_check
      %p2210 = pneg %p2209
    $region38: #{image_discriminator64_forward.9} parent=5 // pred_check_branch
      %2212 = sbr.rel (%p2210) target = $region40
    $region39: #{image_discriminator64_forward.9} parent=5 // pred_region
      %s2213 = ssub.s32 %s10, 2
      // Predicated region
      $region41: #{image_discriminator64_forward.9} parent=39 // pred_check
        %p2214 = pneg %p86
      $region42: #{image_discriminator64_forward.9} parent=39 // pred_check_branch
        %2216 = sbr.rel (%p2214) target = $region44
      $region43: #{image_discriminator64_forward.9} parent=39 // pred_region
        %s2217 = smul.u32 32, %s16
        %p2218 = scmp.lt.s32.totalorder %s2217, 63
        %s2219 = scalar_select %p2218, %s2217, 63
        %s2220 = smul.addr %s2219, 4
        %s2221 = scalar_lea.vmem %s2, %s2220
      $region44: #{image_discriminator64_forward.9} parent=39 // pred_fallthru
        _
      // Predicated region
      $region45: #{image_discriminator64_forward.9} parent=39 // pred_check
        %p2222 = pneg %p112
      $region46: #{image_discriminator64_forward.9} parent=39 // pred_check_branch
        %2224 = sbr.rel (%p2222) target = $region48
      $region47: #{image_discriminator64_forward.9} parent=39 // pred_region
        %p2225 = scmp.lt.s32.totalorder %s16, 1
        %s2226 = scalar_select %p2225, %s16, 1
        %s2227 = smul.addr %s2226, 8
        %s2228 = scalar_lea.vmem %s3, %s2227
      $region48: #{image_discriminator64_forward.9} parent=39 // pred_fallthru
        _
    $region40: #{image_discriminator64_forward.9} parent=5 // pred_fallthru
      _
  $region6: #{image_discriminator64_forward.9} parent=0 // loop_footer
    %s14 = sadd.s32 1, %s10
  $region7: #{image_discriminator64_forward.9} parent=0 // loop_footer_branch
    %9 = sbr.rel target = $region3
  $region8: #{image_discriminator64_forward.9} parent=0 // loop_exit
    _

// kernel: image_discriminator64_forward.8
$region0: #{image_discriminator64_forward.8}
  #allocation0 [shape = 'u32[]', space=smem, size = 0x4, offset = 0x4, fixed_abs, tag = 'smem constant byte address 0x4 - core index']
  #allocation1 [shape = 'u32[72,128]{1,0:T(1,128)}', space=vmem, size = 0x9000, scoped, tag = 'internal scratch']
  %s0 = inlined_call_operand.vmem [shape: bf16[2,33,33,16], index: 0, kind: input, shape index: {}]
  %s1 = inlined_call_operand.vmem [shape: bf16[2,2,16,128], index: 1, kind: input, shape index: {}]
  %s2 = inlined_call_operand.vmem [shape: bf16[2048,128], index: 2, kind: output, shape index: {}]
  %s3 = sld [smem:[#allocation0]]
  $region41: #{image_discriminator64_forward.8} parent=0
    _
  %s5 = ssub.s32 1, %s3
  %s6 = scalar_select 0, %s5, %s3
  loop: start=0, step=1, limit=4
  $region2: #{image_discriminator64_forward.8} parent=0 // loop_pre_header
    _
  $region3: #{image_discriminator64_forward.8} parent=0 // loop_header
    %s8 = sphi 0, %s12
    %p9 = scmp.ge.s32.totalorder %s8, 4
    %s18 = sphi 0, %s20
    %s21 = sphi 0, %s18
    %s22 = sphi 0, %s21
    %s38 = sphi 0, %s22
    %s42 = sphi 0, %s42
    %s44 = sphi 0, %s42
    %s45 = sphi 0, %s44
    %s59 = sphi 0, %s45
    %s65 = sphi 0, %s67
    %s68 = sphi 0, %s65
    %s69 = sphi 0, %s68
    %s85 = sphi 0, %s69
  $region4: #{image_discriminator64_forward.8} parent=0 // loop_header_branch
    %11 = sbr.rel (%p9) target = $region8
  $region5: #{image_discriminator64_forward.8} parent=0 // loop_body
    %s13 = ssub.s32 %s8, 1
    %s14 = ssub.s32 %s8, 2
    %s15 = sadd.s32 %s8, 1
    %s16 = ssub.s32 %s8, %s15
    %p17 = scmp.eq.s32.totalorder %s16, 0
    %s19 = sadd.s32 %s18, 1
    %s20 = scalar_select %p17, %s18, %s19
    %p23 = pneg %p17
    %p24 = scmp.eq.s32.totalorder %s8, 1
    %p25 = por %p23, %p24
    %p26 = scmp.ne.s32.totalorder %s18, %s21
    %p27 = scmp.eq.s32.totalorder %s8, 0
    %p28 = por %p26, %p27
    %p29 = scmp.ne.s32.totalorder %s18, %s21
    %p30 = scmp.eq.s32.totalorder %s13, 1
    %p31 = por %p29, %p30
    %p32 = scmp.ne.s32.totalorder %s21, %s22
    %p33 = scmp.eq.s32.totalorder %s13, 0
    %p34 = por %p32, %p33
    %p35 = scmp.ne.s32.totalorder %s21, %s22
    %p36 = scmp.eq.s32.totalorder %s14, 1
    %p37 = por %p35, %p36
    %p39 = scmp.ne.s32.totalorder %s22, %s38
    %p40 = scmp.eq.s32.totalorder %s14, 0
    %p41 = por %p39, %p40
    %s43 = sadd.s32 %s42, 1
    %p46 = scmp.eq.s32.totalorder %s8, 1
    %p47 = scmp.ne.s32.totalorder %s42, %s44
    %p48 = scmp.eq.s32.totalorder %s8, 0
    %p49 = por %p47, %p48
    %p50 = scmp.ne.s32.totalorder %s42, %s44
    %p51 = scmp.eq.s32.totalorder %s13, 1
    %p52 = por %p50, %p51
    %p53 = scmp.ne.s32.totalorder %s44, %s45
    %p54 = scmp.eq.s32.totalorder %s13, 0
    %p55 = por %p53, %p54
    %p56 = scmp.ne.s32.totalorder %s44, %s45
    %p57 = scmp.eq.s32.totalorder %s14, 1
    %p58 = por %p56, %p57
    %p60 = scmp.ne.s32.totalorder %s45, %s59
    %p61 = scmp.eq.s32.totalorder %s14, 0
    %p62 = por %p60, %p61
    %s63 = ssub.s32 %s8, %s15
    %p64 = scmp.eq.s32.totalorder %s63, 0
    %s66 = sadd.s32 %s65, 1
    %s67 = scalar_select %p64, %s65, %s66
    %p70 = pneg %p64
    %p71 = scmp.eq.s32.totalorder %s8, 1
    %p72 = por %p70, %p71
    %p73 = scmp.ne.s32.totalorder %s65, %s68
    %p74 = scmp.eq.s32.totalorder %s8, 0
    %p75 = por %p73, %p74
    %p76 = scmp.ne.s32.totalorder %s65, %s68
    %p77 = scmp.eq.s32.totalorder %s13, 1
    %p78 = por %p76, %p77
    %p79 = scmp.ne.s32.totalorder %s68, %s69
    %p80 = scmp.eq.s32.totalorder %s13, 0
    %p81 = por %p79, %p80
    %p82 = scmp.ne.s32.totalorder %s68, %s69
    %p83 = scmp.eq.s32.totalorder %s14, 1
    %p84 = por %p82, %p83
    %p86 = scmp.ne.s32.totalorder %s69, %s85
    %p87 = scmp.eq.s32.totalorder %s14, 0
    %p88 = por %p86, %p87
    %p89 = scmp.le.s32.totalorder 1, %s8
    %p90 = scmp.lt.s32.totalorder %s8, 3
    %p91 = pnand %p89, %p90
    %p92 = pneg %p91
    // Predicated region
    $region9: #{image_discriminator64_forward.8} parent=5 // pred_check
      _
    $region10: #{image_discriminator64_forward.8} parent=5 // pred_check_branch
      %94 = sbr.rel (%p91) target = $region12
    $region11: #{image_discriminator64_forward.8} parent=5 // pred_region
      %s95 = ssub.s32 %s8, 1
      // Predicated region
      $region13: #{image_discriminator64_forward.8} parent=11 // pred_check
        %p96 = pneg %p55
      $region14: #{image_discriminator64_forward.8} parent=11 // pred_check_branch
        %98 = sbr.rel (%p96) target = $region16
      $region15: #{image_discriminator64_forward.8} parent=11 // pred_region
        _
      $region16: #{image_discriminator64_forward.8} parent=11 // pred_fallthru
        _
    $region12: #{image_discriminator64_forward.8} parent=5 // pred_fallthru
      _
    %p99 = scmp.lt.s32.totalorder %s8, 2
    // Predicated region
    $region17: #{image_discriminator64_forward.8} parent=5 // pred_check
      %p100 = pneg %p99
    $region18: #{image_discriminator64_forward.8} parent=5 // pred_check_branch
      %102 = sbr.rel (%p100) target = $region20
    $region19: #{image_discriminator64_forward.8} parent=5 // pred_region
      // Predicated region
      $region21: #{image_discriminator64_forward.8} parent=19 // pred_check
        %p103 = pneg %p28
      $region22: #{image_discriminator64_forward.8} parent=19 // pred_check_branch
        %105 = sbr.rel (%p103) target = $region24
      $region23: #{image_discriminator64_forward.8} parent=19 // pred_region
        %p106 = scmp.lt.s32.totalorder %s8, 1
        %s107 = scalar_select %p106, %s8, 1
        %s108 = smul.addr %s107, 165
        %s109 = smul.addr %s108, 4
        %s110 = scalar_lea.vmem %s0, %s109
      $region24: #{image_discriminator64_forward.8} parent=19 // pred_fallthru
        _
    $region20: #{image_discriminator64_forward.8} parent=5 // pred_fallthru
      _
    %p111 = scmp.le.s32.totalorder 1, %s8
    %p112 = scmp.lt.s32.totalorder %s8, 3
    %p113 = pnand %p111, %p112
    %p114 = pneg %p113
    // Predicated region
    $region25: #{image_discriminator64_forward.8} parent=5 // pred_check
      _
    $region26: #{image_discriminator64_forward.8} parent=5 // pred_check_branch
      %116 = sbr.rel (%p113) target = $region28
    $region27: #{image_discriminator64_forward.8} parent=5 // pred_region
      %s117 = ssub.s32 %s8, 1
      %p118 = scmp.lt.s32.totalorder %s13, 1
      %s119 = scalar_select %p118, %s13, 1
      %s120 = smul.addr %s119, 165
      %s121 = smul.addr %s120, 4
      %s122 = scalar_lea.vmem %s0, %s121
      %p123 = pneg %p34
      %p124 = pneg %p31
      %p125 = pneg %p55
      %p126 = pneg %p52
      %p127 = pneg %p81
      %p128 = pneg %p78
      %s129 = smul.u32 128, %s13
      %p130 = scmp.lt.s32.totalorder %s129, 255
      %s131 = scalar_select %p130, %s129, 255
      %s132 = smul.addr %s131, 4
      %s133 = scalar_lea.vmem %s2, %s132
      %p134 = scmp.lt.s32.totalorder %s13, 1
      %s135 = scalar_select %p134, %s13, 1
      %s136 = smul.addr %s135, 165
      %s137 = smul.addr %s136, 4
      %s138 = scalar_lea.vmem %s0, %s137
      %s139 = smul.u32 128, %s13
      %p140 = scmp.lt.s32.totalorder %s139, 255
      %s141 = scalar_select %p140, %s139, 255
      %s142 = smul.addr %s141, 4
      %s143 = scalar_lea.vmem %s2, %s142
      %s144 = smul.u32 128, %s13
      %v146 = vld [vmem:[%s138] sm:$0xf]
      %v147 = vld [vmem:[%s138 + $0x4] sm:$0xf]
      %v148 = vld [vmem:[%s138 + $0x8] sm:$0xf]
      %v149 = vld [vmem:[%s138 + $0xc] sm:$0xf]
      %v150 = vld [vmem:[%s138 + $0x14] sm:$0xf]
      %v151 = vld [vmem:[%s138 + $0x18] sm:$0xf]
      %v152 = vld [vmem:[%s138 + $0x1c] sm:$0xf]
      %v153 = vld [vmem:[%s138 + $0x20] sm:$0xf]
      %v154 = vld [vmem:[%s138 + $0x28] sm:$0xf]
      %v155 = vld [vmem:[%s138 + $0x2c] sm:$0xf]
      %v156 = vld [vmem:[%s138 + $0x30] sm:$0xf]
      %v157 = vld [vmem:[%s138 + $0x34] sm:$0xf]
      %v158 = vld [vmem:[%s138 + $0x3c] sm:$0xf]
      %v159 = vld [vmem:[%s138 + $0x40] sm:$0xf]
      %v160 = vld [vmem:[%s138 + $0x44] sm:$0xf]
      %v161 = vld [vmem:[%s138 + $0x48] sm:$0xf]
      %v162 = vld [vmem:[%s138 + $0x50] sm:$0xf]
      %v163 = vld [vmem:[%s138 + $0x54] sm:$0xf]
      %v164 = vld [vmem:[%s138 + $0x58] sm:$0xf]
      %v165 = vld [vmem:[%s138 + $0x5c] sm:$0xf]
      %v166 = vld [vmem:[%s138 + $0x64] sm:$0xf]
      %v167 = vld [vmem:[%s138 + $0x68] sm:$0xf]
      %v168 = vld [vmem:[%s138 + $0x6c] sm:$0xf]
      %v169 = vld [vmem:[%s138 + $0x70] sm:$0xf]
      %v170 = vld [vmem:[%s138 + $0x78] sm:$0xf]
      %v171 = vld [vmem:[%s138 + $0x7c] sm:$0xf]
      %v172 = vld [vmem:[%s138 + $0x80] sm:$0xf]
      %v173 = vld [vmem:[%s138 + $0x84] sm:$0xf]
      %v174 = vld [vmem:[%s138 + $0x8c] sm:$0xf]
      %v175 = vld [vmem:[%s138 + $0x90] sm:$0xf]
      %v176 = vld [vmem:[%s138 + $0x94] sm:$0xf]
      %v177 = vld [vmem:[%s138 + $0x98] sm:$0xf]
      %v178 = vld [vmem:[%s138 + $0xa0] sm:$0xf]
      %v179 = vld [vmem:[%s138 + $0xa4] sm:$0xf]
      %v180 = vld [vmem:[%s138 + $0xa8] sm:$0xf]
      %v181 = vld [vmem:[%s138 + $0xac] sm:$0xf]
      %v182 = vld [vmem:[%s138 + $0xb4] sm:$0xf]
      %v183 = vld [vmem:[%s138 + $0xb8] sm:$0xf]
      %v184 = vld [vmem:[%s138 + $0xbc] sm:$0xf]
      %v185 = vld [vmem:[%s138 + $0xc0] sm:$0xf]
      %v186 = vld [vmem:[%s138 + $0xc8] sm:$0xf]
      %v187 = vld [vmem:[%s138 + $0xcc] sm:$0xf]
      %v188 = vld [vmem:[%s138 + $0xd0] sm:$0xf]
      %v189 = vld [vmem:[%s138 + $0xd4] sm:$0xf]
      %v190 = vld [vmem:[%s138 + $0xdc] sm:$0xf]
      %v191 = vld [vmem:[%s138 + $0xe0] sm:$0xf]
      %v192 = vld [vmem:[%s138 + $0xe4] sm:$0xf]
      %v193 = vld [vmem:[%s138 + $0xe8] sm:$0xf]
      %v194 = vld [vmem:[%s138 + $0xf0] sm:$0xf]
      %v195 = vld [vmem:[%s138 + $0xf4] sm:$0xf]
      %v196 = vld [vmem:[%s138 + $0xf8] sm:$0xf]
      %v197 = vld [vmem:[%s138 + $0xfc] sm:$0xf]
      %v198 = vld [vmem:[%s138 + $0x104] sm:$0xf]
      %v199 = vld [vmem:[%s138 + $0x108] sm:$0xf]
      %v200 = vld [vmem:[%s138 + $0x10c] sm:$0xf]
      %v201 = vld [vmem:[%s138 + $0x110] sm:$0xf]
      %v202 = vld [vmem:[%s138 + $0x118] sm:$0xf]
      %v203 = vld [vmem:[%s138 + $0x11c] sm:$0xf]
      %v204 = vld [vmem:[%s138 + $0x120] sm:$0xf]
      %v205 = vld [vmem:[%s138 + $0x124] sm:$0xf]
      %v206 = vld [vmem:[%s138 + $0x12c] sm:$0xf]
      %v207 = vld [vmem:[%s138 + $0x130] sm:$0xf]
      %v208 = vld [vmem:[%s138 + $0x134] sm:$0xf]
      %v209 = vld [vmem:[%s138 + $0x138] sm:$0xf]
      %v210 = vld [vmem:[%s138 + $0x140] sm:$0xf]
      %v211 = vld [vmem:[%s138 + $0x144] sm:$0xf]
      %v212 = vld [vmem:[%s138 + $0x148] sm:$0xf]
      %v213 = vld [vmem:[%s138 + $0x14c] sm:$0xf]
      %v214 = vld [vmem:[%s138 + $0x154] sm:$0xf]
      %v215 = vld [vmem:[%s138 + $0x158] sm:$0xf]
      %v216 = vld [vmem:[%s138 + $0x15c] sm:$0xf]
      %v217 = vld [vmem:[%s138 + $0x160] sm:$0xf]
      %v218 = vld [vmem:[%s138 + $0x168] sm:$0xf]
      %v219 = vld [vmem:[%s138 + $0x16c] sm:$0xf]
      %v220 = vld [vmem:[%s138 + $0x170] sm:$0xf]
      %v221 = vld [vmem:[%s138 + $0x174] sm:$0xf]
      %v222 = vld [vmem:[%s138 + $0x17c] sm:$0xf]
      %v223 = vld [vmem:[%s138 + $0x180] sm:$0xf]
      %v224 = vld [vmem:[%s138 + $0x184] sm:$0xf]
      %v225 = vld [vmem:[%s138 + $0x188] sm:$0xf]
      %v226 = vld [vmem:[%s138 + $0x190] sm:$0xf]
      %v227 = vld [vmem:[%s138 + $0x194] sm:$0xf]
      %v228 = vld [vmem:[%s138 + $0x198] sm:$0xf]
      %v229 = vld [vmem:[%s138 + $0x19c] sm:$0xf]
      %v230 = vld [vmem:[%s138 + $0x1a4] sm:$0xf]
      %v231 = vld [vmem:[%s138 + $0x1a8] sm:$0xf]
      %v232 = vld [vmem:[%s138 + $0x1ac] sm:$0xf]
      %v233 = vld [vmem:[%s138 + $0x1b0] sm:$0xf]
      %v234 = vld [vmem:[%s138 + $0x1b8] sm:$0xf]
      %v235 = vld [vmem:[%s138 + $0x1bc] sm:$0xf]
      %v236 = vld [vmem:[%s138 + $0x1c0] sm:$0xf]
      %v237 = vld [vmem:[%s138 + $0x1c4] sm:$0xf]
      %v238 = vld [vmem:[%s138 + $0x1cc] sm:$0xf]
      %v239 = vld [vmem:[%s138 + $0x1d0] sm:$0xf]
      %v240 = vld [vmem:[%s138 + $0x1d4] sm:$0xf]
      %v241 = vld [vmem:[%s138 + $0x1d8] sm:$0xf]
      %v242 = vld [vmem:[%s138 + $0x1e0] sm:$0xf]
      %v243 = vld [vmem:[%s138 + $0x1e4] sm:$0xf]
      %v244 = vld [vmem:[%s138 + $0x1e8] sm:$0xf]
      %v245 = vld [vmem:[%s138 + $0x1ec] sm:$0xf]
      %v246 = vld [vmem:[%s138 + $0x1f4] sm:$0xf]
      %v247 = vld [vmem:[%s138 + $0x1f8] sm:$0xf]
      %v248 = vld [vmem:[%s138 + $0x1fc] sm:$0xf]
      %v249 = vld [vmem:[%s138 + $0x200] sm:$0xf]
      %v250 = vld [vmem:[%s138 + $0x208] sm:$0xf]
      %v251 = vld [vmem:[%s138 + $0x20c] sm:$0xf]
      %v252 = vld [vmem:[%s138 + $0x210] sm:$0xf]
      %v253 = vld [vmem:[%s138 + $0x214] sm:$0xf]
      %v254 = vld [vmem:[%s138 + $0x21c] sm:$0xf]
      %v255 = vld [vmem:[%s138 + $0x220] sm:$0xf]
      %v256 = vld [vmem:[%s138 + $0x224] sm:$0xf]
      %v257 = vld [vmem:[%s138 + $0x228] sm:$0xf]
      %v258 = vld [vmem:[%s138 + $0x230] sm:$0xf]
      %v259 = vld [vmem:[%s138 + $0x234] sm:$0xf]
      %v260 = vld [vmem:[%s138 + $0x238] sm:$0xf]
      %v261 = vld [vmem:[%s138 + $0x23c] sm:$0xf]
      %v262 = vld [vmem:[%s138 + $0x244] sm:$0xf]
      %v263 = vld [vmem:[%s138 + $0x248] sm:$0xf]
      %v264 = vld [vmem:[%s138 + $0x24c] sm:$0xf]
      %v265 = vld [vmem:[%s138 + $0x250] sm:$0xf]
      %v266 = vld [vmem:[%s138 + $0x258] sm:$0xf]
      %v267 = vld [vmem:[%s138 + $0x25c] sm:$0xf]
      %v268 = vld [vmem:[%s138 + $0x260] sm:$0xf]
      %v269 = vld [vmem:[%s138 + $0x264] sm:$0xf]
      %v270 = vld [vmem:[%s138 + $0x26c] sm:$0xf]
      %v271 = vld [vmem:[%s138 + $0x270] sm:$0xf]
      %v272 = vld [vmem:[%s138 + $0x274] sm:$0xf]
      %v273 = vld [vmem:[%s138 + $0x278] sm:$0xf]
      %v274 = vld [vmem:[%s1] sm:$0xf]
      %v275 = vld [vmem:[%s1 + $0x4] sm:$0xf]
      %v276 = vld [vmem:[%s138 + $0x10] sm:$0x1]
      %v277 = vld [vmem:[%s138 + $0x24] sm:$0x1]
      %v278 = vld [vmem:[%s138 + $0x38] sm:$0x1]
      %v279 = vld [vmem:[%s138 + $0x4c] sm:$0x1]
      %v280 = vld [vmem:[%s138 + $0x60] sm:$0x1]
      %v281 = vld [vmem:[%s138 + $0x74] sm:$0x1]
      %v282 = vld [vmem:[%s138 + $0x88] sm:$0x1]
      %v283 = vld [vmem:[%s138 + $0x9c] sm:$0x1]
      %v284 = vld [vmem:[%s138 + $0xb0] sm:$0x1]
      %v285 = vld [vmem:[%s138 + $0xc4] sm:$0x1]
      %v286 = vld [vmem:[%s138 + $0xd8] sm:$0x1]
      %v287 = vld [vmem:[%s138 + $0xec] sm:$0x1]
      %v288 = vld [vmem:[%s138 + $0x100] sm:$0x1]
      %v289 = vld [vmem:[%s138 + $0x114] sm:$0x1]
      %v290 = vld [vmem:[%s138 + $0x128] sm:$0x1]
      %v291 = vld [vmem:[%s138 + $0x13c] sm:$0x1]
      %v292 = vld [vmem:[%s138 + $0x150] sm:$0x1]
      %v293 = vld [vmem:[%s138 + $0x164] sm:$0x1]
      %v294 = vld [vmem:[%s138 + $0x178] sm:$0x1]
      %v295 = vld [vmem:[%s138 + $0x18c] sm:$0x1]
      %v296 = vld [vmem:[%s138 + $0x1a0] sm:$0x1]
      %v297 = vld [vmem:[%s138 + $0x1b4] sm:$0x1]
      %v298 = vld [vmem:[%s138 + $0x1c8] sm:$0x1]
      %v299 = vld [vmem:[%s138 + $0x1dc] sm:$0x1]
      %v300 = vld [vmem:[%s138 + $0x1f0] sm:$0x1]
      %v301 = vld [vmem:[%s138 + $0x204] sm:$0x1]
      %v302 = vld [vmem:[%s138 + $0x218] sm:$0x1]
      %v303 = vld [vmem:[%s138 + $0x22c] sm:$0x1]
      %v304 = vld [vmem:[%s138 + $0x240] sm:$0x1]
      %v305 = vld [vmem:[%s138 + $0x254] sm:$0x1]
      %v306 = vld [vmem:[%s138 + $0x268] sm:$0x1]
      %v307 = vld [vmem:[%s138 + $0x27c] sm:$0x1]
      %vm308 = vsmask.f32 3328
      %vm309 = vsmask.f32 7440
      %vm310 = vmor %vm308, %vm309
      %v312 = vshrl.u32 %v146, 16
      %v314 = vrot.slane %v312, 4
      %v315 = vshll.u32 %v146, 16
      %v317 = vrot.slane %v315, 5
      %v318 = vor.u32 %v314, %v317
      %v319 = vrot.slane %v318, 4
      %v321 = vshll.u32 %v147, 16
      %v323 = vrot.slane %v321, 5
      %v324 = vsel %vm310, %v319, %v323
      %v325 = vshrl.u32 %v147, 16
      %v327 = vrot.slane %v325, 4
      %v328 = vor.u32 %v327, %v323
      %v329 = vrot.slane %v328, 4
      %v331 = vshll.u32 %v148, 16
      %v333 = vrot.slane %v331, 5
      %v334 = vsel %vm310, %v329, %v333
      %v335 = vshrl.u32 %v148, 16
      %v337 = vrot.slane %v335, 4
      %v338 = vor.u32 %v337, %v333
      %v339 = vrot.slane %v338, 4
      %v341 = vshll.u32 %v149, 16
      %v343 = vrot.slane %v341, 5
      %v344 = vsel %vm310, %v339, %v343
      %v345 = vshrl.u32 %v149, 16
      %v347 = vrot.slane %v345, 4
      %v348 = vor.u32 %v347, %v343
      %v349 = vrot.slane %v348, 4
      %v351 = vshll.u32 %v276, 16
      %v353 = vrot.slane %v351, 5
      %v354 = vsel %vm310, %v349, %v353
      %v356 = vshrl.u32 %v150, 16
      %v358 = vrot.slane %v356, 4
      %v359 = vshll.u32 %v150, 16
      %v361 = vrot.slane %v359, 5
      %v362 = vor.u32 %v358, %v361
      %v363 = vrot.slane %v362, 4
      %v365 = vshll.u32 %v151, 16
      %v367 = vrot.slane %v365, 5
      %v368 = vsel %vm310, %v363, %v367
      %v369 = vshrl.u32 %v151, 16
      %v371 = vrot.slane %v369, 4
      %v372 = vor.u32 %v371, %v367
      %v373 = vrot.slane %v372, 4
      %v375 = vshll.u32 %v152, 16
      %v377 = vrot.slane %v375, 5
      %v378 = vsel %vm310, %v373, %v377
      %v379 = vshrl.u32 %v152, 16
      %v381 = vrot.slane %v379, 4
      %v382 = vor.u32 %v381, %v377
      %v383 = vrot.slane %v382, 4
      %v385 = vshll.u32 %v153, 16
      %v387 = vrot.slane %v385, 5
      %v388 = vsel %vm310, %v383, %v387
      %v389 = vshrl.u32 %v153, 16
      %v391 = vrot.slane %v389, 4
      %v392 = vor.u32 %v391, %v387
      %v393 = vrot.slane %v392, 4
      %v395 = vshll.u32 %v277, 16
      %v397 = vrot.slane %v395, 5
      %v398 = vsel %vm310, %v393, %v397
      %v400 = vshrl.u32 %v154, 16
      %v402 = vrot.slane %v400, 4
      %v403 = vshll.u32 %v154, 16
      %v405 = vrot.slane %v403, 5
      %v406 = vor.u32 %v402, %v405
      %v407 = vrot.slane %v406, 4
      %v409 = vshll.u32 %v155, 16
      %v411 = vrot.slane %v409, 5
      %v412 = vsel %vm310, %v407, %v411
      %v413 = vshrl.u32 %v155, 16
      %v415 = vrot.slane %v413, 4
      %v416 = vor.u32 %v415, %v411
      %v417 = vrot.slane %v416, 4
      %v419 = vshll.u32 %v156, 16
      %v421 = vrot.slane %v419, 5
      %v422 = vsel %vm310, %v417, %v421
      %v423 = vshrl.u32 %v156, 16
      %v425 = vrot.slane %v423, 4
      %v426 = vor.u32 %v425, %v421
      %v427 = vrot.slane %v426, 4
      %v429 = vshll.u32 %v157, 16
      %v431 = vrot.slane %v429, 5
      %v432 = vsel %vm310, %v427, %v431
      %v433 = vshrl.u32 %v157, 16
      %v435 = vrot.slane %v433, 4
      %v436 = vor.u32 %v435, %v431
      %v437 = vrot.slane %v436, 4
      %v439 = vshll.u32 %v278, 16
      %v441 = vrot.slane %v439, 5
      %v442 = vsel %vm310, %v437, %v441
      %v444 = vshrl.u32 %v158, 16
      %v446 = vrot.slane %v444, 4
      %v447 = vshll.u32 %v158, 16
      %v449 = vrot.slane %v447, 5
      %v450 = vor.u32 %v446, %v449
      %v451 = vrot.slane %v450, 4
      %v453 = vshll.u32 %v159, 16
      %v455 = vrot.slane %v453, 5
      %v456 = vsel %vm310, %v451, %v455
      %v457 = vshrl.u32 %v159, 16
      %v459 = vrot.slane %v457, 4
      %v460 = vor.u32 %v459, %v455
      %v461 = vrot.slane %v460, 4
      %v463 = vshll.u32 %v160, 16
      %v465 = vrot.slane %v463, 5
      %v466 = vsel %vm310, %v461, %v465
      %v467 = vshrl.u32 %v160, 16
      %v469 = vrot.slane %v467, 4
      %v470 = vor.u32 %v469, %v465
      %v471 = vrot.slane %v470, 4
      %v473 = vshll.u32 %v161, 16
      %v475 = vrot.slane %v473, 5
      %v476 = vsel %vm310, %v471, %v475
      %v477 = vshrl.u32 %v161, 16
      %v479 = vrot.slane %v477, 4
      %v480 = vor.u32 %v479, %v475
      %v481 = vrot.slane %v480, 4
      %v483 = vshll.u32 %v279, 16
      %v485 = vrot.slane %v483, 5
      %v486 = vsel %vm310, %v481, %v485
      %v488 = vshrl.u32 %v162, 16
      %v490 = vrot.slane %v488, 4
      %v491 = vshll.u32 %v162, 16
      %v493 = vrot.slane %v491, 5
      %v494 = vor.u32 %v490, %v493
      %v495 = vrot.slane %v494, 4
      %v497 = vshll.u32 %v163, 16
      %v499 = vrot.slane %v497, 5
      %v500 = vsel %vm310, %v495, %v499
      %v501 = vshrl.u32 %v163, 16
      %v503 = vrot.slane %v501, 4
      %v504 = vor.u32 %v503, %v499
      %v505 = vrot.slane %v504, 4
      %v507 = vshll.u32 %v164, 16
      %v509 = vrot.slane %v507, 5
      %v510 = vsel %vm310, %v505, %v509
      %v511 = vshrl.u32 %v164, 16
      %v513 = vrot.slane %v511, 4
      %v514 = vor.u32 %v513, %v509
      %v515 = vrot.slane %v514, 4
      %v517 = vshll.u32 %v165, 16
      %v519 = vrot.slane %v517, 5
      %v520 = vsel %vm310, %v515, %v519
      %v521 = vshrl.u32 %v165, 16
      %v523 = vrot.slane %v521, 4
      %v524 = vor.u32 %v523, %v519
      %v525 = vrot.slane %v524, 4
      %v527 = vshll.u32 %v280, 16
      %v529 = vrot.slane %v527, 5
      %v530 = vsel %vm310, %v525, %v529
      %v532 = vshrl.u32 %v166, 16
      %v534 = vrot.slane %v532, 4
      %v535 = vshll.u32 %v166, 16
      %v537 = vrot.slane %v535, 5
      %v538 = vor.u32 %v534, %v537
      %v539 = vrot.slane %v538, 4
      %v541 = vshll.u32 %v167, 16
      %v543 = vrot.slane %v541, 5
      %v544 = vsel %vm310, %v539, %v543
      %v545 = vshrl.u32 %v167, 16
      %v547 = vrot.slane %v545, 4
      %v548 = vor.u32 %v547, %v543
      %v549 = vrot.slane %v548, 4
      %v551 = vshll.u32 %v168, 16
      %v553 = vrot.slane %v551, 5
      %v554 = vsel %vm310, %v549, %v553
      %v555 = vshrl.u32 %v168, 16
      %v557 = vrot.slane %v555, 4
      %v558 = vor.u32 %v557, %v553
      %v559 = vrot.slane %v558, 4
      %v561 = vshll.u32 %v169, 16
      %v563 = vrot.slane %v561, 5
      %v564 = vsel %vm310, %v559, %v563
      %v565 = vshrl.u32 %v169, 16
      %v567 = vrot.slane %v565, 4
      %v568 = vor.u32 %v567, %v563
      %v569 = vrot.slane %v568, 4
      %v571 = vshll.u32 %v281, 16
      %v573 = vrot.slane %v571, 5
      %v574 = vsel %vm310, %v569, %v573
      %v576 = vshrl.u32 %v170, 16
      %v578 = vrot.slane %v576, 4
      %v579 = vshll.u32 %v170, 16
      %v581 = vrot.slane %v579, 5
      %v582 = vor.u32 %v578, %v581
      %v583 = vrot.slane %v582, 4
      %v585 = vshll.u32 %v171, 16
      %v587 = vrot.slane %v585, 5
      %v588 = vsel %vm310, %v583, %v587
      %v589 = vshrl.u32 %v171, 16
      %v591 = vrot.slane %v589, 4
      %v592 = vor.u32 %v591, %v587
      %v593 = vrot.slane %v592, 4
      %v595 = vshll.u32 %v172, 16
      %v597 = vrot.slane %v595, 5
      %v598 = vsel %vm310, %v593, %v597
      %v599 = vshrl.u32 %v172, 16
      %v601 = vrot.slane %v599, 4
      %v602 = vor.u32 %v601, %v597
      %v603 = vrot.slane %v602, 4
      %v605 = vshll.u32 %v173, 16
      %v607 = vrot.slane %v605, 5
      %v608 = vsel %vm310, %v603, %v607
      %v609 = vshrl.u32 %v173, 16
      %v611 = vrot.slane %v609, 4
      %v612 = vor.u32 %v611, %v607
      %v613 = vrot.slane %v612, 4
      %v615 = vshll.u32 %v282, 16
      %v617 = vrot.slane %v615, 5
      %v618 = vsel %vm310, %v613, %v617
      %v620 = vshrl.u32 %v174, 16
      %v622 = vrot.slane %v620, 4
      %v623 = vshll.u32 %v174, 16
      %v625 = vrot.slane %v623, 5
      %v626 = vor.u32 %v622, %v625
      %v627 = vrot.slane %v626, 4
      %v629 = vshll.u32 %v175, 16
      %v631 = vrot.slane %v629, 5
      %v632 = vsel %vm310, %v627, %v631
      %v633 = vshrl.u32 %v175, 16
      %v635 = vrot.slane %v633, 4
      %v636 = vor.u32 %v635, %v631
      %v637 = vrot.slane %v636, 4
      %v639 = vshll.u32 %v176, 16
      %v641 = vrot.slane %v639, 5
      %v642 = vsel %vm310, %v637, %v641
      %v643 = vshrl.u32 %v176, 16
      %v645 = vrot.slane %v643, 4
      %v646 = vor.u32 %v645, %v641
      %v647 = vrot.slane %v646, 4
      %v649 = vshll.u32 %v177, 16
      %v651 = vrot.slane %v649, 5
      %v652 = vsel %vm310, %v647, %v651
      %v653 = vshrl.u32 %v177, 16
      %v655 = vrot.slane %v653, 4
      %v656 = vor.u32 %v655, %v651
      %v657 = vrot.slane %v656, 4
      %v659 = vshll.u32 %v283, 16
      %v661 = vrot.slane %v659, 5
      %v662 = vsel %vm310, %v657, %v661
      %v664 = vshrl.u32 %v178, 16
      %v666 = vrot.slane %v664, 4
      %v667 = vshll.u32 %v178, 16
      %v669 = vrot.slane %v667, 5
      %v670 = vor.u32 %v666, %v669
      %v671 = vrot.slane %v670, 4
      %v673 = vshll.u32 %v179, 16
      %v675 = vrot.slane %v673, 5
      %v676 = vsel %vm310, %v671, %v675
      %v677 = vshrl.u32 %v179, 16
      %v679 = vrot.slane %v677, 4
      %v680 = vor.u32 %v679, %v675
      %v681 = vrot.slane %v680, 4
      %v683 = vshll.u32 %v180, 16
      %v685 = vrot.slane %v683, 5
      %v686 = vsel %vm310, %v681, %v685
      %v687 = vshrl.u32 %v180, 16
      %v689 = vrot.slane %v687, 4
      %v690 = vor.u32 %v689, %v685
      %v691 = vrot.slane %v690, 4
      %v693 = vshll.u32 %v181, 16
      %v695 = vrot.slane %v693, 5
      %v696 = vsel %vm310, %v691, %v695
      %v697 = vshrl.u32 %v181, 16
      %v699 = vrot.slane %v697, 4
      %v700 = vor.u32 %v699, %v695
      %v701 = vrot.slane %v700, 4
      %v703 = vshll.u32 %v284, 16
      %v705 = vrot.slane %v703, 5
      %v706 = vsel %vm310, %v701, %v705
      %v708 = vshrl.u32 %v182, 16
      %v710 = vrot.slane %v708, 4
      %v711 = vshll.u32 %v182, 16
      %v713 = vrot.slane %v711, 5
      %v714 = vor.u32 %v710, %v713
      %v715 = vrot.slane %v714, 4
      %v717 = vshll.u32 %v183, 16
      %v719 = vrot.slane %v717, 5
      %v720 = vsel %vm310, %v715, %v719
      %v721 = vshrl.u32 %v183, 16
      %v723 = vrot.slane %v721, 4
      %v724 = vor.u32 %v723, %v719
      %v725 = vrot.slane %v724, 4
      %v727 = vshll.u32 %v184, 16
      %v729 = vrot.slane %v727, 5
      %v730 = vsel %vm310, %v725, %v729
      %v731 = vshrl.u32 %v184, 16
      %v733 = vrot.slane %v731, 4
      %v734 = vor.u32 %v733, %v729
      %v735 = vrot.slane %v734, 4
      %v737 = vshll.u32 %v185, 16
      %v739 = vrot.slane %v737, 5
      %v740 = vsel %vm310, %v735, %v739
      %v741 = vshrl.u32 %v185, 16
      %v743 = vrot.slane %v741, 4
      %v744 = vor.u32 %v743, %v739
      %v745 = vrot.slane %v744, 4
      %v747 = vshll.u32 %v285, 16
      %v749 = vrot.slane %v747, 5
      %v750 = vsel %vm310, %v745, %v749
      %v752 = vshrl.u32 %v186, 16
      %v754 = vrot.slane %v752, 4
      %v755 = vshll.u32 %v186, 16
      %v757 = vrot.slane %v755, 5
      %v758 = vor.u32 %v754, %v757
      %v759 = vrot.slane %v758, 4
      %v761 = vshll.u32 %v187, 16
      %v763 = vrot.slane %v761, 5
      %v764 = vsel %vm310, %v759, %v763
      %v765 = vshrl.u32 %v187, 16
      %v767 = vrot.slane %v765, 4
      %v768 = vor.u32 %v767, %v763
      %v769 = vrot.slane %v768, 4
      %v771 = vshll.u32 %v188, 16
      %v773 = vrot.slane %v771, 5
      %v774 = vsel %vm310, %v769, %v773
      %v775 = vshrl.u32 %v188, 16
      %v777 = vrot.slane %v775, 4
      %v778 = vor.u32 %v777, %v773
      %v779 = vrot.slane %v778, 4
      %v781 = vshll.u32 %v189, 16
      %v783 = vrot.slane %v781, 5
      %v784 = vsel %vm310, %v779, %v783
      %v785 = vshrl.u32 %v189, 16
      %v787 = vrot.slane %v785, 4
      %v788 = vor.u32 %v787, %v783
      %v789 = vrot.slane %v788, 4
      %v791 = vshll.u32 %v286, 16
      %v793 = vrot.slane %v791, 5
      %v794 = vsel %vm310, %v789, %v793
      %v796 = vshrl.u32 %v190, 16
      %v798 = vrot.slane %v796, 4
      %v799 = vshll.u32 %v190, 16
      %v801 = vrot.slane %v799, 5
      %v802 = vor.u32 %v798, %v801
      %v803 = vrot.slane %v802, 4
      %v805 = vshll.u32 %v191, 16
      %v807 = vrot.slane %v805, 5
      %v808 = vsel %vm310, %v803, %v807
      %v809 = vshrl.u32 %v191, 16
      %v811 = vrot.slane %v809, 4
      %v812 = vor.u32 %v811, %v807
      %v813 = vrot.slane %v812, 4
      %v815 = vshll.u32 %v192, 16
      %v817 = vrot.slane %v815, 5
      %v818 = vsel %vm310, %v813, %v817
      %v819 = vshrl.u32 %v192, 16
      %v821 = vrot.slane %v819, 4
      %v822 = vor.u32 %v821, %v817
      %v823 = vrot.slane %v822, 4
      %v825 = vshll.u32 %v193, 16
      %v827 = vrot.slane %v825, 5
      %v828 = vsel %vm310, %v823, %v827
      %v829 = vshrl.u32 %v193, 16
      %v831 = vrot.slane %v829, 4
      %v832 = vor.u32 %v831, %v827
      %v833 = vrot.slane %v832, 4
      %v835 = vshll.u32 %v287, 16
      %v837 = vrot.slane %v835, 5
      %v838 = vsel %vm310, %v833, %v837
      %v840 = vshrl.u32 %v194, 16
      %v842 = vrot.slane %v840, 4
      %v843 = vshll.u32 %v194, 16
      %v845 = vrot.slane %v843, 5
      %v846 = vor.u32 %v842, %v845
      %v847 = vrot.slane %v846, 4
      %v849 = vshll.u32 %v195, 16
      %v851 = vrot.slane %v849, 5
      %v852 = vsel %vm310, %v847, %v851
      %v853 = vshrl.u32 %v195, 16
      %v855 = vrot.slane %v853, 4
      %v856 = vor.u32 %v855, %v851
      %v857 = vrot.slane %v856, 4
      %v859 = vshll.u32 %v196, 16
      %v861 = vrot.slane %v859, 5
      %v862 = vsel %vm310, %v857, %v861
      %v863 = vshrl.u32 %v196, 16
      %v865 = vrot.slane %v863, 4
      %v866 = vor.u32 %v865, %v861
      %v867 = vrot.slane %v866, 4
      %v869 = vshll.u32 %v197, 16
      %v871 = vrot.slane %v869, 5
      %v872 = vsel %vm310, %v867, %v871
      %v873 = vshrl.u32 %v197, 16
      %v875 = vrot.slane %v873, 4
      %v876 = vor.u32 %v875, %v871
      %v877 = vrot.slane %v876, 4
      %v879 = vshll.u32 %v288, 16
      %v881 = vrot.slane %v879, 5
      %v882 = vsel %vm310, %v877, %v881
      %v884 = vshrl.u32 %v198, 16
      %v886 = vrot.slane %v884, 4
      %v887 = vshll.u32 %v198, 16
      %v889 = vrot.slane %v887, 5
      %v890 = vor.u32 %v886, %v889
      %v891 = vrot.slane %v890, 4
      %v893 = vshll.u32 %v199, 16
      %v895 = vrot.slane %v893, 5
      %v896 = vsel %vm310, %v891, %v895
      %v897 = vshrl.u32 %v199, 16
      %v899 = vrot.slane %v897, 4
      %v900 = vor.u32 %v899, %v895
      %v901 = vrot.slane %v900, 4
      %v903 = vshll.u32 %v200, 16
      %v905 = vrot.slane %v903, 5
      %v906 = vsel %vm310, %v901, %v905
      %v907 = vshrl.u32 %v200, 16
      %v909 = vrot.slane %v907, 4
      %v910 = vor.u32 %v909, %v905
      %v911 = vrot.slane %v910, 4
      %v913 = vshll.u32 %v201, 16
      %v915 = vrot.slane %v913, 5
      %v916 = vsel %vm310, %v911, %v915
      %v917 = vshrl.u32 %v201, 16
      %v919 = vrot.slane %v917, 4
      %v920 = vor.u32 %v919, %v915
      %v921 = vrot.slane %v920, 4
      %v923 = vshll.u32 %v289, 16
      %v925 = vrot.slane %v923, 5
      %v926 = vsel %vm310, %v921, %v925
      %v928 = vshrl.u32 %v202, 16
      %v930 = vrot.slane %v928, 4
      %v931 = vshll.u32 %v202, 16
      %v933 = vrot.slane %v931, 5
      %v934 = vor.u32 %v930, %v933
      %v935 = vrot.slane %v934, 4
      %v937 = vshll.u32 %v203, 16
      %v939 = vrot.slane %v937, 5
      %v940 = vsel %vm310, %v935, %v939
      %v941 = vshrl.u32 %v203, 16
      %v943 = vrot.slane %v941, 4
      %v944 = vor.u32 %v943, %v939
      %v945 = vrot.slane %v944, 4
      %v947 = vshll.u32 %v204, 16
      %v949 = vrot.slane %v947, 5
      %v950 = vsel %vm310, %v945, %v949
      %v951 = vshrl.u32 %v204, 16
      %v953 = vrot.slane %v951, 4
      %v954 = vor.u32 %v953, %v949
      %v955 = vrot.slane %v954, 4
      %v957 = vshll.u32 %v205, 16
      %v959 = vrot.slane %v957, 5
      %v960 = vsel %vm310, %v955, %v959
      %v961 = vshrl.u32 %v205, 16
      %v963 = vrot.slane %v961, 4
      %v964 = vor.u32 %v963, %v959
      %v965 = vrot.slane %v964, 4
      %v967 = vshll.u32 %v290, 16
      %v969 = vrot.slane %v967, 5
      %v970 = vsel %vm310, %v965, %v969
      %v972 = vshrl.u32 %v206, 16
      %v974 = vrot.slane %v972, 4
      %v975 = vshll.u32 %v206, 16
      %v977 = vrot.slane %v975, 5
      %v978 = vor.u32 %v974, %v977
      %v979 = vrot.slane %v978, 4
      %v981 = vshll.u32 %v207, 16
      %v983 = vrot.slane %v981, 5
      %v984 = vsel %vm310, %v979, %v983
      %v985 = vshrl.u32 %v207, 16
      %v987 = vrot.slane %v985, 4
      %v988 = vor.u32 %v987, %v983
      %v989 = vrot.slane %v988, 4
      %v991 = vshll.u32 %v208, 16
      %v993 = vrot.slane %v991, 5
      %v994 = vsel %vm310, %v989, %v993
      %v995 = vshrl.u32 %v208, 16
      %v997 = vrot.slane %v995, 4
      %v998 = vor.u32 %v997, %v993
      %v999 = vrot.slane %v998, 4
      %v1001 = vshll.u32 %v209, 16
      %v1003 = vrot.slane %v1001, 5
      %v1004 = vsel %vm310, %v999, %v1003
      %v1005 = vshrl.u32 %v209, 16
      %v1007 = vrot.slane %v1005, 4
      %v1008 = vor.u32 %v1007, %v1003
      %v1009 = vrot.slane %v1008, 4
      %v1011 = vshll.u32 %v291, 16
      %v1013 = vrot.slane %v1011, 5
      %v1014 = vsel %vm310, %v1009, %v1013
      %v1016 = vshrl.u32 %v210, 16
      %v1018 = vrot.slane %v1016, 4
      %v1019 = vshll.u32 %v210, 16
      %v1021 = vrot.slane %v1019, 5
      %v1022 = vor.u32 %v1018, %v1021
      %v1023 = vrot.slane %v1022, 4
      %v1025 = vshll.u32 %v211, 16
      %v1027 = vrot.slane %v1025, 5
      %v1028 = vsel %vm310, %v1023, %v1027
      %v1029 = vshrl.u32 %v211, 16
      %v1031 = vrot.slane %v1029, 4
      %v1032 = vor.u32 %v1031, %v1027
      %v1033 = vrot.slane %v1032, 4
      %v1035 = vshll.u32 %v212, 16
      %v1037 = vrot.slane %v1035, 5
      %v1038 = vsel %vm310, %v1033, %v1037
      %v1039 = vshrl.u32 %v212, 16
      %v1041 = vrot.slane %v1039, 4
      %v1042 = vor.u32 %v1041, %v1037
      %v1043 = vrot.slane %v1042, 4
      %v1045 = vshll.u32 %v213, 16
      %v1047 = vrot.slane %v1045, 5
      %v1048 = vsel %vm310, %v1043, %v1047
      %v1049 = vshrl.u32 %v213, 16
      %v1051 = vrot.slane %v1049, 4
      %v1052 = vor.u32 %v1051, %v1047
      %v1053 = vrot.slane %v1052, 4
      %v1055 = vshll.u32 %v292, 16
      %v1057 = vrot.slane %v1055, 5
      %v1058 = vsel %vm310, %v1053, %v1057
      %v1060 = vshrl.u32 %v214, 16
      %v1062 = vrot.slane %v1060, 4
      %v1063 = vshll.u32 %v214, 16
      %v1065 = vrot.slane %v1063, 5
      %v1066 = vor.u32 %v1062, %v1065
      %v1067 = vrot.slane %v1066, 4
      %v1069 = vshll.u32 %v215, 16
      %v1071 = vrot.slane %v1069, 5
      %v1072 = vsel %vm310, %v1067, %v1071
      %v1073 = vshrl.u32 %v215, 16
      %v1075 = vrot.slane %v1073, 4
      %v1076 = vor.u32 %v1075, %v1071
      %v1077 = vrot.slane %v1076, 4
      %v1079 = vshll.u32 %v216, 16
      %v1081 = vrot.slane %v1079, 5
      %v1082 = vsel %vm310, %v1077, %v1081
      %v1083 = vshrl.u32 %v216, 16
      %v1085 = vrot.slane %v1083, 4
      %v1086 = vor.u32 %v1085, %v1081
      %v1087 = vrot.slane %v1086, 4
      %v1089 = vshll.u32 %v217, 16
      %v1091 = vrot.slane %v1089, 5
      %v1092 = vsel %vm310, %v1087, %v1091
      %v1093 = vshrl.u32 %v217, 16
      %v1095 = vrot.slane %v1093, 4
      %v1096 = vor.u32 %v1095, %v1091
      %v1097 = vrot.slane %v1096, 4
      %v1099 = vshll.u32 %v293, 16
      %v1101 = vrot.slane %v1099, 5
      %v1102 = vsel %vm310, %v1097, %v1101
      %v1104 = vshrl.u32 %v218, 16
      %v1106 = vrot.slane %v1104, 4
      %v1107 = vshll.u32 %v218, 16
      %v1109 = vrot.slane %v1107, 5
      %v1110 = vor.u32 %v1106, %v1109
      %v1111 = vrot.slane %v1110, 4
      %v1113 = vshll.u32 %v219, 16
      %v1115 = vrot.slane %v1113, 5
      %v1116 = vsel %vm310, %v1111, %v1115
      %v1117 = vshrl.u32 %v219, 16
      %v1119 = vrot.slane %v1117, 4
      %v1120 = vor.u32 %v1119, %v1115
      %v1121 = vrot.slane %v1120, 4
      %v1123 = vshll.u32 %v220, 16
      %v1125 = vrot.slane %v1123, 5
      %v1126 = vsel %vm310, %v1121, %v1125
      %v1127 = vshrl.u32 %v220, 16
      %v1129 = vrot.slane %v1127, 4
      %v1130 = vor.u32 %v1129, %v1125
      %v1131 = vrot.slane %v1130, 4
      %v1133 = vshll.u32 %v221, 16
      %v1135 = vrot.slane %v1133, 5
      %v1136 = vsel %vm310, %v1131, %v1135
      %v1137 = vshrl.u32 %v221, 16
      %v1139 = vrot.slane %v1137, 4
      %v1140 = vor.u32 %v1139, %v1135
      %v1141 = vrot.slane %v1140, 4
      %v1143 = vshll.u32 %v294, 16
      %v1145 = vrot.slane %v1143, 5
      %v1146 = vsel %vm310, %v1141, %v1145
      %v1148 = vshrl.u32 %v222, 16
      %v1150 = vrot.slane %v1148, 4
      %v1151 = vshll.u32 %v222, 16
      %v1153 = vrot.slane %v1151, 5
      %v1154 = vor.u32 %v1150, %v1153
      %v1155 = vrot.slane %v1154, 4
      %v1157 = vshll.u32 %v223, 16
      %v1159 = vrot.slane %v1157, 5
      %v1160 = vsel %vm310, %v1155, %v1159
      %v1161 = vshrl.u32 %v223, 16
      %v1163 = vrot.slane %v1161, 4
      %v1164 = vor.u32 %v1163, %v1159
      %v1165 = vrot.slane %v1164, 4
      %v1167 = vshll.u32 %v224, 16
      %v1169 = vrot.slane %v1167, 5
      %v1170 = vsel %vm310, %v1165, %v1169
      %v1171 = vshrl.u32 %v224, 16
      %v1173 = vrot.slane %v1171, 4
      %v1174 = vor.u32 %v1173, %v1169
      %v1175 = vrot.slane %v1174, 4
      %v1177 = vshll.u32 %v225, 16
      %v1179 = vrot.slane %v1177, 5
      %v1180 = vsel %vm310, %v1175, %v1179
      %v1181 = vshrl.u32 %v225, 16
      %v1183 = vrot.slane %v1181, 4
      %v1184 = vor.u32 %v1183, %v1179
      %v1185 = vrot.slane %v1184, 4
      %v1187 = vshll.u32 %v295, 16
      %v1189 = vrot.slane %v1187, 5
      %v1190 = vsel %vm310, %v1185, %v1189
      %v1192 = vshrl.u32 %v226, 16
      %v1194 = vrot.slane %v1192, 4
      %v1195 = vshll.u32 %v226, 16
      %v1197 = vrot.slane %v1195, 5
      %v1198 = vor.u32 %v1194, %v1197
      %v1199 = vrot.slane %v1198, 4
      %v1201 = vshll.u32 %v227, 16
      %v1203 = vrot.slane %v1201, 5
      %v1204 = vsel %vm310, %v1199, %v1203
      %v1205 = vshrl.u32 %v227, 16
      %v1207 = vrot.slane %v1205, 4
      %v1208 = vor.u32 %v1207, %v1203
      %v1209 = vrot.slane %v1208, 4
      %v1211 = vshll.u32 %v228, 16
      %v1213 = vrot.slane %v1211, 5
      %v1214 = vsel %vm310, %v1209, %v1213
      %v1215 = vshrl.u32 %v228, 16
      %v1217 = vrot.slane %v1215, 4
      %v1218 = vor.u32 %v1217, %v1213
      %v1219 = vrot.slane %v1218, 4
      %v1221 = vshll.u32 %v229, 16
      %v1223 = vrot.slane %v1221, 5
      %v1224 = vsel %vm310, %v1219, %v1223
      %v1225 = vshrl.u32 %v229, 16
      %v1227 = vrot.slane %v1225, 4
      %v1228 = vor.u32 %v1227, %v1223
      %v1229 = vrot.slane %v1228, 4
      %v1231 = vshll.u32 %v296, 16
      %v1233 = vrot.slane %v1231, 5
      %v1234 = vsel %vm310, %v1229, %v1233
      %v1236 = vshrl.u32 %v230, 16
      %v1238 = vrot.slane %v1236, 4
      %v1239 = vshll.u32 %v230, 16
      %v1241 = vrot.slane %v1239, 5
      %v1242 = vor.u32 %v1238, %v1241
      %v1243 = vrot.slane %v1242, 4
      %v1245 = vshll.u32 %v231, 16
      %v1247 = vrot.slane %v1245, 5
      %v1248 = vsel %vm310, %v1243, %v1247
      %v1249 = vshrl.u32 %v231, 16
      %v1251 = vrot.slane %v1249, 4
      %v1252 = vor.u32 %v1251, %v1247
      %v1253 = vrot.slane %v1252, 4
      %v1255 = vshll.u32 %v232, 16
      %v1257 = vrot.slane %v1255, 5
      %v1258 = vsel %vm310, %v1253, %v1257
      %v1259 = vshrl.u32 %v232, 16
      %v1261 = vrot.slane %v1259, 4
      %v1262 = vor.u32 %v1261, %v1257
      %v1263 = vrot.slane %v1262, 4
      %v1265 = vshll.u32 %v233, 16
      %v1267 = vrot.slane %v1265, 5
      %v1268 = vsel %vm310, %v1263, %v1267
      %v1269 = vshrl.u32 %v233, 16
      %v1271 = vrot.slane %v1269, 4
      %v1272 = vor.u32 %v1271, %v1267
      %v1273 = vrot.slane %v1272, 4
      %v1275 = vshll.u32 %v297, 16
      %v1277 = vrot.slane %v1275, 5
      %v1278 = vsel %vm310, %v1273, %v1277
      %v1280 = vshrl.u32 %v234, 16
      %v1282 = vrot.slane %v1280, 4
      %v1283 = vshll.u32 %v234, 16
      %v1285 = vrot.slane %v1283, 5
      %v1286 = vor.u32 %v1282, %v1285
      %v1287 = vrot.slane %v1286, 4
      %v1289 = vshll.u32 %v235, 16
      %v1291 = vrot.slane %v1289, 5
      %v1292 = vsel %vm310, %v1287, %v1291
      %v1293 = vshrl.u32 %v235, 16
      %v1295 = vrot.slane %v1293, 4
      %v1296 = vor.u32 %v1295, %v1291
      %v1297 = vrot.slane %v1296, 4
      %v1299 = vshll.u32 %v236, 16
      %v1301 = vrot.slane %v1299, 5
      %v1302 = vsel %vm310, %v1297, %v1301
      %v1303 = vshrl.u32 %v236, 16
      %v1305 = vrot.slane %v1303, 4
      %v1306 = vor.u32 %v1305, %v1301
      %v1307 = vrot.slane %v1306, 4
      %v1309 = vshll.u32 %v237, 16
      %v1311 = vrot.slane %v1309, 5
      %v1312 = vsel %vm310, %v1307, %v1311
      %v1313 = vshrl.u32 %v237, 16
      %v1315 = vrot.slane %v1313, 4
      %v1316 = vor.u32 %v1315, %v1311
      %v1317 = vrot.slane %v1316, 4
      %v1319 = vshll.u32 %v298, 16
      %v1321 = vrot.slane %v1319, 5
      %v1322 = vsel %vm310, %v1317, %v1321
      %v1324 = vshrl.u32 %v238, 16
      %v1326 = vrot.slane %v1324, 4
      %v1327 = vshll.u32 %v238, 16
      %v1329 = vrot.slane %v1327, 5
      %v1330 = vor.u32 %v1326, %v1329
      %v1331 = vrot.slane %v1330, 4
      %v1333 = vshll.u32 %v239, 16
      %v1335 = vrot.slane %v1333, 5
      %v1336 = vsel %vm310, %v1331, %v1335
      %v1337 = vshrl.u32 %v239, 16
      %v1339 = vrot.slane %v1337, 4
      %v1340 = vor.u32 %v1339, %v1335
      %v1341 = vrot.slane %v1340, 4
      %v1343 = vshll.u32 %v240, 16
      %v1345 = vrot.slane %v1343, 5
      %v1346 = vsel %vm310, %v1341, %v1345
      %v1347 = vshrl.u32 %v240, 16
      %v1349 = vrot.slane %v1347, 4
      %v1350 = vor.u32 %v1349, %v1345
      %v1351 = vrot.slane %v1350, 4
      %v1353 = vshll.u32 %v241, 16
      %v1355 = vrot.slane %v1353, 5
      %v1356 = vsel %vm310, %v1351, %v1355
      %v1357 = vshrl.u32 %v241, 16
      %v1359 = vrot.slane %v1357, 4
      %v1360 = vor.u32 %v1359, %v1355
      %v1361 = vrot.slane %v1360, 4
      %v1363 = vshll.u32 %v299, 16
      %v1365 = vrot.slane %v1363, 5
      %v1366 = vsel %vm310, %v1361, %v1365
      %v1368 = vshrl.u32 %v242, 16
      %v1370 = vrot.slane %v1368, 4
      %v1371 = vshll.u32 %v242, 16
      %v1373 = vrot.slane %v1371, 5
      %v1374 = vor.u32 %v1370, %v1373
      %v1375 = vrot.slane %v1374, 4
      %v1377 = vshll.u32 %v243, 16
      %v1379 = vrot.slane %v1377, 5
      %v1380 = vsel %vm310, %v1375, %v1379
      %v1381 = vshrl.u32 %v243, 16
      %v1383 = vrot.slane %v1381, 4
      %v1384 = vor.u32 %v1383, %v1379
      %v1385 = vrot.slane %v1384, 4
      %v1387 = vshll.u32 %v244, 16
      %v1389 = vrot.slane %v1387, 5
      %v1390 = vsel %vm310, %v1385, %v1389
      %v1391 = vshrl.u32 %v244, 16
      %v1393 = vrot.slane %v1391, 4
      %v1394 = vor.u32 %v1393, %v1389
      %v1395 = vrot.slane %v1394, 4
      %v1397 = vshll.u32 %v245, 16
      %v1399 = vrot.slane %v1397, 5
      %v1400 = vsel %vm310, %v1395, %v1399
      %v1401 = vshrl.u32 %v245, 16
      %v1403 = vrot.slane %v1401, 4
      %v1404 = vor.u32 %v1403, %v1399
      %v1405 = vrot.slane %v1404, 4
      %v1407 = vshll.u32 %v300, 16
      %v1409 = vrot.slane %v1407, 5
      %v1410 = vsel %vm310, %v1405, %v1409
      %v1412 = vshrl.u32 %v246, 16
      %v1414 = vrot.slane %v1412, 4
      %v1415 = vshll.u32 %v246, 16
      %v1417 = vrot.slane %v1415, 5
      %v1418 = vor.u32 %v1414, %v1417
      %v1419 = vrot.slane %v1418, 4
      %v1421 = vshll.u32 %v247, 16
      %v1423 = vrot.slane %v1421, 5
      %v1424 = vsel %vm310, %v1419, %v1423
      %v1425 = vshrl.u32 %v247, 16
      %v1427 = vrot.slane %v1425, 4
      %v1428 = vor.u32 %v1427, %v1423
      %v1429 = vrot.slane %v1428, 4
      %v1431 = vshll.u32 %v248, 16
      %v1433 = vrot.slane %v1431, 5
      %v1434 = vsel %vm310, %v1429, %v1433
      %v1435 = vshrl.u32 %v248, 16
      %v1437 = vrot.slane %v1435, 4
      %v1438 = vor.u32 %v1437, %v1433
      %v1439 = vrot.slane %v1438, 4
      %v1441 = vshll.u32 %v249, 16
      %v1443 = vrot.slane %v1441, 5
      %v1444 = vsel %vm310, %v1439, %v1443
      %v1445 = vshrl.u32 %v249, 16
      %v1447 = vrot.slane %v1445, 4
      %v1448 = vor.u32 %v1447, %v1443
      %v1449 = vrot.slane %v1448, 4
      %v1451 = vshll.u32 %v301, 16
      %v1453 = vrot.slane %v1451, 5
      %v1454 = vsel %vm310, %v1449, %v1453
      %v1456 = vshrl.u32 %v250, 16
      %v1458 = vrot.slane %v1456, 4
      %v1459 = vshll.u32 %v250, 16
      %v1461 = vrot.slane %v1459, 5
      %v1462 = vor.u32 %v1458, %v1461
      %v1463 = vrot.slane %v1462, 4
      %v1465 = vshll.u32 %v251, 16
      %v1467 = vrot.slane %v1465, 5
      %v1468 = vsel %vm310, %v1463, %v1467
      %v1469 = vshrl.u32 %v251, 16
      %v1471 = vrot.slane %v1469, 4
      %v1472 = vor.u32 %v1471, %v1467
      %v1473 = vrot.slane %v1472, 4
      %v1475 = vshll.u32 %v252, 16
      %v1477 = vrot.slane %v1475, 5
      %v1478 = vsel %vm310, %v1473, %v1477
      %v1479 = vshrl.u32 %v252, 16
      %v1481 = vrot.slane %v1479, 4
      %v1482 = vor.u32 %v1481, %v1477
      %v1483 = vrot.slane %v1482, 4
      %v1485 = vshll.u32 %v253, 16
      %v1487 = vrot.slane %v1485, 5
      %v1488 = vsel %vm310, %v1483, %v1487
      %v1489 = vshrl.u32 %v253, 16
      %v1491 = vrot.slane %v1489, 4
      %v1492 = vor.u32 %v1491, %v1487
      %v1493 = vrot.slane %v1492, 4
      %v1495 = vshll.u32 %v302, 16
      %v1497 = vrot.slane %v1495, 5
      %v1498 = vsel %vm310, %v1493, %v1497
      %v1500 = vshrl.u32 %v254, 16
      %v1502 = vrot.slane %v1500, 4
      %v1503 = vshll.u32 %v254, 16
      %v1505 = vrot.slane %v1503, 5
      %v1506 = vor.u32 %v1502, %v1505
      %v1507 = vrot.slane %v1506, 4
      %v1509 = vshll.u32 %v255, 16
      %v1511 = vrot.slane %v1509, 5
      %v1512 = vsel %vm310, %v1507, %v1511
      %v1513 = vshrl.u32 %v255, 16
      %v1515 = vrot.slane %v1513, 4
      %v1516 = vor.u32 %v1515, %v1511
      %v1517 = vrot.slane %v1516, 4
      %v1519 = vshll.u32 %v256, 16
      %v1521 = vrot.slane %v1519, 5
      %v1522 = vsel %vm310, %v1517, %v1521
      %v1523 = vshrl.u32 %v256, 16
      %v1525 = vrot.slane %v1523, 4
      %v1526 = vor.u32 %v1525, %v1521
      %v1527 = vrot.slane %v1526, 4
      %v1529 = vshll.u32 %v257, 16
      %v1531 = vrot.slane %v1529, 5
      %v1532 = vsel %vm310, %v1527, %v1531
      %v1533 = vshrl.u32 %v257, 16
      %v1535 = vrot.slane %v1533, 4
      %v1536 = vor.u32 %v1535, %v1531
      %v1537 = vrot.slane %v1536, 4
      %v1539 = vshll.u32 %v303, 16
      %v1541 = vrot.slane %v1539, 5
      %v1542 = vsel %vm310, %v1537, %v1541
      %v1544 = vshrl.u32 %v258, 16
      %v1546 = vrot.slane %v1544, 4
      %v1547 = vshll.u32 %v258, 16
      %v1549 = vrot.slane %v1547, 5
      %v1550 = vor.u32 %v1546, %v1549
      %v1551 = vrot.slane %v1550, 4
      %v1553 = vshll.u32 %v259, 16
      %v1555 = vrot.slane %v1553, 5
      %v1556 = vsel %vm310, %v1551, %v1555
      %v1557 = vshrl.u32 %v259, 16
      %v1559 = vrot.slane %v1557, 4
      %v1560 = vor.u32 %v1559, %v1555
      %v1561 = vrot.slane %v1560, 4
      %v1563 = vshll.u32 %v260, 16
      %v1565 = vrot.slane %v1563, 5
      %v1566 = vsel %vm310, %v1561, %v1565
      %v1567 = vshrl.u32 %v260, 16
      %v1569 = vrot.slane %v1567, 4
      %v1570 = vor.u32 %v1569, %v1565
      %v1571 = vrot.slane %v1570, 4
      %v1573 = vshll.u32 %v261, 16
      %v1575 = vrot.slane %v1573, 5
      %v1576 = vsel %vm310, %v1571, %v1575
      %v1577 = vshrl.u32 %v261, 16
      %v1579 = vrot.slane %v1577, 4
      %v1580 = vor.u32 %v1579, %v1575
      %v1581 = vrot.slane %v1580, 4
      %v1583 = vshll.u32 %v304, 16
      %v1585 = vrot.slane %v1583, 5
      %v1586 = vsel %vm310, %v1581, %v1585
      %v1588 = vshrl.u32 %v262, 16
      %v1590 = vrot.slane %v1588, 4
      %v1591 = vshll.u32 %v262, 16
      %v1593 = vrot.slane %v1591, 5
      %v1594 = vor.u32 %v1590, %v1593
      %v1595 = vrot.slane %v1594, 4
      %v1597 = vshll.u32 %v263, 16
      %v1599 = vrot.slane %v1597, 5
      %v1600 = vsel %vm310, %v1595, %v1599
      %v1601 = vshrl.u32 %v263, 16
      %v1603 = vrot.slane %v1601, 4
      %v1604 = vor.u32 %v1603, %v1599
      %v1605 = vrot.slane %v1604, 4
      %v1607 = vshll.u32 %v264, 16
      %v1609 = vrot.slane %v1607, 5
      %v1610 = vsel %vm310, %v1605, %v1609
      %v1611 = vshrl.u32 %v264, 16
      %v1613 = vrot.slane %v1611, 4
      %v1614 = vor.u32 %v1613, %v1609
      %v1615 = vrot.slane %v1614, 4
      %v1617 = vshll.u32 %v265, 16
      %v1619 = vrot.slane %v1617, 5
      %v1620 = vsel %vm310, %v1615, %v1619
      %v1621 = vshrl.u32 %v265, 16
      %v1623 = vrot.slane %v1621, 4
      %v1624 = vor.u32 %v1623, %v1619
      %v1625 = vrot.slane %v1624, 4
      %v1627 = vshll.u32 %v305, 16
      %v1629 = vrot.slane %v1627, 5
      %v1630 = vsel %vm310, %v1625, %v1629
      %v1632 = vshrl.u32 %v266, 16
      %v1634 = vrot.slane %v1632, 4
      %v1635 = vshll.u32 %v266, 16
      %v1637 = vrot.slane %v1635, 5
      %v1638 = vor.u32 %v1634, %v1637
      %v1639 = vrot.slane %v1638, 4
      %v1641 = vshll.u32 %v267, 16
      %v1643 = vrot.slane %v1641, 5
      %v1644 = vsel %vm310, %v1639, %v1643
      %v1645 = vshrl.u32 %v267, 16
      %v1647 = vrot.slane %v1645, 4
      %v1648 = vor.u32 %v1647, %v1643
      %v1649 = vrot.slane %v1648, 4
      %v1651 = vshll.u32 %v268, 16
      %v1653 = vrot.slane %v1651, 5
      %v1654 = vsel %vm310, %v1649, %v1653
      %v1655 = vshrl.u32 %v268, 16
      %v1657 = vrot.slane %v1655, 4
      %v1658 = vor.u32 %v1657, %v1653
      %v1659 = vrot.slane %v1658, 4
      %v1661 = vshll.u32 %v269, 16
      %v1663 = vrot.slane %v1661, 5
      %v1664 = vsel %vm310, %v1659, %v1663
      %v1665 = vshrl.u32 %v269, 16
      %v1667 = vrot.slane %v1665, 4
      %v1668 = vor.u32 %v1667, %v1663
      %v1669 = vrot.slane %v1668, 4
      %v1671 = vshll.u32 %v306, 16
      %v1673 = vrot.slane %v1671, 5
      %v1674 = vsel %vm310, %v1669, %v1673
      %v1676 = vshrl.u32 %v270, 16
      %v1678 = vrot.slane %v1676, 4
      %v1679 = vshll.u32 %v270, 16
      %v1681 = vrot.slane %v1679, 5
      %v1682 = vor.u32 %v1678, %v1681
      %v1683 = vrot.slane %v1682, 4
      %v1685 = vshll.u32 %v271, 16
      %v1687 = vrot.slane %v1685, 5
      %v1688 = vsel %vm310, %v1683, %v1687
      %v1689 = vshrl.u32 %v271, 16
      %v1691 = vrot.slane %v1689, 4
      %v1692 = vor.u32 %v1691, %v1687
      %v1693 = vrot.slane %v1692, 4
      %v1695 = vshll.u32 %v272, 16
      %v1697 = vrot.slane %v1695, 5
      %v1698 = vsel %vm310, %v1693, %v1697
      %v1699 = vshrl.u32 %v272, 16
      %v1701 = vrot.slane %v1699, 4
      %v1702 = vor.u32 %v1701, %v1697
      %v1703 = vrot.slane %v1702, 4
      %v1705 = vshll.u32 %v273, 16
      %v1707 = vrot.slane %v1705, 5
      %v1708 = vsel %vm310, %v1703, %v1707
      %v1709 = vshrl.u32 %v273, 16
      %v1711 = vrot.slane %v1709, 4
      %v1712 = vor.u32 %v1711, %v1707
      %v1713 = vrot.slane %v1712, 4
      %v1715 = vshll.u32 %v307, 16
      %v1717 = vrot.slane %v1715, 5
      %v1718 = vsel %vm310, %v1713, %v1717
      %s1719 = scalar_lea.vmem %s1, 8
      %v1720 = vld [vmem:[%s1719] sm:$0xf]
      %v1721 = vld [vmem:[%s1719 + $0x4] sm:$0xf]
      %v1722 = vunpack.c.l.b16 %v324
      %v1723 = vunpack.c.l.b16 %v334
      %v1724 = vunpack.c.l.b16 %v344
      %v1725 = vunpack.c.l.b16 %v354
      %v1726 = vunpack.c.l.b16 %v368
      %v1727 = vunpack.c.l.b16 %v378
      %v1728 = vunpack.c.l.b16 %v388
      %v1729 = vunpack.c.l.b16 %v398
      %v1730 = vunpack.c.l.b16 %v412
      %v1731 = vunpack.c.l.b16 %v422
      %v1732 = vunpack.c.l.b16 %v432
      %v1733 = vunpack.c.l.b16 %v442
      %v1734 = vunpack.c.l.b16 %v456
      %v1735 = vunpack.c.l.b16 %v466
      %v1736 = vunpack.c.l.b16 %v476
      %v1737 = vunpack.c.l.b16 %v486
      %v1738 = vunpack.c.l.b16 %v500
      %v1739 = vunpack.c.l.b16 %v510
      %v1740 = vunpack.c.l.b16 %v520
      %v1741 = vunpack.c.l.b16 %v530
      %v1742 = vunpack.c.l.b16 %v544
      %v1743 = vunpack.c.l.b16 %v554
      %v1744 = vunpack.c.l.b16 %v564
      %v1745 = vunpack.c.l.b16 %v574
      %v1746 = vunpack.c.l.b16 %v588
      %v1747 = vunpack.c.l.b16 %v598
      %v1748 = vunpack.c.l.b16 %v608
      %v1749 = vunpack.c.l.b16 %v618
      %v1750 = vunpack.c.l.b16 %v632
      %v1751 = vunpack.c.l.b16 %v642
      %v1752 = vunpack.c.l.b16 %v652
      %v1753 = vunpack.c.l.b16 %v662
      %v1754 = vunpack.c.l.b16 %v676
      %v1755 = vunpack.c.l.b16 %v686
      %v1756 = vunpack.c.l.b16 %v696
      %v1757 = vunpack.c.l.b16 %v706
      %v1758 = vunpack.c.l.b16 %v720
      %v1759 = vunpack.c.l.b16 %v730
      %v1760 = vunpack.c.l.b16 %v740
      %v1761 = vunpack.c.l.b16 %v750
      %v1762 = vunpack.c.l.b16 %v764
      %v1763 = vunpack.c.l.b16 %v774
      %v1764 = vunpack.c.l.b16 %v784
      %v1765 = vunpack.c.l.b16 %v794
      %v1766 = vunpack.c.l.b16 %v808
      %v1767 = vunpack.c.l.b16 %v818
      %v1768 = vunpack.c.l.b16 %v828
      %v1769 = vunpack.c.l.b16 %v838
      %v1770 = vunpack.c.l.b16 %v852
      %v1771 = vunpack.c.l.b16 %v862
      %v1772 = vunpack.c.l.b16 %v872
      %v1773 = vunpack.c.l.b16 %v882
      %v1774 = vunpack.c.l.b16 %v896
      %v1775 = vunpack.c.l.b16 %v906
      %v1776 = vunpack.c.l.b16 %v916
      %v1777 = vunpack.c.l.b16 %v926
      %v1778 = vunpack.c.l.b16 %v940
      %v1779 = vunpack.c.l.b16 %v950
      %v1780 = vunpack.c.l.b16 %v960
      %v1781 = vunpack.c.l.b16 %v970
      %v1782 = vunpack.c.l.b16 %v984
      %v1783 = vunpack.c.l.b16 %v994
      %v1784 = vunpack.c.l.b16 %v1004
      %v1785 = vunpack.c.l.b16 %v1014
      %v1786 = vunpack.c.l.b16 %v1028
      %v1787 = vunpack.c.l.b16 %v1038
      %v1788 = vunpack.c.l.b16 %v1048
      %v1789 = vunpack.c.l.b16 %v1058
      %v1790 = vunpack.c.l.b16 %v1072
      %v1791 = vunpack.c.l.b16 %v1082
      %v1792 = vunpack.c.l.b16 %v1092
      %v1793 = vunpack.c.l.b16 %v1102
      %v1794 = vunpack.c.l.b16 %v1116
      %v1795 = vunpack.c.l.b16 %v1126
      %v1796 = vunpack.c.l.b16 %v1136
      %v1797 = vunpack.c.l.b16 %v1146
      %v1798 = vunpack.c.l.b16 %v1160
      %v1799 = vunpack.c.l.b16 %v1170
      %v1800 = vunpack.c.l.b16 %v1180
      %v1801 = vunpack.c.l.b16 %v1190
      %v1802 = vunpack.c.l.b16 %v1204
      %v1803 = vunpack.c.l.b16 %v1214
      %v1804 = vunpack.c.l.b16 %v1224
      %v1805 = vunpack.c.l.b16 %v1234
      %v1806 = vunpack.c.l.b16 %v1248
      %v1807 = vunpack.c.l.b16 %v1258
      %v1808 = vunpack.c.l.b16 %v1268
      %v1809 = vunpack.c.l.b16 %v1278
      %v1810 = vunpack.c.l.b16 %v1292
      %v1811 = vunpack.c.l.b16 %v1302
      %v1812 = vunpack.c.l.b16 %v1312
      %v1813 = vunpack.c.l.b16 %v1322
      %v1814 = vunpack.c.l.b16 %v1336
      %v1815 = vunpack.c.l.b16 %v1346
      %v1816 = vunpack.c.l.b16 %v1356
      %v1817 = vunpack.c.l.b16 %v1366
      %v1818 = vunpack.c.l.b16 %v1380
      %v1819 = vunpack.c.l.b16 %v1390
      %v1820 = vunpack.c.l.b16 %v1400
      %v1821 = vunpack.c.l.b16 %v1410
      %v1822 = vunpack.c.l.b16 %v1424
      %v1823 = vunpack.c.l.b16 %v1434
      %v1824 = vunpack.c.l.b16 %v1444
      %v1825 = vunpack.c.l.b16 %v1454
      %v1826 = vunpack.c.l.b16 %v1468
      %v1827 = vunpack.c.l.b16 %v1478
      %v1828 = vunpack.c.l.b16 %v1488
      %v1829 = vunpack.c.l.b16 %v1498
      %v1830 = vunpack.c.l.b16 %v1512
      %v1831 = vunpack.c.l.b16 %v1522
      %v1832 = vunpack.c.l.b16 %v1532
      %v1833 = vunpack.c.l.b16 %v1542
      %v1834 = vunpack.c.l.b16 %v1556
      %v1835 = vunpack.c.l.b16 %v1566
      %v1836 = vunpack.c.l.b16 %v1576
      %v1837 = vunpack.c.l.b16 %v1586
      %v1838 = vunpack.c.l.b16 %v1600
      %v1839 = vunpack.c.l.b16 %v1610
      %v1840 = vunpack.c.l.b16 %v1620
      %v1841 = vunpack.c.l.b16 %v1630
      %v1842 = vunpack.c.l.b16 %v1644
      %v1843 = vunpack.c.l.b16 %v1654
      %v1844 = vunpack.c.l.b16 %v1664
      %v1845 = vunpack.c.l.b16 %v1674
      %v1846 = vunpack.c.l.b16 %v1688
      %v1847 = vunpack.c.l.b16 %v1698
      %v1848 = vunpack.c.l.b16 %v1708
      %v1849 = vunpack.c.l.b16 %v1718
      %v1850 = vpack.c.b16 %v1723, %v1722
      %v1851 = vpack.c.b16 %v1725, %v1724
      %v1852 = vpack.c.b16 %v1727, %v1726
      %v1853 = vpack.c.b16 %v1729, %v1728
      %v1854 = vpack.c.b16 %v1731, %v1730
      %v1855 = vpack.c.b16 %v1733, %v1732
      %v1856 = vpack.c.b16 %v1735, %v1734
      %v1857 = vpack.c.b16 %v1737, %v1736
      %v1858 = vpack.c.b16 %v1739, %v1738
      %v1859 = vpack.c.b16 %v1741, %v1740
      %v1860 = vpack.c.b16 %v1743, %v1742
      %v1861 = vpack.c.b16 %v1745, %v1744
      %v1862 = vpack.c.b16 %v1747, %v1746
      %v1863 = vpack.c.b16 %v1749, %v1748
      %v1864 = vpack.c.b16 %v1751, %v1750
      %v1865 = vpack.c.b16 %v1753, %v1752
      %v1866 = vpack.c.b16 %v1755, %v1754
      %v1867 = vpack.c.b16 %v1757, %v1756
      %v1868 = vpack.c.b16 %v1759, %v1758
      %v1869 = vpack.c.b16 %v1761, %v1760
      %v1870 = vpack.c.b16 %v1763, %v1762
      %v1871 = vpack.c.b16 %v1765, %v1764
      %v1872 = vpack.c.b16 %v1767, %v1766
      %v1873 = vpack.c.b16 %v1769, %v1768
      %v1874 = vpack.c.b16 %v1771, %v1770
      %v1875 = vpack.c.b16 %v1773, %v1772
      %v1876 = vpack.c.b16 %v1775, %v1774
      %v1877 = vpack.c.b16 %v1777, %v1776
      %v1878 = vpack.c.b16 %v1779, %v1778
      %v1879 = vpack.c.b16 %v1781, %v1780
      %v1880 = vpack.c.b16 %v1783, %v1782
      %v1881 = vpack.c.b16 %v1785, %v1784
      %v1882 = vpack.c.b16 %v1787, %v1786
      %v1883 = vpack.c.b16 %v1789, %v1788
      %v1884 = vpack.c.b16 %v1791, %v1790
      %v1885 = vpack.c.b16 %v1793, %v1792
      %v1886 = vpack.c.b16 %v1795, %v1794
      %v1887 = vpack.c.b16 %v1797, %v1796
      %v1888 = vpack.c.b16 %v1799, %v1798
      %v1889 = vpack.c.b16 %v1801, %v1800
      %v1890 = vpack.c.b16 %v1803, %v1802
      %v1891 = vpack.c.b16 %v1805, %v1804
      %v1892 = vpack.c.b16 %v1807, %v1806
      %v1893 = vpack.c.b16 %v1809, %v1808
      %v1894 = vpack.c.b16 %v1811, %v1810
      %v1895 = vpack.c.b16 %v1813, %v1812
      %v1896 = vpack.c.b16 %v1815, %v1814
      %v1897 = vpack.c.b16 %v1817, %v1816
      %v1898 = vpack.c.b16 %v1819, %v1818
      %v1899 = vpack.c.b16 %v1821, %v1820
      %v1900 = vpack.c.b16 %v1823, %v1822
      %v1901 = vpack.c.b16 %v1825, %v1824
      %v1902 = vpack.c.b16 %v1827, %v1826
      %v1903 = vpack.c.b16 %v1829, %v1828
      %v1904 = vpack.c.b16 %v1831, %v1830
      %v1905 = vpack.c.b16 %v1833, %v1832
      %v1906 = vpack.c.b16 %v1835, %v1834
      %v1907 = vpack.c.b16 %v1837, %v1836
      %v1908 = vpack.c.b16 %v1839, %v1838
      %v1909 = vpack.c.b16 %v1841, %v1840
      %v1910 = vpack.c.b16 %v1843, %v1842
      %v1911 = vpack.c.b16 %v1845, %v1844
      %v1912 = vpack.c.b16 %v1847, %v1846
      %v1913 = vpack.c.b16 %v1849, %v1848
      %v1916 = vunpack.c.l.b16 %v1720
      %v1917 = vunpack.c.l.b16 %v1721
      %v1918 = vpack.c.b16 %v1917, %v1916
      %vm1920 = vcmask 130048
      %v1922 = vsel %vm1920, %v1850, 0
      %v1925 = vsel %vm1920, %v1851, 0
      %v1928 = vsel %vm1920, %v1852, 0
      %v1931 = vsel %vm1920, %v1853, 0
      %v1934 = vsel %vm1920, %v1854, 0
      %v1937 = vsel %vm1920, %v1855, 0
      %v1940 = vsel %vm1920, %v1856, 0
      %v1943 = vsel %vm1920, %v1857, 0
      %v1946 = vsel %vm1920, %v1858, 0
      %v1949 = vsel %vm1920, %v1859, 0
      %v1952 = vsel %vm1920, %v1860, 0
      %v1955 = vsel %vm1920, %v1861, 0
      %v1958 = vsel %vm1920, %v1862, 0
      %v1961 = vsel %vm1920, %v1863, 0
      %v1964 = vsel %vm1920, %v1864, 0
      %v1967 = vsel %vm1920, %v1865, 0
      %v1970 = vsel %vm1920, %v1866, 0
      %v1973 = vsel %vm1920, %v1867, 0
      %v1976 = vsel %vm1920, %v1868, 0
      %v1979 = vsel %vm1920, %v1869, 0
      %v1982 = vsel %vm1920, %v1870, 0
      %v1985 = vsel %vm1920, %v1871, 0
      %v1988 = vsel %vm1920, %v1872, 0
      %v1991 = vsel %vm1920, %v1873, 0
      %v1994 = vsel %vm1920, %v1874, 0
      %v1997 = vsel %vm1920, %v1875, 0
      %v2000 = vsel %vm1920, %v1876, 0
      %v2003 = vsel %vm1920, %v1877, 0
      %v2006 = vsel %vm1920, %v1878, 0
      %v2009 = vsel %vm1920, %v1879, 0
      %v2012 = vsel %vm1920, %v1880, 0
      %v2015 = vsel %vm1920, %v1881, 0
      %v2018 = vsel %vm1920, %v1882, 0
      %v2021 = vsel %vm1920, %v1883, 0
      %v2024 = vsel %vm1920, %v1884, 0
      %v2027 = vsel %vm1920, %v1885, 0
      %v2030 = vsel %vm1920, %v1886, 0
      %v2033 = vsel %vm1920, %v1887, 0
      %v2036 = vsel %vm1920, %v1888, 0
      %v2039 = vsel %vm1920, %v1889, 0
      %v2042 = vsel %vm1920, %v1890, 0
      %v2045 = vsel %vm1920, %v1891, 0
      %v2048 = vsel %vm1920, %v1892, 0
      %v2051 = vsel %vm1920, %v1893, 0
      %v2054 = vsel %vm1920, %v1894, 0
      %v2057 = vsel %vm1920, %v1895, 0
      %v2060 = vsel %vm1920, %v1896, 0
      %v2063 = vsel %vm1920, %v1897, 0
      %v2066 = vsel %vm1920, %v1898, 0
      %v2069 = vsel %vm1920, %v1899, 0
      %v2072 = vsel %vm1920, %v1900, 0
      %v2075 = vsel %vm1920, %v1901, 0
      %v2078 = vsel %vm1920, %v1902, 0
      %v2081 = vsel %vm1920, %v1903, 0
      %v2084 = vsel %vm1920, %v1904, 0
      %v2087 = vsel %vm1920, %v1905, 0
      %v2090 = vsel %vm1920, %v1906, 0
      %v2093 = vsel %vm1920, %v1907, 0
      %v2096 = vsel %vm1920, %v1908, 0
      %v2099 = vsel %vm1920, %v1909, 0
      %v2102 = vsel %vm1920, %v1910, 0
      %v2105 = vsel %vm1920, %v1911, 0
      %v2108 = vsel %vm1920, %v1912, 0
      %v2111 = vsel %vm1920, %v1913, 0
      %2113 = vmatpush.bf16.msra.mxu0 0
      %2114 = vmatpush.bf16.msra.mxu0 0
      %2115 = vmatpush.bf16.msra.mxu0 0
      %2116 = vmatpush.bf16.msra.mxu0 0
      %2117 = vmatpush.bf16.msra.mxu0 0
      %2118 = vmatpush.bf16.msra.mxu0 0
      %2119 = vmatpush.bf16.msra.mxu0 0
      %2120 = vmatpush.bf16.msra.mxu0 %v1918
      %2121 = vmatmul.bf16.gmra.mxu0 %v1922
      %v2122 = vpop.f32.mrf.mxu0
      %v2123 = vadd.f32 0.0, %v2122
      %v2124 = vpop.f32.mrf.mxu0
      %v2125 = vadd.f32 0.0, %v2124
      %2126 = vmatmul.bf16.gmra.mxu0 %v1925
      %v2127 = vpop.f32.mrf.mxu0
      %v2128 = vadd.f32 0.0, %v2127
      %v2129 = vpop.f32.mrf.mxu0
      %v2130 = vadd.f32 0.0, %v2129
      %2131 = vmatmul.bf16.gmra.mxu0 %v1928
      %v2132 = vpop.f32.mrf.mxu0
      %v2133 = vadd.f32 0.0, %v2132
      %v2134 = vpop.f32.mrf.mxu0
      %v2135 = vadd.f32 0.0, %v2134
      %2136 = vmatmul.bf16.gmra.mxu0 %v1931
      %v2137 = vpop.f32.mrf.mxu0
      %v2138 = vadd.f32 0.0, %v2137
      %v2139 = vpop.f32.mrf.mxu0
      %v2140 = vadd.f32 0.0, %v2139
      %2141 = vmatmul.bf16.gmra.mxu0 %v1934
      %v2142 = vpop.f32.mrf.mxu0
      %v2143 = vadd.f32 0.0, %v2142
      %v2144 = vpop.f32.mrf.mxu0
      %v2145 = vadd.f32 0.0, %v2144
      %2146 = vmatmul.bf16.gmra.mxu0 %v1937
      %v2147 = vpop.f32.mrf.mxu0
      %v2148 = vadd.f32 0.0, %v2147
      %v2149 = vpop.f32.mrf.mxu0
      %v2150 = vadd.f32 0.0, %v2149
      %2151 = vmatmul.bf16.gmra.mxu0 %v1940
      %v2152 = vpop.f32.mrf.mxu0
      %v2153 = vadd.f32 0.0, %v2152
      %v2154 = vpop.f32.mrf.mxu0
      %v2155 = vadd.f32 0.0, %v2154
      %2156 = vmatmul.bf16.gmra.mxu0 %v1943
      %v2157 = vpop.f32.mrf.mxu0
      %v2158 = vadd.f32 0.0, %v2157
      %v2159 = vpop.f32.mrf.mxu0
      %v2160 = vadd.f32 0.0, %v2159
      %2161 = vmatmul.bf16.gmra.mxu0 %v1946
      %v2162 = vpop.f32.mrf.mxu0
      %v2163 = vadd.f32 0.0, %v2162
      %v2164 = vpop.f32.mrf.mxu0
      %v2165 = vadd.f32 0.0, %v2164
      %2166 = vmatmul.bf16.gmra.mxu0 %v1949
      %v2167 = vpop.f32.mrf.mxu0
      %v2168 = vadd.f32 0.0, %v2167
      %v2169 = vpop.f32.mrf.mxu0
      %v2170 = vadd.f32 0.0, %v2169
      %2171 = vmatmul.bf16.gmra.mxu0 %v1952
      %v2172 = vpop.f32.mrf.mxu0
      %v2173 = vadd.f32 0.0, %v2172
      %v2174 = vpop.f32.mrf.mxu0
      %v2175 = vadd.f32 0.0, %v2174
      %2176 = vmatmul.bf16.gmra.mxu0 %v1955
      %v2177 = vpop.f32.mrf.mxu0
      %v2178 = vadd.f32 0.0, %v2177
      %v2179 = vpop.f32.mrf.mxu0
      %v2180 = vadd.f32 0.0, %v2179
      %2181 = vmatmul.bf16.gmra.mxu0 %v1958
      %v2182 = vpop.f32.mrf.mxu0
      %v2183 = vadd.f32 0.0, %v2182
      %v2184 = vpop.f32.mrf.mxu0
      %v2185 = vadd.f32 0.0, %v2184
      %2186 = vmatmul.bf16.gmra.mxu0 %v1961
      %v2187 = vpop.f32.mrf.mxu0
      %v2188 = vadd.f32 0.0, %v2187
      %v2189 = vpop.f32.mrf.mxu0
      %v2190 = vadd.f32 0.0, %v2189
      %2191 = vmatmul.bf16.gmra.mxu0 %v1964
      %v2192 = vpop.f32.mrf.mxu0
      %v2193 = vadd.f32 0.0, %v2192
      %v2194 = vpop.f32.mrf.mxu0
      %v2195 = vadd.f32 0.0, %v2194
      %2196 = vmatmul.bf16.gmra.mxu0 %v1967
      %v2197 = vpop.f32.mrf.mxu0
      %v2198 = vadd.f32 0.0, %v2197
      %v2199 = vpop.f32.mrf.mxu0
      %v2200 = vadd.f32 0.0, %v2199
      %2201 = vmatmul.bf16.gmra.mxu0 %v1970
      %v2202 = vpop.f32.mrf.mxu0
      %v2203 = vadd.f32 0.0, %v2202
      %v2204 = vpop.f32.mrf.mxu0
      %v2205 = vadd.f32 0.0, %v2204
      %2206 = vmatmul.bf16.gmra.mxu0 %v1973
      %v2207 = vpop.f32.mrf.mxu0
      %v2208 = vadd.f32 0.0, %v2207
      %v2209 = vpop.f32.mrf.mxu0
      %v2210 = vadd.f32 0.0, %v2209
      %2211 = vmatmul.bf16.gmra.mxu0 %v1976
      %v2212 = vpop.f32.mrf.mxu0
      %v2213 = vadd.f32 0.0, %v2212
      %v2214 = vpop.f32.mrf.mxu0
      %v2215 = vadd.f32 0.0, %v2214
      %2216 = vmatmul.bf16.gmra.mxu0 %v1979
      %v2217 = vpop.f32.mrf.mxu0
      %v2218 = vadd.f32 0.0, %v2217
      %v2219 = vpop.f32.mrf.mxu0
      %v2220 = vadd.f32 0.0, %v2219
      %2221 = vmatmul.bf16.gmra.mxu0 %v1982
      %v2222 = vpop.f32.mrf.mxu0
      %v2223 = vadd.f32 0.0, %v2222
      %v2224 = vpop.f32.mrf.mxu0
      %v2225 = vadd.f32 0.0, %v2224
      %2226 = vmatmul.bf16.gmra.mxu0 %v1985
      %v2227 = vpop.f32.mrf.mxu0
      %v2228 = vadd.f32 0.0, %v2227
      %v2229 = vpop.f32.mrf.mxu0
      %v2230 = vadd.f32 0.0, %v2229
      %2231 = vmatmul.bf16.gmra.mxu0 %v1988
      %v2232 = vpop.f32.mrf.mxu0
      %v2233 = vadd.f32 0.0, %v2232
      %v2234 = vpop.f32.mrf.mxu0
      %v2235 = vadd.f32 0.0, %v2234
      %2236 = vmatmul.bf16.gmra.mxu0 %v1991
      %v2237 = vpop.f32.mrf.mxu0
      %v2238 = vadd.f32 0.0, %v2237
      %v2239 = vpop.f32.mrf.mxu0
      %v2240 = vadd.f32 0.0, %v2239
      %2241 = vmatmul.bf16.gmra.mxu0 %v1994
      %v2242 = vpop.f32.mrf.mxu0
      %v2243 = vadd.f32 0.0, %v2242
      %v2244 = vpop.f32.mrf.mxu0
      %v2245 = vadd.f32 0.0, %v2244
      %2246 = vmatmul.bf16.gmra.mxu0 %v1997
      %v2247 = vpop.f32.mrf.mxu0
      %v2248 = vadd.f32 0.0, %v2247
      %v2249 = vpop.f32.mrf.mxu0
      %v2250 = vadd.f32 0.0, %v2249
      %2251 = vmatmul.bf16.gmra.mxu0 %v2000
      %v2252 = vpop.f32.mrf.mxu0
      %v2253 = vadd.f32 0.0, %v2252
      %v2254 = vpop.f32.mrf.mxu0
      %v2255 = vadd.f32 0.0, %v2254
      %2256 = vmatmul.bf16.gmra.mxu0 %v2003
      %v2257 = vpop.f32.mrf.mxu0
      %v2258 = vadd.f32 0.0, %v2257
      %v2259 = vpop.f32.mrf.mxu0
      %v2260 = vadd.f32 0.0, %v2259
      %2261 = vmatmul.bf16.gmra.mxu0 %v2006
      %v2262 = vpop.f32.mrf.mxu0
      %v2263 = vadd.f32 0.0, %v2262
      %v2264 = vpop.f32.mrf.mxu0
      %v2265 = vadd.f32 0.0, %v2264
      %2266 = vmatmul.bf16.gmra.mxu0 %v2009
      %v2267 = vpop.f32.mrf.mxu0
      %v2268 = vadd.f32 0.0, %v2267
      %v2269 = vpop.f32.mrf.mxu0
      %v2270 = vadd.f32 0.0, %v2269
      %2271 = vmatmul.bf16.gmra.mxu0 %v2012
      %v2272 = vpop.f32.mrf.mxu0
      %v2273 = vadd.f32 0.0, %v2272
      %v2274 = vpop.f32.mrf.mxu0
      %v2275 = vadd.f32 0.0, %v2274
      %2276 = vmatmul.bf16.gmra.mxu0 %v2015
      %v2277 = vpop.f32.mrf.mxu0
      %v2278 = vadd.f32 0.0, %v2277
      %v2279 = vpop.f32.mrf.mxu0
      %v2280 = vadd.f32 0.0, %v2279
      %2281 = vmatmul.bf16.gmra.mxu0 %v2018
      %v2282 = vpop.f32.mrf.mxu0
      %v2283 = vadd.f32 0.0, %v2282
      %v2284 = vpop.f32.mrf.mxu0
      %v2285 = vadd.f32 0.0, %v2284
      %2286 = vmatmul.bf16.gmra.mxu0 %v2021
      %v2287 = vpop.f32.mrf.mxu0
      %v2288 = vadd.f32 0.0, %v2287
      %v2289 = vpop.f32.mrf.mxu0
      %v2290 = vadd.f32 0.0, %v2289
      %2291 = vmatmul.bf16.gmra.mxu0 %v2024
      %v2292 = vpop.f32.mrf.mxu0
      %v2293 = vadd.f32 0.0, %v2292
      %v2294 = vpop.f32.mrf.mxu0
      %v2295 = vadd.f32 0.0, %v2294
      %2296 = vmatmul.bf16.gmra.mxu0 %v2027
      %v2297 = vpop.f32.mrf.mxu0
      %v2298 = vadd.f32 0.0, %v2297
      %v2299 = vpop.f32.mrf.mxu0
      %v2300 = vadd.f32 0.0, %v2299
      %2301 = vmatmul.bf16.gmra.mxu0 %v2030
      %v2302 = vpop.f32.mrf.mxu0
      %v2303 = vadd.f32 0.0, %v2302
      %v2304 = vpop.f32.mrf.mxu0
      %v2305 = vadd.f32 0.0, %v2304
      %2306 = vmatmul.bf16.gmra.mxu0 %v2033
      %v2307 = vpop.f32.mrf.mxu0
      %v2308 = vadd.f32 0.0, %v2307
      %v2309 = vpop.f32.mrf.mxu0
      %v2310 = vadd.f32 0.0, %v2309
      %2311 = vmatmul.bf16.gmra.mxu0 %v2036
      %v2312 = vpop.f32.mrf.mxu0
      %v2313 = vadd.f32 0.0, %v2312
      %v2314 = vpop.f32.mrf.mxu0
      %v2315 = vadd.f32 0.0, %v2314
      %2316 = vmatmul.bf16.gmra.mxu0 %v2039
      %v2317 = vpop.f32.mrf.mxu0
      %v2318 = vadd.f32 0.0, %v2317
      %v2319 = vpop.f32.mrf.mxu0
      %v2320 = vadd.f32 0.0, %v2319
      %2321 = vmatmul.bf16.gmra.mxu0 %v2042
      %v2322 = vpop.f32.mrf.mxu0
      %v2323 = vadd.f32 0.0, %v2322
      %v2324 = vpop.f32.mrf.mxu0
      %v2325 = vadd.f32 0.0, %v2324
      %2326 = vmatmul.bf16.gmra.mxu0 %v2045
      %v2327 = vpop.f32.mrf.mxu0
      %v2328 = vadd.f32 0.0, %v2327
      %v2329 = vpop.f32.mrf.mxu0
      %v2330 = vadd.f32 0.0, %v2329
      %2331 = vmatmul.bf16.gmra.mxu0 %v2048
      %v2332 = vpop.f32.mrf.mxu0
      %v2333 = vadd.f32 0.0, %v2332
      %v2334 = vpop.f32.mrf.mxu0
      %v2335 = vadd.f32 0.0, %v2334
      %2336 = vmatmul.bf16.gmra.mxu0 %v2051
      %v2337 = vpop.f32.mrf.mxu0
      %v2338 = vadd.f32 0.0, %v2337
      %v2339 = vpop.f32.mrf.mxu0
      %v2340 = vadd.f32 0.0, %v2339
      %2341 = vmatmul.bf16.gmra.mxu0 %v2054
      %v2342 = vpop.f32.mrf.mxu0
      %v2343 = vadd.f32 0.0, %v2342
      %v2344 = vpop.f32.mrf.mxu0
      %v2345 = vadd.f32 0.0, %v2344
      %2346 = vmatmul.bf16.gmra.mxu0 %v2057
      %v2347 = vpop.f32.mrf.mxu0
      %v2348 = vadd.f32 0.0, %v2347
      %v2349 = vpop.f32.mrf.mxu0
      %v2350 = vadd.f32 0.0, %v2349
      %2351 = vmatmul.bf16.gmra.mxu0 %v2060
      %v2352 = vpop.f32.mrf.mxu0
      %v2353 = vadd.f32 0.0, %v2352
      %v2354 = vpop.f32.mrf.mxu0
      %v2355 = vadd.f32 0.0, %v2354
      %2356 = vmatmul.bf16.gmra.mxu0 %v2063
      %v2357 = vpop.f32.mrf.mxu0
      %v2358 = vadd.f32 0.0, %v2357
      %v2359 = vpop.f32.mrf.mxu0
      %v2360 = vadd.f32 0.0, %v2359
      %2361 = vmatmul.bf16.gmra.mxu0 %v2066
      %v2362 = vpop.f32.mrf.mxu0
      %v2363 = vadd.f32 0.0, %v2362
      %v2364 = vpop.f32.mrf.mxu0
      %v2365 = vadd.f32 0.0, %v2364
      %2366 = vmatmul.bf16.gmra.mxu0 %v2069
      %v2367 = vpop.f32.mrf.mxu0
      %v2368 = vadd.f32 0.0, %v2367
      %v2369 = vpop.f32.mrf.mxu0
      %v2370 = vadd.f32 0.0, %v2369
      %2371 = vmatmul.bf16.gmra.mxu0 %v2072
      %v2372 = vpop.f32.mrf.mxu0
      %v2373 = vadd.f32 0.0, %v2372
      %v2374 = vpop.f32.mrf.mxu0
      %v2375 = vadd.f32 0.0, %v2374
      %2376 = vmatmul.bf16.gmra.mxu0 %v2075
      %v2377 = vpop.f32.mrf.mxu0
      %v2378 = vadd.f32 0.0, %v2377
      %v2379 = vpop.f32.mrf.mxu0
      %v2380 = vadd.f32 0.0, %v2379
      %2381 = vmatmul.bf16.gmra.mxu0 %v2078
      %v2382 = vpop.f32.mrf.mxu0
      %v2383 = vadd.f32 0.0, %v2382
      %v2384 = vpop.f32.mrf.mxu0
      %v2385 = vadd.f32 0.0, %v2384
      %2386 = vmatmul.bf16.gmra.mxu0 %v2081
      %v2387 = vpop.f32.mrf.mxu0
      %v2388 = vadd.f32 0.0, %v2387
      %v2389 = vpop.f32.mrf.mxu0
      %v2390 = vadd.f32 0.0, %v2389
      %2391 = vmatmul.bf16.gmra.mxu0 %v2084
      %v2392 = vpop.f32.mrf.mxu0
      %v2393 = vadd.f32 0.0, %v2392
      %v2394 = vpop.f32.mrf.mxu0
      %v2395 = vadd.f32 0.0, %v2394
      %2396 = vmatmul.bf16.gmra.mxu0 %v2087
      %v2397 = vpop.f32.mrf.mxu0
      %v2398 = vadd.f32 0.0, %v2397
      %v2399 = vpop.f32.mrf.mxu0
      %v2400 = vadd.f32 0.0, %v2399
      %2401 = vmatmul.bf16.gmra.mxu0 %v2090
      %v2402 = vpop.f32.mrf.mxu0
      %v2403 = vadd.f32 0.0, %v2402
      %v2404 = vpop.f32.mrf.mxu0
      %v2405 = vadd.f32 0.0, %v2404
      %2406 = vmatmul.bf16.gmra.mxu0 %v2093
      %v2407 = vpop.f32.mrf.mxu0
      %v2408 = vadd.f32 0.0, %v2407
      %v2409 = vpop.f32.mrf.mxu0
      %v2410 = vadd.f32 0.0, %v2409
      %2411 = vmatmul.bf16.gmra.mxu0 %v2096
      %v2412 = vpop.f32.mrf.mxu0
      %v2413 = vadd.f32 0.0, %v2412
      %v2414 = vpop.f32.mrf.mxu0
      %v2415 = vadd.f32 0.0, %v2414
      %2416 = vmatmul.bf16.gmra.mxu0 %v2099
      %v2417 = vpop.f32.mrf.mxu0
      %v2418 = vadd.f32 0.0, %v2417
      %v2419 = vpop.f32.mrf.mxu0
      %v2420 = vadd.f32 0.0, %v2419
      %2421 = vmatmul.bf16.gmra.mxu0 %v2102
      %v2422 = vpop.f32.mrf.mxu0
      %v2423 = vadd.f32 0.0, %v2422
      %v2424 = vpop.f32.mrf.mxu0
      %v2425 = vadd.f32 0.0, %v2424
      %2426 = vmatmul.bf16.gmra.mxu0 %v2105
      %v2427 = vpop.f32.mrf.mxu0
      %v2428 = vadd.f32 0.0, %v2427
      %v2429 = vpop.f32.mrf.mxu0
      %v2430 = vadd.f32 0.0, %v2429
      %2431 = vmatmul.bf16.gmra.mxu0 %v2108
      %v2432 = vpop.f32.mrf.mxu0
      %v2433 = vadd.f32 0.0, %v2432
      %v2434 = vpop.f32.mrf.mxu0
      %v2435 = vadd.f32 0.0, %v2434
      %2436 = vmatmul.bf16.gmra.mxu0 %v2111
      %v2437 = vpop.f32.mrf.mxu0
      %v2438 = vadd.f32 0.0, %v2437
      %v2439 = vpop.f32.mrf.mxu0
      %v2440 = vadd.f32 0.0, %v2439
      %2441 = vdwg.mxu0
      %v2570 = vunpack.c.l.b16 %v146
      %v2571 = vunpack.c.l.b16 %v147
      %v2572 = vunpack.c.l.b16 %v148
      %v2573 = vunpack.c.l.b16 %v149
      %v2574 = vunpack.c.l.b16 %v150
      %v2575 = vunpack.c.l.b16 %v151
      %v2576 = vunpack.c.l.b16 %v152
      %v2577 = vunpack.c.l.b16 %v153
      %v2578 = vunpack.c.l.b16 %v154
      %v2579 = vunpack.c.l.b16 %v155
      %v2580 = vunpack.c.l.b16 %v156
      %v2581 = vunpack.c.l.b16 %v157
      %v2582 = vunpack.c.l.b16 %v158
      %v2583 = vunpack.c.l.b16 %v159
      %v2584 = vunpack.c.l.b16 %v160
      %v2585 = vunpack.c.l.b16 %v161
      %v2586 = vunpack.c.l.b16 %v162
      %v2587 = vunpack.c.l.b16 %v163
      %v2588 = vunpack.c.l.b16 %v164
      %v2589 = vunpack.c.l.b16 %v165
      %v2590 = vunpack.c.l.b16 %v166
      %v2591 = vunpack.c.l.b16 %v167
      %v2592 = vunpack.c.l.b16 %v168
      %v2593 = vunpack.c.l.b16 %v169
      %v2594 = vunpack.c.l.b16 %v170
      %v2595 = vunpack.c.l.b16 %v171
      %v2596 = vunpack.c.l.b16 %v172
      %v2597 = vunpack.c.l.b16 %v173
      %v2598 = vunpack.c.l.b16 %v174
      %v2599 = vunpack.c.l.b16 %v175
      %v2600 = vunpack.c.l.b16 %v176
      %v2601 = vunpack.c.l.b16 %v177
      %v2602 = vunpack.c.l.b16 %v178
      %v2603 = vunpack.c.l.b16 %v179
      %v2604 = vunpack.c.l.b16 %v180
      %v2605 = vunpack.c.l.b16 %v181
      %v2606 = vunpack.c.l.b16 %v182
      %v2607 = vunpack.c.l.b16 %v183
      %v2608 = vunpack.c.l.b16 %v184
      %v2609 = vunpack.c.l.b16 %v185
      %v2610 = vunpack.c.l.b16 %v186
      %v2611 = vunpack.c.l.b16 %v187
      %v2612 = vunpack.c.l.b16 %v188
      %v2613 = vunpack.c.l.b16 %v189
      %v2614 = vunpack.c.l.b16 %v190
      %v2615 = vunpack.c.l.b16 %v191
      %v2616 = vunpack.c.l.b16 %v192
      %v2617 = vunpack.c.l.b16 %v193
      %v2618 = vunpack.c.l.b16 %v194
      %v2619 = vunpack.c.l.b16 %v195
      %v2620 = vunpack.c.l.b16 %v196
      %v2621 = vunpack.c.l.b16 %v197
      %v2622 = vunpack.c.l.b16 %v198
      %v2623 = vunpack.c.l.b16 %v199
      %v2624 = vunpack.c.l.b16 %v200
      %v2625 = vunpack.c.l.b16 %v201
      %v2626 = vunpack.c.l.b16 %v202
      %v2627 = vunpack.c.l.b16 %v203
      %v2628 = vunpack.c.l.b16 %v204
      %v2629 = vunpack.c.l.b16 %v205
      %v2630 = vunpack.c.l.b16 %v206
      %v2631 = vunpack.c.l.b16 %v207
      %v2632 = vunpack.c.l.b16 %v208
      %v2633 = vunpack.c.l.b16 %v209
      %v2634 = vunpack.c.l.b16 %v210
      %v2635 = vunpack.c.l.b16 %v211
      %v2636 = vunpack.c.l.b16 %v212
      %v2637 = vunpack.c.l.b16 %v213
      %v2638 = vunpack.c.l.b16 %v214
      %v2639 = vunpack.c.l.b16 %v215
      %v2640 = vunpack.c.l.b16 %v216
      %v2641 = vunpack.c.l.b16 %v217
      %v2642 = vunpack.c.l.b16 %v218
      %v2643 = vunpack.c.l.b16 %v219
      %v2644 = vunpack.c.l.b16 %v220
      %v2645 = vunpack.c.l.b16 %v221
      %v2646 = vunpack.c.l.b16 %v222
      %v2647 = vunpack.c.l.b16 %v223
      %v2648 = vunpack.c.l.b16 %v224
      %v2649 = vunpack.c.l.b16 %v225
      %v2650 = vunpack.c.l.b16 %v226
      %v2651 = vunpack.c.l.b16 %v227
      %v2652 = vunpack.c.l.b16 %v228
      %v2653 = vunpack.c.l.b16 %v229
      %v2654 = vunpack.c.l.b16 %v230
      %v2655 = vunpack.c.l.b16 %v231
      %v2656 = vunpack.c.l.b16 %v232
      %v2657 = vunpack.c.l.b16 %v233
      %v2658 = vunpack.c.l.b16 %v234
      %v2659 = vunpack.c.l.b16 %v235
      %v2660 = vunpack.c.l.b16 %v236
      %v2661 = vunpack.c.l.b16 %v237
      %v2662 = vunpack.c.l.b16 %v238
      %v2663 = vunpack.c.l.b16 %v239
      %v2664 = vunpack.c.l.b16 %v240
      %v2665 = vunpack.c.l.b16 %v241
      %v2666 = vunpack.c.l.b16 %v242
      %v2667 = vunpack.c.l.b16 %v243
      %v2668 = vunpack.c.l.b16 %v244
      %v2669 = vunpack.c.l.b16 %v245
      %v2670 = vunpack.c.l.b16 %v246
      %v2671 = vunpack.c.l.b16 %v247
      %v2672 = vunpack.c.l.b16 %v248
      %v2673 = vunpack.c.l.b16 %v249
      %v2674 = vunpack.c.l.b16 %v250
      %v2675 = vunpack.c.l.b16 %v251
      %v2676 = vunpack.c.l.b16 %v252
      %v2677 = vunpack.c.l.b16 %v253
      %v2678 = vunpack.c.l.b16 %v254
      %v2679 = vunpack.c.l.b16 %v255
      %v2680 = vunpack.c.l.b16 %v256
      %v2681 = vunpack.c.l.b16 %v257
      %v2682 = vunpack.c.l.b16 %v258
      %v2683 = vunpack.c.l.b16 %v259
      %v2684 = vunpack.c.l.b16 %v260
      %v2685 = vunpack.c.l.b16 %v261
      %v2686 = vunpack.c.l.b16 %v262
      %v2687 = vunpack.c.l.b16 %v263
      %v2688 = vunpack.c.l.b16 %v264
      %v2689 = vunpack.c.l.b16 %v265
      %v2690 = vunpack.c.l.b16 %v266
      %v2691 = vunpack.c.l.b16 %v267
      %v2692 = vunpack.c.l.b16 %v268
      %v2693 = vunpack.c.l.b16 %v269
      %v2694 = vunpack.c.l.b16 %v270
      %v2695 = vunpack.c.l.b16 %v271
      %v2696 = vunpack.c.l.b16 %v272
      %v2697 = vunpack.c.l.b16 %v273
      %v2698 = vpack.c.b16 %v2571, %v2570
      %v2699 = vpack.c.b16 %v2573, %v2572
      %v2700 = vpack.c.b16 %v2575, %v2574
      %v2701 = vpack.c.b16 %v2577, %v2576
      %v2702 = vpack.c.b16 %v2579, %v2578
      %v2703 = vpack.c.b16 %v2581, %v2580
      %v2704 = vpack.c.b16 %v2583, %v2582
      %v2705 = vpack.c.b16 %v2585, %v2584
      %v2706 = vpack.c.b16 %v2587, %v2586
      %v2707 = vpack.c.b16 %v2589, %v2588
      %v2708 = vpack.c.b16 %v2591, %v2590
      %v2709 = vpack.c.b16 %v2593, %v2592
      %v2710 = vpack.c.b16 %v2595, %v2594
      %v2711 = vpack.c.b16 %v2597, %v2596
      %v2712 = vpack.c.b16 %v2599, %v2598
      %v2713 = vpack.c.b16 %v2601, %v2600
      %v2714 = vpack.c.b16 %v2603, %v2602
      %v2715 = vpack.c.b16 %v2605, %v2604
      %v2716 = vpack.c.b16 %v2607, %v2606
      %v2717 = vpack.c.b16 %v2609, %v2608
      %v2718 = vpack.c.b16 %v2611, %v2610
      %v2719 = vpack.c.b16 %v2613, %v2612
      %v2720 = vpack.c.b16 %v2615, %v2614
      %v2721 = vpack.c.b16 %v2617, %v2616
      %v2722 = vpack.c.b16 %v2619, %v2618
      %v2723 = vpack.c.b16 %v2621, %v2620
      %v2724 = vpack.c.b16 %v2623, %v2622
      %v2725 = vpack.c.b16 %v2625, %v2624
      %v2726 = vpack.c.b16 %v2627, %v2626
      %v2727 = vpack.c.b16 %v2629, %v2628
      %v2728 = vpack.c.b16 %v2631, %v2630
      %v2729 = vpack.c.b16 %v2633, %v2632
      %v2730 = vpack.c.b16 %v2635, %v2634
      %v2731 = vpack.c.b16 %v2637, %v2636
      %v2732 = vpack.c.b16 %v2639, %v2638
      %v2733 = vpack.c.b16 %v2641, %v2640
      %v2734 = vpack.c.b16 %v2643, %v2642
      %v2735 = vpack.c.b16 %v2645, %v2644
      %v2736 = vpack.c.b16 %v2647, %v2646
      %v2737 = vpack.c.b16 %v2649, %v2648
      %v2738 = vpack.c.b16 %v2651, %v2650
      %v2739 = vpack.c.b16 %v2653, %v2652
      %v2740 = vpack.c.b16 %v2655, %v2654
      %v2741 = vpack.c.b16 %v2657, %v2656
      %v2742 = vpack.c.b16 %v2659, %v2658
      %v2743 = vpack.c.b16 %v2661, %v2660
      %v2744 = vpack.c.b16 %v2663, %v2662
      %v2745 = vpack.c.b16 %v2665, %v2664
      %v2746 = vpack.c.b16 %v2667, %v2666
      %v2747 = vpack.c.b16 %v2669, %v2668
      %v2748 = vpack.c.b16 %v2671, %v2670
      %v2749 = vpack.c.b16 %v2673, %v2672
      %v2750 = vpack.c.b16 %v2675, %v2674
      %v2751 = vpack.c.b16 %v2677, %v2676
      %v2752 = vpack.c.b16 %v2679, %v2678
      %v2753 = vpack.c.b16 %v2681, %v2680
      %v2754 = vpack.c.b16 %v2683, %v2682
      %v2755 = vpack.c.b16 %v2685, %v2684
      %v2756 = vpack.c.b16 %v2687, %v2686
      %v2757 = vpack.c.b16 %v2689, %v2688
      %v2758 = vpack.c.b16 %v2691, %v2690
      %v2759 = vpack.c.b16 %v2693, %v2692
      %v2760 = vpack.c.b16 %v2695, %v2694
      %v2761 = vpack.c.b16 %v2697, %v2696
      %v2764 = vunpack.c.l.b16 %v274
      %v2765 = vunpack.c.l.b16 %v275
      %v2766 = vpack.c.b16 %v2765, %v2764
      %v2769 = vsel %vm1920, %v2698, 0
      %v2772 = vsel %vm1920, %v2699, 0
      %v2775 = vsel %vm1920, %v2700, 0
      %v2778 = vsel %vm1920, %v2701, 0
      %v2781 = vsel %vm1920, %v2702, 0
      %v2784 = vsel %vm1920, %v2703, 0
      %v2787 = vsel %vm1920, %v2704, 0
      %v2790 = vsel %vm1920, %v2705, 0
      %v2793 = vsel %vm1920, %v2706, 0
      %v2796 = vsel %vm1920, %v2707, 0
      %v2799 = vsel %vm1920, %v2708, 0
      %v2802 = vsel %vm1920, %v2709, 0
      %v2805 = vsel %vm1920, %v2710, 0
      %v2808 = vsel %vm1920, %v2711, 0
      %v2811 = vsel %vm1920, %v2712, 0
      %v2814 = vsel %vm1920, %v2713, 0
      %v2817 = vsel %vm1920, %v2714, 0
      %v2820 = vsel %vm1920, %v2715, 0
      %v2823 = vsel %vm1920, %v2716, 0
      %v2826 = vsel %vm1920, %v2717, 0
      %v2829 = vsel %vm1920, %v2718, 0
      %v2832 = vsel %vm1920, %v2719, 0
      %v2835 = vsel %vm1920, %v2720, 0
      %v2838 = vsel %vm1920, %v2721, 0
      %v2841 = vsel %vm1920, %v2722, 0
      %v2844 = vsel %vm1920, %v2723, 0
      %v2847 = vsel %vm1920, %v2724, 0
      %v2850 = vsel %vm1920, %v2725, 0
      %v2853 = vsel %vm1920, %v2726, 0
      %v2856 = vsel %vm1920, %v2727, 0
      %v2859 = vsel %vm1920, %v2728, 0
      %v2862 = vsel %vm1920, %v2729, 0
      %v2865 = vsel %vm1920, %v2730, 0
      %v2868 = vsel %vm1920, %v2731, 0
      %v2871 = vsel %vm1920, %v2732, 0
      %v2874 = vsel %vm1920, %v2733, 0
      %v2877 = vsel %vm1920, %v2734, 0
      %v2880 = vsel %vm1920, %v2735, 0
      %v2883 = vsel %vm1920, %v2736, 0
      %v2886 = vsel %vm1920, %v2737, 0
      %v2889 = vsel %vm1920, %v2738, 0
      %v2892 = vsel %vm1920, %v2739, 0
      %v2895 = vsel %vm1920, %v2740, 0
      %v2898 = vsel %vm1920, %v2741, 0
      %v2901 = vsel %vm1920, %v2742, 0
      %v2904 = vsel %vm1920, %v2743, 0
      %v2907 = vsel %vm1920, %v2744, 0
      %v2910 = vsel %vm1920, %v2745, 0
      %v2913 = vsel %vm1920, %v2746, 0
      %v2916 = vsel %vm1920, %v2747, 0
      %v2919 = vsel %vm1920, %v2748, 0
      %v2922 = vsel %vm1920, %v2749, 0
      %v2925 = vsel %vm1920, %v2750, 0
      %v2928 = vsel %vm1920, %v2751, 0
      %v2931 = vsel %vm1920, %v2752, 0
      %v2934 = vsel %vm1920, %v2753, 0
      %v2937 = vsel %vm1920, %v2754, 0
      %v2940 = vsel %vm1920, %v2755, 0
      %v2943 = vsel %vm1920, %v2756, 0
      %v2946 = vsel %vm1920, %v2757, 0
      %v2949 = vsel %vm1920, %v2758, 0
      %v2952 = vsel %vm1920, %v2759, 0
      %v2955 = vsel %vm1920, %v2760, 0
      %v2958 = vsel %vm1920, %v2761, 0
      %2960 = vmatpush.bf16.msra.mxu0 0
      %2961 = vmatpush.bf16.msra.mxu0 0
      %2962 = vmatpush.bf16.msra.mxu0 0
      %2963 = vmatpush.bf16.msra.mxu0 0
      %2964 = vmatpush.bf16.msra.mxu0 0
      %2965 = vmatpush.bf16.msra.mxu0 0
      %2966 = vmatpush.bf16.msra.mxu0 0
      %2967 = vmatpush.bf16.msra.mxu0 %v2766
      %2968 = vmatmul.bf16.gmra.mxu0 %v2769
      %v2969 = vpop.f32.mrf.mxu0
      %v2970 = vadd.f32 %v2123, %v2969
      %v2971 = vpop.f32.mrf.mxu0
      %v2972 = vadd.f32 %v2125, %v2971
      %2973 = vmatmul.bf16.gmra.mxu0 %v2772
      %v2974 = vpop.f32.mrf.mxu0
      %v2975 = vadd.f32 %v2128, %v2974
      %v2976 = vpop.f32.mrf.mxu0
      %v2977 = vadd.f32 %v2130, %v2976
      %2978 = vmatmul.bf16.gmra.mxu0 %v2775
      %v2979 = vpop.f32.mrf.mxu0
      %v2980 = vadd.f32 %v2133, %v2979
      %v2981 = vpop.f32.mrf.mxu0
      %v2982 = vadd.f32 %v2135, %v2981
      %2983 = vmatmul.bf16.gmra.mxu0 %v2778
      %v2984 = vpop.f32.mrf.mxu0
      %v2985 = vadd.f32 %v2138, %v2984
      %v2986 = vpop.f32.mrf.mxu0
      %v2987 = vadd.f32 %v2140, %v2986
      %2988 = vmatmul.bf16.gmra.mxu0 %v2781
      %v2989 = vpop.f32.mrf.mxu0
      %v2990 = vadd.f32 %v2143, %v2989
      %v2991 = vpop.f32.mrf.mxu0
      %v2992 = vadd.f32 %v2145, %v2991
      %2993 = vmatmul.bf16.gmra.mxu0 %v2784
      %v2994 = vpop.f32.mrf.mxu0
      %v2995 = vadd.f32 %v2148, %v2994
      %v2996 = vpop.f32.mrf.mxu0
      %v2997 = vadd.f32 %v2150, %v2996
      %2998 = vmatmul.bf16.gmra.mxu0 %v2787
      %v2999 = vpop.f32.mrf.mxu0
      %v3000 = vadd.f32 %v2153, %v2999
      %v3001 = vpop.f32.mrf.mxu0
      %v3002 = vadd.f32 %v2155, %v3001
      %3003 = vmatmul.bf16.gmra.mxu0 %v2790
      %v3004 = vpop.f32.mrf.mxu0
      %v3005 = vadd.f32 %v2158, %v3004
      %v3006 = vpop.f32.mrf.mxu0
      %v3007 = vadd.f32 %v2160, %v3006
      %3008 = vmatmul.bf16.gmra.mxu0 %v2793
      %v3009 = vpop.f32.mrf.mxu0
      %v3010 = vadd.f32 %v2163, %v3009
      %v3011 = vpop.f32.mrf.mxu0
      %v3012 = vadd.f32 %v2165, %v3011
      %3013 = vmatmul.bf16.gmra.mxu0 %v2796
      %v3014 = vpop.f32.mrf.mxu0
      %v3015 = vadd.f32 %v2168, %v3014
      %v3016 = vpop.f32.mrf.mxu0
      %v3017 = vadd.f32 %v2170, %v3016
      %3018 = vmatmul.bf16.gmra.mxu0 %v2799
      %v3019 = vpop.f32.mrf.mxu0
      %v3020 = vadd.f32 %v2173, %v3019
      %v3021 = vpop.f32.mrf.mxu0
      %v3022 = vadd.f32 %v2175, %v3021
      %3023 = vmatmul.bf16.gmra.mxu0 %v2802
      %v3024 = vpop.f32.mrf.mxu0
      %v3025 = vadd.f32 %v2178, %v3024
      %v3026 = vpop.f32.mrf.mxu0
      %v3027 = vadd.f32 %v2180, %v3026
      %3028 = vmatmul.bf16.gmra.mxu0 %v2805
      %v3029 = vpop.f32.mrf.mxu0
      %v3030 = vadd.f32 %v2183, %v3029
      %v3031 = vpop.f32.mrf.mxu0
      %v3032 = vadd.f32 %v2185, %v3031
      %3033 = vmatmul.bf16.gmra.mxu0 %v2808
      %v3034 = vpop.f32.mrf.mxu0
      %v3035 = vadd.f32 %v2188, %v3034
      %v3036 = vpop.f32.mrf.mxu0
      %v3037 = vadd.f32 %v2190, %v3036
      %3038 = vmatmul.bf16.gmra.mxu0 %v2811
      %v3039 = vpop.f32.mrf.mxu0
      %v3040 = vadd.f32 %v2193, %v3039
      %v3041 = vpop.f32.mrf.mxu0
      %v3042 = vadd.f32 %v2195, %v3041
      %3043 = vmatmul.bf16.gmra.mxu0 %v2814
      %v3044 = vpop.f32.mrf.mxu0
      %v3045 = vadd.f32 %v2198, %v3044
      %v3046 = vpop.f32.mrf.mxu0
      %v3047 = vadd.f32 %v2200, %v3046
      %3048 = vmatmul.bf16.gmra.mxu0 %v2817
      %v3049 = vpop.f32.mrf.mxu0
      %v3050 = vadd.f32 %v2203, %v3049
      %v3051 = vpop.f32.mrf.mxu0
      %v3052 = vadd.f32 %v2205, %v3051
      %3053 = vmatmul.bf16.gmra.mxu0 %v2820
      %v3054 = vpop.f32.mrf.mxu0
      %v3055 = vadd.f32 %v2208, %v3054
      %v3056 = vpop.f32.mrf.mxu0
      %v3057 = vadd.f32 %v2210, %v3056
      %3058 = vmatmul.bf16.gmra.mxu0 %v2823
      %v3059 = vpop.f32.mrf.mxu0
      %v3060 = vadd.f32 %v2213, %v3059
      %v3061 = vpop.f32.mrf.mxu0
      %v3062 = vadd.f32 %v2215, %v3061
      %3063 = vmatmul.bf16.gmra.mxu0 %v2826
      %v3064 = vpop.f32.mrf.mxu0
      %v3065 = vadd.f32 %v2218, %v3064
      %v3066 = vpop.f32.mrf.mxu0
      %v3067 = vadd.f32 %v2220, %v3066
      %3068 = vmatmul.bf16.gmra.mxu0 %v2829
      %v3069 = vpop.f32.mrf.mxu0
      %v3070 = vadd.f32 %v2223, %v3069
      %v3071 = vpop.f32.mrf.mxu0
      %v3072 = vadd.f32 %v2225, %v3071
      %3073 = vmatmul.bf16.gmra.mxu0 %v2832
      %v3074 = vpop.f32.mrf.mxu0
      %v3075 = vadd.f32 %v2228, %v3074
      %v3076 = vpop.f32.mrf.mxu0
      %v3077 = vadd.f32 %v2230, %v3076
      %3078 = vmatmul.bf16.gmra.mxu0 %v2835
      %v3079 = vpop.f32.mrf.mxu0
      %v3080 = vadd.f32 %v2233, %v3079
      %v3081 = vpop.f32.mrf.mxu0
      %v3082 = vadd.f32 %v2235, %v3081
      %3083 = vmatmul.bf16.gmra.mxu0 %v2838
      %v3084 = vpop.f32.mrf.mxu0
      %v3085 = vadd.f32 %v2238, %v3084
      %v3086 = vpop.f32.mrf.mxu0
      %v3087 = vadd.f32 %v2240, %v3086
      %3088 = vmatmul.bf16.gmra.mxu0 %v2841
      %v3089 = vpop.f32.mrf.mxu0
      %v3090 = vadd.f32 %v2243, %v3089
      %v3091 = vpop.f32.mrf.mxu0
      %v3092 = vadd.f32 %v2245, %v3091
      %3093 = vmatmul.bf16.gmra.mxu0 %v2844
      %v3094 = vpop.f32.mrf.mxu0
      %v3095 = vadd.f32 %v2248, %v3094
      %v3096 = vpop.f32.mrf.mxu0
      %v3097 = vadd.f32 %v2250, %v3096
      %3098 = vmatmul.bf16.gmra.mxu0 %v2847
      %v3099 = vpop.f32.mrf.mxu0
      %v3100 = vadd.f32 %v2253, %v3099
      %v3101 = vpop.f32.mrf.mxu0
      %v3102 = vadd.f32 %v2255, %v3101
      %3103 = vmatmul.bf16.gmra.mxu0 %v2850
      %v3104 = vpop.f32.mrf.mxu0
      %v3105 = vadd.f32 %v2258, %v3104
      %v3106 = vpop.f32.mrf.mxu0
      %v3107 = vadd.f32 %v2260, %v3106
      %3108 = vmatmul.bf16.gmra.mxu0 %v2853
      %v3109 = vpop.f32.mrf.mxu0
      %v3110 = vadd.f32 %v2263, %v3109
      %v3111 = vpop.f32.mrf.mxu0
      %v3112 = vadd.f32 %v2265, %v3111
      %3113 = vmatmul.bf16.gmra.mxu0 %v2856
      %v3114 = vpop.f32.mrf.mxu0
      %v3115 = vadd.f32 %v2268, %v3114
      %v3116 = vpop.f32.mrf.mxu0
      %v3117 = vadd.f32 %v2270, %v3116
      %3118 = vmatmul.bf16.gmra.mxu0 %v2859
      %v3119 = vpop.f32.mrf.mxu0
      %v3120 = vadd.f32 %v2273, %v3119
      %v3121 = vpop.f32.mrf.mxu0
      %v3122 = vadd.f32 %v2275, %v3121
      %3123 = vmatmul.bf16.gmra.mxu0 %v2862
      %v3124 = vpop.f32.mrf.mxu0
      %v3125 = vadd.f32 %v2278, %v3124
      %v3126 = vpop.f32.mrf.mxu0
      %v3127 = vadd.f32 %v2280, %v3126
      %3128 = vmatmul.bf16.gmra.mxu0 %v2865
      %v3129 = vpop.f32.mrf.mxu0
      %v3130 = vadd.f32 %v2283, %v3129
      %v3131 = vpop.f32.mrf.mxu0
      %v3132 = vadd.f32 %v2285, %v3131
      %3133 = vmatmul.bf16.gmra.mxu0 %v2868
      %v3134 = vpop.f32.mrf.mxu0
      %v3135 = vadd.f32 %v2288, %v3134
      %v3136 = vpop.f32.mrf.mxu0
      %v3137 = vadd.f32 %v2290, %v3136
      %3138 = vmatmul.bf16.gmra.mxu0 %v2871
      %v3139 = vpop.f32.mrf.mxu0
      %v3140 = vadd.f32 %v2293, %v3139
      %v3141 = vpop.f32.mrf.mxu0
      %v3142 = vadd.f32 %v2295, %v3141
      %3143 = vmatmul.bf16.gmra.mxu0 %v2874
      %v3144 = vpop.f32.mrf.mxu0
      %v3145 = vadd.f32 %v2298, %v3144
      %v3146 = vpop.f32.mrf.mxu0
      %v3147 = vadd.f32 %v2300, %v3146
      %3148 = vmatmul.bf16.gmra.mxu0 %v2877
      %v3149 = vpop.f32.mrf.mxu0
      %v3150 = vadd.f32 %v2303, %v3149
      %v3151 = vpop.f32.mrf.mxu0
      %v3152 = vadd.f32 %v2305, %v3151
      %3153 = vmatmul.bf16.gmra.mxu0 %v2880
      %v3154 = vpop.f32.mrf.mxu0
      %v3155 = vadd.f32 %v2308, %v3154
      %v3156 = vpop.f32.mrf.mxu0
      %v3157 = vadd.f32 %v2310, %v3156
      %3158 = vmatmul.bf16.gmra.mxu0 %v2883
      %v3159 = vpop.f32.mrf.mxu0
      %v3160 = vadd.f32 %v2313, %v3159
      %v3161 = vpop.f32.mrf.mxu0
      %v3162 = vadd.f32 %v2315, %v3161
      %3163 = vmatmul.bf16.gmra.mxu0 %v2886
      %v3164 = vpop.f32.mrf.mxu0
      %v3165 = vadd.f32 %v2318, %v3164
      %v3166 = vpop.f32.mrf.mxu0
      %v3167 = vadd.f32 %v2320, %v3166
      %3168 = vmatmul.bf16.gmra.mxu0 %v2889
      %v3169 = vpop.f32.mrf.mxu0
      %v3170 = vadd.f32 %v2323, %v3169
      %v3171 = vpop.f32.mrf.mxu0
      %v3172 = vadd.f32 %v2325, %v3171
      %3173 = vmatmul.bf16.gmra.mxu0 %v2892
      %v3174 = vpop.f32.mrf.mxu0
      %v3175 = vadd.f32 %v2328, %v3174
      %v3176 = vpop.f32.mrf.mxu0
      %v3177 = vadd.f32 %v2330, %v3176
      %3178 = vmatmul.bf16.gmra.mxu0 %v2895
      %v3179 = vpop.f32.mrf.mxu0
      %v3180 = vadd.f32 %v2333, %v3179
      %v3181 = vpop.f32.mrf.mxu0
      %v3182 = vadd.f32 %v2335, %v3181
      %3183 = vmatmul.bf16.gmra.mxu0 %v2898
      %v3184 = vpop.f32.mrf.mxu0
      %v3185 = vadd.f32 %v2338, %v3184
      %v3186 = vpop.f32.mrf.mxu0
      %v3187 = vadd.f32 %v2340, %v3186
      %3188 = vmatmul.bf16.gmra.mxu0 %v2901
      %v3189 = vpop.f32.mrf.mxu0
      %v3190 = vadd.f32 %v2343, %v3189
      %v3191 = vpop.f32.mrf.mxu0
      %v3192 = vadd.f32 %v2345, %v3191
      %3193 = vmatmul.bf16.gmra.mxu0 %v2904
      %v3194 = vpop.f32.mrf.mxu0
      %v3195 = vadd.f32 %v2348, %v3194
      %v3196 = vpop.f32.mrf.mxu0
      %v3197 = vadd.f32 %v2350, %v3196
      %3198 = vmatmul.bf16.gmra.mxu0 %v2907
      %v3199 = vpop.f32.mrf.mxu0
      %v3200 = vadd.f32 %v2353, %v3199
      %v3201 = vpop.f32.mrf.mxu0
      %v3202 = vadd.f32 %v2355, %v3201
      %3203 = vmatmul.bf16.gmra.mxu0 %v2910
      %v3204 = vpop.f32.mrf.mxu0
      %v3205 = vadd.f32 %v2358, %v3204
      %v3206 = vpop.f32.mrf.mxu0
      %v3207 = vadd.f32 %v2360, %v3206
      %3208 = vmatmul.bf16.gmra.mxu0 %v2913
      %v3209 = vpop.f32.mrf.mxu0
      %v3210 = vadd.f32 %v2363, %v3209
      %v3211 = vpop.f32.mrf.mxu0
      %v3212 = vadd.f32 %v2365, %v3211
      %3213 = vmatmul.bf16.gmra.mxu0 %v2916
      %v3214 = vpop.f32.mrf.mxu0
      %v3215 = vadd.f32 %v2368, %v3214
      %v3216 = vpop.f32.mrf.mxu0
      %v3217 = vadd.f32 %v2370, %v3216
      %3218 = vmatmul.bf16.gmra.mxu0 %v2919
      %v3219 = vpop.f32.mrf.mxu0
      %v3220 = vadd.f32 %v2373, %v3219
      %v3221 = vpop.f32.mrf.mxu0
      %v3222 = vadd.f32 %v2375, %v3221
      %3223 = vmatmul.bf16.gmra.mxu0 %v2922
      %v3224 = vpop.f32.mrf.mxu0
      %v3225 = vadd.f32 %v2378, %v3224
      %v3226 = vpop.f32.mrf.mxu0
      %v3227 = vadd.f32 %v2380, %v3226
      %3228 = vmatmul.bf16.gmra.mxu0 %v2925
      %v3229 = vpop.f32.mrf.mxu0
      %v3230 = vadd.f32 %v2383, %v3229
      %v3231 = vpop.f32.mrf.mxu0
      %v3232 = vadd.f32 %v2385, %v3231
      %3233 = vmatmul.bf16.gmra.mxu0 %v2928
      %v3234 = vpop.f32.mrf.mxu0
      %v3235 = vadd.f32 %v2388, %v3234
      %v3236 = vpop.f32.mrf.mxu0
      %v3237 = vadd.f32 %v2390, %v3236
      %3238 = vmatmul.bf16.gmra.mxu0 %v2931
      %v3239 = vpop.f32.mrf.mxu0
      %v3240 = vadd.f32 %v2393, %v3239
      %v3241 = vpop.f32.mrf.mxu0
      %v3242 = vadd.f32 %v2395, %v3241
      %3243 = vmatmul.bf16.gmra.mxu0 %v2934
      %v3244 = vpop.f32.mrf.mxu0
      %v3245 = vadd.f32 %v2398, %v3244
      %v3246 = vpop.f32.mrf.mxu0
      %v3247 = vadd.f32 %v2400, %v3246
      %3248 = vmatmul.bf16.gmra.mxu0 %v2937
      %v3249 = vpop.f32.mrf.mxu0
      %v3250 = vadd.f32 %v2403, %v3249
      %v3251 = vpop.f32.mrf.mxu0
      %v3252 = vadd.f32 %v2405, %v3251
      %3253 = vmatmul.bf16.gmra.mxu0 %v2940
      %v3254 = vpop.f32.mrf.mxu0
      %v3255 = vadd.f32 %v2408, %v3254
      %v3256 = vpop.f32.mrf.mxu0
      %v3257 = vadd.f32 %v2410, %v3256
      %3258 = vmatmul.bf16.gmra.mxu0 %v2943
      %v3259 = vpop.f32.mrf.mxu0
      %v3260 = vadd.f32 %v2413, %v3259
      %v3261 = vpop.f32.mrf.mxu0
      %v3262 = vadd.f32 %v2415, %v3261
      %3263 = vmatmul.bf16.gmra.mxu0 %v2946
      %v3264 = vpop.f32.mrf.mxu0
      %v3265 = vadd.f32 %v2418, %v3264
      %v3266 = vpop.f32.mrf.mxu0
      %v3267 = vadd.f32 %v2420, %v3266
      %3268 = vmatmul.bf16.gmra.mxu0 %v2949
      %v3269 = vpop.f32.mrf.mxu0
      %v3270 = vadd.f32 %v2423, %v3269
      %v3271 = vpop.f32.mrf.mxu0
      %v3272 = vadd.f32 %v2425, %v3271
      %3273 = vmatmul.bf16.gmra.mxu0 %v2952
      %v3274 = vpop.f32.mrf.mxu0
      %v3275 = vadd.f32 %v2428, %v3274
      %v3276 = vpop.f32.mrf.mxu0
      %v3277 = vadd.f32 %v2430, %v3276
      %3278 = vmatmul.bf16.gmra.mxu0 %v2955
      %v3279 = vpop.f32.mrf.mxu0
      %v3280 = vadd.f32 %v2433, %v3279
      %v3281 = vpop.f32.mrf.mxu0
      %v3282 = vadd.f32 %v2435, %v3281
      %3283 = vmatmul.bf16.gmra.mxu0 %v2958
      %v3284 = vpop.f32.mrf.mxu0
      %v3285 = vadd.f32 %v2438, %v3284
      %v3286 = vpop.f32.mrf.mxu0
      %v3287 = vadd.f32 %v2440, %v3286
      %3288 = vdwg.mxu0
      %s3289 = scalar_lea.vmem %s138, 20
      %v3290 = vld [vmem:[%s3289] sm:$0xf]
      %v3291 = vld [vmem:[%s3289 + $0x4] sm:$0xf]
      %v3292 = vld [vmem:[%s3289 + $0x8] sm:$0xf]
      %v3293 = vld [vmem:[%s3289 + $0xc] sm:$0xf]
      %v3294 = vld [vmem:[%s3289 + $0x14] sm:$0xf]
      %v3295 = vld [vmem:[%s3289 + $0x18] sm:$0xf]
      %v3296 = vld [vmem:[%s3289 + $0x1c] sm:$0xf]
      %v3297 = vld [vmem:[%s3289 + $0x20] sm:$0xf]
      %v3298 = vld [vmem:[%s3289 + $0x28] sm:$0xf]
      %v3299 = vld [vmem:[%s3289 + $0x2c] sm:$0xf]
      %v3300 = vld [vmem:[%s3289 + $0x30] sm:$0xf]
      %v3301 = vld [vmem:[%s3289 + $0x34] sm:$0xf]
      %v3302 = vld [vmem:[%s3289 + $0x3c] sm:$0xf]
      %v3303 = vld [vmem:[%s3289 + $0x40] sm:$0xf]
      %v3304 = vld [vmem:[%s3289 + $0x44] sm:$0xf]
      %v3305 = vld [vmem:[%s3289 + $0x48] sm:$0xf]
      %v3306 = vld [vmem:[%s3289 + $0x50] sm:$0xf]
      %v3307 = vld [vmem:[%s3289 + $0x54] sm:$0xf]
      %v3308 = vld [vmem:[%s3289 + $0x58] sm:$0xf]
      %v3309 = vld [vmem:[%s3289 + $0x5c] sm:$0xf]
      %v3310 = vld [vmem:[%s3289 + $0x64] sm:$0xf]
      %v3311 = vld [vmem:[%s3289 + $0x68] sm:$0xf]
      %v3312 = vld [vmem:[%s3289 + $0x6c] sm:$0xf]
      %v3313 = vld [vmem:[%s3289 + $0x70] sm:$0xf]
      %v3314 = vld [vmem:[%s3289 + $0x78] sm:$0xf]
      %v3315 = vld [vmem:[%s3289 + $0x7c] sm:$0xf]
      %v3316 = vld [vmem:[%s3289 + $0x80] sm:$0xf]
      %v3317 = vld [vmem:[%s3289 + $0x84] sm:$0xf]
      %v3318 = vld [vmem:[%s3289 + $0x8c] sm:$0xf]
      %v3319 = vld [vmem:[%s3289 + $0x90] sm:$0xf]
      %v3320 = vld [vmem:[%s3289 + $0x94] sm:$0xf]
      %v3321 = vld [vmem:[%s3289 + $0x98] sm:$0xf]
      %v3322 = vld [vmem:[%s3289 + $0xa0] sm:$0xf]
      %v3323 = vld [vmem:[%s3289 + $0xa4] sm:$0xf]
      %v3324 = vld [vmem:[%s3289 + $0xa8] sm:$0xf]
      %v3325 = vld [vmem:[%s3289 + $0xac] sm:$0xf]
      %v3326 = vld [vmem:[%s3289 + $0xb4] sm:$0xf]
      %v3327 = vld [vmem:[%s3289 + $0xb8] sm:$0xf]
      %v3328 = vld [vmem:[%s3289 + $0xbc] sm:$0xf]
      %v3329 = vld [vmem:[%s3289 + $0xc0] sm:$0xf]
      %v3330 = vld [vmem:[%s3289 + $0xc8] sm:$0xf]
      %v3331 = vld [vmem:[%s3289 + $0xcc] sm:$0xf]
      %v3332 = vld [vmem:[%s3289 + $0xd0] sm:$0xf]
      %v3333 = vld [vmem:[%s3289 + $0xd4] sm:$0xf]
      %v3334 = vld [vmem:[%s3289 + $0xdc] sm:$0xf]
      %v3335 = vld [vmem:[%s3289 + $0xe0] sm:$0xf]
      %v3336 = vld [vmem:[%s3289 + $0xe4] sm:$0xf]
      %v3337 = vld [vmem:[%s3289 + $0xe8] sm:$0xf]
      %v3338 = vld [vmem:[%s3289 + $0xf0] sm:$0xf]
      %v3339 = vld [vmem:[%s3289 + $0xf4] sm:$0xf]
      %v3340 = vld [vmem:[%s3289 + $0xf8] sm:$0xf]
      %v3341 = vld [vmem:[%s3289 + $0xfc] sm:$0xf]
      %v3342 = vld [vmem:[%s3289 + $0x104] sm:$0xf]
      %v3343 = vld [vmem:[%s3289 + $0x108] sm:$0xf]
      %v3344 = vld [vmem:[%s3289 + $0x10c] sm:$0xf]
      %v3345 = vld [vmem:[%s3289 + $0x110] sm:$0xf]
      %v3346 = vld [vmem:[%s3289 + $0x118] sm:$0xf]
      %v3347 = vld [vmem:[%s3289 + $0x11c] sm:$0xf]
      %v3348 = vld [vmem:[%s3289 + $0x120] sm:$0xf]
      %v3349 = vld [vmem:[%s3289 + $0x124] sm:$0xf]
      %v3350 = vld [vmem:[%s3289 + $0x12c] sm:$0xf]
      %v3351 = vld [vmem:[%s3289 + $0x130] sm:$0xf]
      %v3352 = vld [vmem:[%s3289 + $0x134] sm:$0xf]
      %v3353 = vld [vmem:[%s3289 + $0x138] sm:$0xf]
      %v3354 = vld [vmem:[%s3289 + $0x140] sm:$0xf]
      %v3355 = vld [vmem:[%s3289 + $0x144] sm:$0xf]
      %v3356 = vld [vmem:[%s3289 + $0x148] sm:$0xf]
      %v3357 = vld [vmem:[%s3289 + $0x14c] sm:$0xf]
      %v3358 = vld [vmem:[%s3289 + $0x154] sm:$0xf]
      %v3359 = vld [vmem:[%s3289 + $0x158] sm:$0xf]
      %v3360 = vld [vmem:[%s3289 + $0x15c] sm:$0xf]
      %v3361 = vld [vmem:[%s3289 + $0x160] sm:$0xf]
      %v3362 = vld [vmem:[%s3289 + $0x168] sm:$0xf]
      %v3363 = vld [vmem:[%s3289 + $0x16c] sm:$0xf]
      %v3364 = vld [vmem:[%s3289 + $0x170] sm:$0xf]
      %v3365 = vld [vmem:[%s3289 + $0x174] sm:$0xf]
      %v3366 = vld [vmem:[%s3289 + $0x17c] sm:$0xf]
      %v3367 = vld [vmem:[%s3289 + $0x180] sm:$0xf]
      %v3368 = vld [vmem:[%s3289 + $0x184] sm:$0xf]
      %v3369 = vld [vmem:[%s3289 + $0x188] sm:$0xf]
      %v3370 = vld [vmem:[%s3289 + $0x190] sm:$0xf]
      %v3371 = vld [vmem:[%s3289 + $0x194] sm:$0xf]
      %v3372 = vld [vmem:[%s3289 + $0x198] sm:$0xf]
      %v3373 = vld [vmem:[%s3289 + $0x19c] sm:$0xf]
      %v3374 = vld [vmem:[%s3289 + $0x1a4] sm:$0xf]
      %v3375 = vld [vmem:[%s3289 + $0x1a8] sm:$0xf]
      %v3376 = vld [vmem:[%s3289 + $0x1ac] sm:$0xf]
      %v3377 = vld [vmem:[%s3289 + $0x1b0] sm:$0xf]
      %v3378 = vld [vmem:[%s3289 + $0x1b8] sm:$0xf]
      %v3379 = vld [vmem:[%s3289 + $0x1bc] sm:$0xf]
      %v3380 = vld [vmem:[%s3289 + $0x1c0] sm:$0xf]
      %v3381 = vld [vmem:[%s3289 + $0x1c4] sm:$0xf]
      %v3382 = vld [vmem:[%s3289 + $0x1cc] sm:$0xf]
      %v3383 = vld [vmem:[%s3289 + $0x1d0] sm:$0xf]
      %v3384 = vld [vmem:[%s3289 + $0x1d4] sm:$0xf]
      %v3385 = vld [vmem:[%s3289 + $0x1d8] sm:$0xf]
      %v3386 = vld [vmem:[%s3289 + $0x1e0] sm:$0xf]
      %v3387 = vld [vmem:[%s3289 + $0x1e4] sm:$0xf]
      %v3388 = vld [vmem:[%s3289 + $0x1e8] sm:$0xf]
      %v3389 = vld [vmem:[%s3289 + $0x1ec] sm:$0xf]
      %v3390 = vld [vmem:[%s3289 + $0x1f4] sm:$0xf]
      %v3391 = vld [vmem:[%s3289 + $0x1f8] sm:$0xf]
      %v3392 = vld [vmem:[%s3289 + $0x1fc] sm:$0xf]
      %v3393 = vld [vmem:[%s3289 + $0x200] sm:$0xf]
      %v3394 = vld [vmem:[%s3289 + $0x208] sm:$0xf]
      %v3395 = vld [vmem:[%s3289 + $0x20c] sm:$0xf]
      %v3396 = vld [vmem:[%s3289 + $0x210] sm:$0xf]
      %v3397 = vld [vmem:[%s3289 + $0x214] sm:$0xf]
      %v3398 = vld [vmem:[%s3289 + $0x21c] sm:$0xf]
      %v3399 = vld [vmem:[%s3289 + $0x220] sm:$0xf]
      %v3400 = vld [vmem:[%s3289 + $0x224] sm:$0xf]
      %v3401 = vld [vmem:[%s3289 + $0x228] sm:$0xf]
      %v3402 = vld [vmem:[%s3289 + $0x230] sm:$0xf]
      %v3403 = vld [vmem:[%s3289 + $0x234] sm:$0xf]
      %v3404 = vld [vmem:[%s3289 + $0x238] sm:$0xf]
      %v3405 = vld [vmem:[%s3289 + $0x23c] sm:$0xf]
      %v3406 = vld [vmem:[%s3289 + $0x244] sm:$0xf]
      %v3407 = vld [vmem:[%s3289 + $0x248] sm:$0xf]
      %v3408 = vld [vmem:[%s3289 + $0x24c] sm:$0xf]
      %v3409 = vld [vmem:[%s3289 + $0x250] sm:$0xf]
      %v3410 = vld [vmem:[%s3289 + $0x258] sm:$0xf]
      %v3411 = vld [vmem:[%s3289 + $0x25c] sm:$0xf]
      %v3412 = vld [vmem:[%s3289 + $0x260] sm:$0xf]
      %v3413 = vld [vmem:[%s3289 + $0x264] sm:$0xf]
      %v3414 = vld [vmem:[%s3289 + $0x26c] sm:$0xf]
      %v3415 = vld [vmem:[%s3289 + $0x270] sm:$0xf]
      %v3416 = vld [vmem:[%s3289 + $0x274] sm:$0xf]
      %v3417 = vld [vmem:[%s3289 + $0x278] sm:$0xf]
      %s3418 = scalar_lea.vmem %s1, 16
      %v3419 = vld [vmem:[%s3418] sm:$0xf]
      %v3420 = vld [vmem:[%s3418 + $0x4] sm:$0xf]
      %v3549 = vunpack.c.l.b16 %v3290
      %v3550 = vunpack.c.l.b16 %v3291
      %v3551 = vunpack.c.l.b16 %v3292
      %v3552 = vunpack.c.l.b16 %v3293
      %v3553 = vunpack.c.l.b16 %v3294
      %v3554 = vunpack.c.l.b16 %v3295
      %v3555 = vunpack.c.l.b16 %v3296
      %v3556 = vunpack.c.l.b16 %v3297
      %v3557 = vunpack.c.l.b16 %v3298
      %v3558 = vunpack.c.l.b16 %v3299
      %v3559 = vunpack.c.l.b16 %v3300
      %v3560 = vunpack.c.l.b16 %v3301
      %v3561 = vunpack.c.l.b16 %v3302
      %v3562 = vunpack.c.l.b16 %v3303
      %v3563 = vunpack.c.l.b16 %v3304
      %v3564 = vunpack.c.l.b16 %v3305
      %v3565 = vunpack.c.l.b16 %v3306
      %v3566 = vunpack.c.l.b16 %v3307
      %v3567 = vunpack.c.l.b16 %v3308
      %v3568 = vunpack.c.l.b16 %v3309
      %v3569 = vunpack.c.l.b16 %v3310
      %v3570 = vunpack.c.l.b16 %v3311
      %v3571 = vunpack.c.l.b16 %v3312
      %v3572 = vunpack.c.l.b16 %v3313
      %v3573 = vunpack.c.l.b16 %v3314
      %v3574 = vunpack.c.l.b16 %v3315
      %v3575 = vunpack.c.l.b16 %v3316
      %v3576 = vunpack.c.l.b16 %v3317
      %v3577 = vunpack.c.l.b16 %v3318
      %v3578 = vunpack.c.l.b16 %v3319
      %v3579 = vunpack.c.l.b16 %v3320
      %v3580 = vunpack.c.l.b16 %v3321
      %v3581 = vunpack.c.l.b16 %v3322
      %v3582 = vunpack.c.l.b16 %v3323
      %v3583 = vunpack.c.l.b16 %v3324
      %v3584 = vunpack.c.l.b16 %v3325
      %v3585 = vunpack.c.l.b16 %v3326
      %v3586 = vunpack.c.l.b16 %v3327
      %v3587 = vunpack.c.l.b16 %v3328
      %v3588 = vunpack.c.l.b16 %v3329
      %v3589 = vunpack.c.l.b16 %v3330
      %v3590 = vunpack.c.l.b16 %v3331
      %v3591 = vunpack.c.l.b16 %v3332
      %v3592 = vunpack.c.l.b16 %v3333
      %v3593 = vunpack.c.l.b16 %v3334
      %v3594 = vunpack.c.l.b16 %v3335
      %v3595 = vunpack.c.l.b16 %v3336
      %v3596 = vunpack.c.l.b16 %v3337
      %v3597 = vunpack.c.l.b16 %v3338
      %v3598 = vunpack.c.l.b16 %v3339
      %v3599 = vunpack.c.l.b16 %v3340
      %v3600 = vunpack.c.l.b16 %v3341
      %v3601 = vunpack.c.l.b16 %v3342
      %v3602 = vunpack.c.l.b16 %v3343
      %v3603 = vunpack.c.l.b16 %v3344
      %v3604 = vunpack.c.l.b16 %v3345
      %v3605 = vunpack.c.l.b16 %v3346
      %v3606 = vunpack.c.l.b16 %v3347
      %v3607 = vunpack.c.l.b16 %v3348
      %v3608 = vunpack.c.l.b16 %v3349
      %v3609 = vunpack.c.l.b16 %v3350
      %v3610 = vunpack.c.l.b16 %v3351
      %v3611 = vunpack.c.l.b16 %v3352
      %v3612 = vunpack.c.l.b16 %v3353
      %v3613 = vunpack.c.l.b16 %v3354
      %v3614 = vunpack.c.l.b16 %v3355
      %v3615 = vunpack.c.l.b16 %v3356
      %v3616 = vunpack.c.l.b16 %v3357
      %v3617 = vunpack.c.l.b16 %v3358
      %v3618 = vunpack.c.l.b16 %v3359
      %v3619 = vunpack.c.l.b16 %v3360
      %v3620 = vunpack.c.l.b16 %v3361
      %v3621 = vunpack.c.l.b16 %v3362
      %v3622 = vunpack.c.l.b16 %v3363
      %v3623 = vunpack.c.l.b16 %v3364
      %v3624 = vunpack.c.l.b16 %v3365
      %v3625 = vunpack.c.l.b16 %v3366
      %v3626 = vunpack.c.l.b16 %v3367
      %v3627 = vunpack.c.l.b16 %v3368
      %v3628 = vunpack.c.l.b16 %v3369
      %v3629 = vunpack.c.l.b16 %v3370
      %v3630 = vunpack.c.l.b16 %v3371
      %v3631 = vunpack.c.l.b16 %v3372
      %v3632 = vunpack.c.l.b16 %v3373
      %v3633 = vunpack.c.l.b16 %v3374
      %v3634 = vunpack.c.l.b16 %v3375
      %v3635 = vunpack.c.l.b16 %v3376
      %v3636 = vunpack.c.l.b16 %v3377
      %v3637 = vunpack.c.l.b16 %v3378
      %v3638 = vunpack.c.l.b16 %v3379
      %v3639 = vunpack.c.l.b16 %v3380
      %v3640 = vunpack.c.l.b16 %v3381
      %v3641 = vunpack.c.l.b16 %v3382
      %v3642 = vunpack.c.l.b16 %v3383
      %v3643 = vunpack.c.l.b16 %v3384
      %v3644 = vunpack.c.l.b16 %v3385
      %v3645 = vunpack.c.l.b16 %v3386
      %v3646 = vunpack.c.l.b16 %v3387
      %v3647 = vunpack.c.l.b16 %v3388
      %v3648 = vunpack.c.l.b16 %v3389
      %v3649 = vunpack.c.l.b16 %v3390
      %v3650 = vunpack.c.l.b16 %v3391
      %v3651 = vunpack.c.l.b16 %v3392
      %v3652 = vunpack.c.l.b16 %v3393
      %v3653 = vunpack.c.l.b16 %v3394
      %v3654 = vunpack.c.l.b16 %v3395
      %v3655 = vunpack.c.l.b16 %v3396
      %v3656 = vunpack.c.l.b16 %v3397
      %v3657 = vunpack.c.l.b16 %v3398
      %v3658 = vunpack.c.l.b16 %v3399
      %v3659 = vunpack.c.l.b16 %v3400
      %v3660 = vunpack.c.l.b16 %v3401
      %v3661 = vunpack.c.l.b16 %v3402
      %v3662 = vunpack.c.l.b16 %v3403
      %v3663 = vunpack.c.l.b16 %v3404
      %v3664 = vunpack.c.l.b16 %v3405
      %v3665 = vunpack.c.l.b16 %v3406
      %v3666 = vunpack.c.l.b16 %v3407
      %v3667 = vunpack.c.l.b16 %v3408
      %v3668 = vunpack.c.l.b16 %v3409
      %v3669 = vunpack.c.l.b16 %v3410
      %v3670 = vunpack.c.l.b16 %v3411
      %v3671 = vunpack.c.l.b16 %v3412
      %v3672 = vunpack.c.l.b16 %v3413
      %v3673 = vunpack.c.l.b16 %v3414
      %v3674 = vunpack.c.l.b16 %v3415
      %v3675 = vunpack.c.l.b16 %v3416
      %v3676 = vunpack.c.l.b16 %v3417
      %v3677 = vpack.c.b16 %v3550, %v3549
      %v3678 = vpack.c.b16 %v3552, %v3551
      %v3679 = vpack.c.b16 %v3554, %v3553
      %v3680 = vpack.c.b16 %v3556, %v3555
      %v3681 = vpack.c.b16 %v3558, %v3557
      %v3682 = vpack.c.b16 %v3560, %v3559
      %v3683 = vpack.c.b16 %v3562, %v3561
      %v3684 = vpack.c.b16 %v3564, %v3563
      %v3685 = vpack.c.b16 %v3566, %v3565
      %v3686 = vpack.c.b16 %v3568, %v3567
      %v3687 = vpack.c.b16 %v3570, %v3569
      %v3688 = vpack.c.b16 %v3572, %v3571
      %v3689 = vpack.c.b16 %v3574, %v3573
      %v3690 = vpack.c.b16 %v3576, %v3575
      %v3691 = vpack.c.b16 %v3578, %v3577
      %v3692 = vpack.c.b16 %v3580, %v3579
      %v3693 = vpack.c.b16 %v3582, %v3581
      %v3694 = vpack.c.b16 %v3584, %v3583
      %v3695 = vpack.c.b16 %v3586, %v3585
      %v3696 = vpack.c.b16 %v3588, %v3587
      %v3697 = vpack.c.b16 %v3590, %v3589
      %v3698 = vpack.c.b16 %v3592, %v3591
      %v3699 = vpack.c.b16 %v3594, %v3593
      %v3700 = vpack.c.b16 %v3596, %v3595
      %v3701 = vpack.c.b16 %v3598, %v3597
      %v3702 = vpack.c.b16 %v3600, %v3599
      %v3703 = vpack.c.b16 %v3602, %v3601
      %v3704 = vpack.c.b16 %v3604, %v3603
      %v3705 = vpack.c.b16 %v3606, %v3605
      %v3706 = vpack.c.b16 %v3608, %v3607
      %v3707 = vpack.c.b16 %v3610, %v3609
      %v3708 = vpack.c.b16 %v3612, %v3611
      %v3709 = vpack.c.b16 %v3614, %v3613
      %v3710 = vpack.c.b16 %v3616, %v3615
      %v3711 = vpack.c.b16 %v3618, %v3617
      %v3712 = vpack.c.b16 %v3620, %v3619
      %v3713 = vpack.c.b16 %v3622, %v3621
      %v3714 = vpack.c.b16 %v3624, %v3623
      %v3715 = vpack.c.b16 %v3626, %v3625
      %v3716 = vpack.c.b16 %v3628, %v3627
      %v3717 = vpack.c.b16 %v3630, %v3629
      %v3718 = vpack.c.b16 %v3632, %v3631
      %v3719 = vpack.c.b16 %v3634, %v3633
      %v3720 = vpack.c.b16 %v3636, %v3635
      %v3721 = vpack.c.b16 %v3638, %v3637
      %v3722 = vpack.c.b16 %v3640, %v3639
      %v3723 = vpack.c.b16 %v3642, %v3641
      %v3724 = vpack.c.b16 %v3644, %v3643
      %v3725 = vpack.c.b16 %v3646, %v3645
      %v3726 = vpack.c.b16 %v3648, %v3647
      %v3727 = vpack.c.b16 %v3650, %v3649
      %v3728 = vpack.c.b16 %v3652, %v3651
      %v3729 = vpack.c.b16 %v3654, %v3653
      %v3730 = vpack.c.b16 %v3656, %v3655
      %v3731 = vpack.c.b16 %v3658, %v3657
      %v3732 = vpack.c.b16 %v3660, %v3659
      %v3733 = vpack.c.b16 %v3662, %v3661
      %v3734 = vpack.c.b16 %v3664, %v3663
      %v3735 = vpack.c.b16 %v3666, %v3665
      %v3736 = vpack.c.b16 %v3668, %v3667
      %v3737 = vpack.c.b16 %v3670, %v3669
      %v3738 = vpack.c.b16 %v3672, %v3671
      %v3739 = vpack.c.b16 %v3674, %v3673
      %v3740 = vpack.c.b16 %v3676, %v3675
      %v3743 = vunpack.c.l.b16 %v3419
      %v3744 = vunpack.c.l.b16 %v3420
      %v3745 = vpack.c.b16 %v3744, %v3743
      %v3748 = vsel %vm1920, %v3677, 0
      %v3751 = vsel %vm1920, %v3678, 0
      %v3754 = vsel %vm1920, %v3679, 0
      %v3757 = vsel %vm1920, %v3680, 0
      %v3760 = vsel %vm1920, %v3681, 0
      %v3763 = vsel %vm1920, %v3682, 0
      %v3766 = vsel %vm1920, %v3683, 0
      %v3769 = vsel %vm1920, %v3684, 0
      %v3772 = vsel %vm1920, %v3685, 0
      %v3775 = vsel %vm1920, %v3686, 0
      %v3778 = vsel %vm1920, %v3687, 0
      %v3781 = vsel %vm1920, %v3688, 0
      %v3784 = vsel %vm1920, %v3689, 0
      %v3787 = vsel %vm1920, %v3690, 0
      %v3790 = vsel %vm1920, %v3691, 0
      %v3793 = vsel %vm1920, %v3692, 0
      %v3796 = vsel %vm1920, %v3693, 0
      %v3799 = vsel %vm1920, %v3694, 0
      %v3802 = vsel %vm1920, %v3695, 0
      %v3805 = vsel %vm1920, %v3696, 0
      %v3808 = vsel %vm1920, %v3697, 0
      %v3811 = vsel %vm1920, %v3698, 0
      %v3814 = vsel %vm1920, %v3699, 0
      %v3817 = vsel %vm1920, %v3700, 0
      %v3820 = vsel %vm1920, %v3701, 0
      %v3823 = vsel %vm1920, %v3702, 0
      %v3826 = vsel %vm1920, %v3703, 0
      %v3829 = vsel %vm1920, %v3704, 0
      %v3832 = vsel %vm1920, %v3705, 0
      %v3835 = vsel %vm1920, %v3706, 0
      %v3838 = vsel %vm1920, %v3707, 0
      %v3841 = vsel %vm1920, %v3708, 0
      %v3844 = vsel %vm1920, %v3709, 0
      %v3847 = vsel %vm1920, %v3710, 0
      %v3850 = vsel %vm1920, %v3711, 0
      %v3853 = vsel %vm1920, %v3712, 0
      %v3856 = vsel %vm1920, %v3713, 0
      %v3859 = vsel %vm1920, %v3714, 0
      %v3862 = vsel %vm1920, %v3715, 0
      %v3865 = vsel %vm1920, %v3716, 0
      %v3868 = vsel %vm1920, %v3717, 0
      %v3871 = vsel %vm1920, %v3718, 0
      %v3874 = vsel %vm1920, %v3719, 0
      %v3877 = vsel %vm1920, %v3720, 0
      %v3880 = vsel %vm1920, %v3721, 0
      %v3883 = vsel %vm1920, %v3722, 0
      %v3886 = vsel %vm1920, %v3723, 0
      %v3889 = vsel %vm1920, %v3724, 0
      %v3892 = vsel %vm1920, %v3725, 0
      %v3895 = vsel %vm1920, %v3726, 0
      %v3898 = vsel %vm1920, %v3727, 0
      %v3901 = vsel %vm1920, %v3728, 0
      %v3904 = vsel %vm1920, %v3729, 0
      %v3907 = vsel %vm1920, %v3730, 0
      %v3910 = vsel %vm1920, %v3731, 0
      %v3913 = vsel %vm1920, %v3732, 0
      %v3916 = vsel %vm1920, %v3733, 0
      %v3919 = vsel %vm1920, %v3734, 0
      %v3922 = vsel %vm1920, %v3735, 0
      %v3925 = vsel %vm1920, %v3736, 0
      %v3928 = vsel %vm1920, %v3737, 0
      %v3931 = vsel %vm1920, %v3738, 0
      %v3934 = vsel %vm1920, %v3739, 0
      %v3937 = vsel %vm1920, %v3740, 0
      %3939 = vmatpush.bf16.msra.mxu0 0
      %3940 = vmatpush.bf16.msra.mxu0 0
      %3941 = vmatpush.bf16.msra.mxu0 0
      %3942 = vmatpush.bf16.msra.mxu0 0
      %3943 = vmatpush.bf16.msra.mxu0 0
      %3944 = vmatpush.bf16.msra.mxu0 0
      %3945 = vmatpush.bf16.msra.mxu0 0
      %3946 = vmatpush.bf16.msra.mxu0 %v3745
      %3947 = vmatmul.bf16.gmra.mxu0 %v3748
      %v3948 = vpop.f32.mrf.mxu0
      %v3949 = vadd.f32 0.0, %v3948
      %v3950 = vpop.f32.mrf.mxu0
      %v3951 = vadd.f32 0.0, %v3950
      %3952 = vmatmul.bf16.gmra.mxu0 %v3751
      %v3953 = vpop.f32.mrf.mxu0
      %v3954 = vadd.f32 0.0, %v3953
      %v3955 = vpop.f32.mrf.mxu0
      %v3956 = vadd.f32 0.0, %v3955
      %3957 = vmatmul.bf16.gmra.mxu0 %v3754
      %v3958 = vpop.f32.mrf.mxu0
      %v3959 = vadd.f32 0.0, %v3958
      %v3960 = vpop.f32.mrf.mxu0
      %v3961 = vadd.f32 0.0, %v3960
      %3962 = vmatmul.bf16.gmra.mxu0 %v3757
      %v3963 = vpop.f32.mrf.mxu0
      %v3964 = vadd.f32 0.0, %v3963
      %v3965 = vpop.f32.mrf.mxu0
      %v3966 = vadd.f32 0.0, %v3965
      %3967 = vmatmul.bf16.gmra.mxu0 %v3760
      %v3968 = vpop.f32.mrf.mxu0
      %v3969 = vadd.f32 0.0, %v3968
      %v3970 = vpop.f32.mrf.mxu0
      %v3971 = vadd.f32 0.0, %v3970
      %3972 = vmatmul.bf16.gmra.mxu0 %v3763
      %v3973 = vpop.f32.mrf.mxu0
      %v3974 = vadd.f32 0.0, %v3973
      %v3975 = vpop.f32.mrf.mxu0
      %v3976 = vadd.f32 0.0, %v3975
      %3977 = vmatmul.bf16.gmra.mxu0 %v3766
      %v3978 = vpop.f32.mrf.mxu0
      %v3979 = vadd.f32 0.0, %v3978
      %v3980 = vpop.f32.mrf.mxu0
      %v3981 = vadd.f32 0.0, %v3980
      %3982 = vmatmul.bf16.gmra.mxu0 %v3769
      %v3983 = vpop.f32.mrf.mxu0
      %v3984 = vadd.f32 0.0, %v3983
      %v3985 = vpop.f32.mrf.mxu0
      %v3986 = vadd.f32 0.0, %v3985
      %3987 = vmatmul.bf16.gmra.mxu0 %v3772
      %v3988 = vpop.f32.mrf.mxu0
      %v3989 = vadd.f32 0.0, %v3988
      %v3990 = vpop.f32.mrf.mxu0
      %v3991 = vadd.f32 0.0, %v3990
      %3992 = vmatmul.bf16.gmra.mxu0 %v3775
      %v3993 = vpop.f32.mrf.mxu0
      %v3994 = vadd.f32 0.0, %v3993
      %v3995 = vpop.f32.mrf.mxu0
      %v3996 = vadd.f32 0.0, %v3995
      %3997 = vmatmul.bf16.gmra.mxu0 %v3778
      %v3998 = vpop.f32.mrf.mxu0
      %v3999 = vadd.f32 0.0, %v3998
      %v4000 = vpop.f32.mrf.mxu0
      %v4001 = vadd.f32 0.0, %v4000
      %4002 = vmatmul.bf16.gmra.mxu0 %v3781
      %v4003 = vpop.f32.mrf.mxu0
      %v4004 = vadd.f32 0.0, %v4003
      %v4005 = vpop.f32.mrf.mxu0
      %v4006 = vadd.f32 0.0, %v4005
      %4007 = vmatmul.bf16.gmra.mxu0 %v3784
      %v4008 = vpop.f32.mrf.mxu0
      %v4009 = vadd.f32 0.0, %v4008
      %v4010 = vpop.f32.mrf.mxu0
      %v4011 = vadd.f32 0.0, %v4010
      %4012 = vmatmul.bf16.gmra.mxu0 %v3787
      %v4013 = vpop.f32.mrf.mxu0
      %v4014 = vadd.f32 0.0, %v4013
      %v4015 = vpop.f32.mrf.mxu0
      %v4016 = vadd.f32 0.0, %v4015
      %4017 = vmatmul.bf16.gmra.mxu0 %v3790
      %v4018 = vpop.f32.mrf.mxu0
      %v4019 = vadd.f32 0.0, %v4018
      %v4020 = vpop.f32.mrf.mxu0
      %v4021 = vadd.f32 0.0, %v4020
      %4022 = vmatmul.bf16.gmra.mxu0 %v3793
      %v4023 = vpop.f32.mrf.mxu0
      %v4024 = vadd.f32 0.0, %v4023
      %v4025 = vpop.f32.mrf.mxu0
      %v4026 = vadd.f32 0.0, %v4025
      %4027 = vmatmul.bf16.gmra.mxu0 %v3796
      %v4028 = vpop.f32.mrf.mxu0
      %v4029 = vadd.f32 0.0, %v4028
      %v4030 = vpop.f32.mrf.mxu0
      %v4031 = vadd.f32 0.0, %v4030
      %4032 = vmatmul.bf16.gmra.mxu0 %v3799
      %v4033 = vpop.f32.mrf.mxu0
      %v4034 = vadd.f32 0.0, %v4033
      %v4035 = vpop.f32.mrf.mxu0
      %v4036 = vadd.f32 0.0, %v4035
      %4037 = vmatmul.bf16.gmra.mxu0 %v3802
      %v4038 = vpop.f32.mrf.mxu0
      %v4039 = vadd.f32 0.0, %v4038
      %v4040 = vpop.f32.mrf.mxu0
      %v4041 = vadd.f32 0.0, %v4040
      %4042 = vmatmul.bf16.gmra.mxu0 %v3805
      %v4043 = vpop.f32.mrf.mxu0
      %v4044 = vadd.f32 0.0, %v4043
      %v4045 = vpop.f32.mrf.mxu0
      %v4046 = vadd.f32 0.0, %v4045
      %4047 = vmatmul.bf16.gmra.mxu0 %v3808
      %v4048 = vpop.f32.mrf.mxu0
      %v4049 = vadd.f32 0.0, %v4048
      %v4050 = vpop.f32.mrf.mxu0
      %v4051 = vadd.f32 0.0, %v4050
      %4052 = vmatmul.bf16.gmra.mxu0 %v3811
      %v4053 = vpop.f32.mrf.mxu0
      %v4054 = vadd.f32 0.0, %v4053
      %v4055 = vpop.f32.mrf.mxu0
      %v4056 = vadd.f32 0.0, %v4055
      %4057 = vmatmul.bf16.gmra.mxu0 %v3814
      %v4058 = vpop.f32.mrf.mxu0
      %v4059 = vadd.f32 0.0, %v4058
      %v4060 = vpop.f32.mrf.mxu0
      %v4061 = vadd.f32 0.0, %v4060
      %4062 = vmatmul.bf16.gmra.mxu0 %v3817
      %v4063 = vpop.f32.mrf.mxu0
      %v4064 = vadd.f32 0.0, %v4063
      %v4065 = vpop.f32.mrf.mxu0
      %v4066 = vadd.f32 0.0, %v4065
      %4067 = vmatmul.bf16.gmra.mxu0 %v3820
      %v4068 = vpop.f32.mrf.mxu0
      %v4069 = vadd.f32 0.0, %v4068
      %v4070 = vpop.f32.mrf.mxu0
      %v4071 = vadd.f32 0.0, %v4070
      %4072 = vmatmul.bf16.gmra.mxu0 %v3823
      %v4073 = vpop.f32.mrf.mxu0
      %v4074 = vadd.f32 0.0, %v4073
      %v4075 = vpop.f32.mrf.mxu0
      %v4076 = vadd.f32 0.0, %v4075
      %4077 = vmatmul.bf16.gmra.mxu0 %v3826
      %v4078 = vpop.f32.mrf.mxu0
      %v4079 = vadd.f32 0.0, %v4078
      %v4080 = vpop.f32.mrf.mxu0
      %v4081 = vadd.f32 0.0, %v4080
      %4082 = vmatmul.bf16.gmra.mxu0 %v3829
      %v4083 = vpop.f32.mrf.mxu0
      %v4084 = vadd.f32 0.0, %v4083
      %v4085 = vpop.f32.mrf.mxu0
      %v4086 = vadd.f32 0.0, %v4085
      %4087 = vmatmul.bf16.gmra.mxu0 %v3832
      %v4088 = vpop.f32.mrf.mxu0
      %v4089 = vadd.f32 0.0, %v4088
      %v4090 = vpop.f32.mrf.mxu0
      %v4091 = vadd.f32 0.0, %v4090
      %4092 = vmatmul.bf16.gmra.mxu0 %v3835
      %v4093 = vpop.f32.mrf.mxu0
      %v4094 = vadd.f32 0.0, %v4093
      %v4095 = vpop.f32.mrf.mxu0
      %v4096 = vadd.f32 0.0, %v4095
      %4097 = vmatmul.bf16.gmra.mxu0 %v3838
      %v4098 = vpop.f32.mrf.mxu0
      %v4099 = vadd.f32 0.0, %v4098
      %v4100 = vpop.f32.mrf.mxu0
      %v4101 = vadd.f32 0.0, %v4100
      %4102 = vmatmul.bf16.gmra.mxu0 %v3841
      %v4103 = vpop.f32.mrf.mxu0
      %v4104 = vadd.f32 0.0, %v4103
      %v4105 = vpop.f32.mrf.mxu0
      %v4106 = vadd.f32 0.0, %v4105
      %4107 = vmatmul.bf16.gmra.mxu0 %v3844
      %v4108 = vpop.f32.mrf.mxu0
      %v4109 = vadd.f32 0.0, %v4108
      %v4110 = vpop.f32.mrf.mxu0
      %v4111 = vadd.f32 0.0, %v4110
      %4112 = vmatmul.bf16.gmra.mxu0 %v3847
      %v4113 = vpop.f32.mrf.mxu0
      %v4114 = vadd.f32 0.0, %v4113
      %v4115 = vpop.f32.mrf.mxu0
      %v4116 = vadd.f32 0.0, %v4115
      %4117 = vmatmul.bf16.gmra.mxu0 %v3850
      %v4118 = vpop.f32.mrf.mxu0
      %v4119 = vadd.f32 0.0, %v4118
      %v4120 = vpop.f32.mrf.mxu0
      %v4121 = vadd.f32 0.0, %v4120
      %4122 = vmatmul.bf16.gmra.mxu0 %v3853
      %v4123 = vpop.f32.mrf.mxu0
      %v4124 = vadd.f32 0.0, %v4123
      %v4125 = vpop.f32.mrf.mxu0
      %v4126 = vadd.f32 0.0, %v4125
      %4127 = vmatmul.bf16.gmra.mxu0 %v3856
      %v4128 = vpop.f32.mrf.mxu0
      %v4129 = vadd.f32 0.0, %v4128
      %v4130 = vpop.f32.mrf.mxu0
      %v4131 = vadd.f32 0.0, %v4130
      %4132 = vmatmul.bf16.gmra.mxu0 %v3859
      %v4133 = vpop.f32.mrf.mxu0
      %v4134 = vadd.f32 0.0, %v4133
      %v4135 = vpop.f32.mrf.mxu0
      %v4136 = vadd.f32 0.0, %v4135
      %4137 = vmatmul.bf16.gmra.mxu0 %v3862
      %v4138 = vpop.f32.mrf.mxu0
      %v4139 = vadd.f32 0.0, %v4138
      %v4140 = vpop.f32.mrf.mxu0
      %v4141 = vadd.f32 0.0, %v4140
      %4142 = vmatmul.bf16.gmra.mxu0 %v3865
      %v4143 = vpop.f32.mrf.mxu0
      %v4144 = vadd.f32 0.0, %v4143
      %v4145 = vpop.f32.mrf.mxu0
      %v4146 = vadd.f32 0.0, %v4145
      %4147 = vmatmul.bf16.gmra.mxu0 %v3868
      %v4148 = vpop.f32.mrf.mxu0
      %v4149 = vadd.f32 0.0, %v4148
      %v4150 = vpop.f32.mrf.mxu0
      %v4151 = vadd.f32 0.0, %v4150
      %4152 = vmatmul.bf16.gmra.mxu0 %v3871
      %v4153 = vpop.f32.mrf.mxu0
      %v4154 = vadd.f32 0.0, %v4153
      %v4155 = vpop.f32.mrf.mxu0
      %v4156 = vadd.f32 0.0, %v4155
      %4157 = vmatmul.bf16.gmra.mxu0 %v3874
      %v4158 = vpop.f32.mrf.mxu0
      %v4159 = vadd.f32 0.0, %v4158
      %v4160 = vpop.f32.mrf.mxu0
      %v4161 = vadd.f32 0.0, %v4160
      %4162 = vmatmul.bf16.gmra.mxu0 %v3877
      %v4163 = vpop.f32.mrf.mxu0
      %v4164 = vadd.f32 0.0, %v4163
      %v4165 = vpop.f32.mrf.mxu0
      %v4166 = vadd.f32 0.0, %v4165
      %4167 = vmatmul.bf16.gmra.mxu0 %v3880
      %v4168 = vpop.f32.mrf.mxu0
      %v4169 = vadd.f32 0.0, %v4168
      %v4170 = vpop.f32.mrf.mxu0
      %v4171 = vadd.f32 0.0, %v4170
      %4172 = vmatmul.bf16.gmra.mxu0 %v3883
      %v4173 = vpop.f32.mrf.mxu0
      %v4174 = vadd.f32 0.0, %v4173
      %v4175 = vpop.f32.mrf.mxu0
      %v4176 = vadd.f32 0.0, %v4175
      %4177 = vmatmul.bf16.gmra.mxu0 %v3886
      %v4178 = vpop.f32.mrf.mxu0
      %v4179 = vadd.f32 0.0, %v4178
      %v4180 = vpop.f32.mrf.mxu0
      %v4181 = vadd.f32 0.0, %v4180
      %4182 = vmatmul.bf16.gmra.mxu0 %v3889
      %v4183 = vpop.f32.mrf.mxu0
      %v4184 = vadd.f32 0.0, %v4183
      %v4185 = vpop.f32.mrf.mxu0
      %v4186 = vadd.f32 0.0, %v4185
      %4187 = vmatmul.bf16.gmra.mxu0 %v3892
      %v4188 = vpop.f32.mrf.mxu0
      %v4189 = vadd.f32 0.0, %v4188
      %v4190 = vpop.f32.mrf.mxu0
      %v4191 = vadd.f32 0.0, %v4190
      %4192 = vmatmul.bf16.gmra.mxu0 %v3895
      %v4193 = vpop.f32.mrf.mxu0
      %v4194 = vadd.f32 0.0, %v4193
      %v4195 = vpop.f32.mrf.mxu0
      %v4196 = vadd.f32 0.0, %v4195
      %4197 = vmatmul.bf16.gmra.mxu0 %v3898
      %v4198 = vpop.f32.mrf.mxu0
      %v4199 = vadd.f32 0.0, %v4198
      %v4200 = vpop.f32.mrf.mxu0
      %v4201 = vadd.f32 0.0, %v4200
      %4202 = vmatmul.bf16.gmra.mxu0 %v3901
      %v4203 = vpop.f32.mrf.mxu0
      %v4204 = vadd.f32 0.0, %v4203
      %v4205 = vpop.f32.mrf.mxu0
      %v4206 = vadd.f32 0.0, %v4205
      %4207 = vmatmul.bf16.gmra.mxu0 %v3904
      %v4208 = vpop.f32.mrf.mxu0
      %v4209 = vadd.f32 0.0, %v4208
      %v4210 = vpop.f32.mrf.mxu0
      %v4211 = vadd.f32 0.0, %v4210
      %4212 = vmatmul.bf16.gmra.mxu0 %v3907
      %v4213 = vpop.f32.mrf.mxu0
      %v4214 = vadd.f32 0.0, %v4213
      %v4215 = vpop.f32.mrf.mxu0
      %v4216 = vadd.f32 0.0, %v4215
      %4217 = vmatmul.bf16.gmra.mxu0 %v3910
      %v4218 = vpop.f32.mrf.mxu0
      %v4219 = vadd.f32 0.0, %v4218
      %v4220 = vpop.f32.mrf.mxu0
      %v4221 = vadd.f32 0.0, %v4220
      %4222 = vmatmul.bf16.gmra.mxu0 %v3913
      %v4223 = vpop.f32.mrf.mxu0
      %v4224 = vadd.f32 0.0, %v4223
      %v4225 = vpop.f32.mrf.mxu0
      %v4226 = vadd.f32 0.0, %v4225
      %4227 = vmatmul.bf16.gmra.mxu0 %v3916
      %v4228 = vpop.f32.mrf.mxu0
      %v4229 = vadd.f32 0.0, %v4228
      %v4230 = vpop.f32.mrf.mxu0
      %v4231 = vadd.f32 0.0, %v4230
      %4232 = vmatmul.bf16.gmra.mxu0 %v3919
      %v4233 = vpop.f32.mrf.mxu0
      %v4234 = vadd.f32 0.0, %v4233
      %v4235 = vpop.f32.mrf.mxu0
      %v4236 = vadd.f32 0.0, %v4235
      %4237 = vmatmul.bf16.gmra.mxu0 %v3922
      %v4238 = vpop.f32.mrf.mxu0
      %v4239 = vadd.f32 0.0, %v4238
      %v4240 = vpop.f32.mrf.mxu0
      %v4241 = vadd.f32 0.0, %v4240
      %4242 = vmatmul.bf16.gmra.mxu0 %v3925
      %v4243 = vpop.f32.mrf.mxu0
      %v4244 = vadd.f32 0.0, %v4243
      %v4245 = vpop.f32.mrf.mxu0
      %v4246 = vadd.f32 0.0, %v4245
      %4247 = vmatmul.bf16.gmra.mxu0 %v3928
      %v4248 = vpop.f32.mrf.mxu0
      %v4249 = vadd.f32 0.0, %v4248
      %v4250 = vpop.f32.mrf.mxu0
      %v4251 = vadd.f32 0.0, %v4250
      %4252 = vmatmul.bf16.gmra.mxu0 %v3931
      %v4253 = vpop.f32.mrf.mxu0
      %v4254 = vadd.f32 0.0, %v4253
      %v4255 = vpop.f32.mrf.mxu0
      %v4256 = vadd.f32 0.0, %v4255
      %4257 = vmatmul.bf16.gmra.mxu0 %v3934
      %v4258 = vpop.f32.mrf.mxu0
      %v4259 = vadd.f32 0.0, %v4258
      %v4260 = vpop.f32.mrf.mxu0
      %v4261 = vadd.f32 0.0, %v4260
      %4262 = vmatmul.bf16.gmra.mxu0 %v3937
      %v4263 = vpop.f32.mrf.mxu0
      %v4264 = vadd.f32 0.0, %v4263
      %v4265 = vpop.f32.mrf.mxu0
      %v4266 = vadd.f32 0.0, %v4265
      %4267 = vdwg.mxu0
      %v4268 = vadd.f32 %v2970, %v3949
      %v4269 = vadd.f32 %v2972, %v3951
      %v4270 = vadd.f32 %v2975, %v3954
      %v4271 = vadd.f32 %v2977, %v3956
      %v4272 = vadd.f32 %v2980, %v3959
      %v4273 = vadd.f32 %v2982, %v3961
      %v4274 = vadd.f32 %v2985, %v3964
      %v4275 = vadd.f32 %v2987, %v3966
      %v4276 = vadd.f32 %v2990, %v3969
      %v4277 = vadd.f32 %v2992, %v3971
      %v4278 = vadd.f32 %v2995, %v3974
      %v4279 = vadd.f32 %v2997, %v3976
      %v4280 = vadd.f32 %v3000, %v3979
      %v4281 = vadd.f32 %v3002, %v3981
      %v4282 = vadd.f32 %v3005, %v3984
      %v4283 = vadd.f32 %v3007, %v3986
      %v4284 = vadd.f32 %v3010, %v3989
      %v4285 = vadd.f32 %v3012, %v3991
      %v4286 = vadd.f32 %v3015, %v3994
      %v4287 = vadd.f32 %v3017, %v3996
      %v4288 = vadd.f32 %v3020, %v3999
      %v4289 = vadd.f32 %v3022, %v4001
      %v4290 = vadd.f32 %v3025, %v4004
      %v4291 = vadd.f32 %v3027, %v4006
      %v4292 = vadd.f32 %v3030, %v4009
      %v4293 = vadd.f32 %v3032, %v4011
      %v4294 = vadd.f32 %v3035, %v4014
      %v4295 = vadd.f32 %v3037, %v4016
      %v4296 = vadd.f32 %v3040, %v4019
      %v4297 = vadd.f32 %v3042, %v4021
      %v4298 = vadd.f32 %v3045, %v4024
      %v4299 = vadd.f32 %v3047, %v4026
      %v4300 = vadd.f32 %v3050, %v4029
      %v4301 = vadd.f32 %v3052, %v4031
      %v4302 = vadd.f32 %v3055, %v4034
      %v4303 = vadd.f32 %v3057, %v4036
      %v4304 = vadd.f32 %v3060, %v4039
      %v4305 = vadd.f32 %v3062, %v4041
      %v4306 = vadd.f32 %v3065, %v4044
      %v4307 = vadd.f32 %v3067, %v4046
      %v4308 = vadd.f32 %v3070, %v4049
      %v4309 = vadd.f32 %v3072, %v4051
      %v4310 = vadd.f32 %v3075, %v4054
      %v4311 = vadd.f32 %v3077, %v4056
      %v4312 = vadd.f32 %v3080, %v4059
      %v4313 = vadd.f32 %v3082, %v4061
      %v4314 = vadd.f32 %v3085, %v4064
      %v4315 = vadd.f32 %v3087, %v4066
      %v4316 = vadd.f32 %v3090, %v4069
      %v4317 = vadd.f32 %v3092, %v4071
      %v4318 = vadd.f32 %v3095, %v4074
      %v4319 = vadd.f32 %v3097, %v4076
      %v4320 = vadd.f32 %v3100, %v4079
      %v4321 = vadd.f32 %v3102, %v4081
      %v4322 = vadd.f32 %v3105, %v4084
      %v4323 = vadd.f32 %v3107, %v4086
      %v4324 = vadd.f32 %v3110, %v4089
      %v4325 = vadd.f32 %v3112, %v4091
      %v4326 = vadd.f32 %v3115, %v4094
      %v4327 = vadd.f32 %v3117, %v4096
      %v4328 = vadd.f32 %v3120, %v4099
      %v4329 = vadd.f32 %v3122, %v4101
      %v4330 = vadd.f32 %v3125, %v4104
      %v4331 = vadd.f32 %v3127, %v4106
      %v4332 = vadd.f32 %v3130, %v4109
      %v4333 = vadd.f32 %v3132, %v4111
      %v4334 = vadd.f32 %v3135, %v4114
      %v4335 = vadd.f32 %v3137, %v4116
      %v4336 = vadd.f32 %v3140, %v4119
      %v4337 = vadd.f32 %v3142, %v4121
      %v4338 = vadd.f32 %v3145, %v4124
      %v4339 = vadd.f32 %v3147, %v4126
      %v4340 = vadd.f32 %v3150, %v4129
      %v4341 = vadd.f32 %v3152, %v4131
      %v4342 = vadd.f32 %v3155, %v4134
      %v4343 = vadd.f32 %v3157, %v4136
      %v4344 = vadd.f32 %v3160, %v4139
      %v4345 = vadd.f32 %v3162, %v4141
      %v4346 = vadd.f32 %v3165, %v4144
      %v4347 = vadd.f32 %v3167, %v4146
      %v4348 = vadd.f32 %v3170, %v4149
      %v4349 = vadd.f32 %v3172, %v4151
      %v4350 = vadd.f32 %v3175, %v4154
      %v4351 = vadd.f32 %v3177, %v4156
      %v4352 = vadd.f32 %v3180, %v4159
      %v4353 = vadd.f32 %v3182, %v4161
      %v4354 = vadd.f32 %v3185, %v4164
      %v4355 = vadd.f32 %v3187, %v4166
      %v4356 = vadd.f32 %v3190, %v4169
      %v4357 = vadd.f32 %v3192, %v4171
      %v4358 = vadd.f32 %v3195, %v4174
      %v4359 = vadd.f32 %v3197, %v4176
      %v4360 = vadd.f32 %v3200, %v4179
      %v4361 = vadd.f32 %v3202, %v4181
      %v4362 = vadd.f32 %v3205, %v4184
      %v4363 = vadd.f32 %v3207, %v4186
      %v4364 = vadd.f32 %v3210, %v4189
      %v4365 = vadd.f32 %v3212, %v4191
      %v4366 = vadd.f32 %v3215, %v4194
      %v4367 = vadd.f32 %v3217, %v4196
      %v4368 = vadd.f32 %v3220, %v4199
      %v4369 = vadd.f32 %v3222, %v4201
      %v4370 = vadd.f32 %v3225, %v4204
      %v4371 = vadd.f32 %v3227, %v4206
      %v4372 = vadd.f32 %v3230, %v4209
      %v4373 = vadd.f32 %v3232, %v4211
      %v4374 = vadd.f32 %v3235, %v4214
      %v4375 = vadd.f32 %v3237, %v4216
      %v4376 = vadd.f32 %v3240, %v4219
      %v4377 = vadd.f32 %v3242, %v4221
      %v4378 = vadd.f32 %v3245, %v4224
      %v4379 = vadd.f32 %v3247, %v4226
      %v4380 = vadd.f32 %v3250, %v4229
      %v4381 = vadd.f32 %v3252, %v4231
      %v4382 = vadd.f32 %v3255, %v4234
      %v4383 = vadd.f32 %v3257, %v4236
      %v4384 = vadd.f32 %v3260, %v4239
      %v4385 = vadd.f32 %v3262, %v4241
      %v4386 = vadd.f32 %v3265, %v4244
      %v4387 = vadd.f32 %v3267, %v4246
      %v4388 = vadd.f32 %v3270, %v4249
      %v4389 = vadd.f32 %v3272, %v4251
      %v4390 = vadd.f32 %v3275, %v4254
      %v4391 = vadd.f32 %v3277, %v4256
      %v4392 = vadd.f32 %v3280, %v4259
      %v4393 = vadd.f32 %v3282, %v4261
      %v4394 = vadd.f32 %v3285, %v4264
      %v4395 = vadd.f32 %v3287, %v4266
      %v4396 = vld [vmem:[%s3289] sm:$0xf]
      %v4397 = vld [vmem:[%s3289 + $0x4] sm:$0xf]
      %v4398 = vld [vmem:[%s3289 + $0x8] sm:$0xf]
      %v4399 = vld [vmem:[%s3289 + $0xc] sm:$0xf]
      %v4400 = vld [vmem:[%s3289 + $0x10] sm:$0x1]
      %v4401 = vld [vmem:[%s3289 + $0x14] sm:$0xf]
      %v4402 = vld [vmem:[%s3289 + $0x18] sm:$0xf]
      %v4403 = vld [vmem:[%s3289 + $0x1c] sm:$0xf]
      %v4404 = vld [vmem:[%s3289 + $0x20] sm:$0xf]
      %v4405 = vld [vmem:[%s3289 + $0x24] sm:$0x1]
      %v4406 = vld [vmem:[%s3289 + $0x28] sm:$0xf]
      %v4407 = vld [vmem:[%s3289 + $0x2c] sm:$0xf]
      %v4408 = vld [vmem:[%s3289 + $0x30] sm:$0xf]
      %v4409 = vld [vmem:[%s3289 + $0x34] sm:$0xf]
      %v4410 = vld [vmem:[%s3289 + $0x38] sm:$0x1]
      %v4411 = vld [vmem:[%s3289 + $0x3c] sm:$0xf]
      %v4412 = vld [vmem:[%s3289 + $0x40] sm:$0xf]
      %v4413 = vld [vmem:[%s3289 + $0x44] sm:$0xf]
      %v4414 = vld [vmem:[%s3289 + $0x48] sm:$0xf]
      %v4415 = vld [vmem:[%s3289 + $0x4c] sm:$0x1]
      %v4416 = vld [vmem:[%s3289 + $0x50] sm:$0xf]
      %v4417 = vld [vmem:[%s3289 + $0x54] sm:$0xf]
      %v4418 = vld [vmem:[%s3289 + $0x58] sm:$0xf]
      %v4419 = vld [vmem:[%s3289 + $0x5c] sm:$0xf]
      %v4420 = vld [vmem:[%s3289 + $0x60] sm:$0x1]
      %v4421 = vld [vmem:[%s3289 + $0x64] sm:$0xf]
      %v4422 = vld [vmem:[%s3289 + $0x68] sm:$0xf]
      %v4423 = vld [vmem:[%s3289 + $0x6c] sm:$0xf]
      %v4424 = vld [vmem:[%s3289 + $0x70] sm:$0xf]
      %v4425 = vld [vmem:[%s3289 + $0x74] sm:$0x1]
      %v4426 = vld [vmem:[%s3289 + $0x78] sm:$0xf]
      %v4427 = vld [vmem:[%s3289 + $0x7c] sm:$0xf]
      %v4428 = vld [vmem:[%s3289 + $0x80] sm:$0xf]
      %v4429 = vld [vmem:[%s3289 + $0x84] sm:$0xf]
      %v4430 = vld [vmem:[%s3289 + $0x88] sm:$0x1]
      %v4431 = vld [vmem:[%s3289 + $0x8c] sm:$0xf]
      %v4432 = vld [vmem:[%s3289 + $0x90] sm:$0xf]
      %v4433 = vld [vmem:[%s3289 + $0x94] sm:$0xf]
      %v4434 = vld [vmem:[%s3289 + $0x98] sm:$0xf]
      %v4435 = vld [vmem:[%s3289 + $0x9c] sm:$0x1]
      %v4436 = vld [vmem:[%s3289 + $0xa0] sm:$0xf]
      %v4437 = vld [vmem:[%s3289 + $0xa4] sm:$0xf]
      %v4438 = vld [vmem:[%s3289 + $0xa8] sm:$0xf]
      %v4439 = vld [vmem:[%s3289 + $0xac] sm:$0xf]
      %v4440 = vld [vmem:[%s3289 + $0xb0] sm:$0x1]
      %v4441 = vld [vmem:[%s3289 + $0xb4] sm:$0xf]
      %v4442 = vld [vmem:[%s3289 + $0xb8] sm:$0xf]
      %v4443 = vld [vmem:[%s3289 + $0xbc] sm:$0xf]
      %v4444 = vld [vmem:[%s3289 + $0xc0] sm:$0xf]
      %v4445 = vld [vmem:[%s3289 + $0xc4] sm:$0x1]
      %v4446 = vld [vmem:[%s3289 + $0xc8] sm:$0xf]
      %v4447 = vld [vmem:[%s3289 + $0xcc] sm:$0xf]
      %v4448 = vld [vmem:[%s3289 + $0xd0] sm:$0xf]
      %v4449 = vld [vmem:[%s3289 + $0xd4] sm:$0xf]
      %v4450 = vld [vmem:[%s3289 + $0xd8] sm:$0x1]
      %v4451 = vld [vmem:[%s3289 + $0xdc] sm:$0xf]
      %v4452 = vld [vmem:[%s3289 + $0xe0] sm:$0xf]
      %v4453 = vld [vmem:[%s3289 + $0xe4] sm:$0xf]
      %v4454 = vld [vmem:[%s3289 + $0xe8] sm:$0xf]
      %v4455 = vld [vmem:[%s3289 + $0xec] sm:$0x1]
      %v4456 = vld [vmem:[%s3289 + $0xf0] sm:$0xf]
      %v4457 = vld [vmem:[%s3289 + $0xf4] sm:$0xf]
      %v4458 = vld [vmem:[%s3289 + $0xf8] sm:$0xf]
      %v4459 = vld [vmem:[%s3289 + $0xfc] sm:$0xf]
      %v4460 = vld [vmem:[%s3289 + $0x100] sm:$0x1]
      %v4461 = vld [vmem:[%s3289 + $0x104] sm:$0xf]
      %v4462 = vld [vmem:[%s3289 + $0x108] sm:$0xf]
      %v4463 = vld [vmem:[%s3289 + $0x10c] sm:$0xf]
      %v4464 = vld [vmem:[%s3289 + $0x110] sm:$0xf]
      %v4465 = vld [vmem:[%s3289 + $0x114] sm:$0x1]
      %v4466 = vld [vmem:[%s3289 + $0x118] sm:$0xf]
      %v4467 = vld [vmem:[%s3289 + $0x11c] sm:$0xf]
      %v4468 = vld [vmem:[%s3289 + $0x120] sm:$0xf]
      %v4469 = vld [vmem:[%s3289 + $0x124] sm:$0xf]
      %v4470 = vld [vmem:[%s3289 + $0x128] sm:$0x1]
      %v4471 = vld [vmem:[%s3289 + $0x12c] sm:$0xf]
      %v4472 = vld [vmem:[%s3289 + $0x130] sm:$0xf]
      %v4473 = vld [vmem:[%s3289 + $0x134] sm:$0xf]
      %v4474 = vld [vmem:[%s3289 + $0x138] sm:$0xf]
      %v4475 = vld [vmem:[%s3289 + $0x13c] sm:$0x1]
      %v4476 = vld [vmem:[%s3289 + $0x140] sm:$0xf]
      %v4477 = vld [vmem:[%s3289 + $0x144] sm:$0xf]
      %v4478 = vld [vmem:[%s3289 + $0x148] sm:$0xf]
      %v4479 = vld [vmem:[%s3289 + $0x14c] sm:$0xf]
      %v4480 = vld [vmem:[%s3289 + $0x150] sm:$0x1]
      %v4481 = vld [vmem:[%s3289 + $0x154] sm:$0xf]
      %v4482 = vld [vmem:[%s3289 + $0x158] sm:$0xf]
      %v4483 = vld [vmem:[%s3289 + $0x15c] sm:$0xf]
      %v4484 = vld [vmem:[%s3289 + $0x160] sm:$0xf]
      %v4485 = vld [vmem:[%s3289 + $0x164] sm:$0x1]
      %v4486 = vld [vmem:[%s3289 + $0x168] sm:$0xf]
      %v4487 = vld [vmem:[%s3289 + $0x16c] sm:$0xf]
      %v4488 = vld [vmem:[%s3289 + $0x170] sm:$0xf]
      %v4489 = vld [vmem:[%s3289 + $0x174] sm:$0xf]
      %v4490 = vld [vmem:[%s3289 + $0x178] sm:$0x1]
      %v4491 = vld [vmem:[%s3289 + $0x17c] sm:$0xf]
      %v4492 = vld [vmem:[%s3289 + $0x180] sm:$0xf]
      %v4493 = vld [vmem:[%s3289 + $0x184] sm:$0xf]
      %v4494 = vld [vmem:[%s3289 + $0x188] sm:$0xf]
      %v4495 = vld [vmem:[%s3289 + $0x18c] sm:$0x1]
      %v4496 = vld [vmem:[%s3289 + $0x190] sm:$0xf]
      %v4497 = vld [vmem:[%s3289 + $0x194] sm:$0xf]
      %v4498 = vld [vmem:[%s3289 + $0x198] sm:$0xf]
      %v4499 = vld [vmem:[%s3289 + $0x19c] sm:$0xf]
      %v4500 = vld [vmem:[%s3289 + $0x1a0] sm:$0x1]
      %v4501 = vld [vmem:[%s3289 + $0x1a4] sm:$0xf]
      %v4502 = vld [vmem:[%s3289 + $0x1a8] sm:$0xf]
      %v4503 = vld [vmem:[%s3289 + $0x1ac] sm:$0xf]
      %v4504 = vld [vmem:[%s3289 + $0x1b0] sm:$0xf]
      %v4505 = vld [vmem:[%s3289 + $0x1b4] sm:$0x1]
      %v4506 = vld [vmem:[%s3289 + $0x1b8] sm:$0xf]
      %v4507 = vld [vmem:[%s3289 + $0x1bc] sm:$0xf]
      %v4508 = vld [vmem:[%s3289 + $0x1c0] sm:$0xf]
      %v4509 = vld [vmem:[%s3289 + $0x1c4] sm:$0xf]
      %v4510 = vld [vmem:[%s3289 + $0x1c8] sm:$0x1]
      %v4511 = vld [vmem:[%s3289 + $0x1cc] sm:$0xf]
      %v4512 = vld [vmem:[%s3289 + $0x1d0] sm:$0xf]
      %v4513 = vld [vmem:[%s3289 + $0x1d4] sm:$0xf]
      %v4514 = vld [vmem:[%s3289 + $0x1d8] sm:$0xf]
      %v4515 = vld [vmem:[%s3289 + $0x1dc] sm:$0x1]
      %v4516 = vld [vmem:[%s3289 + $0x1e0] sm:$0xf]
      %v4517 = vld [vmem:[%s3289 + $0x1e4] sm:$0xf]
      %v4518 = vld [vmem:[%s3289 + $0x1e8] sm:$0xf]
      %v4519 = vld [vmem:[%s3289 + $0x1ec] sm:$0xf]
      %v4520 = vld [vmem:[%s3289 + $0x1f0] sm:$0x1]
      %v4521 = vld [vmem:[%s3289 + $0x1f4] sm:$0xf]
      %v4522 = vld [vmem:[%s3289 + $0x1f8] sm:$0xf]
      %v4523 = vld [vmem:[%s3289 + $0x1fc] sm:$0xf]
      %v4524 = vld [vmem:[%s3289 + $0x200] sm:$0xf]
      %v4525 = vld [vmem:[%s3289 + $0x204] sm:$0x1]
      %v4526 = vld [vmem:[%s3289 + $0x208] sm:$0xf]
      %v4527 = vld [vmem:[%s3289 + $0x20c] sm:$0xf]
      %v4528 = vld [vmem:[%s3289 + $0x210] sm:$0xf]
      %v4529 = vld [vmem:[%s3289 + $0x214] sm:$0xf]
      %v4530 = vld [vmem:[%s3289 + $0x218] sm:$0x1]
      %v4531 = vld [vmem:[%s3289 + $0x21c] sm:$0xf]
      %v4532 = vld [vmem:[%s3289 + $0x220] sm:$0xf]
      %v4533 = vld [vmem:[%s3289 + $0x224] sm:$0xf]
      %v4534 = vld [vmem:[%s3289 + $0x228] sm:$0xf]
      %v4535 = vld [vmem:[%s3289 + $0x22c] sm:$0x1]
      %v4536 = vld [vmem:[%s3289 + $0x230] sm:$0xf]
      %v4537 = vld [vmem:[%s3289 + $0x234] sm:$0xf]
      %v4538 = vld [vmem:[%s3289 + $0x238] sm:$0xf]
      %v4539 = vld [vmem:[%s3289 + $0x23c] sm:$0xf]
      %v4540 = vld [vmem:[%s3289 + $0x240] sm:$0x1]
      %v4541 = vld [vmem:[%s3289 + $0x244] sm:$0xf]
      %v4542 = vld [vmem:[%s3289 + $0x248] sm:$0xf]
      %v4543 = vld [vmem:[%s3289 + $0x24c] sm:$0xf]
      %v4544 = vld [vmem:[%s3289 + $0x250] sm:$0xf]
      %v4545 = vld [vmem:[%s3289 + $0x254] sm:$0x1]
      %v4546 = vld [vmem:[%s3289 + $0x258] sm:$0xf]
      %v4547 = vld [vmem:[%s3289 + $0x25c] sm:$0xf]
      %v4548 = vld [vmem:[%s3289 + $0x260] sm:$0xf]
      %v4549 = vld [vmem:[%s3289 + $0x264] sm:$0xf]
      %v4550 = vld [vmem:[%s3289 + $0x268] sm:$0x1]
      %v4551 = vld [vmem:[%s3289 + $0x26c] sm:$0xf]
      %v4552 = vld [vmem:[%s3289 + $0x270] sm:$0xf]
      %v4553 = vld [vmem:[%s3289 + $0x274] sm:$0xf]
      %v4554 = vld [vmem:[%s3289 + $0x278] sm:$0xf]
      %v4555 = vld [vmem:[%s3289 + $0x27c] sm:$0x1]
      %v4557 = vshrl.u32 %v4396, 16
      %v4559 = vrot.slane %v4557, 4
      %v4560 = vshll.u32 %v4396, 16
      %v4562 = vrot.slane %v4560, 5
      %v4563 = vor.u32 %v4559, %v4562
      %v4564 = vrot.slane %v4563, 4
      %v4566 = vshll.u32 %v4397, 16
      %v4568 = vrot.slane %v4566, 5
      %v4569 = vsel %vm310, %v4564, %v4568
      %v4570 = vshrl.u32 %v4397, 16
      %v4572 = vrot.slane %v4570, 4
      %v4573 = vor.u32 %v4572, %v4568
      %v4574 = vrot.slane %v4573, 4
      %v4576 = vshll.u32 %v4398, 16
      %v4578 = vrot.slane %v4576, 5
      %v4579 = vsel %vm310, %v4574, %v4578
      %v4580 = vshrl.u32 %v4398, 16
      %v4582 = vrot.slane %v4580, 4
      %v4583 = vor.u32 %v4582, %v4578
      %v4584 = vrot.slane %v4583, 4
      %v4586 = vshll.u32 %v4399, 16
      %v4588 = vrot.slane %v4586, 5
      %v4589 = vsel %vm310, %v4584, %v4588
      %v4590 = vshrl.u32 %v4399, 16
      %v4592 = vrot.slane %v4590, 4
      %v4593 = vor.u32 %v4592, %v4588
      %v4594 = vrot.slane %v4593, 4
      %v4596 = vshll.u32 %v4400, 16
      %v4598 = vrot.slane %v4596, 5
      %v4599 = vsel %vm310, %v4594, %v4598
      %v4601 = vshrl.u32 %v4401, 16
      %v4603 = vrot.slane %v4601, 4
      %v4604 = vshll.u32 %v4401, 16
      %v4606 = vrot.slane %v4604, 5
      %v4607 = vor.u32 %v4603, %v4606
      %v4608 = vrot.slane %v4607, 4
      %v4610 = vshll.u32 %v4402, 16
      %v4612 = vrot.slane %v4610, 5
      %v4613 = vsel %vm310, %v4608, %v4612
      %v4614 = vshrl.u32 %v4402, 16
      %v4616 = vrot.slane %v4614, 4
      %v4617 = vor.u32 %v4616, %v4612
      %v4618 = vrot.slane %v4617, 4
      %v4620 = vshll.u32 %v4403, 16
      %v4622 = vrot.slane %v4620, 5
      %v4623 = vsel %vm310, %v4618, %v4622
      %v4624 = vshrl.u32 %v4403, 16
      %v4626 = vrot.slane %v4624, 4
      %v4627 = vor.u32 %v4626, %v4622
      %v4628 = vrot.slane %v4627, 4
      %v4630 = vshll.u32 %v4404, 16
      %v4632 = vrot.slane %v4630, 5
      %v4633 = vsel %vm310, %v4628, %v4632
      %v4634 = vshrl.u32 %v4404, 16
      %v4636 = vrot.slane %v4634, 4
      %v4637 = vor.u32 %v4636, %v4632
      %v4638 = vrot.slane %v4637, 4
      %v4640 = vshll.u32 %v4405, 16
      %v4642 = vrot.slane %v4640, 5
      %v4643 = vsel %vm310, %v4638, %v4642
      %v4645 = vshrl.u32 %v4406, 16
      %v4647 = vrot.slane %v4645, 4
      %v4648 = vshll.u32 %v4406, 16
      %v4650 = vrot.slane %v4648, 5
      %v4651 = vor.u32 %v4647, %v4650
      %v4652 = vrot.slane %v4651, 4
      %v4654 = vshll.u32 %v4407, 16
      %v4656 = vrot.slane %v4654, 5
      %v4657 = vsel %vm310, %v4652, %v4656
      %v4658 = vshrl.u32 %v4407, 16
      %v4660 = vrot.slane %v4658, 4
      %v4661 = vor.u32 %v4660, %v4656
      %v4662 = vrot.slane %v4661, 4
      %v4664 = vshll.u32 %v4408, 16
      %v4666 = vrot.slane %v4664, 5
      %v4667 = vsel %vm310, %v4662, %v4666
      %v4668 = vshrl.u32 %v4408, 16
      %v4670 = vrot.slane %v4668, 4
      %v4671 = vor.u32 %v4670, %v4666
      %v4672 = vrot.slane %v4671, 4
      %v4674 = vshll.u32 %v4409, 16
      %v4676 = vrot.slane %v4674, 5
      %v4677 = vsel %vm310, %v4672, %v4676
      %v4678 = vshrl.u32 %v4409, 16
      %v4680 = vrot.slane %v4678, 4
      %v4681 = vor.u32 %v4680, %v4676
      %v4682 = vrot.slane %v4681, 4
      %v4684 = vshll.u32 %v4410, 16
      %v4686 = vrot.slane %v4684, 5
      %v4687 = vsel %vm310, %v4682, %v4686
      %v4689 = vshrl.u32 %v4411, 16
      %v4691 = vrot.slane %v4689, 4
      %v4692 = vshll.u32 %v4411, 16
      %v4694 = vrot.slane %v4692, 5
      %v4695 = vor.u32 %v4691, %v4694
      %v4696 = vrot.slane %v4695, 4
      %v4698 = vshll.u32 %v4412, 16
      %v4700 = vrot.slane %v4698, 5
      %v4701 = vsel %vm310, %v4696, %v4700
      %v4702 = vshrl.u32 %v4412, 16
      %v4704 = vrot.slane %v4702, 4
      %v4705 = vor.u32 %v4704, %v4700
      %v4706 = vrot.slane %v4705, 4
      %v4708 = vshll.u32 %v4413, 16
      %v4710 = vrot.slane %v4708, 5
      %v4711 = vsel %vm310, %v4706, %v4710
      %v4712 = vshrl.u32 %v4413, 16
      %v4714 = vrot.slane %v4712, 4
      %v4715 = vor.u32 %v4714, %v4710
      %v4716 = vrot.slane %v4715, 4
      %v4718 = vshll.u32 %v4414, 16
      %v4720 = vrot.slane %v4718, 5
      %v4721 = vsel %vm310, %v4716, %v4720
      %v4722 = vshrl.u32 %v4414, 16
      %v4724 = vrot.slane %v4722, 4
      %v4725 = vor.u32 %v4724, %v4720
      %v4726 = vrot.slane %v4725, 4
      %v4728 = vshll.u32 %v4415, 16
      %v4730 = vrot.slane %v4728, 5
      %v4731 = vsel %vm310, %v4726, %v4730
      %v4733 = vshrl.u32 %v4416, 16
      %v4735 = vrot.slane %v4733, 4
      %v4736 = vshll.u32 %v4416, 16
      %v4738 = vrot.slane %v4736, 5
      %v4739 = vor.u32 %v4735, %v4738
      %v4740 = vrot.slane %v4739, 4
      %v4742 = vshll.u32 %v4417, 16
      %v4744 = vrot.slane %v4742, 5
      %v4745 = vsel %vm310, %v4740, %v4744
      %v4746 = vshrl.u32 %v4417, 16
      %v4748 = vrot.slane %v4746, 4
      %v4749 = vor.u32 %v4748, %v4744
      %v4750 = vrot.slane %v4749, 4
      %v4752 = vshll.u32 %v4418, 16
      %v4754 = vrot.slane %v4752, 5
      %v4755 = vsel %vm310, %v4750, %v4754
      %v4756 = vshrl.u32 %v4418, 16
      %v4758 = vrot.slane %v4756, 4
      %v4759 = vor.u32 %v4758, %v4754
      %v4760 = vrot.slane %v4759, 4
      %v4762 = vshll.u32 %v4419, 16
      %v4764 = vrot.slane %v4762, 5
      %v4765 = vsel %vm310, %v4760, %v4764
      %v4766 = vshrl.u32 %v4419, 16
      %v4768 = vrot.slane %v4766, 4
      %v4769 = vor.u32 %v4768, %v4764
      %v4770 = vrot.slane %v4769, 4
      %v4772 = vshll.u32 %v4420, 16
      %v4774 = vrot.slane %v4772, 5
      %v4775 = vsel %vm310, %v4770, %v4774
      %v4777 = vshrl.u32 %v4421, 16
      %v4779 = vrot.slane %v4777, 4
      %v4780 = vshll.u32 %v4421, 16
      %v4782 = vrot.slane %v4780, 5
      %v4783 = vor.u32 %v4779, %v4782
      %v4784 = vrot.slane %v4783, 4
      %v4786 = vshll.u32 %v4422, 16
      %v4788 = vrot.slane %v4786, 5
      %v4789 = vsel %vm310, %v4784, %v4788
      %v4790 = vshrl.u32 %v4422, 16
      %v4792 = vrot.slane %v4790, 4
      %v4793 = vor.u32 %v4792, %v4788
      %v4794 = vrot.slane %v4793, 4
      %v4796 = vshll.u32 %v4423, 16
      %v4798 = vrot.slane %v4796, 5
      %v4799 = vsel %vm310, %v4794, %v4798
      %v4800 = vshrl.u32 %v4423, 16
      %v4802 = vrot.slane %v4800, 4
      %v4803 = vor.u32 %v4802, %v4798
      %v4804 = vrot.slane %v4803, 4
      %v4806 = vshll.u32 %v4424, 16
      %v4808 = vrot.slane %v4806, 5
      %v4809 = vsel %vm310, %v4804, %v4808
      %v4810 = vshrl.u32 %v4424, 16
      %v4812 = vrot.slane %v4810, 4
      %v4813 = vor.u32 %v4812, %v4808
      %v4814 = vrot.slane %v4813, 4
      %v4816 = vshll.u32 %v4425, 16
      %v4818 = vrot.slane %v4816, 5
      %v4819 = vsel %vm310, %v4814, %v4818
      %v4821 = vshrl.u32 %v4426, 16
      %v4823 = vrot.slane %v4821, 4
      %v4824 = vshll.u32 %v4426, 16
      %v4826 = vrot.slane %v4824, 5
      %v4827 = vor.u32 %v4823, %v4826
      %v4828 = vrot.slane %v4827, 4
      %v4830 = vshll.u32 %v4427, 16
      %v4832 = vrot.slane %v4830, 5
      %v4833 = vsel %vm310, %v4828, %v4832
      %v4834 = vshrl.u32 %v4427, 16
      %v4836 = vrot.slane %v4834, 4
      %v4837 = vor.u32 %v4836, %v4832
      %v4838 = vrot.slane %v4837, 4
      %v4840 = vshll.u32 %v4428, 16
      %v4842 = vrot.slane %v4840, 5
      %v4843 = vsel %vm310, %v4838, %v4842
      %v4844 = vshrl.u32 %v4428, 16
      %v4846 = vrot.slane %v4844, 4
      %v4847 = vor.u32 %v4846, %v4842
      %v4848 = vrot.slane %v4847, 4
      %v4850 = vshll.u32 %v4429, 16
      %v4852 = vrot.slane %v4850, 5
      %v4853 = vsel %vm310, %v4848, %v4852
      %v4854 = vshrl.u32 %v4429, 16
      %v4856 = vrot.slane %v4854, 4
      %v4857 = vor.u32 %v4856, %v4852
      %v4858 = vrot.slane %v4857, 4
      %v4860 = vshll.u32 %v4430, 16
      %v4862 = vrot.slane %v4860, 5
      %v4863 = vsel %vm310, %v4858, %v4862
      %v4865 = vshrl.u32 %v4431, 16
      %v4867 = vrot.slane %v4865, 4
      %v4868 = vshll.u32 %v4431, 16
      %v4870 = vrot.slane %v4868, 5
      %v4871 = vor.u32 %v4867, %v4870
      %v4872 = vrot.slane %v4871, 4
      %v4874 = vshll.u32 %v4432, 16
      %v4876 = vrot.slane %v4874, 5
      %v4877 = vsel %vm310, %v4872, %v4876
      %v4878 = vshrl.u32 %v4432, 16
      %v4880 = vrot.slane %v4878, 4
      %v4881 = vor.u32 %v4880, %v4876
      %v4882 = vrot.slane %v4881, 4
      %v4884 = vshll.u32 %v4433, 16
      %v4886 = vrot.slane %v4884, 5
      %v4887 = vsel %vm310, %v4882, %v4886
      %v4888 = vshrl.u32 %v4433, 16
      %v4890 = vrot.slane %v4888, 4
      %v4891 = vor.u32 %v4890, %v4886
      %v4892 = vrot.slane %v4891, 4
      %v4894 = vshll.u32 %v4434, 16
      %v4896 = vrot.slane %v4894, 5
      %v4897 = vsel %vm310, %v4892, %v4896
      %v4898 = vshrl.u32 %v4434, 16
      %v4900 = vrot.slane %v4898, 4
      %v4901 = vor.u32 %v4900, %v4896
      %v4902 = vrot.slane %v4901, 4
      %v4904 = vshll.u32 %v4435, 16
      %v4906 = vrot.slane %v4904, 5
      %v4907 = vsel %vm310, %v4902, %v4906
      %v4909 = vshrl.u32 %v4436, 16
      %v4911 = vrot.slane %v4909, 4
      %v4912 = vshll.u32 %v4436, 16
      %v4914 = vrot.slane %v4912, 5
      %v4915 = vor.u32 %v4911, %v4914
      %v4916 = vrot.slane %v4915, 4
      %v4918 = vshll.u32 %v4437, 16
      %v4920 = vrot.slane %v4918, 5
      %v4921 = vsel %vm310, %v4916, %v4920
      %v4922 = vshrl.u32 %v4437, 16
      %v4924 = vrot.slane %v4922, 4
      %v4925 = vor.u32 %v4924, %v4920
      %v4926 = vrot.slane %v4925, 4
      %v4928 = vshll.u32 %v4438, 16
      %v4930 = vrot.slane %v4928, 5
      %v4931 = vsel %vm310, %v4926, %v4930
      %v4932 = vshrl.u32 %v4438, 16
      %v4934 = vrot.slane %v4932, 4
      %v4935 = vor.u32 %v4934, %v4930
      %v4936 = vrot.slane %v4935, 4
      %v4938 = vshll.u32 %v4439, 16
      %v4940 = vrot.slane %v4938, 5
      %v4941 = vsel %vm310, %v4936, %v4940
      %v4942 = vshrl.u32 %v4439, 16
      %v4944 = vrot.slane %v4942, 4
      %v4945 = vor.u32 %v4944, %v4940
      %v4946 = vrot.slane %v4945, 4
      %v4948 = vshll.u32 %v4440, 16
      %v4950 = vrot.slane %v4948, 5
      %v4951 = vsel %vm310, %v4946, %v4950
      %v4953 = vshrl.u32 %v4441, 16
      %v4955 = vrot.slane %v4953, 4
      %v4956 = vshll.u32 %v4441, 16
      %v4958 = vrot.slane %v4956, 5
      %v4959 = vor.u32 %v4955, %v4958
      %v4960 = vrot.slane %v4959, 4
      %v4962 = vshll.u32 %v4442, 16
      %v4964 = vrot.slane %v4962, 5
      %v4965 = vsel %vm310, %v4960, %v4964
      %v4966 = vshrl.u32 %v4442, 16
      %v4968 = vrot.slane %v4966, 4
      %v4969 = vor.u32 %v4968, %v4964
      %v4970 = vrot.slane %v4969, 4
      %v4972 = vshll.u32 %v4443, 16
      %v4974 = vrot.slane %v4972, 5
      %v4975 = vsel %vm310, %v4970, %v4974
      %v4976 = vshrl.u32 %v4443, 16
      %v4978 = vrot.slane %v4976, 4
      %v4979 = vor.u32 %v4978, %v4974
      %v4980 = vrot.slane %v4979, 4
      %v4982 = vshll.u32 %v4444, 16
      %v4984 = vrot.slane %v4982, 5
      %v4985 = vsel %vm310, %v4980, %v4984
      %v4986 = vshrl.u32 %v4444, 16
      %v4988 = vrot.slane %v4986, 4
      %v4989 = vor.u32 %v4988, %v4984
      %v4990 = vrot.slane %v4989, 4
      %v4992 = vshll.u32 %v4445, 16
      %v4994 = vrot.slane %v4992, 5
      %v4995 = vsel %vm310, %v4990, %v4994
      %v4997 = vshrl.u32 %v4446, 16
      %v4999 = vrot.slane %v4997, 4
      %v5000 = vshll.u32 %v4446, 16
      %v5002 = vrot.slane %v5000, 5
      %v5003 = vor.u32 %v4999, %v5002
      %v5004 = vrot.slane %v5003, 4
      %v5006 = vshll.u32 %v4447, 16
      %v5008 = vrot.slane %v5006, 5
      %v5009 = vsel %vm310, %v5004, %v5008
      %v5010 = vshrl.u32 %v4447, 16
      %v5012 = vrot.slane %v5010, 4
      %v5013 = vor.u32 %v5012, %v5008
      %v5014 = vrot.slane %v5013, 4
      %v5016 = vshll.u32 %v4448, 16
      %v5018 = vrot.slane %v5016, 5
      %v5019 = vsel %vm310, %v5014, %v5018
      %v5020 = vshrl.u32 %v4448, 16
      %v5022 = vrot.slane %v5020, 4
      %v5023 = vor.u32 %v5022, %v5018
      %v5024 = vrot.slane %v5023, 4
      %v5026 = vshll.u32 %v4449, 16
      %v5028 = vrot.slane %v5026, 5
      %v5029 = vsel %vm310, %v5024, %v5028
      %v5030 = vshrl.u32 %v4449, 16
      %v5032 = vrot.slane %v5030, 4
      %v5033 = vor.u32 %v5032, %v5028
      %v5034 = vrot.slane %v5033, 4
      %v5036 = vshll.u32 %v4450, 16
      %v5038 = vrot.slane %v5036, 5
      %v5039 = vsel %vm310, %v5034, %v5038
      %v5041 = vshrl.u32 %v4451, 16
      %v5043 = vrot.slane %v5041, 4
      %v5044 = vshll.u32 %v4451, 16
      %v5046 = vrot.slane %v5044, 5
      %v5047 = vor.u32 %v5043, %v5046
      %v5048 = vrot.slane %v5047, 4
      %v5050 = vshll.u32 %v4452, 16
      %v5052 = vrot.slane %v5050, 5
      %v5053 = vsel %vm310, %v5048, %v5052
      %v5054 = vshrl.u32 %v4452, 16
      %v5056 = vrot.slane %v5054, 4
      %v5057 = vor.u32 %v5056, %v5052
      %v5058 = vrot.slane %v5057, 4
      %v5060 = vshll.u32 %v4453, 16
      %v5062 = vrot.slane %v5060, 5
      %v5063 = vsel %vm310, %v5058, %v5062
      %v5064 = vshrl.u32 %v4453, 16
      %v5066 = vrot.slane %v5064, 4
      %v5067 = vor.u32 %v5066, %v5062
      %v5068 = vrot.slane %v5067, 4
      %v5070 = vshll.u32 %v4454, 16
      %v5072 = vrot.slane %v5070, 5
      %v5073 = vsel %vm310, %v5068, %v5072
      %v5074 = vshrl.u32 %v4454, 16
      %v5076 = vrot.slane %v5074, 4
      %v5077 = vor.u32 %v5076, %v5072
      %v5078 = vrot.slane %v5077, 4
      %v5080 = vshll.u32 %v4455, 16
      %v5082 = vrot.slane %v5080, 5
      %v5083 = vsel %vm310, %v5078, %v5082
      %v5085 = vshrl.u32 %v4456, 16
      %v5087 = vrot.slane %v5085, 4
      %v5088 = vshll.u32 %v4456, 16
      %v5090 = vrot.slane %v5088, 5
      %v5091 = vor.u32 %v5087, %v5090
      %v5092 = vrot.slane %v5091, 4
      %v5094 = vshll.u32 %v4457, 16
      %v5096 = vrot.slane %v5094, 5
      %v5097 = vsel %vm310, %v5092, %v5096
      %v5098 = vshrl.u32 %v4457, 16
      %v5100 = vrot.slane %v5098, 4
      %v5101 = vor.u32 %v5100, %v5096
      %v5102 = vrot.slane %v5101, 4
      %v5104 = vshll.u32 %v4458, 16
      %v5106 = vrot.slane %v5104, 5
      %v5107 = vsel %vm310, %v5102, %v5106
      %v5108 = vshrl.u32 %v4458, 16
      %v5110 = vrot.slane %v5108, 4
      %v5111 = vor.u32 %v5110, %v5106
      %v5112 = vrot.slane %v5111, 4
      %v5114 = vshll.u32 %v4459, 16
      %v5116 = vrot.slane %v5114, 5
      %v5117 = vsel %vm310, %v5112, %v5116
      %v5118 = vshrl.u32 %v4459, 16
      %v5120 = vrot.slane %v5118, 4
      %v5121 = vor.u32 %v5120, %v5116
      %v5122 = vrot.slane %v5121, 4
      %v5124 = vshll.u32 %v4460, 16
      %v5126 = vrot.slane %v5124, 5
      %v5127 = vsel %vm310, %v5122, %v5126
      %v5129 = vshrl.u32 %v4461, 16
      %v5131 = vrot.slane %v5129, 4
      %v5132 = vshll.u32 %v4461, 16
      %v5134 = vrot.slane %v5132, 5
      %v5135 = vor.u32 %v5131, %v5134
      %v5136 = vrot.slane %v5135, 4
      %v5138 = vshll.u32 %v4462, 16
      %v5140 = vrot.slane %v5138, 5
      %v5141 = vsel %vm310, %v5136, %v5140
      %v5142 = vshrl.u32 %v4462, 16
      %v5144 = vrot.slane %v5142, 4
      %v5145 = vor.u32 %v5144, %v5140
      %v5146 = vrot.slane %v5145, 4
      %v5148 = vshll.u32 %v4463, 16
      %v5150 = vrot.slane %v5148, 5
      %v5151 = vsel %vm310, %v5146, %v5150
      %v5152 = vshrl.u32 %v4463, 16
      %v5154 = vrot.slane %v5152, 4
      %v5155 = vor.u32 %v5154, %v5150
      %v5156 = vrot.slane %v5155, 4
      %v5158 = vshll.u32 %v4464, 16
      %v5160 = vrot.slane %v5158, 5
      %v5161 = vsel %vm310, %v5156, %v5160
      %v5162 = vshrl.u32 %v4464, 16
      %v5164 = vrot.slane %v5162, 4
      %v5165 = vor.u32 %v5164, %v5160
      %v5166 = vrot.slane %v5165, 4
      %v5168 = vshll.u32 %v4465, 16
      %v5170 = vrot.slane %v5168, 5
      %v5171 = vsel %vm310, %v5166, %v5170
      %v5173 = vshrl.u32 %v4466, 16
      %v5175 = vrot.slane %v5173, 4
      %v5176 = vshll.u32 %v4466, 16
      %v5178 = vrot.slane %v5176, 5
      %v5179 = vor.u32 %v5175, %v5178
      %v5180 = vrot.slane %v5179, 4
      %v5182 = vshll.u32 %v4467, 16
      %v5184 = vrot.slane %v5182, 5
      %v5185 = vsel %vm310, %v5180, %v5184
      %v5186 = vshrl.u32 %v4467, 16
      %v5188 = vrot.slane %v5186, 4
      %v5189 = vor.u32 %v5188, %v5184
      %v5190 = vrot.slane %v5189, 4
      %v5192 = vshll.u32 %v4468, 16
      %v5194 = vrot.slane %v5192, 5
      %v5195 = vsel %vm310, %v5190, %v5194
      %v5196 = vshrl.u32 %v4468, 16
      %v5198 = vrot.slane %v5196, 4
      %v5199 = vor.u32 %v5198, %v5194
      %v5200 = vrot.slane %v5199, 4
      %v5202 = vshll.u32 %v4469, 16
      %v5204 = vrot.slane %v5202, 5
      %v5205 = vsel %vm310, %v5200, %v5204
      %v5206 = vshrl.u32 %v4469, 16
      %v5208 = vrot.slane %v5206, 4
      %v5209 = vor.u32 %v5208, %v5204
      %v5210 = vrot.slane %v5209, 4
      %v5212 = vshll.u32 %v4470, 16
      %v5214 = vrot.slane %v5212, 5
      %v5215 = vsel %vm310, %v5210, %v5214
      %v5217 = vshrl.u32 %v4471, 16
      %v5219 = vrot.slane %v5217, 4
      %v5220 = vshll.u32 %v4471, 16
      %v5222 = vrot.slane %v5220, 5
      %v5223 = vor.u32 %v5219, %v5222
      %v5224 = vrot.slane %v5223, 4
      %v5226 = vshll.u32 %v4472, 16
      %v5228 = vrot.slane %v5226, 5
      %v5229 = vsel %vm310, %v5224, %v5228
      %v5230 = vshrl.u32 %v4472, 16
      %v5232 = vrot.slane %v5230, 4
      %v5233 = vor.u32 %v5232, %v5228
      %v5234 = vrot.slane %v5233, 4
      %v5236 = vshll.u32 %v4473, 16
      %v5238 = vrot.slane %v5236, 5
      %v5239 = vsel %vm310, %v5234, %v5238
      %v5240 = vshrl.u32 %v4473, 16
      %v5242 = vrot.slane %v5240, 4
      %v5243 = vor.u32 %v5242, %v5238
      %v5244 = vrot.slane %v5243, 4
      %v5246 = vshll.u32 %v4474, 16
      %v5248 = vrot.slane %v5246, 5
      %v5249 = vsel %vm310, %v5244, %v5248
      %v5250 = vshrl.u32 %v4474, 16
      %v5252 = vrot.slane %v5250, 4
      %v5253 = vor.u32 %v5252, %v5248
      %v5254 = vrot.slane %v5253, 4
      %v5256 = vshll.u32 %v4475, 16
      %v5258 = vrot.slane %v5256, 5
      %v5259 = vsel %vm310, %v5254, %v5258
      %v5261 = vshrl.u32 %v4476, 16
      %v5263 = vrot.slane %v5261, 4
      %v5264 = vshll.u32 %v4476, 16
      %v5266 = vrot.slane %v5264, 5
      %v5267 = vor.u32 %v5263, %v5266
      %v5268 = vrot.slane %v5267, 4
      %v5270 = vshll.u32 %v4477, 16
      %v5272 = vrot.slane %v5270, 5
      %v5273 = vsel %vm310, %v5268, %v5272
      %v5274 = vshrl.u32 %v4477, 16
      %v5276 = vrot.slane %v5274, 4
      %v5277 = vor.u32 %v5276, %v5272
      %v5278 = vrot.slane %v5277, 4
      %v5280 = vshll.u32 %v4478, 16
      %v5282 = vrot.slane %v5280, 5
      %v5283 = vsel %vm310, %v5278, %v5282
      %v5284 = vshrl.u32 %v4478, 16
      %v5286 = vrot.slane %v5284, 4
      %v5287 = vor.u32 %v5286, %v5282
      %v5288 = vrot.slane %v5287, 4
      %v5290 = vshll.u32 %v4479, 16
      %v5292 = vrot.slane %v5290, 5
      %v5293 = vsel %vm310, %v5288, %v5292
      %v5294 = vshrl.u32 %v4479, 16
      %v5296 = vrot.slane %v5294, 4
      %v5297 = vor.u32 %v5296, %v5292
      %v5298 = vrot.slane %v5297, 4
      %v5300 = vshll.u32 %v4480, 16
      %v5302 = vrot.slane %v5300, 5
      %v5303 = vsel %vm310, %v5298, %v5302
      %v5305 = vshrl.u32 %v4481, 16
      %v5307 = vrot.slane %v5305, 4
      %v5308 = vshll.u32 %v4481, 16
      %v5310 = vrot.slane %v5308, 5
      %v5311 = vor.u32 %v5307, %v5310
      %v5312 = vrot.slane %v5311, 4
      %v5314 = vshll.u32 %v4482, 16
      %v5316 = vrot.slane %v5314, 5
      %v5317 = vsel %vm310, %v5312, %v5316
      %v5318 = vshrl.u32 %v4482, 16
      %v5320 = vrot.slane %v5318, 4
      %v5321 = vor.u32 %v5320, %v5316
      %v5322 = vrot.slane %v5321, 4
      %v5324 = vshll.u32 %v4483, 16
      %v5326 = vrot.slane %v5324, 5
      %v5327 = vsel %vm310, %v5322, %v5326
      %v5328 = vshrl.u32 %v4483, 16
      %v5330 = vrot.slane %v5328, 4
      %v5331 = vor.u32 %v5330, %v5326
      %v5332 = vrot.slane %v5331, 4
      %v5334 = vshll.u32 %v4484, 16
      %v5336 = vrot.slane %v5334, 5
      %v5337 = vsel %vm310, %v5332, %v5336
      %v5338 = vshrl.u32 %v4484, 16
      %v5340 = vrot.slane %v5338, 4
      %v5341 = vor.u32 %v5340, %v5336
      %v5342 = vrot.slane %v5341, 4
      %v5344 = vshll.u32 %v4485, 16
      %v5346 = vrot.slane %v5344, 5
      %v5347 = vsel %vm310, %v5342, %v5346
      %v5349 = vshrl.u32 %v4486, 16
      %v5351 = vrot.slane %v5349, 4
      %v5352 = vshll.u32 %v4486, 16
      %v5354 = vrot.slane %v5352, 5
      %v5355 = vor.u32 %v5351, %v5354
      %v5356 = vrot.slane %v5355, 4
      %v5358 = vshll.u32 %v4487, 16
      %v5360 = vrot.slane %v5358, 5
      %v5361 = vsel %vm310, %v5356, %v5360
      %v5362 = vshrl.u32 %v4487, 16
      %v5364 = vrot.slane %v5362, 4
      %v5365 = vor.u32 %v5364, %v5360
      %v5366 = vrot.slane %v5365, 4
      %v5368 = vshll.u32 %v4488, 16
      %v5370 = vrot.slane %v5368, 5
      %v5371 = vsel %vm310, %v5366, %v5370
      %v5372 = vshrl.u32 %v4488, 16
      %v5374 = vrot.slane %v5372, 4
      %v5375 = vor.u32 %v5374, %v5370
      %v5376 = vrot.slane %v5375, 4
      %v5378 = vshll.u32 %v4489, 16
      %v5380 = vrot.slane %v5378, 5
      %v5381 = vsel %vm310, %v5376, %v5380
      %v5382 = vshrl.u32 %v4489, 16
      %v5384 = vrot.slane %v5382, 4
      %v5385 = vor.u32 %v5384, %v5380
      %v5386 = vrot.slane %v5385, 4
      %v5388 = vshll.u32 %v4490, 16
      %v5390 = vrot.slane %v5388, 5
      %v5391 = vsel %vm310, %v5386, %v5390
      %v5393 = vshrl.u32 %v4491, 16
      %v5395 = vrot.slane %v5393, 4
      %v5396 = vshll.u32 %v4491, 16
      %v5398 = vrot.slane %v5396, 5
      %v5399 = vor.u32 %v5395, %v5398
      %v5400 = vrot.slane %v5399, 4
      %v5402 = vshll.u32 %v4492, 16
      %v5404 = vrot.slane %v5402, 5
      %v5405 = vsel %vm310, %v5400, %v5404
      %v5406 = vshrl.u32 %v4492, 16
      %v5408 = vrot.slane %v5406, 4
      %v5409 = vor.u32 %v5408, %v5404
      %v5410 = vrot.slane %v5409, 4
      %v5412 = vshll.u32 %v4493, 16
      %v5414 = vrot.slane %v5412, 5
      %v5415 = vsel %vm310, %v5410, %v5414
      %v5416 = vshrl.u32 %v4493, 16
      %v5418 = vrot.slane %v5416, 4
      %v5419 = vor.u32 %v5418, %v5414
      %v5420 = vrot.slane %v5419, 4
      %v5422 = vshll.u32 %v4494, 16
      %v5424 = vrot.slane %v5422, 5
      %v5425 = vsel %vm310, %v5420, %v5424
      %v5426 = vshrl.u32 %v4494, 16
      %v5428 = vrot.slane %v5426, 4
      %v5429 = vor.u32 %v5428, %v5424
      %v5430 = vrot.slane %v5429, 4
      %v5432 = vshll.u32 %v4495, 16
      %v5434 = vrot.slane %v5432, 5
      %v5435 = vsel %vm310, %v5430, %v5434
      %v5437 = vshrl.u32 %v4496, 16
      %v5439 = vrot.slane %v5437, 4
      %v5440 = vshll.u32 %v4496, 16
      %v5442 = vrot.slane %v5440, 5
      %v5443 = vor.u32 %v5439, %v5442
      %v5444 = vrot.slane %v5443, 4
      %v5446 = vshll.u32 %v4497, 16
      %v5448 = vrot.slane %v5446, 5
      %v5449 = vsel %vm310, %v5444, %v5448
      %v5450 = vshrl.u32 %v4497, 16
      %v5452 = vrot.slane %v5450, 4
      %v5453 = vor.u32 %v5452, %v5448
      %v5454 = vrot.slane %v5453, 4
      %v5456 = vshll.u32 %v4498, 16
      %v5458 = vrot.slane %v5456, 5
      %v5459 = vsel %vm310, %v5454, %v5458
      %v5460 = vshrl.u32 %v4498, 16
      %v5462 = vrot.slane %v5460, 4
      %v5463 = vor.u32 %v5462, %v5458
      %v5464 = vrot.slane %v5463, 4
      %v5466 = vshll.u32 %v4499, 16
      %v5468 = vrot.slane %v5466, 5
      %v5469 = vsel %vm310, %v5464, %v5468
      %v5470 = vshrl.u32 %v4499, 16
      %v5472 = vrot.slane %v5470, 4
      %v5473 = vor.u32 %v5472, %v5468
      %v5474 = vrot.slane %v5473, 4
      %v5476 = vshll.u32 %v4500, 16
      %v5478 = vrot.slane %v5476, 5
      %v5479 = vsel %vm310, %v5474, %v5478
      %v5481 = vshrl.u32 %v4501, 16
      %v5483 = vrot.slane %v5481, 4
      %v5484 = vshll.u32 %v4501, 16
      %v5486 = vrot.slane %v5484, 5
      %v5487 = vor.u32 %v5483, %v5486
      %v5488 = vrot.slane %v5487, 4
      %v5490 = vshll.u32 %v4502, 16
      %v5492 = vrot.slane %v5490, 5
      %v5493 = vsel %vm310, %v5488, %v5492
      %v5494 = vshrl.u32 %v4502, 16
      %v5496 = vrot.slane %v5494, 4
      %v5497 = vor.u32 %v5496, %v5492
      %v5498 = vrot.slane %v5497, 4
      %v5500 = vshll.u32 %v4503, 16
      %v5502 = vrot.slane %v5500, 5
      %v5503 = vsel %vm310, %v5498, %v5502
      %v5504 = vshrl.u32 %v4503, 16
      %v5506 = vrot.slane %v5504, 4
      %v5507 = vor.u32 %v5506, %v5502
      %v5508 = vrot.slane %v5507, 4
      %v5510 = vshll.u32 %v4504, 16
      %v5512 = vrot.slane %v5510, 5
      %v5513 = vsel %vm310, %v5508, %v5512
      %v5514 = vshrl.u32 %v4504, 16
      %v5516 = vrot.slane %v5514, 4
      %v5517 = vor.u32 %v5516, %v5512
      %v5518 = vrot.slane %v5517, 4
      %v5520 = vshll.u32 %v4505, 16
      %v5522 = vrot.slane %v5520, 5
      %v5523 = vsel %vm310, %v5518, %v5522
      %v5525 = vshrl.u32 %v4506, 16
      %v5527 = vrot.slane %v5525, 4
      %v5528 = vshll.u32 %v4506, 16
      %v5530 = vrot.slane %v5528, 5
      %v5531 = vor.u32 %v5527, %v5530
      %v5532 = vrot.slane %v5531, 4
      %v5534 = vshll.u32 %v4507, 16
      %v5536 = vrot.slane %v5534, 5
      %v5537 = vsel %vm310, %v5532, %v5536
      %v5538 = vshrl.u32 %v4507, 16
      %v5540 = vrot.slane %v5538, 4
      %v5541 = vor.u32 %v5540, %v5536
      %v5542 = vrot.slane %v5541, 4
      %v5544 = vshll.u32 %v4508, 16
      %v5546 = vrot.slane %v5544, 5
      %v5547 = vsel %vm310, %v5542, %v5546
      %v5548 = vshrl.u32 %v4508, 16
      %v5550 = vrot.slane %v5548, 4
      %v5551 = vor.u32 %v5550, %v5546
      %v5552 = vrot.slane %v5551, 4
      %v5554 = vshll.u32 %v4509, 16
      %v5556 = vrot.slane %v5554, 5
      %v5557 = vsel %vm310, %v5552, %v5556
      %v5558 = vshrl.u32 %v4509, 16
      %v5560 = vrot.slane %v5558, 4
      %v5561 = vor.u32 %v5560, %v5556
      %v5562 = vrot.slane %v5561, 4
      %v5564 = vshll.u32 %v4510, 16
      %v5566 = vrot.slane %v5564, 5
      %v5567 = vsel %vm310, %v5562, %v5566
      %v5569 = vshrl.u32 %v4511, 16
      %v5571 = vrot.slane %v5569, 4
      %v5572 = vshll.u32 %v4511, 16
      %v5574 = vrot.slane %v5572, 5
      %v5575 = vor.u32 %v5571, %v5574
      %v5576 = vrot.slane %v5575, 4
      %v5578 = vshll.u32 %v4512, 16
      %v5580 = vrot.slane %v5578, 5
      %v5581 = vsel %vm310, %v5576, %v5580
      %v5582 = vshrl.u32 %v4512, 16
      %v5584 = vrot.slane %v5582, 4
      %v5585 = vor.u32 %v5584, %v5580
      %v5586 = vrot.slane %v5585, 4
      %v5588 = vshll.u32 %v4513, 16
      %v5590 = vrot.slane %v5588, 5
      %v5591 = vsel %vm310, %v5586, %v5590
      %v5592 = vshrl.u32 %v4513, 16
      %v5594 = vrot.slane %v5592, 4
      %v5595 = vor.u32 %v5594, %v5590
      %v5596 = vrot.slane %v5595, 4
      %v5598 = vshll.u32 %v4514, 16
      %v5600 = vrot.slane %v5598, 5
      %v5601 = vsel %vm310, %v5596, %v5600
      %v5602 = vshrl.u32 %v4514, 16
      %v5604 = vrot.slane %v5602, 4
      %v5605 = vor.u32 %v5604, %v5600
      %v5606 = vrot.slane %v5605, 4
      %v5608 = vshll.u32 %v4515, 16
      %v5610 = vrot.slane %v5608, 5
      %v5611 = vsel %vm310, %v5606, %v5610
      %v5613 = vshrl.u32 %v4516, 16
      %v5615 = vrot.slane %v5613, 4
      %v5616 = vshll.u32 %v4516, 16
      %v5618 = vrot.slane %v5616, 5
      %v5619 = vor.u32 %v5615, %v5618
      %v5620 = vrot.slane %v5619, 4
      %v5622 = vshll.u32 %v4517, 16
      %v5624 = vrot.slane %v5622, 5
      %v5625 = vsel %vm310, %v5620, %v5624
      %v5626 = vshrl.u32 %v4517, 16
      %v5628 = vrot.slane %v5626, 4
      %v5629 = vor.u32 %v5628, %v5624
      %v5630 = vrot.slane %v5629, 4
      %v5632 = vshll.u32 %v4518, 16
      %v5634 = vrot.slane %v5632, 5
      %v5635 = vsel %vm310, %v5630, %v5634
      %v5636 = vshrl.u32 %v4518, 16
      %v5638 = vrot.slane %v5636, 4
      %v5639 = vor.u32 %v5638, %v5634
      %v5640 = vrot.slane %v5639, 4
      %v5642 = vshll.u32 %v4519, 16
      %v5644 = vrot.slane %v5642, 5
      %v5645 = vsel %vm310, %v5640, %v5644
      %v5646 = vshrl.u32 %v4519, 16
      %v5648 = vrot.slane %v5646, 4
      %v5649 = vor.u32 %v5648, %v5644
      %v5650 = vrot.slane %v5649, 4
      %v5652 = vshll.u32 %v4520, 16
      %v5654 = vrot.slane %v5652, 5
      %v5655 = vsel %vm310, %v5650, %v5654
      %v5657 = vshrl.u32 %v4521, 16
      %v5659 = vrot.slane %v5657, 4
      %v5660 = vshll.u32 %v4521, 16
      %v5662 = vrot.slane %v5660, 5
      %v5663 = vor.u32 %v5659, %v5662
      %v5664 = vrot.slane %v5663, 4
      %v5666 = vshll.u32 %v4522, 16
      %v5668 = vrot.slane %v5666, 5
      %v5669 = vsel %vm310, %v5664, %v5668
      %v5670 = vshrl.u32 %v4522, 16
      %v5672 = vrot.slane %v5670, 4
      %v5673 = vor.u32 %v5672, %v5668
      %v5674 = vrot.slane %v5673, 4
      %v5676 = vshll.u32 %v4523, 16
      %v5678 = vrot.slane %v5676, 5
      %v5679 = vsel %vm310, %v5674, %v5678
      %v5680 = vshrl.u32 %v4523, 16
      %v5682 = vrot.slane %v5680, 4
      %v5683 = vor.u32 %v5682, %v5678
      %v5684 = vrot.slane %v5683, 4
      %v5686 = vshll.u32 %v4524, 16
      %v5688 = vrot.slane %v5686, 5
      %v5689 = vsel %vm310, %v5684, %v5688
      %v5690 = vshrl.u32 %v4524, 16
      %v5692 = vrot.slane %v5690, 4
      %v5693 = vor.u32 %v5692, %v5688
      %v5694 = vrot.slane %v5693, 4
      %v5696 = vshll.u32 %v4525, 16
      %v5698 = vrot.slane %v5696, 5
      %v5699 = vsel %vm310, %v5694, %v5698
      %v5701 = vshrl.u32 %v4526, 16
      %v5703 = vrot.slane %v5701, 4
      %v5704 = vshll.u32 %v4526, 16
      %v5706 = vrot.slane %v5704, 5
      %v5707 = vor.u32 %v5703, %v5706
      %v5708 = vrot.slane %v5707, 4
      %v5710 = vshll.u32 %v4527, 16
      %v5712 = vrot.slane %v5710, 5
      %v5713 = vsel %vm310, %v5708, %v5712
      %v5714 = vshrl.u32 %v4527, 16
      %v5716 = vrot.slane %v5714, 4
      %v5717 = vor.u32 %v5716, %v5712
      %v5718 = vrot.slane %v5717, 4
      %v5720 = vshll.u32 %v4528, 16
      %v5722 = vrot.slane %v5720, 5
      %v5723 = vsel %vm310, %v5718, %v5722
      %v5724 = vshrl.u32 %v4528, 16
      %v5726 = vrot.slane %v5724, 4
      %v5727 = vor.u32 %v5726, %v5722
      %v5728 = vrot.slane %v5727, 4
      %v5730 = vshll.u32 %v4529, 16
      %v5732 = vrot.slane %v5730, 5
      %v5733 = vsel %vm310, %v5728, %v5732
      %v5734 = vshrl.u32 %v4529, 16
      %v5736 = vrot.slane %v5734, 4
      %v5737 = vor.u32 %v5736, %v5732
      %v5738 = vrot.slane %v5737, 4
      %v5740 = vshll.u32 %v4530, 16
      %v5742 = vrot.slane %v5740, 5
      %v5743 = vsel %vm310, %v5738, %v5742
      %v5745 = vshrl.u32 %v4531, 16
      %v5747 = vrot.slane %v5745, 4
      %v5748 = vshll.u32 %v4531, 16
      %v5750 = vrot.slane %v5748, 5
      %v5751 = vor.u32 %v5747, %v5750
      %v5752 = vrot.slane %v5751, 4
      %v5754 = vshll.u32 %v4532, 16
      %v5756 = vrot.slane %v5754, 5
      %v5757 = vsel %vm310, %v5752, %v5756
      %v5758 = vshrl.u32 %v4532, 16
      %v5760 = vrot.slane %v5758, 4
      %v5761 = vor.u32 %v5760, %v5756
      %v5762 = vrot.slane %v5761, 4
      %v5764 = vshll.u32 %v4533, 16
      %v5766 = vrot.slane %v5764, 5
      %v5767 = vsel %vm310, %v5762, %v5766
      %v5768 = vshrl.u32 %v4533, 16
      %v5770 = vrot.slane %v5768, 4
      %v5771 = vor.u32 %v5770, %v5766
      %v5772 = vrot.slane %v5771, 4
      %v5774 = vshll.u32 %v4534, 16
      %v5776 = vrot.slane %v5774, 5
      %v5777 = vsel %vm310, %v5772, %v5776
      %v5778 = vshrl.u32 %v4534, 16
      %v5780 = vrot.slane %v5778, 4
      %v5781 = vor.u32 %v5780, %v5776
      %v5782 = vrot.slane %v5781, 4
      %v5784 = vshll.u32 %v4535, 16
      %v5786 = vrot.slane %v5784, 5
      %v5787 = vsel %vm310, %v5782, %v5786
      %v5789 = vshrl.u32 %v4536, 16
      %v5791 = vrot.slane %v5789, 4
      %v5792 = vshll.u32 %v4536, 16
      %v5794 = vrot.slane %v5792, 5
      %v5795 = vor.u32 %v5791, %v5794
      %v5796 = vrot.slane %v5795, 4
      %v5798 = vshll.u32 %v4537, 16
      %v5800 = vrot.slane %v5798, 5
      %v5801 = vsel %vm310, %v5796, %v5800
      %v5802 = vshrl.u32 %v4537, 16
      %v5804 = vrot.slane %v5802, 4
      %v5805 = vor.u32 %v5804, %v5800
      %v5806 = vrot.slane %v5805, 4
      %v5808 = vshll.u32 %v4538, 16
      %v5810 = vrot.slane %v5808, 5
      %v5811 = vsel %vm310, %v5806, %v5810
      %v5812 = vshrl.u32 %v4538, 16
      %v5814 = vrot.slane %v5812, 4
      %v5815 = vor.u32 %v5814, %v5810
      %v5816 = vrot.slane %v5815, 4
      %v5818 = vshll.u32 %v4539, 16
      %v5820 = vrot.slane %v5818, 5
      %v5821 = vsel %vm310, %v5816, %v5820
      %v5822 = vshrl.u32 %v4539, 16
      %v5824 = vrot.slane %v5822, 4
      %v5825 = vor.u32 %v5824, %v5820
      %v5826 = vrot.slane %v5825, 4
      %v5828 = vshll.u32 %v4540, 16
      %v5830 = vrot.slane %v5828, 5
      %v5831 = vsel %vm310, %v5826, %v5830
      %v5833 = vshrl.u32 %v4541, 16
      %v5835 = vrot.slane %v5833, 4
      %v5836 = vshll.u32 %v4541, 16
      %v5838 = vrot.slane %v5836, 5
      %v5839 = vor.u32 %v5835, %v5838
      %v5840 = vrot.slane %v5839, 4
      %v5842 = vshll.u32 %v4542, 16
      %v5844 = vrot.slane %v5842, 5
      %v5845 = vsel %vm310, %v5840, %v5844
      %v5846 = vshrl.u32 %v4542, 16
      %v5848 = vrot.slane %v5846, 4
      %v5849 = vor.u32 %v5848, %v5844
      %v5850 = vrot.slane %v5849, 4
      %v5852 = vshll.u32 %v4543, 16
      %v5854 = vrot.slane %v5852, 5
      %v5855 = vsel %vm310, %v5850, %v5854
      %v5856 = vshrl.u32 %v4543, 16
      %v5858 = vrot.slane %v5856, 4
      %v5859 = vor.u32 %v5858, %v5854
      %v5860 = vrot.slane %v5859, 4
      %v5862 = vshll.u32 %v4544, 16
      %v5864 = vrot.slane %v5862, 5
      %v5865 = vsel %vm310, %v5860, %v5864
      %v5866 = vshrl.u32 %v4544, 16
      %v5868 = vrot.slane %v5866, 4
      %v5869 = vor.u32 %v5868, %v5864
      %v5870 = vrot.slane %v5869, 4
      %v5872 = vshll.u32 %v4545, 16
      %v5874 = vrot.slane %v5872, 5
      %v5875 = vsel %vm310, %v5870, %v5874
      %v5877 = vshrl.u32 %v4546, 16
      %v5879 = vrot.slane %v5877, 4
      %v5880 = vshll.u32 %v4546, 16
      %v5882 = vrot.slane %v5880, 5
      %v5883 = vor.u32 %v5879, %v5882
      %v5884 = vrot.slane %v5883, 4
      %v5886 = vshll.u32 %v4547, 16
      %v5888 = vrot.slane %v5886, 5
      %v5889 = vsel %vm310, %v5884, %v5888
      %v5890 = vshrl.u32 %v4547, 16
      %v5892 = vrot.slane %v5890, 4
      %v5893 = vor.u32 %v5892, %v5888
      %v5894 = vrot.slane %v5893, 4
      %v5896 = vshll.u32 %v4548, 16
      %v5898 = vrot.slane %v5896, 5
      %v5899 = vsel %vm310, %v5894, %v5898
      %v5900 = vshrl.u32 %v4548, 16
      %v5902 = vrot.slane %v5900, 4
      %v5903 = vor.u32 %v5902, %v5898
      %v5904 = vrot.slane %v5903, 4
      %v5906 = vshll.u32 %v4549, 16
      %v5908 = vrot.slane %v5906, 5
      %v5909 = vsel %vm310, %v5904, %v5908
      %v5910 = vshrl.u32 %v4549, 16
      %v5912 = vrot.slane %v5910, 4
      %v5913 = vor.u32 %v5912, %v5908
      %v5914 = vrot.slane %v5913, 4
      %v5916 = vshll.u32 %v4550, 16
      %v5918 = vrot.slane %v5916, 5
      %v5919 = vsel %vm310, %v5914, %v5918
      %v5921 = vshrl.u32 %v4551, 16
      %v5923 = vrot.slane %v5921, 4
      %v5924 = vshll.u32 %v4551, 16
      %v5926 = vrot.slane %v5924, 5
      %v5927 = vor.u32 %v5923, %v5926
      %v5928 = vrot.slane %v5927, 4
      %v5930 = vshll.u32 %v4552, 16
      %v5932 = vrot.slane %v5930, 5
      %v5933 = vsel %vm310, %v5928, %v5932
      %v5934 = vshrl.u32 %v4552, 16
      %v5936 = vrot.slane %v5934, 4
      %v5937 = vor.u32 %v5936, %v5932
      %v5938 = vrot.slane %v5937, 4
      %v5940 = vshll.u32 %v4553, 16
      %v5942 = vrot.slane %v5940, 5
      %v5943 = vsel %vm310, %v5938, %v5942
      %v5944 = vshrl.u32 %v4553, 16
      %v5946 = vrot.slane %v5944, 4
      %v5947 = vor.u32 %v5946, %v5942
      %v5948 = vrot.slane %v5947, 4
      %v5950 = vshll.u32 %v4554, 16
      %v5952 = vrot.slane %v5950, 5
      %v5953 = vsel %vm310, %v5948, %v5952
      %v5954 = vshrl.u32 %v4554, 16
      %v5956 = vrot.slane %v5954, 4
      %v5957 = vor.u32 %v5956, %v5952
      %v5958 = vrot.slane %v5957, 4
      %v5960 = vshll.u32 %v4555, 16
      %v5962 = vrot.slane %v5960, 5
      %v5963 = vsel %vm310, %v5958, %v5962
      %s5964 = scalar_lea.vmem %s1, 24
      %v5965 = vld [vmem:[%s5964] sm:$0xf]
      %v5966 = vld [vmem:[%s5964 + $0x4] sm:$0xf]
      %v5967 = vunpack.c.l.b16 %v4569
      %v5968 = vunpack.c.l.b16 %v4579
      %v5969 = vunpack.c.l.b16 %v4589
      %v5970 = vunpack.c.l.b16 %v4599
      %v5971 = vunpack.c.l.b16 %v4613
      %v5972 = vunpack.c.l.b16 %v4623
      %v5973 = vunpack.c.l.b16 %v4633
      %v5974 = vunpack.c.l.b16 %v4643
      %v5975 = vunpack.c.l.b16 %v4657
      %v5976 = vunpack.c.l.b16 %v4667
      %v5977 = vunpack.c.l.b16 %v4677
      %v5978 = vunpack.c.l.b16 %v4687
      %v5979 = vunpack.c.l.b16 %v4701
      %v5980 = vunpack.c.l.b16 %v4711
      %v5981 = vunpack.c.l.b16 %v4721
      %v5982 = vunpack.c.l.b16 %v4731
      %v5983 = vunpack.c.l.b16 %v4745
      %v5984 = vunpack.c.l.b16 %v4755
      %v5985 = vunpack.c.l.b16 %v4765
      %v5986 = vunpack.c.l.b16 %v4775
      %v5987 = vunpack.c.l.b16 %v4789
      %v5988 = vunpack.c.l.b16 %v4799
      %v5989 = vunpack.c.l.b16 %v4809
      %v5990 = vunpack.c.l.b16 %v4819
      %v5991 = vunpack.c.l.b16 %v4833
      %v5992 = vunpack.c.l.b16 %v4843
      %v5993 = vunpack.c.l.b16 %v4853
      %v5994 = vunpack.c.l.b16 %v4863
      %v5995 = vunpack.c.l.b16 %v4877
      %v5996 = vunpack.c.l.b16 %v4887
      %v5997 = vunpack.c.l.b16 %v4897
      %v5998 = vunpack.c.l.b16 %v4907
      %v5999 = vunpack.c.l.b16 %v4921
      %v6000 = vunpack.c.l.b16 %v4931
      %v6001 = vunpack.c.l.b16 %v4941
      %v6002 = vunpack.c.l.b16 %v4951
      %v6003 = vunpack.c.l.b16 %v4965
      %v6004 = vunpack.c.l.b16 %v4975
      %v6005 = vunpack.c.l.b16 %v4985
      %v6006 = vunpack.c.l.b16 %v4995
      %v6007 = vunpack.c.l.b16 %v5009
      %v6008 = vunpack.c.l.b16 %v5019
      %v6009 = vunpack.c.l.b16 %v5029
      %v6010 = vunpack.c.l.b16 %v5039
      %v6011 = vunpack.c.l.b16 %v5053
      %v6012 = vunpack.c.l.b16 %v5063
      %v6013 = vunpack.c.l.b16 %v5073
      %v6014 = vunpack.c.l.b16 %v5083
      %v6015 = vunpack.c.l.b16 %v5097
      %v6016 = vunpack.c.l.b16 %v5107
      %v6017 = vunpack.c.l.b16 %v5117
      %v6018 = vunpack.c.l.b16 %v5127
      %v6019 = vunpack.c.l.b16 %v5141
      %v6020 = vunpack.c.l.b16 %v5151
      %v6021 = vunpack.c.l.b16 %v5161
      %v6022 = vunpack.c.l.b16 %v5171
      %v6023 = vunpack.c.l.b16 %v5185
      %v6024 = vunpack.c.l.b16 %v5195
      %v6025 = vunpack.c.l.b16 %v5205
      %v6026 = vunpack.c.l.b16 %v5215
      %v6027 = vunpack.c.l.b16 %v5229
      %v6028 = vunpack.c.l.b16 %v5239
      %v6029 = vunpack.c.l.b16 %v5249
      %v6030 = vunpack.c.l.b16 %v5259
      %v6031 = vunpack.c.l.b16 %v5273
      %v6032 = vunpack.c.l.b16 %v5283
      %v6033 = vunpack.c.l.b16 %v5293
      %v6034 = vunpack.c.l.b16 %v5303
      %v6035 = vunpack.c.l.b16 %v5317
      %v6036 = vunpack.c.l.b16 %v5327
      %v6037 = vunpack.c.l.b16 %v5337
      %v6038 = vunpack.c.l.b16 %v5347
      %v6039 = vunpack.c.l.b16 %v5361
      %v6040 = vunpack.c.l.b16 %v5371
      %v6041 = vunpack.c.l.b16 %v5381
      %v6042 = vunpack.c.l.b16 %v5391
      %v6043 = vunpack.c.l.b16 %v5405
      %v6044 = vunpack.c.l.b16 %v5415
      %v6045 = vunpack.c.l.b16 %v5425
      %v6046 = vunpack.c.l.b16 %v5435
      %v6047 = vunpack.c.l.b16 %v5449
      %v6048 = vunpack.c.l.b16 %v5459
      %v6049 = vunpack.c.l.b16 %v5469
      %v6050 = vunpack.c.l.b16 %v5479
      %v6051 = vunpack.c.l.b16 %v5493
      %v6052 = vunpack.c.l.b16 %v5503
      %v6053 = vunpack.c.l.b16 %v5513
      %v6054 = vunpack.c.l.b16 %v5523
      %v6055 = vunpack.c.l.b16 %v5537
      %v6056 = vunpack.c.l.b16 %v5547
      %v6057 = vunpack.c.l.b16 %v5557
      %v6058 = vunpack.c.l.b16 %v5567
      %v6059 = vunpack.c.l.b16 %v5581
      %v6060 = vunpack.c.l.b16 %v5591
      %v6061 = vunpack.c.l.b16 %v5601
      %v6062 = vunpack.c.l.b16 %v5611
      %v6063 = vunpack.c.l.b16 %v5625
      %v6064 = vunpack.c.l.b16 %v5635
      %v6065 = vunpack.c.l.b16 %v5645
      %v6066 = vunpack.c.l.b16 %v5655
      %v6067 = vunpack.c.l.b16 %v5669
      %v6068 = vunpack.c.l.b16 %v5679
      %v6069 = vunpack.c.l.b16 %v5689
      %v6070 = vunpack.c.l.b16 %v5699
      %v6071 = vunpack.c.l.b16 %v5713
      %v6072 = vunpack.c.l.b16 %v5723
      %v6073 = vunpack.c.l.b16 %v5733
      %v6074 = vunpack.c.l.b16 %v5743
      %v6075 = vunpack.c.l.b16 %v5757
      %v6076 = vunpack.c.l.b16 %v5767
      %v6077 = vunpack.c.l.b16 %v5777
      %v6078 = vunpack.c.l.b16 %v5787
      %v6079 = vunpack.c.l.b16 %v5801
      %v6080 = vunpack.c.l.b16 %v5811
      %v6081 = vunpack.c.l.b16 %v5821
      %v6082 = vunpack.c.l.b16 %v5831
      %v6083 = vunpack.c.l.b16 %v5845
      %v6084 = vunpack.c.l.b16 %v5855
      %v6085 = vunpack.c.l.b16 %v5865
      %v6086 = vunpack.c.l.b16 %v5875
      %v6087 = vunpack.c.l.b16 %v5889
      %v6088 = vunpack.c.l.b16 %v5899
      %v6089 = vunpack.c.l.b16 %v5909
      %v6090 = vunpack.c.l.b16 %v5919
      %v6091 = vunpack.c.l.b16 %v5933
      %v6092 = vunpack.c.l.b16 %v5943
      %v6093 = vunpack.c.l.b16 %v5953
      %v6094 = vunpack.c.l.b16 %v5963
      %v6095 = vpack.c.b16 %v5968, %v5967
      %v6096 = vpack.c.b16 %v5970, %v5969
      %v6097 = vpack.c.b16 %v5972, %v5971
      %v6098 = vpack.c.b16 %v5974, %v5973
      %v6099 = vpack.c.b16 %v5976, %v5975
      %v6100 = vpack.c.b16 %v5978, %v5977
      %v6101 = vpack.c.b16 %v5980, %v5979
      %v6102 = vpack.c.b16 %v5982, %v5981
      %v6103 = vpack.c.b16 %v5984, %v5983
      %v6104 = vpack.c.b16 %v5986, %v5985
      %v6105 = vpack.c.b16 %v5988, %v5987
      %v6106 = vpack.c.b16 %v5990, %v5989
      %v6107 = vpack.c.b16 %v5992, %v5991
      %v6108 = vpack.c.b16 %v5994, %v5993
      %v6109 = vpack.c.b16 %v5996, %v5995
      %v6110 = vpack.c.b16 %v5998, %v5997
      %v6111 = vpack.c.b16 %v6000, %v5999
      %v6112 = vpack.c.b16 %v6002, %v6001
      %v6113 = vpack.c.b16 %v6004, %v6003
      %v6114 = vpack.c.b16 %v6006, %v6005
      %v6115 = vpack.c.b16 %v6008, %v6007
      %v6116 = vpack.c.b16 %v6010, %v6009
      %v6117 = vpack.c.b16 %v6012, %v6011
      %v6118 = vpack.c.b16 %v6014, %v6013
      %v6119 = vpack.c.b16 %v6016, %v6015
      %v6120 = vpack.c.b16 %v6018, %v6017
      %v6121 = vpack.c.b16 %v6020, %v6019
      %v6122 = vpack.c.b16 %v6022, %v6021
      %v6123 = vpack.c.b16 %v6024, %v6023
      %v6124 = vpack.c.b16 %v6026, %v6025
      %v6125 = vpack.c.b16 %v6028, %v6027
      %v6126 = vpack.c.b16 %v6030, %v6029
      %v6127 = vpack.c.b16 %v6032, %v6031
      %v6128 = vpack.c.b16 %v6034, %v6033
      %v6129 = vpack.c.b16 %v6036, %v6035
      %v6130 = vpack.c.b16 %v6038, %v6037
      %v6131 = vpack.c.b16 %v6040, %v6039
      %v6132 = vpack.c.b16 %v6042, %v6041
      %v6133 = vpack.c.b16 %v6044, %v6043
      %v6134 = vpack.c.b16 %v6046, %v6045
      %v6135 = vpack.c.b16 %v6048, %v6047
      %v6136 = vpack.c.b16 %v6050, %v6049
      %v6137 = vpack.c.b16 %v6052, %v6051
      %v6138 = vpack.c.b16 %v6054, %v6053
      %v6139 = vpack.c.b16 %v6056, %v6055
      %v6140 = vpack.c.b16 %v6058, %v6057
      %v6141 = vpack.c.b16 %v6060, %v6059
      %v6142 = vpack.c.b16 %v6062, %v6061
      %v6143 = vpack.c.b16 %v6064, %v6063
      %v6144 = vpack.c.b16 %v6066, %v6065
      %v6145 = vpack.c.b16 %v6068, %v6067
      %v6146 = vpack.c.b16 %v6070, %v6069
      %v6147 = vpack.c.b16 %v6072, %v6071
      %v6148 = vpack.c.b16 %v6074, %v6073
      %v6149 = vpack.c.b16 %v6076, %v6075
      %v6150 = vpack.c.b16 %v6078, %v6077
      %v6151 = vpack.c.b16 %v6080, %v6079
      %v6152 = vpack.c.b16 %v6082, %v6081
      %v6153 = vpack.c.b16 %v6084, %v6083
      %v6154 = vpack.c.b16 %v6086, %v6085
      %v6155 = vpack.c.b16 %v6088, %v6087
      %v6156 = vpack.c.b16 %v6090, %v6089
      %v6157 = vpack.c.b16 %v6092, %v6091
      %v6158 = vpack.c.b16 %v6094, %v6093
      %v6161 = vunpack.c.l.b16 %v5965
      %v6162 = vunpack.c.l.b16 %v5966
      %v6163 = vpack.c.b16 %v6162, %v6161
      %v6166 = vsel %vm1920, %v6095, 0
      %v6169 = vsel %vm1920, %v6096, 0
      %v6172 = vsel %vm1920, %v6097, 0
      %v6175 = vsel %vm1920, %v6098, 0
      %v6178 = vsel %vm1920, %v6099, 0
      %v6181 = vsel %vm1920, %v6100, 0
      %v6184 = vsel %vm1920, %v6101, 0
      %v6187 = vsel %vm1920, %v6102, 0
      %v6190 = vsel %vm1920, %v6103, 0
      %v6193 = vsel %vm1920, %v6104, 0
      %v6196 = vsel %vm1920, %v6105, 0
      %v6199 = vsel %vm1920, %v6106, 0
      %v6202 = vsel %vm1920, %v6107, 0
      %v6205 = vsel %vm1920, %v6108, 0
      %v6208 = vsel %vm1920, %v6109, 0
      %v6211 = vsel %vm1920, %v6110, 0
      %v6214 = vsel %vm1920, %v6111, 0
      %v6217 = vsel %vm1920, %v6112, 0
      %v6220 = vsel %vm1920, %v6113, 0
      %v6223 = vsel %vm1920, %v6114, 0
      %v6226 = vsel %vm1920, %v6115, 0
      %v6229 = vsel %vm1920, %v6116, 0
      %v6232 = vsel %vm1920, %v6117, 0
      %v6235 = vsel %vm1920, %v6118, 0
      %v6238 = vsel %vm1920, %v6119, 0
      %v6241 = vsel %vm1920, %v6120, 0
      %v6244 = vsel %vm1920, %v6121, 0
      %v6247 = vsel %vm1920, %v6122, 0
      %v6250 = vsel %vm1920, %v6123, 0
      %v6253 = vsel %vm1920, %v6124, 0
      %v6256 = vsel %vm1920, %v6125, 0
      %v6259 = vsel %vm1920, %v6126, 0
      %v6262 = vsel %vm1920, %v6127, 0
      %v6265 = vsel %vm1920, %v6128, 0
      %v6268 = vsel %vm1920, %v6129, 0
      %v6271 = vsel %vm1920, %v6130, 0
      %v6274 = vsel %vm1920, %v6131, 0
      %v6277 = vsel %vm1920, %v6132, 0
      %v6280 = vsel %vm1920, %v6133, 0
      %v6283 = vsel %vm1920, %v6134, 0
      %v6286 = vsel %vm1920, %v6135, 0
      %v6289 = vsel %vm1920, %v6136, 0
      %v6292 = vsel %vm1920, %v6137, 0
      %v6295 = vsel %vm1920, %v6138, 0
      %v6298 = vsel %vm1920, %v6139, 0
      %v6301 = vsel %vm1920, %v6140, 0
      %v6304 = vsel %vm1920, %v6141, 0
      %v6307 = vsel %vm1920, %v6142, 0
      %v6310 = vsel %vm1920, %v6143, 0
      %v6313 = vsel %vm1920, %v6144, 0
      %v6316 = vsel %vm1920, %v6145, 0
      %v6319 = vsel %vm1920, %v6146, 0
      %v6322 = vsel %vm1920, %v6147, 0
      %v6325 = vsel %vm1920, %v6148, 0
      %v6328 = vsel %vm1920, %v6149, 0
      %v6331 = vsel %vm1920, %v6150, 0
      %v6334 = vsel %vm1920, %v6151, 0
      %v6337 = vsel %vm1920, %v6152, 0
      %v6340 = vsel %vm1920, %v6153, 0
      %v6343 = vsel %vm1920, %v6154, 0
      %v6346 = vsel %vm1920, %v6155, 0
      %v6349 = vsel %vm1920, %v6156, 0
      %v6352 = vsel %vm1920, %v6157, 0
      %v6355 = vsel %vm1920, %v6158, 0
      %6357 = vmatpush.bf16.msra.mxu0 0
      %6358 = vmatpush.bf16.msra.mxu0 0
      %6359 = vmatpush.bf16.msra.mxu0 0
      %6360 = vmatpush.bf16.msra.mxu0 0
      %6361 = vmatpush.bf16.msra.mxu0 0
      %6362 = vmatpush.bf16.msra.mxu0 0
      %6363 = vmatpush.bf16.msra.mxu0 0
      %6364 = vmatpush.bf16.msra.mxu0 %v6163
      %6365 = vmatmul.bf16.gmra.mxu0 %v6166
      %v6366 = vpop.f32.mrf.mxu0
      %v6367 = vadd.f32 0.0, %v6366
      %v6368 = vpop.f32.mrf.mxu0
      %v6369 = vadd.f32 0.0, %v6368
      %6370 = vmatmul.bf16.gmra.mxu0 %v6169
      %v6371 = vpop.f32.mrf.mxu0
      %v6372 = vadd.f32 0.0, %v6371
      %v6373 = vpop.f32.mrf.mxu0
      %v6374 = vadd.f32 0.0, %v6373
      %6375 = vmatmul.bf16.gmra.mxu0 %v6172
      %v6376 = vpop.f32.mrf.mxu0
      %v6377 = vadd.f32 0.0, %v6376
      %v6378 = vpop.f32.mrf.mxu0
      %v6379 = vadd.f32 0.0, %v6378
      %6380 = vmatmul.bf16.gmra.mxu0 %v6175
      %v6381 = vpop.f32.mrf.mxu0
      %v6382 = vadd.f32 0.0, %v6381
      %v6383 = vpop.f32.mrf.mxu0
      %v6384 = vadd.f32 0.0, %v6383
      %6385 = vmatmul.bf16.gmra.mxu0 %v6178
      %v6386 = vpop.f32.mrf.mxu0
      %v6387 = vadd.f32 0.0, %v6386
      %v6388 = vpop.f32.mrf.mxu0
      %v6389 = vadd.f32 0.0, %v6388
      %6390 = vmatmul.bf16.gmra.mxu0 %v6181
      %v6391 = vpop.f32.mrf.mxu0
      %v6392 = vadd.f32 0.0, %v6391
      %v6393 = vpop.f32.mrf.mxu0
      %v6394 = vadd.f32 0.0, %v6393
      %6395 = vmatmul.bf16.gmra.mxu0 %v6184
      %v6396 = vpop.f32.mrf.mxu0
      %v6397 = vadd.f32 0.0, %v6396
      %v6398 = vpop.f32.mrf.mxu0
      %v6399 = vadd.f32 0.0, %v6398
      %6400 = vmatmul.bf16.gmra.mxu0 %v6187
      %v6401 = vpop.f32.mrf.mxu0
      %v6402 = vadd.f32 0.0, %v6401
      %v6403 = vpop.f32.mrf.mxu0
      %v6404 = vadd.f32 0.0, %v6403
      %6405 = vmatmul.bf16.gmra.mxu0 %v6190
      %v6406 = vpop.f32.mrf.mxu0
      %v6407 = vadd.f32 0.0, %v6406
      %v6408 = vpop.f32.mrf.mxu0
      %v6409 = vadd.f32 0.0, %v6408
      %6410 = vmatmul.bf16.gmra.mxu0 %v6193
      %v6411 = vpop.f32.mrf.mxu0
      %v6412 = vadd.f32 0.0, %v6411
      %v6413 = vpop.f32.mrf.mxu0
      %v6414 = vadd.f32 0.0, %v6413
      %6415 = vmatmul.bf16.gmra.mxu0 %v6196
      %v6416 = vpop.f32.mrf.mxu0
      %v6417 = vadd.f32 0.0, %v6416
      %v6418 = vpop.f32.mrf.mxu0
      %v6419 = vadd.f32 0.0, %v6418
      %6420 = vmatmul.bf16.gmra.mxu0 %v6199
      %v6421 = vpop.f32.mrf.mxu0
      %v6422 = vadd.f32 0.0, %v6421
      %v6423 = vpop.f32.mrf.mxu0
      %v6424 = vadd.f32 0.0, %v6423
      %6425 = vmatmul.bf16.gmra.mxu0 %v6202
      %v6426 = vpop.f32.mrf.mxu0
      %v6427 = vadd.f32 0.0, %v6426
      %v6428 = vpop.f32.mrf.mxu0
      %v6429 = vadd.f32 0.0, %v6428
      %6430 = vmatmul.bf16.gmra.mxu0 %v6205
      %v6431 = vpop.f32.mrf.mxu0
      %v6432 = vadd.f32 0.0, %v6431
      %v6433 = vpop.f32.mrf.mxu0
      %v6434 = vadd.f32 0.0, %v6433
      %6435 = vmatmul.bf16.gmra.mxu0 %v6208
      %v6436 = vpop.f32.mrf.mxu0
      %v6437 = vadd.f32 0.0, %v6436
      %v6438 = vpop.f32.mrf.mxu0
      %v6439 = vadd.f32 0.0, %v6438
      %6440 = vmatmul.bf16.gmra.mxu0 %v6211
      %v6441 = vpop.f32.mrf.mxu0
      %v6442 = vadd.f32 0.0, %v6441
      %v6443 = vpop.f32.mrf.mxu0
      %v6444 = vadd.f32 0.0, %v6443
      %6445 = vmatmul.bf16.gmra.mxu0 %v6214
      %v6446 = vpop.f32.mrf.mxu0
      %v6447 = vadd.f32 0.0, %v6446
      %v6448 = vpop.f32.mrf.mxu0
      %v6449 = vadd.f32 0.0, %v6448
      %6450 = vmatmul.bf16.gmra.mxu0 %v6217
      %v6451 = vpop.f32.mrf.mxu0
      %v6452 = vadd.f32 0.0, %v6451
      %v6453 = vpop.f32.mrf.mxu0
      %v6454 = vadd.f32 0.0, %v6453
      %6455 = vmatmul.bf16.gmra.mxu0 %v6220
      %v6456 = vpop.f32.mrf.mxu0
      %v6457 = vadd.f32 0.0, %v6456
      %v6458 = vpop.f32.mrf.mxu0
      %v6459 = vadd.f32 0.0, %v6458
      %6460 = vmatmul.bf16.gmra.mxu0 %v6223
      %v6461 = vpop.f32.mrf.mxu0
      %v6462 = vadd.f32 0.0, %v6461
      %v6463 = vpop.f32.mrf.mxu0
      %v6464 = vadd.f32 0.0, %v6463
      %6465 = vmatmul.bf16.gmra.mxu0 %v6226
      %v6466 = vpop.f32.mrf.mxu0
      %v6467 = vadd.f32 0.0, %v6466
      %v6468 = vpop.f32.mrf.mxu0
      %v6469 = vadd.f32 0.0, %v6468
      %6470 = vmatmul.bf16.gmra.mxu0 %v6229
      %v6471 = vpop.f32.mrf.mxu0
      %v6472 = vadd.f32 0.0, %v6471
      %v6473 = vpop.f32.mrf.mxu0
      %v6474 = vadd.f32 0.0, %v6473
      %6475 = vmatmul.bf16.gmra.mxu0 %v6232
      %v6476 = vpop.f32.mrf.mxu0
      %v6477 = vadd.f32 0.0, %v6476
      %v6478 = vpop.f32.mrf.mxu0
      %v6479 = vadd.f32 0.0, %v6478
      %6480 = vmatmul.bf16.gmra.mxu0 %v6235
      %v6481 = vpop.f32.mrf.mxu0
      %v6482 = vadd.f32 0.0, %v6481
      %v6483 = vpop.f32.mrf.mxu0
      %v6484 = vadd.f32 0.0, %v6483
      %6485 = vmatmul.bf16.gmra.mxu0 %v6238
      %v6486 = vpop.f32.mrf.mxu0
      %v6487 = vadd.f32 0.0, %v6486
      %v6488 = vpop.f32.mrf.mxu0
      %v6489 = vadd.f32 0.0, %v6488
      %6490 = vmatmul.bf16.gmra.mxu0 %v6241
      %v6491 = vpop.f32.mrf.mxu0
      %v6492 = vadd.f32 0.0, %v6491
      %v6493 = vpop.f32.mrf.mxu0
      %v6494 = vadd.f32 0.0, %v6493
      %6495 = vmatmul.bf16.gmra.mxu0 %v6244
      %v6496 = vpop.f32.mrf.mxu0
      %v6497 = vadd.f32 0.0, %v6496
      %v6498 = vpop.f32.mrf.mxu0
      %v6499 = vadd.f32 0.0, %v6498
      %6500 = vmatmul.bf16.gmra.mxu0 %v6247
      %v6501 = vpop.f32.mrf.mxu0
      %v6502 = vadd.f32 0.0, %v6501
      %v6503 = vpop.f32.mrf.mxu0
      %v6504 = vadd.f32 0.0, %v6503
      %6505 = vmatmul.bf16.gmra.mxu0 %v6250
      %v6506 = vpop.f32.mrf.mxu0
      %v6507 = vadd.f32 0.0, %v6506
      %v6508 = vpop.f32.mrf.mxu0
      %v6509 = vadd.f32 0.0, %v6508
      %6510 = vmatmul.bf16.gmra.mxu0 %v6253
      %v6511 = vpop.f32.mrf.mxu0
      %v6512 = vadd.f32 0.0, %v6511
      %v6513 = vpop.f32.mrf.mxu0
      %v6514 = vadd.f32 0.0, %v6513
      %6515 = vmatmul.bf16.gmra.mxu0 %v6256
      %v6516 = vpop.f32.mrf.mxu0
      %v6517 = vadd.f32 0.0, %v6516
      %v6518 = vpop.f32.mrf.mxu0
      %v6519 = vadd.f32 0.0, %v6518
      %6520 = vmatmul.bf16.gmra.mxu0 %v6259
      %v6521 = vpop.f32.mrf.mxu0
      %v6522 = vadd.f32 0.0, %v6521
      %v6523 = vpop.f32.mrf.mxu0
      %v6524 = vadd.f32 0.0, %v6523
      %6525 = vmatmul.bf16.gmra.mxu0 %v6262
      %v6526 = vpop.f32.mrf.mxu0
      %v6527 = vadd.f32 0.0, %v6526
      %v6528 = vpop.f32.mrf.mxu0
      %v6529 = vadd.f32 0.0, %v6528
      %6530 = vmatmul.bf16.gmra.mxu0 %v6265
      %v6531 = vpop.f32.mrf.mxu0
      %v6532 = vadd.f32 0.0, %v6531
      %v6533 = vpop.f32.mrf.mxu0
      %v6534 = vadd.f32 0.0, %v6533
      %6535 = vmatmul.bf16.gmra.mxu0 %v6268
      %v6536 = vpop.f32.mrf.mxu0
      %v6537 = vadd.f32 0.0, %v6536
      %v6538 = vpop.f32.mrf.mxu0
      %v6539 = vadd.f32 0.0, %v6538
      %6540 = vmatmul.bf16.gmra.mxu0 %v6271
      %v6541 = vpop.f32.mrf.mxu0
      %v6542 = vadd.f32 0.0, %v6541
      %v6543 = vpop.f32.mrf.mxu0
      %v6544 = vadd.f32 0.0, %v6543
      %6545 = vmatmul.bf16.gmra.mxu0 %v6274
      %v6546 = vpop.f32.mrf.mxu0
      %v6547 = vadd.f32 0.0, %v6546
      %v6548 = vpop.f32.mrf.mxu0
      %v6549 = vadd.f32 0.0, %v6548
      %6550 = vmatmul.bf16.gmra.mxu0 %v6277
      %v6551 = vpop.f32.mrf.mxu0
      %v6552 = vadd.f32 0.0, %v6551
      %v6553 = vpop.f32.mrf.mxu0
      %v6554 = vadd.f32 0.0, %v6553
      %6555 = vmatmul.bf16.gmra.mxu0 %v6280
      %v6556 = vpop.f32.mrf.mxu0
      %v6557 = vadd.f32 0.0, %v6556
      %v6558 = vpop.f32.mrf.mxu0
      %v6559 = vadd.f32 0.0, %v6558
      %6560 = vmatmul.bf16.gmra.mxu0 %v6283
      %v6561 = vpop.f32.mrf.mxu0
      %v6562 = vadd.f32 0.0, %v6561
      %v6563 = vpop.f32.mrf.mxu0
      %v6564 = vadd.f32 0.0, %v6563
      %6565 = vmatmul.bf16.gmra.mxu0 %v6286
      %v6566 = vpop.f32.mrf.mxu0
      %v6567 = vadd.f32 0.0, %v6566
      %v6568 = vpop.f32.mrf.mxu0
      %v6569 = vadd.f32 0.0, %v6568
      %6570 = vmatmul.bf16.gmra.mxu0 %v6289
      %v6571 = vpop.f32.mrf.mxu0
      %v6572 = vadd.f32 0.0, %v6571
      %v6573 = vpop.f32.mrf.mxu0
      %v6574 = vadd.f32 0.0, %v6573
      %6575 = vmatmul.bf16.gmra.mxu0 %v6292
      %v6576 = vpop.f32.mrf.mxu0
      %v6577 = vadd.f32 0.0, %v6576
      %v6578 = vpop.f32.mrf.mxu0
      %v6579 = vadd.f32 0.0, %v6578
      %6580 = vmatmul.bf16.gmra.mxu0 %v6295
      %v6581 = vpop.f32.mrf.mxu0
      %v6582 = vadd.f32 0.0, %v6581
      %v6583 = vpop.f32.mrf.mxu0
      %v6584 = vadd.f32 0.0, %v6583
      %6585 = vmatmul.bf16.gmra.mxu0 %v6298
      %v6586 = vpop.f32.mrf.mxu0
      %v6587 = vadd.f32 0.0, %v6586
      %v6588 = vpop.f32.mrf.mxu0
      %v6589 = vadd.f32 0.0, %v6588
      %6590 = vmatmul.bf16.gmra.mxu0 %v6301
      %v6591 = vpop.f32.mrf.mxu0
      %v6592 = vadd.f32 0.0, %v6591
      %v6593 = vpop.f32.mrf.mxu0
      %v6594 = vadd.f32 0.0, %v6593
      %6595 = vmatmul.bf16.gmra.mxu0 %v6304
      %v6596 = vpop.f32.mrf.mxu0
      %v6597 = vadd.f32 0.0, %v6596
      %v6598 = vpop.f32.mrf.mxu0
      %v6599 = vadd.f32 0.0, %v6598
      %6600 = vmatmul.bf16.gmra.mxu0 %v6307
      %v6601 = vpop.f32.mrf.mxu0
      %v6602 = vadd.f32 0.0, %v6601
      %v6603 = vpop.f32.mrf.mxu0
      %v6604 = vadd.f32 0.0, %v6603
      %6605 = vmatmul.bf16.gmra.mxu0 %v6310
      %v6606 = vpop.f32.mrf.mxu0
      %v6607 = vadd.f32 0.0, %v6606
      %v6608 = vpop.f32.mrf.mxu0
      %v6609 = vadd.f32 0.0, %v6608
      %6610 = vmatmul.bf16.gmra.mxu0 %v6313
      %v6611 = vpop.f32.mrf.mxu0
      %v6612 = vadd.f32 0.0, %v6611
      %v6613 = vpop.f32.mrf.mxu0
      %v6614 = vadd.f32 0.0, %v6613
      %6615 = vmatmul.bf16.gmra.mxu0 %v6316
      %v6616 = vpop.f32.mrf.mxu0
      %v6617 = vadd.f32 0.0, %v6616
      %v6618 = vpop.f32.mrf.mxu0
      %v6619 = vadd.f32 0.0, %v6618
      %6620 = vmatmul.bf16.gmra.mxu0 %v6319
      %v6621 = vpop.f32.mrf.mxu0
      %v6622 = vadd.f32 0.0, %v6621
      %v6623 = vpop.f32.mrf.mxu0
      %v6624 = vadd.f32 0.0, %v6623
      %6625 = vmatmul.bf16.gmra.mxu0 %v6322
      %v6626 = vpop.f32.mrf.mxu0
      %v6627 = vadd.f32 0.0, %v6626
      %v6628 = vpop.f32.mrf.mxu0
      %v6629 = vadd.f32 0.0, %v6628
      %6630 = vmatmul.bf16.gmra.mxu0 %v6325
      %v6631 = vpop.f32.mrf.mxu0
      %v6632 = vadd.f32 0.0, %v6631
      %v6633 = vpop.f32.mrf.mxu0
      %v6634 = vadd.f32 0.0, %v6633
      %6635 = vmatmul.bf16.gmra.mxu0 %v6328
      %v6636 = vpop.f32.mrf.mxu0
      %v6637 = vadd.f32 0.0, %v6636
      %v6638 = vpop.f32.mrf.mxu0
      %v6639 = vadd.f32 0.0, %v6638
      %6640 = vmatmul.bf16.gmra.mxu0 %v6331
      %v6641 = vpop.f32.mrf.mxu0
      %v6642 = vadd.f32 0.0, %v6641
      %v6643 = vpop.f32.mrf.mxu0
      %v6644 = vadd.f32 0.0, %v6643
      %6645 = vmatmul.bf16.gmra.mxu0 %v6334
      %v6646 = vpop.f32.mrf.mxu0
      %v6647 = vadd.f32 0.0, %v6646
      %v6648 = vpop.f32.mrf.mxu0
      %v6649 = vadd.f32 0.0, %v6648
      %6650 = vmatmul.bf16.gmra.mxu0 %v6337
      %v6651 = vpop.f32.mrf.mxu0
      %v6652 = vadd.f32 0.0, %v6651
      %v6653 = vpop.f32.mrf.mxu0
      %v6654 = vadd.f32 0.0, %v6653
      %6655 = vmatmul.bf16.gmra.mxu0 %v6340
      %v6656 = vpop.f32.mrf.mxu0
      %v6657 = vadd.f32 0.0, %v6656
      %v6658 = vpop.f32.mrf.mxu0
      %v6659 = vadd.f32 0.0, %v6658
      %6660 = vmatmul.bf16.gmra.mxu0 %v6343
      %v6661 = vpop.f32.mrf.mxu0
      %v6662 = vadd.f32 0.0, %v6661
      %v6663 = vpop.f32.mrf.mxu0
      %v6664 = vadd.f32 0.0, %v6663
      %6665 = vmatmul.bf16.gmra.mxu0 %v6346
      %v6666 = vpop.f32.mrf.mxu0
      %v6667 = vadd.f32 0.0, %v6666
      %v6668 = vpop.f32.mrf.mxu0
      %v6669 = vadd.f32 0.0, %v6668
      %6670 = vmatmul.bf16.gmra.mxu0 %v6349
      %v6671 = vpop.f32.mrf.mxu0
      %v6672 = vadd.f32 0.0, %v6671
      %v6673 = vpop.f32.mrf.mxu0
      %v6674 = vadd.f32 0.0, %v6673
      %6675 = vmatmul.bf16.gmra.mxu0 %v6352
      %v6676 = vpop.f32.mrf.mxu0
      %v6677 = vadd.f32 0.0, %v6676
      %v6678 = vpop.f32.mrf.mxu0
      %v6679 = vadd.f32 0.0, %v6678
      %6680 = vmatmul.bf16.gmra.mxu0 %v6355
      %v6681 = vpop.f32.mrf.mxu0
      %v6682 = vadd.f32 0.0, %v6681
      %v6683 = vpop.f32.mrf.mxu0
      %v6684 = vadd.f32 0.0, %v6683
      %6685 = vdwg.mxu0
      %v6686 = vadd.f32 %v4268, %v6367
      %v6687 = vadd.f32 %v4269, %v6369
      %v6688 = vadd.f32 %v4270, %v6372
      %v6689 = vadd.f32 %v4271, %v6374
      %v6690 = vadd.f32 %v4272, %v6377
      %v6691 = vadd.f32 %v4273, %v6379
      %v6692 = vadd.f32 %v4274, %v6382
      %v6693 = vadd.f32 %v4275, %v6384
      %v6694 = vadd.f32 %v4276, %v6387
      %v6695 = vadd.f32 %v4277, %v6389
      %v6696 = vadd.f32 %v4278, %v6392
      %v6697 = vadd.f32 %v4279, %v6394
      %v6698 = vadd.f32 %v4280, %v6397
      %v6699 = vadd.f32 %v4281, %v6399
      %v6700 = vadd.f32 %v4282, %v6402
      %v6701 = vadd.f32 %v4283, %v6404
      %v6702 = vadd.f32 %v4284, %v6407
      %v6703 = vadd.f32 %v4285, %v6409
      %v6704 = vadd.f32 %v4286, %v6412
      %v6705 = vadd.f32 %v4287, %v6414
      %v6706 = vadd.f32 %v4288, %v6417
      %v6707 = vadd.f32 %v4289, %v6419
      %v6708 = vadd.f32 %v4290, %v6422
      %v6709 = vadd.f32 %v4291, %v6424
      %v6710 = vadd.f32 %v4292, %v6427
      %v6711 = vadd.f32 %v4293, %v6429
      %v6712 = vadd.f32 %v4294, %v6432
      %v6713 = vadd.f32 %v4295, %v6434
      %v6714 = vadd.f32 %v4296, %v6437
      %v6715 = vadd.f32 %v4297, %v6439
      %v6716 = vadd.f32 %v4298, %v6442
      %v6717 = vadd.f32 %v4299, %v6444
      %v6718 = vadd.f32 %v4300, %v6447
      %v6719 = vadd.f32 %v4301, %v6449
      %v6720 = vadd.f32 %v4302, %v6452
      %v6721 = vadd.f32 %v4303, %v6454
      %v6722 = vadd.f32 %v4304, %v6457
      %v6723 = vadd.f32 %v4305, %v6459
      %v6724 = vadd.f32 %v4306, %v6462
      %v6725 = vadd.f32 %v4307, %v6464
      %v6726 = vadd.f32 %v4308, %v6467
      %v6727 = vadd.f32 %v4309, %v6469
      %v6728 = vadd.f32 %v4310, %v6472
      %v6729 = vadd.f32 %v4311, %v6474
      %v6730 = vadd.f32 %v4312, %v6477
      %v6731 = vadd.f32 %v4313, %v6479
      %v6732 = vadd.f32 %v4314, %v6482
      %v6733 = vadd.f32 %v4315, %v6484
      %v6734 = vadd.f32 %v4316, %v6487
      %v6735 = vadd.f32 %v4317, %v6489
      %v6736 = vadd.f32 %v4318, %v6492
      %v6737 = vadd.f32 %v4319, %v6494
      %v6738 = vadd.f32 %v4320, %v6497
      %v6739 = vadd.f32 %v4321, %v6499
      %v6740 = vadd.f32 %v4322, %v6502
      %v6741 = vadd.f32 %v4323, %v6504
      %v6742 = vadd.f32 %v4324, %v6507
      %v6743 = vadd.f32 %v4325, %v6509
      %v6744 = vadd.f32 %v4326, %v6512
      %v6745 = vadd.f32 %v4327, %v6514
      %v6746 = vadd.f32 %v4328, %v6517
      %v6747 = vadd.f32 %v4329, %v6519
      %v6748 = vadd.f32 %v4330, %v6522
      %v6749 = vadd.f32 %v4331, %v6524
      %v6750 = vadd.f32 %v4332, %v6527
      %v6751 = vadd.f32 %v4333, %v6529
      %v6752 = vadd.f32 %v4334, %v6532
      %v6753 = vadd.f32 %v4335, %v6534
      %v6754 = vadd.f32 %v4336, %v6537
      %v6755 = vadd.f32 %v4337, %v6539
      %v6756 = vadd.f32 %v4338, %v6542
      %v6757 = vadd.f32 %v4339, %v6544
      %v6758 = vadd.f32 %v4340, %v6547
      %v6759 = vadd.f32 %v4341, %v6549
      %v6760 = vadd.f32 %v4342, %v6552
      %v6761 = vadd.f32 %v4343, %v6554
      %v6762 = vadd.f32 %v4344, %v6557
      %v6763 = vadd.f32 %v4345, %v6559
      %v6764 = vadd.f32 %v4346, %v6562
      %v6765 = vadd.f32 %v4347, %v6564
      %v6766 = vadd.f32 %v4348, %v6567
      %v6767 = vadd.f32 %v4349, %v6569
      %v6768 = vadd.f32 %v4350, %v6572
      %v6769 = vadd.f32 %v4351, %v6574
      %v6770 = vadd.f32 %v4352, %v6577
      %v6771 = vadd.f32 %v4353, %v6579
      %v6772 = vadd.f32 %v4354, %v6582
      %v6773 = vadd.f32 %v4355, %v6584
      %v6774 = vadd.f32 %v4356, %v6587
      %v6775 = vadd.f32 %v4357, %v6589
      %v6776 = vadd.f32 %v4358, %v6592
      %v6777 = vadd.f32 %v4359, %v6594
      %v6778 = vadd.f32 %v4360, %v6597
      %v6779 = vadd.f32 %v4361, %v6599
      %v6780 = vadd.f32 %v4362, %v6602
      %v6781 = vadd.f32 %v4363, %v6604
      %v6782 = vadd.f32 %v4364, %v6607
      %v6783 = vadd.f32 %v4365, %v6609
      %v6784 = vadd.f32 %v4366, %v6612
      %v6785 = vadd.f32 %v4367, %v6614
      %v6786 = vadd.f32 %v4368, %v6617
      %v6787 = vadd.f32 %v4369, %v6619
      %v6788 = vadd.f32 %v4370, %v6622
      %v6789 = vadd.f32 %v4371, %v6624
      %v6790 = vadd.f32 %v4372, %v6627
      %v6791 = vadd.f32 %v4373, %v6629
      %v6792 = vadd.f32 %v4374, %v6632
      %v6793 = vadd.f32 %v4375, %v6634
      %v6794 = vadd.f32 %v4376, %v6637
      %v6795 = vadd.f32 %v4377, %v6639
      %v6796 = vadd.f32 %v4378, %v6642
      %v6797 = vadd.f32 %v4379, %v6644
      %v6798 = vadd.f32 %v4380, %v6647
      %v6799 = vadd.f32 %v4381, %v6649
      %v6800 = vadd.f32 %v4382, %v6652
      %v6801 = vadd.f32 %v4383, %v6654
      %v6802 = vadd.f32 %v4384, %v6657
      %v6803 = vadd.f32 %v4385, %v6659
      %v6804 = vadd.f32 %v4386, %v6662
      %v6805 = vadd.f32 %v4387, %v6664
      %v6806 = vadd.f32 %v4388, %v6667
      %v6807 = vadd.f32 %v4389, %v6669
      %v6808 = vadd.f32 %v4390, %v6672
      %v6809 = vadd.f32 %v4391, %v6674
      %v6810 = vadd.f32 %v4392, %v6677
      %v6811 = vadd.f32 %v4393, %v6679
      %v6812 = vadd.f32 %v4394, %v6682
      %v6813 = vadd.f32 %v4395, %v6684
      %vm6814 = vcmp.ge.f32.partialorder %v6686, 0.0
      %vm6815 = vcmp.ge.f32.partialorder %v6687, 0.0
      %vm6816 = vcmp.ge.f32.partialorder %v6688, 0.0
      %vm6817 = vcmp.ge.f32.partialorder %v6689, 0.0
      %vm6818 = vcmp.ge.f32.partialorder %v6690, 0.0
      %vm6819 = vcmp.ge.f32.partialorder %v6691, 0.0
      %vm6820 = vcmp.ge.f32.partialorder %v6692, 0.0
      %vm6821 = vcmp.ge.f32.partialorder %v6693, 0.0
      %vm6822 = vcmp.ge.f32.partialorder %v6694, 0.0
      %vm6823 = vcmp.ge.f32.partialorder %v6695, 0.0
      %vm6824 = vcmp.ge.f32.partialorder %v6696, 0.0
      %vm6825 = vcmp.ge.f32.partialorder %v6697, 0.0
      %vm6826 = vcmp.ge.f32.partialorder %v6698, 0.0
      %vm6827 = vcmp.ge.f32.partialorder %v6699, 0.0
      %vm6828 = vcmp.ge.f32.partialorder %v6700, 0.0
      %vm6829 = vcmp.ge.f32.partialorder %v6701, 0.0
      %vm6830 = vcmp.ge.f32.partialorder %v6702, 0.0
      %vm6831 = vcmp.ge.f32.partialorder %v6703, 0.0
      %vm6832 = vcmp.ge.f32.partialorder %v6704, 0.0
      %vm6833 = vcmp.ge.f32.partialorder %v6705, 0.0
      %vm6834 = vcmp.ge.f32.partialorder %v6706, 0.0
      %vm6835 = vcmp.ge.f32.partialorder %v6707, 0.0
      %vm6836 = vcmp.ge.f32.partialorder %v6708, 0.0
      %vm6837 = vcmp.ge.f32.partialorder %v6709, 0.0
      %vm6838 = vcmp.ge.f32.partialorder %v6710, 0.0
      %vm6839 = vcmp.ge.f32.partialorder %v6711, 0.0
      %vm6840 = vcmp.ge.f32.partialorder %v6712, 0.0
      %vm6841 = vcmp.ge.f32.partialorder %v6713, 0.0
      %vm6842 = vcmp.ge.f32.partialorder %v6714, 0.0
      %vm6843 = vcmp.ge.f32.partialorder %v6715, 0.0
      %vm6844 = vcmp.ge.f32.partialorder %v6716, 0.0
      %vm6845 = vcmp.ge.f32.partialorder %v6717, 0.0
      %vm6846 = vcmp.ge.f32.partialorder %v6718, 0.0
      %vm6847 = vcmp.ge.f32.partialorder %v6719, 0.0
      %vm6848 = vcmp.ge.f32.partialorder %v6720, 0.0
      %vm6849 = vcmp.ge.f32.partialorder %v6721, 0.0
      %vm6850 = vcmp.ge.f32.partialorder %v6722, 0.0
      %vm6851 = vcmp.ge.f32.partialorder %v6723, 0.0
      %vm6852 = vcmp.ge.f32.partialorder %v6724, 0.0
      %vm6853 = vcmp.ge.f32.partialorder %v6725, 0.0
      %vm6854 = vcmp.ge.f32.partialorder %v6726, 0.0
      %vm6855 = vcmp.ge.f32.partialorder %v6727, 0.0
      %vm6856 = vcmp.ge.f32.partialorder %v6728, 0.0
      %vm6857 = vcmp.ge.f32.partialorder %v6729, 0.0
      %vm6858 = vcmp.ge.f32.partialorder %v6730, 0.0
      %vm6859 = vcmp.ge.f32.partialorder %v6731, 0.0
      %vm6860 = vcmp.ge.f32.partialorder %v6732, 0.0
      %vm6861 = vcmp.ge.f32.partialorder %v6733, 0.0
      %vm6862 = vcmp.ge.f32.partialorder %v6734, 0.0
      %vm6863 = vcmp.ge.f32.partialorder %v6735, 0.0
      %vm6864 = vcmp.ge.f32.partialorder %v6736, 0.0
      %vm6865 = vcmp.ge.f32.partialorder %v6737, 0.0
      %vm6866 = vcmp.ge.f32.partialorder %v6738, 0.0
      %vm6867 = vcmp.ge.f32.partialorder %v6739, 0.0
      %vm6868 = vcmp.ge.f32.partialorder %v6740, 0.0
      %vm6869 = vcmp.ge.f32.partialorder %v6741, 0.0
      %vm6870 = vcmp.ge.f32.partialorder %v6742, 0.0
      %vm6871 = vcmp.ge.f32.partialorder %v6743, 0.0
      %vm6872 = vcmp.ge.f32.partialorder %v6744, 0.0
      %vm6873 = vcmp.ge.f32.partialorder %v6745, 0.0
      %vm6874 = vcmp.ge.f32.partialorder %v6746, 0.0
      %vm6875 = vcmp.ge.f32.partialorder %v6747, 0.0
      %vm6876 = vcmp.ge.f32.partialorder %v6748, 0.0
      %vm6877 = vcmp.ge.f32.partialorder %v6749, 0.0
      %vm6878 = vcmp.ge.f32.partialorder %v6750, 0.0
      %vm6879 = vcmp.ge.f32.partialorder %v6751, 0.0
      %vm6880 = vcmp.ge.f32.partialorder %v6752, 0.0
      %vm6881 = vcmp.ge.f32.partialorder %v6753, 0.0
      %vm6882 = vcmp.ge.f32.partialorder %v6754, 0.0
      %vm6883 = vcmp.ge.f32.partialorder %v6755, 0.0
      %vm6884 = vcmp.ge.f32.partialorder %v6756, 0.0
      %vm6885 = vcmp.ge.f32.partialorder %v6757, 0.0
      %vm6886 = vcmp.ge.f32.partialorder %v6758, 0.0
      %vm6887 = vcmp.ge.f32.partialorder %v6759, 0.0
      %vm6888 = vcmp.ge.f32.partialorder %v6760, 0.0
      %vm6889 = vcmp.ge.f32.partialorder %v6761, 0.0
      %vm6890 = vcmp.ge.f32.partialorder %v6762, 0.0
      %vm6891 = vcmp.ge.f32.partialorder %v6763, 0.0
      %vm6892 = vcmp.ge.f32.partialorder %v6764, 0.0
      %vm6893 = vcmp.ge.f32.partialorder %v6765, 0.0
      %vm6894 = vcmp.ge.f32.partialorder %v6766, 0.0
      %vm6895 = vcmp.ge.f32.partialorder %v6767, 0.0
      %vm6896 = vcmp.ge.f32.partialorder %v6768, 0.0
      %vm6897 = vcmp.ge.f32.partialorder %v6769, 0.0
      %vm6898 = vcmp.ge.f32.partialorder %v6770, 0.0
      %vm6899 = vcmp.ge.f32.partialorder %v6771, 0.0
      %vm6900 = vcmp.ge.f32.partialorder %v6772, 0.0
      %vm6901 = vcmp.ge.f32.partialorder %v6773, 0.0
      %vm6902 = vcmp.ge.f32.partialorder %v6774, 0.0
      %vm6903 = vcmp.ge.f32.partialorder %v6775, 0.0
      %vm6904 = vcmp.ge.f32.partialorder %v6776, 0.0
      %vm6905 = vcmp.ge.f32.partialorder %v6777, 0.0
      %vm6906 = vcmp.ge.f32.partialorder %v6778, 0.0
      %vm6907 = vcmp.ge.f32.partialorder %v6779, 0.0
      %vm6908 = vcmp.ge.f32.partialorder %v6780, 0.0
      %vm6909 = vcmp.ge.f32.partialorder %v6781, 0.0
      %vm6910 = vcmp.ge.f32.partialorder %v6782, 0.0
      %vm6911 = vcmp.ge.f32.partialorder %v6783, 0.0
      %vm6912 = vcmp.ge.f32.partialorder %v6784, 0.0
      %vm6913 = vcmp.ge.f32.partialorder %v6785, 0.0
      %vm6914 = vcmp.ge.f32.partialorder %v6786, 0.0
      %vm6915 = vcmp.ge.f32.partialorder %v6787, 0.0
      %vm6916 = vcmp.ge.f32.partialorder %v6788, 0.0
      %vm6917 = vcmp.ge.f32.partialorder %v6789, 0.0
      %vm6918 = vcmp.ge.f32.partialorder %v6790, 0.0
      %vm6919 = vcmp.ge.f32.partialorder %v6791, 0.0
      %vm6920 = vcmp.ge.f32.partialorder %v6792, 0.0
      %vm6921 = vcmp.ge.f32.partialorder %v6793, 0.0
      %vm6922 = vcmp.ge.f32.partialorder %v6794, 0.0
      %vm6923 = vcmp.ge.f32.partialorder %v6795, 0.0
      %vm6924 = vcmp.ge.f32.partialorder %v6796, 0.0
      %vm6925 = vcmp.ge.f32.partialorder %v6797, 0.0
      %vm6926 = vcmp.ge.f32.partialorder %v6798, 0.0
      %vm6927 = vcmp.ge.f32.partialorder %v6799, 0.0
      %vm6928 = vcmp.ge.f32.partialorder %v6800, 0.0
      %vm6929 = vcmp.ge.f32.partialorder %v6801, 0.0
      %vm6930 = vcmp.ge.f32.partialorder %v6802, 0.0
      %vm6931 = vcmp.ge.f32.partialorder %v6803, 0.0
      %vm6932 = vcmp.ge.f32.partialorder %v6804, 0.0
      %vm6933 = vcmp.ge.f32.partialorder %v6805, 0.0
      %vm6934 = vcmp.ge.f32.partialorder %v6806, 0.0
      %vm6935 = vcmp.ge.f32.partialorder %v6807, 0.0
      %vm6936 = vcmp.ge.f32.partialorder %v6808, 0.0
      %vm6937 = vcmp.ge.f32.partialorder %v6809, 0.0
      %vm6938 = vcmp.ge.f32.partialorder %v6810, 0.0
      %vm6939 = vcmp.ge.f32.partialorder %v6811, 0.0
      %vm6940 = vcmp.ge.f32.partialorder %v6812, 0.0
      %vm6941 = vcmp.ge.f32.partialorder %v6813, 0.0
      %v6942 = vmul.f32 %v6686, 0.2
      %v6943 = vmul.f32 %v6687, 0.2
      %v6944 = vmul.f32 %v6688, 0.2
      %v6945 = vmul.f32 %v6689, 0.2
      %v6946 = vmul.f32 %v6690, 0.2
      %v6947 = vmul.f32 %v6691, 0.2
      %v6948 = vmul.f32 %v6692, 0.2
      %v6949 = vmul.f32 %v6693, 0.2
      %v6950 = vmul.f32 %v6694, 0.2
      %v6951 = vmul.f32 %v6695, 0.2
      %v6952 = vmul.f32 %v6696, 0.2
      %v6953 = vmul.f32 %v6697, 0.2
      %v6954 = vmul.f32 %v6698, 0.2
      %v6955 = vmul.f32 %v6699, 0.2
      %v6956 = vmul.f32 %v6700, 0.2
      %v6957 = vmul.f32 %v6701, 0.2
      %v6958 = vmul.f32 %v6702, 0.2
      %v6959 = vmul.f32 %v6703, 0.2
      %v6960 = vmul.f32 %v6704, 0.2
      %v6961 = vmul.f32 %v6705, 0.2
      %v6962 = vmul.f32 %v6706, 0.2
      %v6963 = vmul.f32 %v6707, 0.2
      %v6964 = vmul.f32 %v6708, 0.2
      %v6965 = vmul.f32 %v6709, 0.2
      %v6966 = vmul.f32 %v6710, 0.2
      %v6967 = vmul.f32 %v6711, 0.2
      %v6968 = vmul.f32 %v6712, 0.2
      %v6969 = vmul.f32 %v6713, 0.2
      %v6970 = vmul.f32 %v6714, 0.2
      %v6971 = vmul.f32 %v6715, 0.2
      %v6972 = vmul.f32 %v6716, 0.2
      %v6973 = vmul.f32 %v6717, 0.2
      %v6974 = vmul.f32 %v6718, 0.2
      %v6975 = vmul.f32 %v6719, 0.2
      %v6976 = vmul.f32 %v6720, 0.2
      %v6977 = vmul.f32 %v6721, 0.2
      %v6978 = vmul.f32 %v6722, 0.2
      %v6979 = vmul.f32 %v6723, 0.2
      %v6980 = vmul.f32 %v6724, 0.2
      %v6981 = vmul.f32 %v6725, 0.2
      %v6982 = vmul.f32 %v6726, 0.2
      %v6983 = vmul.f32 %v6727, 0.2
      %v6984 = vmul.f32 %v6728, 0.2
      %v6985 = vmul.f32 %v6729, 0.2
      %v6986 = vmul.f32 %v6730, 0.2
      %v6987 = vmul.f32 %v6731, 0.2
      %v6988 = vmul.f32 %v6732, 0.2
      %v6989 = vmul.f32 %v6733, 0.2
      %v6990 = vmul.f32 %v6734, 0.2
      %v6991 = vmul.f32 %v6735, 0.2
      %v6992 = vmul.f32 %v6736, 0.2
      %v6993 = vmul.f32 %v6737, 0.2
      %v6994 = vmul.f32 %v6738, 0.2
      %v6995 = vmul.f32 %v6739, 0.2
      %v6996 = vmul.f32 %v6740, 0.2
      %v6997 = vmul.f32 %v6741, 0.2
      %v6998 = vmul.f32 %v6742, 0.2
      %v6999 = vmul.f32 %v6743, 0.2
      %v7000 = vmul.f32 %v6744, 0.2
      %v7001 = vmul.f32 %v6745, 0.2
      %v7002 = vmul.f32 %v6746, 0.2
      %v7003 = vmul.f32 %v6747, 0.2
      %v7004 = vmul.f32 %v6748, 0.2
      %v7005 = vmul.f32 %v6749, 0.2
      %v7006 = vmul.f32 %v6750, 0.2
      %v7007 = vmul.f32 %v6751, 0.2
      %v7008 = vmul.f32 %v6752, 0.2
      %v7009 = vmul.f32 %v6753, 0.2
      %v7010 = vmul.f32 %v6754, 0.2
      %v7011 = vmul.f32 %v6755, 0.2
      %v7012 = vmul.f32 %v6756, 0.2
      %v7013 = vmul.f32 %v6757, 0.2
      %v7014 = vmul.f32 %v6758, 0.2
      %v7015 = vmul.f32 %v6759, 0.2
      %v7016 = vmul.f32 %v6760, 0.2
      %v7017 = vmul.f32 %v6761, 0.2
      %v7018 = vmul.f32 %v6762, 0.2
      %v7019 = vmul.f32 %v6763, 0.2
      %v7020 = vmul.f32 %v6764, 0.2
      %v7021 = vmul.f32 %v6765, 0.2
      %v7022 = vmul.f32 %v6766, 0.2
      %v7023 = vmul.f32 %v6767, 0.2
      %v7024 = vmul.f32 %v6768, 0.2
      %v7025 = vmul.f32 %v6769, 0.2
      %v7026 = vmul.f32 %v6770, 0.2
      %v7027 = vmul.f32 %v6771, 0.2
      %v7028 = vmul.f32 %v6772, 0.2
      %v7029 = vmul.f32 %v6773, 0.2
      %v7030 = vmul.f32 %v6774, 0.2
      %v7031 = vmul.f32 %v6775, 0.2
      %v7032 = vmul.f32 %v6776, 0.2
      %v7033 = vmul.f32 %v6777, 0.2
      %v7034 = vmul.f32 %v6778, 0.2
      %v7035 = vmul.f32 %v6779, 0.2
      %v7036 = vmul.f32 %v6780, 0.2
      %v7037 = vmul.f32 %v6781, 0.2
      %v7038 = vmul.f32 %v6782, 0.2
      %v7039 = vmul.f32 %v6783, 0.2
      %v7040 = vmul.f32 %v6784, 0.2
      %v7041 = vmul.f32 %v6785, 0.2
      %v7042 = vmul.f32 %v6786, 0.2
      %v7043 = vmul.f32 %v6787, 0.2
      %v7044 = vmul.f32 %v6788, 0.2
      %v7045 = vmul.f32 %v6789, 0.2
      %v7046 = vmul.f32 %v6790, 0.2
      %v7047 = vmul.f32 %v6791, 0.2
      %v7048 = vmul.f32 %v6792, 0.2
      %v7049 = vmul.f32 %v6793, 0.2
      %v7050 = vmul.f32 %v6794, 0.2
      %v7051 = vmul.f32 %v6795, 0.2
      %v7052 = vmul.f32 %v6796, 0.2
      %v7053 = vmul.f32 %v6797, 0.2
      %v7054 = vmul.f32 %v6798, 0.2
      %v7055 = vmul.f32 %v6799, 0.2
      %v7056 = vmul.f32 %v6800, 0.2
      %v7057 = vmul.f32 %v6801, 0.2
      %v7058 = vmul.f32 %v6802, 0.2
      %v7059 = vmul.f32 %v6803, 0.2
      %v7060 = vmul.f32 %v6804, 0.2
      %v7061 = vmul.f32 %v6805, 0.2
      %v7062 = vmul.f32 %v6806, 0.2
      %v7063 = vmul.f32 %v6807, 0.2
      %v7064 = vmul.f32 %v6808, 0.2
      %v7065 = vmul.f32 %v6809, 0.2
      %v7066 = vmul.f32 %v6810, 0.2
      %v7067 = vmul.f32 %v6811, 0.2
      %v7068 = vmul.f32 %v6812, 0.2
      %v7069 = vmul.f32 %v6813, 0.2
      %v7070 = vsel %vm6814, %v6686, %v6942
      %v7071 = vsel %vm6815, %v6687, %v6943
      %v7072 = vsel %vm6816, %v6688, %v6944
      %v7073 = vsel %vm6817, %v6689, %v6945
      %v7074 = vsel %vm6818, %v6690, %v6946
      %v7075 = vsel %vm6819, %v6691, %v6947
      %v7076 = vsel %vm6820, %v6692, %v6948
      %v7077 = vsel %vm6821, %v6693, %v6949
      %v7078 = vsel %vm6822, %v6694, %v6950
      %v7079 = vsel %vm6823, %v6695, %v6951
      %v7080 = vsel %vm6824, %v6696, %v6952
      %v7081 = vsel %vm6825, %v6697, %v6953
      %v7082 = vsel %vm6826, %v6698, %v6954
      %v7083 = vsel %vm6827, %v6699, %v6955
      %v7084 = vsel %vm6828, %v6700, %v6956
      %v7085 = vsel %vm6829, %v6701, %v6957
      %v7086 = vsel %vm6830, %v6702, %v6958
      %v7087 = vsel %vm6831, %v6703, %v6959
      %v7088 = vsel %vm6832, %v6704, %v6960
      %v7089 = vsel %vm6833, %v6705, %v6961
      %v7090 = vsel %vm6834, %v6706, %v6962
      %v7091 = vsel %vm6835, %v6707, %v6963
      %v7092 = vsel %vm6836, %v6708, %v6964
      %v7093 = vsel %vm6837, %v6709, %v6965
      %v7094 = vsel %vm6838, %v6710, %v6966
      %v7095 = vsel %vm6839, %v6711, %v6967
      %v7096 = vsel %vm6840, %v6712, %v6968
      %v7097 = vsel %vm6841, %v6713, %v6969
      %v7098 = vsel %vm6842, %v6714, %v6970
      %v7099 = vsel %vm6843, %v6715, %v6971
      %v7100 = vsel %vm6844, %v6716, %v6972
      %v7101 = vsel %vm6845, %v6717, %v6973
      %v7102 = vsel %vm6846, %v6718, %v6974
      %v7103 = vsel %vm6847, %v6719, %v6975
      %v7104 = vsel %vm6848, %v6720, %v6976
      %v7105 = vsel %vm6849, %v6721, %v6977
      %v7106 = vsel %vm6850, %v6722, %v6978
      %v7107 = vsel %vm6851, %v6723, %v6979
      %v7108 = vsel %vm6852, %v6724, %v6980
      %v7109 = vsel %vm6853, %v6725, %v6981
      %v7110 = vsel %vm6854, %v6726, %v6982
      %v7111 = vsel %vm6855, %v6727, %v6983
      %v7112 = vsel %vm6856, %v6728, %v6984
      %v7113 = vsel %vm6857, %v6729, %v6985
      %v7114 = vsel %vm6858, %v6730, %v6986
      %v7115 = vsel %vm6859, %v6731, %v6987
      %v7116 = vsel %vm6860, %v6732, %v6988
      %v7117 = vsel %vm6861, %v6733, %v6989
      %v7118 = vsel %vm6862, %v6734, %v6990
      %v7119 = vsel %vm6863, %v6735, %v6991
      %v7120 = vsel %vm6864, %v6736, %v6992
      %v7121 = vsel %vm6865, %v6737, %v6993
      %v7122 = vsel %vm6866, %v6738, %v6994
      %v7123 = vsel %vm6867, %v6739, %v6995
      %v7124 = vsel %vm6868, %v6740, %v6996
      %v7125 = vsel %vm6869, %v6741, %v6997
      %v7126 = vsel %vm6870, %v6742, %v6998
      %v7127 = vsel %vm6871, %v6743, %v6999
      %v7128 = vsel %vm6872, %v6744, %v7000
      %v7129 = vsel %vm6873, %v6745, %v7001
      %v7130 = vsel %vm6874, %v6746, %v7002
      %v7131 = vsel %vm6875, %v6747, %v7003
      %v7132 = vsel %vm6876, %v6748, %v7004
      %v7133 = vsel %vm6877, %v6749, %v7005
      %v7134 = vsel %vm6878, %v6750, %v7006
      %v7135 = vsel %vm6879, %v6751, %v7007
      %v7136 = vsel %vm6880, %v6752, %v7008
      %v7137 = vsel %vm6881, %v6753, %v7009
      %v7138 = vsel %vm6882, %v6754, %v7010
      %v7139 = vsel %vm6883, %v6755, %v7011
      %v7140 = vsel %vm6884, %v6756, %v7012
      %v7141 = vsel %vm6885, %v6757, %v7013
      %v7142 = vsel %vm6886, %v6758, %v7014
      %v7143 = vsel %vm6887, %v6759, %v7015
      %v7144 = vsel %vm6888, %v6760, %v7016
      %v7145 = vsel %vm6889, %v6761, %v7017
      %v7146 = vsel %vm6890, %v6762, %v7018
      %v7147 = vsel %vm6891, %v6763, %v7019
      %v7148 = vsel %vm6892, %v6764, %v7020
      %v7149 = vsel %vm6893, %v6765, %v7021
      %v7150 = vsel %vm6894, %v6766, %v7022
      %v7151 = vsel %vm6895, %v6767, %v7023
      %v7152 = vsel %vm6896, %v6768, %v7024
      %v7153 = vsel %vm6897, %v6769, %v7025
      %v7154 = vsel %vm6898, %v6770, %v7026
      %v7155 = vsel %vm6899, %v6771, %v7027
      %v7156 = vsel %vm6900, %v6772, %v7028
      %v7157 = vsel %vm6901, %v6773, %v7029
      %v7158 = vsel %vm6902, %v6774, %v7030
      %v7159 = vsel %vm6903, %v6775, %v7031
      %v7160 = vsel %vm6904, %v6776, %v7032
      %v7161 = vsel %vm6905, %v6777, %v7033
      %v7162 = vsel %vm6906, %v6778, %v7034
      %v7163 = vsel %vm6907, %v6779, %v7035
      %v7164 = vsel %vm6908, %v6780, %v7036
      %v7165 = vsel %vm6909, %v6781, %v7037
      %v7166 = vsel %vm6910, %v6782, %v7038
      %v7167 = vsel %vm6911, %v6783, %v7039
      %v7168 = vsel %vm6912, %v6784, %v7040
      %v7169 = vsel %vm6913, %v6785, %v7041
      %v7170 = vsel %vm6914, %v6786, %v7042
      %v7171 = vsel %vm6915, %v6787, %v7043
      %v7172 = vsel %vm6916, %v6788, %v7044
      %v7173 = vsel %vm6917, %v6789, %v7045
      %v7174 = vsel %vm6918, %v6790, %v7046
      %v7175 = vsel %vm6919, %v6791, %v7047
      %v7176 = vsel %vm6920, %v6792, %v7048
      %v7177 = vsel %vm6921, %v6793, %v7049
      %v7178 = vsel %vm6922, %v6794, %v7050
      %v7179 = vsel %vm6923, %v6795, %v7051
      %v7180 = vsel %vm6924, %v6796, %v7052
      %v7181 = vsel %vm6925, %v6797, %v7053
      %v7182 = vsel %vm6926, %v6798, %v7054
      %v7183 = vsel %vm6927, %v6799, %v7055
      %v7184 = vsel %vm6928, %v6800, %v7056
      %v7185 = vsel %vm6929, %v6801, %v7057
      %v7186 = vsel %vm6930, %v6802, %v7058
      %v7187 = vsel %vm6931, %v6803, %v7059
      %v7188 = vsel %vm6932, %v6804, %v7060
      %v7189 = vsel %vm6933, %v6805, %v7061
      %v7190 = vsel %vm6934, %v6806, %v7062
      %v7191 = vsel %vm6935, %v6807, %v7063
      %v7192 = vsel %vm6936, %v6808, %v7064
      %v7193 = vsel %vm6937, %v6809, %v7065
      %v7194 = vsel %vm6938, %v6810, %v7066
      %v7195 = vsel %vm6939, %v6811, %v7067
      %v7196 = vsel %vm6940, %v6812, %v7068
      %v7197 = vsel %vm6941, %v6813, %v7069
      %v7198 = vpack.c.bf16 %v7070, %v7070
      %v7199 = vpack.c.bf16 %v7071, %v7071
      %v7200 = vpack.c.bf16 %v7072, %v7072
      %v7201 = vpack.c.bf16 %v7073, %v7073
      %v7202 = vpack.c.bf16 %v7074, %v7074
      %v7203 = vpack.c.bf16 %v7075, %v7075
      %v7204 = vpack.c.bf16 %v7076, %v7076
      %v7205 = vpack.c.bf16 %v7077, %v7077
      %v7206 = vpack.c.bf16 %v7078, %v7078
      %v7207 = vpack.c.bf16 %v7079, %v7079
      %v7208 = vpack.c.bf16 %v7080, %v7080
      %v7209 = vpack.c.bf16 %v7081, %v7081
      %v7210 = vpack.c.bf16 %v7082, %v7082
      %v7211 = vpack.c.bf16 %v7083, %v7083
      %v7212 = vpack.c.bf16 %v7084, %v7084
      %v7213 = vpack.c.bf16 %v7085, %v7085
      %v7214 = vpack.c.bf16 %v7086, %v7086
      %v7215 = vpack.c.bf16 %v7087, %v7087
      %v7216 = vpack.c.bf16 %v7088, %v7088
      %v7217 = vpack.c.bf16 %v7089, %v7089
      %v7218 = vpack.c.bf16 %v7090, %v7090
      %v7219 = vpack.c.bf16 %v7091, %v7091
      %v7220 = vpack.c.bf16 %v7092, %v7092
      %v7221 = vpack.c.bf16 %v7093, %v7093
      %v7222 = vpack.c.bf16 %v7094, %v7094
      %v7223 = vpack.c.bf16 %v7095, %v7095
      %v7224 = vpack.c.bf16 %v7096, %v7096
      %v7225 = vpack.c.bf16 %v7097, %v7097
      %v7226 = vpack.c.bf16 %v7098, %v7098
      %v7227 = vpack.c.bf16 %v7099, %v7099
      %v7228 = vpack.c.bf16 %v7100, %v7100
      %v7229 = vpack.c.bf16 %v7101, %v7101
      %v7230 = vpack.c.bf16 %v7102, %v7102
      %v7231 = vpack.c.bf16 %v7103, %v7103
      %v7232 = vpack.c.bf16 %v7104, %v7104
      %v7233 = vpack.c.bf16 %v7105, %v7105
      %v7234 = vpack.c.bf16 %v7106, %v7106
      %v7235 = vpack.c.bf16 %v7107, %v7107
      %v7236 = vpack.c.bf16 %v7108, %v7108
      %v7237 = vpack.c.bf16 %v7109, %v7109
      %v7238 = vpack.c.bf16 %v7110, %v7110
      %v7239 = vpack.c.bf16 %v7111, %v7111
      %v7240 = vpack.c.bf16 %v7112, %v7112
      %v7241 = vpack.c.bf16 %v7113, %v7113
      %v7242 = vpack.c.bf16 %v7114, %v7114
      %v7243 = vpack.c.bf16 %v7115, %v7115
      %v7244 = vpack.c.bf16 %v7116, %v7116
      %v7245 = vpack.c.bf16 %v7117, %v7117
      %v7246 = vpack.c.bf16 %v7118, %v7118
      %v7247 = vpack.c.bf16 %v7119, %v7119
      %v7248 = vpack.c.bf16 %v7120, %v7120
      %v7249 = vpack.c.bf16 %v7121, %v7121
      %v7250 = vpack.c.bf16 %v7122, %v7122
      %v7251 = vpack.c.bf16 %v7123, %v7123
      %v7252 = vpack.c.bf16 %v7124, %v7124
      %v7253 = vpack.c.bf16 %v7125, %v7125
      %v7254 = vpack.c.bf16 %v7126, %v7126
      %v7255 = vpack.c.bf16 %v7127, %v7127
      %v7256 = vpack.c.bf16 %v7128, %v7128
      %v7257 = vpack.c.bf16 %v7129, %v7129
      %v7258 = vpack.c.bf16 %v7130, %v7130
      %v7259 = vpack.c.bf16 %v7131, %v7131
      %v7260 = vpack.c.bf16 %v7132, %v7132
      %v7261 = vpack.c.bf16 %v7133, %v7133
      %v7262 = vpack.c.bf16 %v7134, %v7134
      %v7263 = vpack.c.bf16 %v7135, %v7135
      %v7264 = vpack.c.bf16 %v7136, %v7136
      %v7265 = vpack.c.bf16 %v7137, %v7137
      %v7266 = vpack.c.bf16 %v7138, %v7138
      %v7267 = vpack.c.bf16 %v7139, %v7139
      %v7268 = vpack.c.bf16 %v7140, %v7140
      %v7269 = vpack.c.bf16 %v7141, %v7141
      %v7270 = vpack.c.bf16 %v7142, %v7142
      %v7271 = vpack.c.bf16 %v7143, %v7143
      %v7272 = vpack.c.bf16 %v7144, %v7144
      %v7273 = vpack.c.bf16 %v7145, %v7145
      %v7274 = vpack.c.bf16 %v7146, %v7146
      %v7275 = vpack.c.bf16 %v7147, %v7147
      %v7276 = vpack.c.bf16 %v7148, %v7148
      %v7277 = vpack.c.bf16 %v7149, %v7149
      %v7278 = vpack.c.bf16 %v7150, %v7150
      %v7279 = vpack.c.bf16 %v7151, %v7151
      %v7280 = vpack.c.bf16 %v7152, %v7152
      %v7281 = vpack.c.bf16 %v7153, %v7153
      %v7282 = vpack.c.bf16 %v7154, %v7154
      %v7283 = vpack.c.bf16 %v7155, %v7155
      %v7284 = vpack.c.bf16 %v7156, %v7156
      %v7285 = vpack.c.bf16 %v7157, %v7157
      %v7286 = vpack.c.bf16 %v7158, %v7158
      %v7287 = vpack.c.bf16 %v7159, %v7159
      %v7288 = vpack.c.bf16 %v7160, %v7160
      %v7289 = vpack.c.bf16 %v7161, %v7161
      %v7290 = vpack.c.bf16 %v7162, %v7162
      %v7291 = vpack.c.bf16 %v7163, %v7163
      %v7292 = vpack.c.bf16 %v7164, %v7164
      %v7293 = vpack.c.bf16 %v7165, %v7165
      %v7294 = vpack.c.bf16 %v7166, %v7166
      %v7295 = vpack.c.bf16 %v7167, %v7167
      %v7296 = vpack.c.bf16 %v7168, %v7168
      %v7297 = vpack.c.bf16 %v7169, %v7169
      %v7298 = vpack.c.bf16 %v7170, %v7170
      %v7299 = vpack.c.bf16 %v7171, %v7171
      %v7300 = vpack.c.bf16 %v7172, %v7172
      %v7301 = vpack.c.bf16 %v7173, %v7173
      %v7302 = vpack.c.bf16 %v7174, %v7174
      %v7303 = vpack.c.bf16 %v7175, %v7175
      %v7304 = vpack.c.bf16 %v7176, %v7176
      %v7305 = vpack.c.bf16 %v7177, %v7177
      %v7306 = vpack.c.bf16 %v7178, %v7178
      %v7307 = vpack.c.bf16 %v7179, %v7179
      %v7308 = vpack.c.bf16 %v7180, %v7180
      %v7309 = vpack.c.bf16 %v7181, %v7181
      %v7310 = vpack.c.bf16 %v7182, %v7182
      %v7311 = vpack.c.bf16 %v7183, %v7183
      %v7312 = vpack.c.bf16 %v7184, %v7184
      %v7313 = vpack.c.bf16 %v7185, %v7185
      %v7314 = vpack.c.bf16 %v7186, %v7186
      %v7315 = vpack.c.bf16 %v7187, %v7187
      %v7316 = vpack.c.bf16 %v7188, %v7188
      %v7317 = vpack.c.bf16 %v7189, %v7189
      %v7318 = vpack.c.bf16 %v7190, %v7190
      %v7319 = vpack.c.bf16 %v7191, %v7191
      %v7320 = vpack.c.bf16 %v7192, %v7192
      %v7321 = vpack.c.bf16 %v7193, %v7193
      %v7322 = vpack.c.bf16 %v7194, %v7194
      %v7323 = vpack.c.bf16 %v7195, %v7195
      %v7324 = vpack.c.bf16 %v7196, %v7196
      %v7325 = vpack.c.bf16 %v7197, %v7197
      %7326 = vst [vmem:[%s143] sm:$0xf] %v7198
      %7327 = vst [vmem:[%s143 + $0x4] sm:$0xf] %v7199
      %7328 = vst [vmem:[%s143 + $0x8] sm:$0xf] %v7200
      %7329 = vst [vmem:[%s143 + $0xc] sm:$0xf] %v7201
      %7330 = vst [vmem:[%s143 + $0x10] sm:$0xf] %v7202
      %7331 = vst [vmem:[%s143 + $0x14] sm:$0xf] %v7203
      %7332 = vst [vmem:[%s143 + $0x18] sm:$0xf] %v7204
      %7333 = vst [vmem:[%s143 + $0x1c] sm:$0xf] %v7205
      %7334 = vst [vmem:[%s143 + $0x20] sm:$0xf] %v7206
      %7335 = vst [vmem:[%s143 + $0x24] sm:$0xf] %v7207
      %7336 = vst [vmem:[%s143 + $0x28] sm:$0xf] %v7208
      %7337 = vst [vmem:[%s143 + $0x2c] sm:$0xf] %v7209
      %7338 = vst [vmem:[%s143 + $0x30] sm:$0xf] %v7210
      %7339 = vst [vmem:[%s143 + $0x34] sm:$0xf] %v7211
      %7340 = vst [vmem:[%s143 + $0x38] sm:$0xf] %v7212
      %7341 = vst [vmem:[%s143 + $0x3c] sm:$0xf] %v7213
      %7342 = vst [vmem:[%s143 + $0x40] sm:$0xf] %v7214
      %7343 = vst [vmem:[%s143 + $0x44] sm:$0xf] %v7215
      %7344 = vst [vmem:[%s143 + $0x48] sm:$0xf] %v7216
      %7345 = vst [vmem:[%s143 + $0x4c] sm:$0xf] %v7217
      %7346 = vst [vmem:[%s143 + $0x50] sm:$0xf] %v7218
      %7347 = vst [vmem:[%s143 + $0x54] sm:$0xf] %v7219
      %7348 = vst [vmem:[%s143 + $0x58] sm:$0xf] %v7220
      %7349 = vst [vmem:[%s143 + $0x5c] sm:$0xf] %v7221
      %7350 = vst [vmem:[%s143 + $0x60] sm:$0xf] %v7222
      %7351 = vst [vmem:[%s143 + $0x64] sm:$0xf] %v7223
      %7352 = vst [vmem:[%s143 + $0x68] sm:$0xf] %v7224
      %7353 = vst [vmem:[%s143 + $0x6c] sm:$0xf] %v7225
      %7354 = vst [vmem:[%s143 + $0x70] sm:$0xf] %v7226
      %7355 = vst [vmem:[%s143 + $0x74] sm:$0xf] %v7227
      %7356 = vst [vmem:[%s143 + $0x78] sm:$0xf] %v7228
      %7357 = vst [vmem:[%s143 + $0x7c] sm:$0xf] %v7229
      %7358 = vst [vmem:[%s143 + $0x80] sm:$0xf] %v7230
      %7359 = vst [vmem:[%s143 + $0x84] sm:$0xf] %v7231
      %7360 = vst [vmem:[%s143 + $0x88] sm:$0xf] %v7232
      %7361 = vst [vmem:[%s143 + $0x8c] sm:$0xf] %v7233
      %7362 = vst [vmem:[%s143 + $0x90] sm:$0xf] %v7234
      %7363 = vst [vmem:[%s143 + $0x94] sm:$0xf] %v7235
      %7364 = vst [vmem:[%s143 + $0x98] sm:$0xf] %v7236
      %7365 = vst [vmem:[%s143 + $0x9c] sm:$0xf] %v7237
      %7366 = vst [vmem:[%s143 + $0xa0] sm:$0xf] %v7238
      %7367 = vst [vmem:[%s143 + $0xa4] sm:$0xf] %v7239
      %7368 = vst [vmem:[%s143 + $0xa8] sm:$0xf] %v7240
      %7369 = vst [vmem:[%s143 + $0xac] sm:$0xf] %v7241
      %7370 = vst [vmem:[%s143 + $0xb0] sm:$0xf] %v7242
      %7371 = vst [vmem:[%s143 + $0xb4] sm:$0xf] %v7243
      %7372 = vst [vmem:[%s143 + $0xb8] sm:$0xf] %v7244
      %7373 = vst [vmem:[%s143 + $0xbc] sm:$0xf] %v7245
      %7374 = vst [vmem:[%s143 + $0xc0] sm:$0xf] %v7246
      %7375 = vst [vmem:[%s143 + $0xc4] sm:$0xf] %v7247
      %7376 = vst [vmem:[%s143 + $0xc8] sm:$0xf] %v7248
      %7377 = vst [vmem:[%s143 + $0xcc] sm:$0xf] %v7249
      %7378 = vst [vmem:[%s143 + $0xd0] sm:$0xf] %v7250
      %7379 = vst [vmem:[%s143 + $0xd4] sm:$0xf] %v7251
      %7380 = vst [vmem:[%s143 + $0xd8] sm:$0xf] %v7252
      %7381 = vst [vmem:[%s143 + $0xdc] sm:$0xf] %v7253
      %7382 = vst [vmem:[%s143 + $0xe0] sm:$0xf] %v7254
      %7383 = vst [vmem:[%s143 + $0xe4] sm:$0xf] %v7255
      %7384 = vst [vmem:[%s143 + $0xe8] sm:$0xf] %v7256
      %7385 = vst [vmem:[%s143 + $0xec] sm:$0xf] %v7257
      %7386 = vst [vmem:[%s143 + $0xf0] sm:$0xf] %v7258
      %7387 = vst [vmem:[%s143 + $0xf4] sm:$0xf] %v7259
      %7388 = vst [vmem:[%s143 + $0xf8] sm:$0xf] %v7260
      %7389 = vst [vmem:[%s143 + $0xfc] sm:$0xf] %v7261
      %7390 = vst [vmem:[%s143 + $0x100] sm:$0xf] %v7262
      %7391 = vst [vmem:[%s143 + $0x104] sm:$0xf] %v7263
      %7392 = vst [vmem:[%s143 + $0x108] sm:$0xf] %v7264
      %7393 = vst [vmem:[%s143 + $0x10c] sm:$0xf] %v7265
      %7394 = vst [vmem:[%s143 + $0x110] sm:$0xf] %v7266
      %7395 = vst [vmem:[%s143 + $0x114] sm:$0xf] %v7267
      %7396 = vst [vmem:[%s143 + $0x118] sm:$0xf] %v7268
      %7397 = vst [vmem:[%s143 + $0x11c] sm:$0xf] %v7269
      %7398 = vst [vmem:[%s143 + $0x120] sm:$0xf] %v7270
      %7399 = vst [vmem:[%s143 + $0x124] sm:$0xf] %v7271
      %7400 = vst [vmem:[%s143 + $0x128] sm:$0xf] %v7272
      %7401 = vst [vmem:[%s143 + $0x12c] sm:$0xf] %v7273
      %7402 = vst [vmem:[%s143 + $0x130] sm:$0xf] %v7274
      %7403 = vst [vmem:[%s143 + $0x134] sm:$0xf] %v7275
      %7404 = vst [vmem:[%s143 + $0x138] sm:$0xf] %v7276
      %7405 = vst [vmem:[%s143 + $0x13c] sm:$0xf] %v7277
      %7406 = vst [vmem:[%s143 + $0x140] sm:$0xf] %v7278
      %7407 = vst [vmem:[%s143 + $0x144] sm:$0xf] %v7279
      %7408 = vst [vmem:[%s143 + $0x148] sm:$0xf] %v7280
      %7409 = vst [vmem:[%s143 + $0x14c] sm:$0xf] %v7281
      %7410 = vst [vmem:[%s143 + $0x150] sm:$0xf] %v7282
      %7411 = vst [vmem:[%s143 + $0x154] sm:$0xf] %v7283
      %7412 = vst [vmem:[%s143 + $0x158] sm:$0xf] %v7284
      %7413 = vst [vmem:[%s143 + $0x15c] sm:$0xf] %v7285
      %7414 = vst [vmem:[%s143 + $0x160] sm:$0xf] %v7286
      %7415 = vst [vmem:[%s143 + $0x164] sm:$0xf] %v7287
      %7416 = vst [vmem:[%s143 + $0x168] sm:$0xf] %v7288
      %7417 = vst [vmem:[%s143 + $0x16c] sm:$0xf] %v7289
      %7418 = vst [vmem:[%s143 + $0x170] sm:$0xf] %v7290
      %7419 = vst [vmem:[%s143 + $0x174] sm:$0xf] %v7291
      %7420 = vst [vmem:[%s143 + $0x178] sm:$0xf] %v7292
      %7421 = vst [vmem:[%s143 + $0x17c] sm:$0xf] %v7293
      %7422 = vst [vmem:[%s143 + $0x180] sm:$0xf] %v7294
      %7423 = vst [vmem:[%s143 + $0x184] sm:$0xf] %v7295
      %7424 = vst [vmem:[%s143 + $0x188] sm:$0xf] %v7296
      %7425 = vst [vmem:[%s143 + $0x18c] sm:$0xf] %v7297
      %7426 = vst [vmem:[%s143 + $0x190] sm:$0xf] %v7298
      %7427 = vst [vmem:[%s143 + $0x194] sm:$0xf] %v7299
      %7428 = vst [vmem:[%s143 + $0x198] sm:$0xf] %v7300
      %7429 = vst [vmem:[%s143 + $0x19c] sm:$0xf] %v7301
      %7430 = vst [vmem:[%s143 + $0x1a0] sm:$0xf] %v7302
      %7431 = vst [vmem:[%s143 + $0x1a4] sm:$0xf] %v7303
      %7432 = vst [vmem:[%s143 + $0x1a8] sm:$0xf] %v7304
      %7433 = vst [vmem:[%s143 + $0x1ac] sm:$0xf] %v7305
      %7434 = vst [vmem:[%s143 + $0x1b0] sm:$0xf] %v7306
      %7435 = vst [vmem:[%s143 + $0x1b4] sm:$0xf] %v7307
      %7436 = vst [vmem:[%s143 + $0x1b8] sm:$0xf] %v7308
      %7437 = vst [vmem:[%s143 + $0x1bc] sm:$0xf] %v7309
      %7438 = vst [vmem:[%s143 + $0x1c0] sm:$0xf] %v7310
      %7439 = vst [vmem:[%s143 + $0x1c4] sm:$0xf] %v7311
      %7440 = vst [vmem:[%s143 + $0x1c8] sm:$0xf] %v7312
      %7441 = vst [vmem:[%s143 + $0x1cc] sm:$0xf] %v7313
      %7442 = vst [vmem:[%s143 + $0x1d0] sm:$0xf] %v7314
      %7443 = vst [vmem:[%s143 + $0x1d4] sm:$0xf] %v7315
      %7444 = vst [vmem:[%s143 + $0x1d8] sm:$0xf] %v7316
      %7445 = vst [vmem:[%s143 + $0x1dc] sm:$0xf] %v7317
      %7446 = vst [vmem:[%s143 + $0x1e0] sm:$0xf] %v7318
      %7447 = vst [vmem:[%s143 + $0x1e4] sm:$0xf] %v7319
      %7448 = vst [vmem:[%s143 + $0x1e8] sm:$0xf] %v7320
      %7449 = vst [vmem:[%s143 + $0x1ec] sm:$0xf] %v7321
      %7450 = vst [vmem:[%s143 + $0x1f0] sm:$0xf] %v7322
      %7451 = vst [vmem:[%s143 + $0x1f4] sm:$0xf] %v7323
      %7452 = vst [vmem:[%s143 + $0x1f8] sm:$0xf] %v7324
      %7453 = vst [vmem:[%s143 + $0x1fc] sm:$0xf] %v7325
      %s7454 = smul.u32 128, %s13
      %p7455 = scmp.lt.s32.totalorder %s7454, 255
      %s7456 = scalar_select %p7455, %s7454, 255
      %s7457 = smul.addr %s7456, 4
      %s7458 = scalar_lea.vmem %s2, %s7457
      // Predicated region
      $region29: #{image_discriminator64_forward.8} parent=27 // pred_check
        %p7459 = pneg %p78
      $region30: #{image_discriminator64_forward.8} parent=27 // pred_check_branch
        %7461 = sbr.rel (%p7459) target = $region32
      $region31: #{image_discriminator64_forward.8} parent=27 // pred_region
        %s7462 = smul.u32 128, %s13
      $region32: #{image_discriminator64_forward.8} parent=27 // pred_fallthru
        _
    $region28: #{image_discriminator64_forward.8} parent=5 // pred_fallthru
      _
    %p7463 = scmp.le.s32.totalorder 2, %s8
    // Predicated region
    $region33: #{image_discriminator64_forward.8} parent=5 // pred_check
      %p7464 = pneg %p7463
    $region34: #{image_discriminator64_forward.8} parent=5 // pred_check_branch
      %7466 = sbr.rel (%p7464) target = $region36
    $region35: #{image_discriminator64_forward.8} parent=5 // pred_region
      %s7467 = ssub.s32 %s8, 2
      // Predicated region
      $region37: #{image_discriminator64_forward.8} parent=35 // pred_check
        %p7468 = pneg %p84
      $region38: #{image_discriminator64_forward.8} parent=35 // pred_check_branch
        %7470 = sbr.rel (%p7468) target = $region40
      $region39: #{image_discriminator64_forward.8} parent=35 // pred_region
        %s7471 = smul.u32 128, %s14
        %p7472 = scmp.lt.s32.totalorder %s7471, 255
        %s7473 = scalar_select %p7472, %s7471, 255
        %s7474 = smul.addr %s7473, 4
        %s7475 = scalar_lea.vmem %s2, %s7474
      $region40: #{image_discriminator64_forward.8} parent=35 // pred_fallthru
        _
    $region36: #{image_discriminator64_forward.8} parent=5 // pred_fallthru
      _
  $region6: #{image_discriminator64_forward.8} parent=0 // loop_footer
    %s12 = sadd.s32 1, %s8
  $region7: #{image_discriminator64_forward.8} parent=0 // loop_footer_branch
    %7 = sbr.rel target = $region3
  $region8: #{image_discriminator64_forward.8} parent=0 // loop_exit
    _

// kernel: image_discriminator64_forward.12
$region0: #{image_discriminator64_forward.12}
  #allocation0 [shape = 'u32[]', space=smem, size = 0x4, offset = 0x4, fixed_abs, tag = 'smem constant byte address 0x4 - core index']
  #allocation1 [shape = 'u32[72,128]{1,0:T(1,128)}', space=vmem, size = 0x9000, scoped, tag = 'internal scratch']
  %s0 = inlined_call_operand.vmem [shape: bf16[128,128], index: 0, kind: input, shape index: {}]
  %s1 = inlined_call_operand.vmem [shape: f32[1,128], index: 1, kind: input, shape index: {}]
  %s2 = inlined_call_operand.vmem [shape: f32[1,128], index: 2, kind: input, shape index: {}]
  %s3 = inlined_call_operand.vmem [shape: bf16[128,128], index: 3, kind: output, shape index: {}]
  %s4 = sld [smem:[#allocation0]]
  $region45: #{image_discriminator64_forward.12} parent=0
    _
  %s6 = ssub.s32 1, %s4
  %s7 = scalar_select 0, %s6, %s4
  loop: start=0, step=1, limit=4
  $region2: #{image_discriminator64_forward.12} parent=0 // loop_pre_header
    _
  $region3: #{image_discriminator64_forward.12} parent=0 // loop_header
    %s9 = sphi 0, %s13
    %p10 = scmp.ge.s32.totalorder %s9, 4
    %s19 = sphi 0, %s21
    %s22 = sphi 0, %s19
    %s23 = sphi 0, %s22
    %s39 = sphi 0, %s23
    %s43 = sphi 0, %s43
    %s45 = sphi 0, %s43
    %s46 = sphi 0, %s45
    %s60 = sphi 0, %s46
    %s64 = sphi 0, %s64
    %s66 = sphi 0, %s64
    %s67 = sphi 0, %s66
    %s81 = sphi 0, %s67
    %s87 = sphi 0, %s89
    %s90 = sphi 0, %s87
    %s91 = sphi 0, %s90
    %s107 = sphi 0, %s91
  $region4: #{image_discriminator64_forward.12} parent=0 // loop_header_branch
    %12 = sbr.rel (%p10) target = $region8
  $region5: #{image_discriminator64_forward.12} parent=0 // loop_body
    %s14 = ssub.s32 %s9, 1
    %s15 = ssub.s32 %s9, 2
    %s16 = sadd.s32 %s9, 1
    %s17 = ssub.s32 %s9, %s16
    %p18 = scmp.eq.s32.totalorder %s17, 0
    %s20 = sadd.s32 %s19, 1
    %s21 = scalar_select %p18, %s19, %s20
    %p24 = pneg %p18
    %p25 = scmp.eq.s32.totalorder %s9, 1
    %p26 = por %p24, %p25
    %p27 = scmp.ne.s32.totalorder %s19, %s22
    %p28 = scmp.eq.s32.totalorder %s9, 0
    %p29 = por %p27, %p28
    %p30 = scmp.ne.s32.totalorder %s19, %s22
    %p31 = scmp.eq.s32.totalorder %s14, 1
    %p32 = por %p30, %p31
    %p33 = scmp.ne.s32.totalorder %s22, %s23
    %p34 = scmp.eq.s32.totalorder %s14, 0
    %p35 = por %p33, %p34
    %p36 = scmp.ne.s32.totalorder %s22, %s23
    %p37 = scmp.eq.s32.totalorder %s15, 1
    %p38 = por %p36, %p37
    %p40 = scmp.ne.s32.totalorder %s23, %s39
    %p41 = scmp.eq.s32.totalorder %s15, 0
    %p42 = por %p40, %p41
    %s44 = sadd.s32 %s43, 1
    %p47 = scmp.eq.s32.totalorder %s9, 1
    %p48 = scmp.ne.s32.totalorder %s43, %s45
    %p49 = scmp.eq.s32.totalorder %s9, 0
    %p50 = por %p48, %p49
    %p51 = scmp.ne.s32.totalorder %s43, %s45
    %p52 = scmp.eq.s32.totalorder %s14, 1
    %p53 = por %p51, %p52
    %p54 = scmp.ne.s32.totalorder %s45, %s46
    %p55 = scmp.eq.s32.totalorder %s14, 0
    %p56 = por %p54, %p55
    %p57 = scmp.ne.s32.totalorder %s45, %s46
    %p58 = scmp.eq.s32.totalorder %s15, 1
    %p59 = por %p57, %p58
    %p61 = scmp.ne.s32.totalorder %s46, %s60
    %p62 = scmp.eq.s32.totalorder %s15, 0
    %p63 = por %p61, %p62
    %s65 = sadd.s32 %s64, 1
    %p68 = scmp.eq.s32.totalorder %s9, 1
    %p69 = scmp.ne.s32.totalorder %s64, %s66
    %p70 = scmp.eq.s32.totalorder %s9, 0
    %p71 = por %p69, %p70
    %p72 = scmp.ne.s32.totalorder %s64, %s66
    %p73 = scmp.eq.s32.totalorder %s14, 1
    %p74 = por %p72, %p73
    %p75 = scmp.ne.s32.totalorder %s66, %s67
    %p76 = scmp.eq.s32.totalorder %s14, 0
    %p77 = por %p75, %p76
    %p78 = scmp.ne.s32.totalorder %s66, %s67
    %p79 = scmp.eq.s32.totalorder %s15, 1
    %p80 = por %p78, %p79
    %p82 = scmp.ne.s32.totalorder %s67, %s81
    %p83 = scmp.eq.s32.totalorder %s15, 0
    %p84 = por %p82, %p83
    %s85 = ssub.s32 %s9, %s16
    %p86 = scmp.eq.s32.totalorder %s85, 0
    %s88 = sadd.s32 %s87, 1
    %s89 = scalar_select %p86, %s87, %s88
    %p92 = pneg %p86
    %p93 = scmp.eq.s32.totalorder %s9, 1
    %p94 = por %p92, %p93
    %p95 = scmp.ne.s32.totalorder %s87, %s90
    %p96 = scmp.eq.s32.totalorder %s9, 0
    %p97 = por %p95, %p96
    %p98 = scmp.ne.s32.totalorder %s87, %s90
    %p99 = scmp.eq.s32.totalorder %s14, 1
    %p100 = por %p98, %p99
    %p101 = scmp.ne.s32.totalorder %s90, %s91
    %p102 = scmp.eq.s32.totalorder %s14, 0
    %p103 = por %p101, %p102
    %p104 = scmp.ne.s32.totalorder %s90, %s91
    %p105 = scmp.eq.s32.totalorder %s15, 1
    %p106 = por %p104, %p105
    %p108 = scmp.ne.s32.totalorder %s91, %s107
    %p109 = scmp.eq.s32.totalorder %s15, 0
    %p110 = por %p108, %p109
    %p111 = scmp.le.s32.totalorder 1, %s9
    %p112 = scmp.lt.s32.totalorder %s9, 3
    %p113 = pnand %p111, %p112
    %p114 = pneg %p113
    // Predicated region
    $region9: #{image_discriminator64_forward.12} parent=5 // pred_check
      _
    $region10: #{image_discriminator64_forward.12} parent=5 // pred_check_branch
      %116 = sbr.rel (%p113) target = $region12
    $region11: #{image_discriminator64_forward.12} parent=5 // pred_region
      %s117 = ssub.s32 %s9, 1
      // Predicated region
      $region13: #{image_discriminator64_forward.12} parent=11 // pred_check
        %p118 = pneg %p56
      $region14: #{image_discriminator64_forward.12} parent=11 // pred_check_branch
        %120 = sbr.rel (%p118) target = $region16
      $region15: #{image_discriminator64_forward.12} parent=11 // pred_region
        _
      $region16: #{image_discriminator64_forward.12} parent=11 // pred_fallthru
        _
      // Predicated region
      $region17: #{image_discriminator64_forward.12} parent=11 // pred_check
        %p121 = pneg %p77
      $region18: #{image_discriminator64_forward.12} parent=11 // pred_check_branch
        %123 = sbr.rel (%p121) target = $region20
      $region19: #{image_discriminator64_forward.12} parent=11 // pred_region
        _
      $region20: #{image_discriminator64_forward.12} parent=11 // pred_fallthru
        _
    $region12: #{image_discriminator64_forward.12} parent=5 // pred_fallthru
      _
    %p124 = scmp.lt.s32.totalorder %s9, 2
    // Predicated region
    $region21: #{image_discriminator64_forward.12} parent=5 // pred_check
      %p125 = pneg %p124
    $region22: #{image_discriminator64_forward.12} parent=5 // pred_check_branch
      %127 = sbr.rel (%p125) target = $region24
    $region23: #{image_discriminator64_forward.12} parent=5 // pred_region
      // Predicated region
      $region25: #{image_discriminator64_forward.12} parent=23 // pred_check
        %p128 = pneg %p29
      $region26: #{image_discriminator64_forward.12} parent=23 // pred_check_branch
        %130 = sbr.rel (%p128) target = $region28
      $region27: #{image_discriminator64_forward.12} parent=23 // pred_region
        %s131 = smul.u32 8, %s9
        %p132 = scmp.lt.s32.totalorder %s131, 15
        %s133 = scalar_select %p132, %s131, 15
        %s134 = smul.addr %s133, 4
        %s135 = scalar_lea.vmem %s0, %s134
        %s136 = smul.u32 8, %s9
      $region28: #{image_discriminator64_forward.12} parent=23 // pred_fallthru
        _
    $region24: #{image_discriminator64_forward.12} parent=5 // pred_fallthru
      _
    %p137 = scmp.le.s32.totalorder 1, %s9
    %p138 = scmp.lt.s32.totalorder %s9, 3
    %p139 = pnand %p137, %p138
    %p140 = pneg %p139
    // Predicated region
    $region29: #{image_discriminator64_forward.12} parent=5 // pred_check
      _
    $region30: #{image_discriminator64_forward.12} parent=5 // pred_check_branch
      %142 = sbr.rel (%p139) target = $region32
    $region31: #{image_discriminator64_forward.12} parent=5 // pred_region
      %s143 = ssub.s32 %s9, 1
      %s144 = smul.u32 8, %s14
      %p145 = scmp.lt.s32.totalorder %s144, 15
      %s146 = scalar_select %p145, %s144, 15
      %s147 = smul.addr %s146, 4
      %s148 = scalar_lea.vmem %s0, %s147
      %p149 = pneg %p35
      %p150 = pneg %p32
      %p151 = pneg %p56
      %p152 = pneg %p53
      %p153 = pneg %p77
      %p154 = pneg %p74
      %p155 = pneg %p103
      %p156 = pneg %p100
      %s157 = smul.u32 8, %s14
      %p158 = scmp.lt.s32.totalorder %s157, 15
      %s159 = scalar_select %p158, %s157, 15
      %s160 = smul.addr %s159, 4
      %s161 = scalar_lea.vmem %s3, %s160
      %s162 = smul.u32 8, %s14
      %p163 = scmp.lt.s32.totalorder %s162, 15
      %s164 = scalar_select %p163, %s162, 15
      %s165 = smul.addr %s164, 4
      %s166 = scalar_lea.vmem %s0, %s165
      %s167 = smul.u32 8, %s14
      %s168 = smul.u32 8, %s14
      %p169 = scmp.lt.s32.totalorder %s168, 15
      %s170 = scalar_select %p169, %s168, 15
      %s171 = smul.addr %s170, 4
      %s172 = scalar_lea.vmem %s3, %s171
      %s173 = smul.u32 8, %s14
      %v174 = vld [vmem:[%s166] sm:$0xf]
      %v175 = vld [vmem:[%s166 + $0x4] sm:$0xf]
      %v176 = vld [vmem:[%s166 + $0x8] sm:$0xf]
      %v177 = vld [vmem:[%s166 + $0xc] sm:$0xf]
      %v178 = vld [vmem:[%s166 + $0x10] sm:$0xf]
      %v179 = vld [vmem:[%s166 + $0x14] sm:$0xf]
      %v180 = vld [vmem:[%s166 + $0x18] sm:$0xf]
      %v181 = vld [vmem:[%s166 + $0x1c] sm:$0xf]
      %v182 = vunpack.c.l.bf16 %v174
      %v183 = vunpack.c.l.bf16 %v175
      %v184 = vunpack.c.l.bf16 %v176
      %v185 = vunpack.c.l.bf16 %v177
      %v186 = vunpack.c.l.bf16 %v178
      %v187 = vunpack.c.l.bf16 %v179
      %v188 = vunpack.c.l.bf16 %v180
      %v189 = vunpack.c.l.bf16 %v181
      %v190 = vld [vmem:[%s1] sm:$0x1]
      %v192 = vperm.slane %v190, 0
      %v194 = vmul.f32 %v182, %v192
      %v195 = vmul.f32 %v183, %v192
      %v196 = vmul.f32 %v184, %v192
      %v197 = vmul.f32 %v185, %v192
      %v198 = vmul.f32 %v186, %v192
      %v199 = vmul.f32 %v187, %v192
      %v200 = vmul.f32 %v188, %v192
      %v201 = vmul.f32 %v189, %v192
      %v202 = vld [vmem:[%s2] sm:$0x1]
      %v204 = vperm.slane %v202, 0
      %v206 = vadd.f32 %v194, %v204
      %v207 = vadd.f32 %v195, %v204
      %v208 = vadd.f32 %v196, %v204
      %v209 = vadd.f32 %v197, %v204
      %v210 = vadd.f32 %v198, %v204
      %v211 = vadd.f32 %v199, %v204
      %v212 = vadd.f32 %v200, %v204
      %v213 = vadd.f32 %v201, %v204
      %vm214 = vcmp.ge.f32.partialorder %v206, 0.0
      %vm215 = vcmp.ge.f32.partialorder %v207, 0.0
      %vm216 = vcmp.ge.f32.partialorder %v208, 0.0
      %vm217 = vcmp.ge.f32.partialorder %v209, 0.0
      %vm218 = vcmp.ge.f32.partialorder %v210, 0.0
      %vm219 = vcmp.ge.f32.partialorder %v211, 0.0
      %vm220 = vcmp.ge.f32.partialorder %v212, 0.0
      %vm221 = vcmp.ge.f32.partialorder %v213, 0.0
      %v222 = vmul.f32 %v206, 0.2
      %v223 = vmul.f32 %v207, 0.2
      %v224 = vmul.f32 %v208, 0.2
      %v225 = vmul.f32 %v209, 0.2
      %v226 = vmul.f32 %v210, 0.2
      %v227 = vmul.f32 %v211, 0.2
      %v228 = vmul.f32 %v212, 0.2
      %v229 = vmul.f32 %v213, 0.2
      %v230 = vsel %vm214, %v206, %v222
      %v231 = vsel %vm215, %v207, %v223
      %v232 = vsel %vm216, %v208, %v224
      %v233 = vsel %vm217, %v209, %v225
      %v234 = vsel %vm218, %v210, %v226
      %v235 = vsel %vm219, %v211, %v227
      %v236 = vsel %vm220, %v212, %v228
      %v237 = vsel %vm221, %v213, %v229
      %v238 = vpack.c.bf16 %v230, %v230
      %v239 = vpack.c.bf16 %v231, %v231
      %v240 = vpack.c.bf16 %v232, %v232
      %v241 = vpack.c.bf16 %v233, %v233
      %v242 = vpack.c.bf16 %v234, %v234
      %v243 = vpack.c.bf16 %v235, %v235
      %v244 = vpack.c.bf16 %v236, %v236
      %v245 = vpack.c.bf16 %v237, %v237
      %246 = vst [vmem:[%s172] sm:$0xf] %v238
      %247 = vst [vmem:[%s172 + $0x4] sm:$0xf] %v239
      %248 = vst [vmem:[%s172 + $0x8] sm:$0xf] %v240
      %249 = vst [vmem:[%s172 + $0xc] sm:$0xf] %v241
      %250 = vst [vmem:[%s172 + $0x10] sm:$0xf] %v242
      %251 = vst [vmem:[%s172 + $0x14] sm:$0xf] %v243
      %252 = vst [vmem:[%s172 + $0x18] sm:$0xf] %v244
      %253 = vst [vmem:[%s172 + $0x1c] sm:$0xf] %v245
      %s254 = smul.u32 8, %s14
      %p255 = scmp.lt.s32.totalorder %s254, 15
      %s256 = scalar_select %p255, %s254, 15
      %s257 = smul.addr %s256, 4
      %s258 = scalar_lea.vmem %s3, %s257
      // Predicated region
      $region33: #{image_discriminator64_forward.12} parent=31 // pred_check
        %p259 = pneg %p100
      $region34: #{image_discriminator64_forward.12} parent=31 // pred_check_branch
        %261 = sbr.rel (%p259) target = $region36
      $region35: #{image_discriminator64_forward.12} parent=31 // pred_region
        %s262 = smul.u32 8, %s14
      $region36: #{image_discriminator64_forward.12} parent=31 // pred_fallthru
        _
    $region32: #{image_discriminator64_forward.12} parent=5 // pred_fallthru
      _
    %p263 = scmp.le.s32.totalorder 2, %s9
    // Predicated region
    $region37: #{image_discriminator64_forward.12} parent=5 // pred_check
      %p264 = pneg %p263
    $region38: #{image_discriminator64_forward.12} parent=5 // pred_check_branch
      %266 = sbr.rel (%p264) target = $region40
    $region39: #{image_discriminator64_forward.12} parent=5 // pred_region
      %s267 = ssub.s32 %s9, 2
      // Predicated region
      $region41: #{image_discriminator64_forward.12} parent=39 // pred_check
        %p268 = pneg %p106
      $region42: #{image_discriminator64_forward.12} parent=39 // pred_check_branch
        %270 = sbr.rel (%p268) target = $region44
      $region43: #{image_discriminator64_forward.12} parent=39 // pred_region
        %s271 = smul.u32 8, %s15
        %p272 = scmp.lt.s32.totalorder %s271, 15
        %s273 = scalar_select %p272, %s271, 15
        %s274 = smul.addr %s273, 4
        %s275 = scalar_lea.vmem %s3, %s274
      $region44: #{image_discriminator64_forward.12} parent=39 // pred_fallthru
        _
    $region40: #{image_discriminator64_forward.12} parent=5 // pred_fallthru
      _
  $region6: #{image_discriminator64_forward.12} parent=0 // loop_footer
    %s13 = sadd.s32 1, %s9
  $region7: #{image_discriminator64_forward.12} parent=0 // loop_footer_branch
    %8 = sbr.rel target = $region3
  $region8: #{image_discriminator64_forward.12} parent=0 // loop_exit
    _

// kernel: image_discriminator64_forward.11
$region0: #{image_discriminator64_forward.11}
  #allocation0 [shape = 'u32[]', space=smem, size = 0x4, offset = 0x4, fixed_abs, tag = 'smem constant byte address 0x4 - core index']
  #allocation1 [shape = 'u32[72,128]{1,0:T(1,128)}', space=vmem, size = 0x9000, scoped, tag = 'internal scratch']
  %s0 = inlined_call_operand.vmem [shape: bf16[2,9,9,64], index: 0, kind: input, shape index: {}]
  %s1 = inlined_call_operand.vmem [shape: bf16[2,2,64,128], index: 1, kind: input, shape index: {}]
  %s2 = inlined_call_operand.vmem [shape: bf16[128,128], index: 2, kind: output, shape index: {0}]
  %s3 = inlined_call_operand.vmem [shape: f32[2,8,128], index: 3, kind: output, shape index: {1}]
  %4 = xla_tuple %s2, %s3
  %s5 = sld [smem:[#allocation0]]
  $region49: #{image_discriminator64_forward.11} parent=0
    _
  %s7 = ssub.s32 1, %s5
  %s8 = scalar_select 0, %s7, %s5
  loop: start=0, step=1, limit=4
  $region2: #{image_discriminator64_forward.11} parent=0 // loop_pre_header
    _
  $region3: #{image_discriminator64_forward.11} parent=0 // loop_header
    %s10 = sphi 0, %s14
    %p11 = scmp.ge.s32.totalorder %s10, 4
    %s20 = sphi 0, %s22
    %s23 = sphi 0, %s20
    %s24 = sphi 0, %s23
    %s40 = sphi 0, %s24
    %s44 = sphi 0, %s44
    %s46 = sphi 0, %s44
    %s47 = sphi 0, %s46
    %s61 = sphi 0, %s47
    %s67 = sphi 0, %s69
    %s70 = sphi 0, %s67
    %s71 = sphi 0, %s70
    %s87 = sphi 0, %s71
    %s93 = sphi 0, %s95
    %s96 = sphi 0, %s93
    %s97 = sphi 0, %s96
    %s113 = sphi 0, %s97
  $region4: #{image_discriminator64_forward.11} parent=0 // loop_header_branch
    %13 = sbr.rel (%p11) target = $region8
  $region5: #{image_discriminator64_forward.11} parent=0 // loop_body
    %s15 = ssub.s32 %s10, 1
    %s16 = ssub.s32 %s10, 2
    %s17 = sadd.s32 %s10, 1
    %s18 = ssub.s32 %s10, %s17
    %p19 = scmp.eq.s32.totalorder %s18, 0
    %s21 = sadd.s32 %s20, 1
    %s22 = scalar_select %p19, %s20, %s21
    %p25 = pneg %p19
    %p26 = scmp.eq.s32.totalorder %s10, 1
    %p27 = por %p25, %p26
    %p28 = scmp.ne.s32.totalorder %s20, %s23
    %p29 = scmp.eq.s32.totalorder %s10, 0
    %p30 = por %p28, %p29
    %p31 = scmp.ne.s32.totalorder %s20, %s23
    %p32 = scmp.eq.s32.totalorder %s15, 1
    %p33 = por %p31, %p32
    %p34 = scmp.ne.s32.totalorder %s23, %s24
    %p35 = scmp.eq.s32.totalorder %s15, 0
    %p36 = por %p34, %p35
    %p37 = scmp.ne.s32.totalorder %s23, %s24
    %p38 = scmp.eq.s32.totalorder %s16, 1
    %p39 = por %p37, %p38
    %p41 = scmp.ne.s32.totalorder %s24, %s40
    %p42 = scmp.eq.s32.totalorder %s16, 0
    %p43 = por %p41, %p42
    %s45 = sadd.s32 %s44, 1
    %p48 = scmp.eq.s32.totalorder %s10, 1
    %p49 = scmp.ne.s32.totalorder %s44, %s46
    %p50 = scmp.eq.s32.totalorder %s10, 0
    %p51 = por %p49, %p50
    %p52 = scmp.ne.s32.totalorder %s44, %s46
    %p53 = scmp.eq.s32.totalorder %s15, 1
    %p54 = por %p52, %p53
    %p55 = scmp.ne.s32.totalorder %s46, %s47
    %p56 = scmp.eq.s32.totalorder %s15, 0
    %p57 = por %p55, %p56
    %p58 = scmp.ne.s32.totalorder %s46, %s47
    %p59 = scmp.eq.s32.totalorder %s16, 1
    %p60 = por %p58, %p59
    %p62 = scmp.ne.s32.totalorder %s47, %s61
    %p63 = scmp.eq.s32.totalorder %s16, 0
    %p64 = por %p62, %p63
    %s65 = ssub.s32 %s10, %s17
    %p66 = scmp.eq.s32.totalorder %s65, 0
    %s68 = sadd.s32 %s67, 1
    %s69 = scalar_select %p66, %s67, %s68
    %p72 = pneg %p66
    %p73 = scmp.eq.s32.totalorder %s10, 1
    %p74 = por %p72, %p73
    %p75 = scmp.ne.s32.totalorder %s67, %s70
    %p76 = scmp.eq.s32.totalorder %s10, 0
    %p77 = por %p75, %p76
    %p78 = scmp.ne.s32.totalorder %s67, %s70
    %p79 = scmp.eq.s32.totalorder %s15, 1
    %p80 = por %p78, %p79
    %p81 = scmp.ne.s32.totalorder %s70, %s71
    %p82 = scmp.eq.s32.totalorder %s15, 0
    %p83 = por %p81, %p82
    %p84 = scmp.ne.s32.totalorder %s70, %s71
    %p85 = scmp.eq.s32.totalorder %s16, 1
    %p86 = por %p84, %p85
    %p88 = scmp.ne.s32.totalorder %s71, %s87
    %p89 = scmp.eq.s32.totalorder %s16, 0
    %p90 = por %p88, %p89
    %s91 = ssub.s32 %s10, %s17
    %p92 = scmp.eq.s32.totalorder %s91, 0
    %s94 = sadd.s32 %s93, 1
    %s95 = scalar_select %p92, %s93, %s94
    %p98 = pneg %p92
    %p99 = scmp.eq.s32.totalorder %s10, 1
    %p100 = por %p98, %p99
    %p101 = scmp.ne.s32.totalorder %s93, %s96
    %p102 = scmp.eq.s32.totalorder %s10, 0
    %p103 = por %p101, %p102
    %p104 = scmp.ne.s32.totalorder %s93, %s96
    %p105 = scmp.eq.s32.totalorder %s15, 1
    %p106 = por %p104, %p105
    %p107 = scmp.ne.s32.totalorder %s96, %s97
    %p108 = scmp.eq.s32.totalorder %s15, 0
    %p109 = por %p107, %p108
    %p110 = scmp.ne.s32.totalorder %s96, %s97
    %p111 = scmp.eq.s32.totalorder %s16, 1
    %p112 = por %p110, %p111
    %p114 = scmp.ne.s32.totalorder %s97, %s113
    %p115 = scmp.eq.s32.totalorder %s16, 0
    %p116 = por %p114, %p115
    %p117 = scmp.le.s32.totalorder 1, %s10
    %p118 = scmp.lt.s32.totalorder %s10, 3
    %p119 = pnand %p117, %p118
    %p120 = pneg %p119
    // Predicated region
    $region9: #{image_discriminator64_forward.11} parent=5 // pred_check
      _
    $region10: #{image_discriminator64_forward.11} parent=5 // pred_check_branch
      %122 = sbr.rel (%p119) target = $region12
    $region11: #{image_discriminator64_forward.11} parent=5 // pred_region
      %s123 = ssub.s32 %s10, 1
      // Predicated region
      $region13: #{image_discriminator64_forward.11} parent=11 // pred_check
        %p124 = pneg %p57
      $region14: #{image_discriminator64_forward.11} parent=11 // pred_check_branch
        %126 = sbr.rel (%p124) target = $region16
      $region15: #{image_discriminator64_forward.11} parent=11 // pred_region
        _
      $region16: #{image_discriminator64_forward.11} parent=11 // pred_fallthru
        _
    $region12: #{image_discriminator64_forward.11} parent=5 // pred_fallthru
      _
    %p127 = scmp.lt.s32.totalorder %s10, 2
    // Predicated region
    $region17: #{image_discriminator64_forward.11} parent=5 // pred_check
      %p128 = pneg %p127
    $region18: #{image_discriminator64_forward.11} parent=5 // pred_check_branch
      %130 = sbr.rel (%p128) target = $region20
    $region19: #{image_discriminator64_forward.11} parent=5 // pred_region
      // Predicated region
      $region21: #{image_discriminator64_forward.11} parent=19 // pred_check
        %p131 = pneg %p30
      $region22: #{image_discriminator64_forward.11} parent=19 // pred_check_branch
        %133 = sbr.rel (%p131) target = $region24
      $region23: #{image_discriminator64_forward.11} parent=19 // pred_region
        %p134 = scmp.lt.s32.totalorder %s10, 1
        %s135 = scalar_select %p134, %s10, 1
        %s136 = smul.addr %s135, 18
        %s137 = smul.addr %s136, 4
        %s138 = scalar_lea.vmem %s0, %s137
      $region24: #{image_discriminator64_forward.11} parent=19 // pred_fallthru
        _
    $region20: #{image_discriminator64_forward.11} parent=5 // pred_fallthru
      _
    %p139 = scmp.le.s32.totalorder 1, %s10
    %p140 = scmp.lt.s32.totalorder %s10, 3
    %p141 = pnand %p139, %p140
    %p142 = pneg %p141
    // Predicated region
    $region25: #{image_discriminator64_forward.11} parent=5 // pred_check
      _
    $region26: #{image_discriminator64_forward.11} parent=5 // pred_check_branch
      %144 = sbr.rel (%p141) target = $region28
    $region27: #{image_discriminator64_forward.11} parent=5 // pred_region
      %s145 = ssub.s32 %s10, 1
      %p146 = scmp.lt.s32.totalorder %s15, 1
      %s147 = scalar_select %p146, %s15, 1
      %s148 = smul.addr %s147, 18
      %s149 = smul.addr %s148, 4
      %s150 = scalar_lea.vmem %s0, %s149
      %p151 = pneg %p36
      %p152 = pneg %p33
      %p153 = pneg %p57
      %p154 = pneg %p54
      %p155 = pneg %p83
      %p156 = pneg %p80
      %s157 = smul.u32 8, %s15
      %p158 = scmp.lt.s32.totalorder %s157, 15
      %s159 = scalar_select %p158, %s157, 15
      %s160 = smul.addr %s159, 4
      %s161 = scalar_lea.vmem %s2, %s160
      %p162 = pneg %p109
      %p163 = pneg %p106
      %p164 = scmp.lt.s32.totalorder %s15, 1
      %s165 = scalar_select %p164, %s15, 1
      %s166 = smul.addr %s165, 8
      %s167 = scalar_lea.vmem %s3, %s166
      %p168 = scmp.lt.s32.totalorder %s15, 1
      %s169 = scalar_select %p168, %s15, 1
      %s170 = smul.addr %s169, 18
      %s171 = smul.addr %s170, 4
      %s172 = scalar_lea.vmem %s0, %s171
      %s173 = smul.u32 8, %s15
      %p174 = scmp.lt.s32.totalorder %s173, 15
      %s175 = scalar_select %p174, %s173, 15
      %s176 = smul.addr %s175, 4
      %s177 = scalar_lea.vmem %s2, %s176
      %s178 = smul.u32 8, %s15
      %p179 = scmp.lt.s32.totalorder %s15, 1
      %s180 = scalar_select %p179, %s15, 1
      %s181 = smul.addr %s180, 8
      %s182 = scalar_lea.vmem %s3, %s181
      %v184 = vld [vmem:[%s172] sm:$0xf]
      %v185 = vld [vmem:[%s172 + $0x8] sm:$0xf]
      %v186 = vld [vmem:[%s172 + $0x10] sm:$0xf]
      %v187 = vld [vmem:[%s172 + $0x18] sm:$0xf]
      %v188 = vld [vmem:[%s172 + $0x20] sm:$0xf]
      %v189 = vld [vmem:[%s172 + $0x28] sm:$0xf]
      %v190 = vld [vmem:[%s172 + $0x30] sm:$0xf]
      %v191 = vld [vmem:[%s172 + $0x38] sm:$0xf]
      %v192 = vld [vmem:[%s1] sm:$0xf]
      %v193 = vld [vmem:[%s1 + $0x4] sm:$0xf]
      %v194 = vld [vmem:[%s1 + $0x8] sm:$0xf]
      %v195 = vld [vmem:[%s1 + $0xc] sm:$0xf]
      %v196 = vld [vmem:[%s1 + $0x10] sm:$0xf]
      %v197 = vld [vmem:[%s1 + $0x14] sm:$0xf]
      %v198 = vld [vmem:[%s1 + $0x18] sm:$0xf]
      %v199 = vld [vmem:[%s1 + $0x1c] sm:$0xf]
      %v200 = vld [vmem:[%s172 + $0x4] sm:$0x1]
      %v201 = vld [vmem:[%s172 + $0xc] sm:$0x1]
      %v202 = vld [vmem:[%s172 + $0x14] sm:$0x1]
      %v203 = vld [vmem:[%s172 + $0x1c] sm:$0x1]
      %v204 = vld [vmem:[%s172 + $0x24] sm:$0x1]
      %v205 = vld [vmem:[%s172 + $0x2c] sm:$0x1]
      %v206 = vld [vmem:[%s172 + $0x34] sm:$0x1]
      %v207 = vld [vmem:[%s172 + $0x3c] sm:$0x1]
      %vm208 = vsmask.f32 3328
      %vm209 = vsmask.f32 7440
      %vm210 = vmor %vm208, %vm209
      %v212 = vshrl.u32 %v184, 16
      %v214 = vrot.slane %v212, 4
      %v215 = vshll.u32 %v184, 16
      %v217 = vrot.slane %v215, 5
      %v218 = vor.u32 %v214, %v217
      %v219 = vrot.slane %v218, 4
      %v221 = vshll.u32 %v200, 16
      %v223 = vrot.slane %v221, 5
      %v224 = vsel %vm210, %v219, %v223
      %v226 = vshrl.u32 %v185, 16
      %v228 = vrot.slane %v226, 4
      %v229 = vshll.u32 %v185, 16
      %v231 = vrot.slane %v229, 5
      %v232 = vor.u32 %v228, %v231
      %v233 = vrot.slane %v232, 4
      %v235 = vshll.u32 %v201, 16
      %v237 = vrot.slane %v235, 5
      %v238 = vsel %vm210, %v233, %v237
      %v240 = vshrl.u32 %v186, 16
      %v242 = vrot.slane %v240, 4
      %v243 = vshll.u32 %v186, 16
      %v245 = vrot.slane %v243, 5
      %v246 = vor.u32 %v242, %v245
      %v247 = vrot.slane %v246, 4
      %v249 = vshll.u32 %v202, 16
      %v251 = vrot.slane %v249, 5
      %v252 = vsel %vm210, %v247, %v251
      %v254 = vshrl.u32 %v187, 16
      %v256 = vrot.slane %v254, 4
      %v257 = vshll.u32 %v187, 16
      %v259 = vrot.slane %v257, 5
      %v260 = vor.u32 %v256, %v259
      %v261 = vrot.slane %v260, 4
      %v263 = vshll.u32 %v203, 16
      %v265 = vrot.slane %v263, 5
      %v266 = vsel %vm210, %v261, %v265
      %v268 = vshrl.u32 %v188, 16
      %v270 = vrot.slane %v268, 4
      %v271 = vshll.u32 %v188, 16
      %v273 = vrot.slane %v271, 5
      %v274 = vor.u32 %v270, %v273
      %v275 = vrot.slane %v274, 4
      %v277 = vshll.u32 %v204, 16
      %v279 = vrot.slane %v277, 5
      %v280 = vsel %vm210, %v275, %v279
      %v282 = vshrl.u32 %v189, 16
      %v284 = vrot.slane %v282, 4
      %v285 = vshll.u32 %v189, 16
      %v287 = vrot.slane %v285, 5
      %v288 = vor.u32 %v284, %v287
      %v289 = vrot.slane %v288, 4
      %v291 = vshll.u32 %v205, 16
      %v293 = vrot.slane %v291, 5
      %v294 = vsel %vm210, %v289, %v293
      %v296 = vshrl.u32 %v190, 16
      %v298 = vrot.slane %v296, 4
      %v299 = vshll.u32 %v190, 16
      %v301 = vrot.slane %v299, 5
      %v302 = vor.u32 %v298, %v301
      %v303 = vrot.slane %v302, 4
      %v305 = vshll.u32 %v206, 16
      %v307 = vrot.slane %v305, 5
      %v308 = vsel %vm210, %v303, %v307
      %v310 = vshrl.u32 %v191, 16
      %v312 = vrot.slane %v310, 4
      %v313 = vshll.u32 %v191, 16
      %v315 = vrot.slane %v313, 5
      %v316 = vor.u32 %v312, %v315
      %v317 = vrot.slane %v316, 4
      %v319 = vshll.u32 %v207, 16
      %v321 = vrot.slane %v319, 5
      %v322 = vsel %vm210, %v317, %v321
      %s323 = scalar_lea.vmem %s1, 32
      %v324 = vld [vmem:[%s323] sm:$0xf]
      %v325 = vld [vmem:[%s323 + $0x4] sm:$0xf]
      %v326 = vld [vmem:[%s323 + $0x8] sm:$0xf]
      %v327 = vld [vmem:[%s323 + $0xc] sm:$0xf]
      %v328 = vld [vmem:[%s323 + $0x10] sm:$0xf]
      %v329 = vld [vmem:[%s323 + $0x14] sm:$0xf]
      %v330 = vld [vmem:[%s323 + $0x18] sm:$0xf]
      %v331 = vld [vmem:[%s323 + $0x1c] sm:$0xf]
      %v332 = vunpack.c.l.b16 %v224
      %v333 = vunpack.c.l.b16 %v238
      %v334 = vunpack.c.l.b16 %v252
      %v335 = vunpack.c.l.b16 %v266
      %v336 = vunpack.c.l.b16 %v280
      %v337 = vunpack.c.l.b16 %v294
      %v338 = vunpack.c.l.b16 %v308
      %v339 = vunpack.c.l.b16 %v322
      %v340 = vpack.c.b16 %v333, %v332
      %v341 = vpack.c.b16 %v335, %v334
      %v342 = vpack.c.b16 %v337, %v336
      %v343 = vpack.c.b16 %v339, %v338
      %v352 = vunpack.c.l.b16 %v324
      %v353 = vunpack.c.l.b16 %v325
      %v354 = vunpack.c.l.b16 %v326
      %v355 = vunpack.c.l.b16 %v327
      %v356 = vunpack.c.l.b16 %v328
      %v357 = vunpack.c.l.b16 %v329
      %v358 = vunpack.c.l.b16 %v330
      %v359 = vunpack.c.l.b16 %v331
      %v360 = vpack.c.b16 %v353, %v352
      %v361 = vpack.c.b16 %v355, %v354
      %v362 = vpack.c.b16 %v357, %v356
      %v363 = vpack.c.b16 %v359, %v358
      %vm368 = vcmask 523264
      %v370 = vsel %vm368, %v340, 0
      %v373 = vsel %vm368, %v341, 0
      %v376 = vsel %vm368, %v342, 0
      %v379 = vsel %vm368, %v343, 0
      %381 = vmatpush.bf16.msra.mxu0 0
      %382 = vmatpush.bf16.msra.mxu0 0
      %383 = vmatpush.bf16.msra.mxu0 0
      %384 = vmatpush.bf16.msra.mxu0 0
      %385 = vmatpush.bf16.msra.mxu0 %v363
      %386 = vmatpush.bf16.msra.mxu0 %v362
      %387 = vmatpush.bf16.msra.mxu0 %v361
      %388 = vmatpush.bf16.msra.mxu0 %v360
      %389 = vmatmul.bf16.gmra.mxu0 %v370
      %v390 = vpop.f32.mrf.mxu0
      %v391 = vadd.f32 0.0, %v390
      %v392 = vpop.f32.mrf.mxu0
      %v393 = vadd.f32 0.0, %v392
      %394 = vmatmul.bf16.gmra.mxu0 %v373
      %v395 = vpop.f32.mrf.mxu0
      %v396 = vadd.f32 0.0, %v395
      %v397 = vpop.f32.mrf.mxu0
      %v398 = vadd.f32 0.0, %v397
      %399 = vmatmul.bf16.gmra.mxu0 %v376
      %v400 = vpop.f32.mrf.mxu0
      %v401 = vadd.f32 0.0, %v400
      %v402 = vpop.f32.mrf.mxu0
      %v403 = vadd.f32 0.0, %v402
      %404 = vmatmul.bf16.gmra.mxu0 %v379
      %v405 = vpop.f32.mrf.mxu0
      %v406 = vadd.f32 0.0, %v405
      %v407 = vpop.f32.mrf.mxu0
      %v408 = vadd.f32 0.0, %v407
      %409 = vdwg.mxu0
      %v418 = vunpack.c.l.b16 %v184
      %v419 = vunpack.c.l.b16 %v185
      %v420 = vunpack.c.l.b16 %v186
      %v421 = vunpack.c.l.b16 %v187
      %v422 = vunpack.c.l.b16 %v188
      %v423 = vunpack.c.l.b16 %v189
      %v424 = vunpack.c.l.b16 %v190
      %v425 = vunpack.c.l.b16 %v191
      %v426 = vpack.c.b16 %v419, %v418
      %v427 = vpack.c.b16 %v421, %v420
      %v428 = vpack.c.b16 %v423, %v422
      %v429 = vpack.c.b16 %v425, %v424
      %v438 = vunpack.c.l.b16 %v192
      %v439 = vunpack.c.l.b16 %v193
      %v440 = vunpack.c.l.b16 %v194
      %v441 = vunpack.c.l.b16 %v195
      %v442 = vunpack.c.l.b16 %v196
      %v443 = vunpack.c.l.b16 %v197
      %v444 = vunpack.c.l.b16 %v198
      %v445 = vunpack.c.l.b16 %v199
      %v446 = vpack.c.b16 %v439, %v438
      %v447 = vpack.c.b16 %v441, %v440
      %v448 = vpack.c.b16 %v443, %v442
      %v449 = vpack.c.b16 %v445, %v444
      %v455 = vsel %vm368, %v426, 0
      %v458 = vsel %vm368, %v427, 0
      %v461 = vsel %vm368, %v428, 0
      %v464 = vsel %vm368, %v429, 0
      %466 = vmatpush.bf16.msra.mxu0 0
      %467 = vmatpush.bf16.msra.mxu0 0
      %468 = vmatpush.bf16.msra.mxu0 0
      %469 = vmatpush.bf16.msra.mxu0 0
      %470 = vmatpush.bf16.msra.mxu0 %v449
      %471 = vmatpush.bf16.msra.mxu0 %v448
      %472 = vmatpush.bf16.msra.mxu0 %v447
      %473 = vmatpush.bf16.msra.mxu0 %v446
      %474 = vmatmul.bf16.gmra.mxu0 %v455
      %v475 = vpop.f32.mrf.mxu0
      %v476 = vadd.f32 %v391, %v475
      %v477 = vpop.f32.mrf.mxu0
      %v478 = vadd.f32 %v393, %v477
      %479 = vmatmul.bf16.gmra.mxu0 %v458
      %v480 = vpop.f32.mrf.mxu0
      %v481 = vadd.f32 %v396, %v480
      %v482 = vpop.f32.mrf.mxu0
      %v483 = vadd.f32 %v398, %v482
      %484 = vmatmul.bf16.gmra.mxu0 %v461
      %v485 = vpop.f32.mrf.mxu0
      %v486 = vadd.f32 %v401, %v485
      %v487 = vpop.f32.mrf.mxu0
      %v488 = vadd.f32 %v403, %v487
      %489 = vmatmul.bf16.gmra.mxu0 %v464
      %v490 = vpop.f32.mrf.mxu0
      %v491 = vadd.f32 %v406, %v490
      %v492 = vpop.f32.mrf.mxu0
      %v493 = vadd.f32 %v408, %v492
      %494 = vdwg.mxu0
      %s495 = scalar_lea.vmem %s172, 8
      %v496 = vld [vmem:[%s495] sm:$0xf]
      %v497 = vld [vmem:[%s495 + $0x8] sm:$0xf]
      %v498 = vld [vmem:[%s495 + $0x10] sm:$0xf]
      %v499 = vld [vmem:[%s495 + $0x18] sm:$0xf]
      %v500 = vld [vmem:[%s495 + $0x20] sm:$0xf]
      %v501 = vld [vmem:[%s495 + $0x28] sm:$0xf]
      %v502 = vld [vmem:[%s495 + $0x30] sm:$0xf]
      %v503 = vld [vmem:[%s495 + $0x38] sm:$0xf]
      %s504 = scalar_lea.vmem %s1, 64
      %v505 = vld [vmem:[%s504] sm:$0xf]
      %v506 = vld [vmem:[%s504 + $0x4] sm:$0xf]
      %v507 = vld [vmem:[%s504 + $0x8] sm:$0xf]
      %v508 = vld [vmem:[%s504 + $0xc] sm:$0xf]
      %v509 = vld [vmem:[%s504 + $0x10] sm:$0xf]
      %v510 = vld [vmem:[%s504 + $0x14] sm:$0xf]
      %v511 = vld [vmem:[%s504 + $0x18] sm:$0xf]
      %v512 = vld [vmem:[%s504 + $0x1c] sm:$0xf]
      %v521 = vunpack.c.l.b16 %v496
      %v522 = vunpack.c.l.b16 %v497
      %v523 = vunpack.c.l.b16 %v498
      %v524 = vunpack.c.l.b16 %v499
      %v525 = vunpack.c.l.b16 %v500
      %v526 = vunpack.c.l.b16 %v501
      %v527 = vunpack.c.l.b16 %v502
      %v528 = vunpack.c.l.b16 %v503
      %v529 = vpack.c.b16 %v522, %v521
      %v530 = vpack.c.b16 %v524, %v523
      %v531 = vpack.c.b16 %v526, %v525
      %v532 = vpack.c.b16 %v528, %v527
      %v541 = vunpack.c.l.b16 %v505
      %v542 = vunpack.c.l.b16 %v506
      %v543 = vunpack.c.l.b16 %v507
      %v544 = vunpack.c.l.b16 %v508
      %v545 = vunpack.c.l.b16 %v509
      %v546 = vunpack.c.l.b16 %v510
      %v547 = vunpack.c.l.b16 %v511
      %v548 = vunpack.c.l.b16 %v512
      %v549 = vpack.c.b16 %v542, %v541
      %v550 = vpack.c.b16 %v544, %v543
      %v551 = vpack.c.b16 %v546, %v545
      %v552 = vpack.c.b16 %v548, %v547
      %v558 = vsel %vm368, %v529, 0
      %v561 = vsel %vm368, %v530, 0
      %v564 = vsel %vm368, %v531, 0
      %v567 = vsel %vm368, %v532, 0
      %569 = vmatpush.bf16.msra.mxu0 0
      %570 = vmatpush.bf16.msra.mxu0 0
      %571 = vmatpush.bf16.msra.mxu0 0
      %572 = vmatpush.bf16.msra.mxu0 0
      %573 = vmatpush.bf16.msra.mxu0 %v552
      %574 = vmatpush.bf16.msra.mxu0 %v551
      %575 = vmatpush.bf16.msra.mxu0 %v550
      %576 = vmatpush.bf16.msra.mxu0 %v549
      %577 = vmatmul.bf16.gmra.mxu0 %v558
      %v578 = vpop.f32.mrf.mxu0
      %v579 = vadd.f32 0.0, %v578
      %v580 = vpop.f32.mrf.mxu0
      %v581 = vadd.f32 0.0, %v580
      %582 = vmatmul.bf16.gmra.mxu0 %v561
      %v583 = vpop.f32.mrf.mxu0
      %v584 = vadd.f32 0.0, %v583
      %v585 = vpop.f32.mrf.mxu0
      %v586 = vadd.f32 0.0, %v585
      %587 = vmatmul.bf16.gmra.mxu0 %v564
      %v588 = vpop.f32.mrf.mxu0
      %v589 = vadd.f32 0.0, %v588
      %v590 = vpop.f32.mrf.mxu0
      %v591 = vadd.f32 0.0, %v590
      %592 = vmatmul.bf16.gmra.mxu0 %v567
      %v593 = vpop.f32.mrf.mxu0
      %v594 = vadd.f32 0.0, %v593
      %v595 = vpop.f32.mrf.mxu0
      %v596 = vadd.f32 0.0, %v595
      %597 = vdwg.mxu0
      %v598 = vadd.f32 %v476, %v579
      %v599 = vadd.f32 %v478, %v581
      %v600 = vadd.f32 %v481, %v584
      %v601 = vadd.f32 %v483, %v586
      %v602 = vadd.f32 %v486, %v589
      %v603 = vadd.f32 %v488, %v591
      %v604 = vadd.f32 %v491, %v594
      %v605 = vadd.f32 %v493, %v596
      %v606 = vld [vmem:[%s495] sm:$0xf]
      %v607 = vld [vmem:[%s495 + $0x4] sm:$0x1]
      %v608 = vld [vmem:[%s495 + $0x8] sm:$0xf]
      %v609 = vld [vmem:[%s495 + $0xc] sm:$0x1]
      %v610 = vld [vmem:[%s495 + $0x10] sm:$0xf]
      %v611 = vld [vmem:[%s495 + $0x14] sm:$0x1]
      %v612 = vld [vmem:[%s495 + $0x18] sm:$0xf]
      %v613 = vld [vmem:[%s495 + $0x1c] sm:$0x1]
      %v614 = vld [vmem:[%s495 + $0x20] sm:$0xf]
      %v615 = vld [vmem:[%s495 + $0x24] sm:$0x1]
      %v616 = vld [vmem:[%s495 + $0x28] sm:$0xf]
      %v617 = vld [vmem:[%s495 + $0x2c] sm:$0x1]
      %v618 = vld [vmem:[%s495 + $0x30] sm:$0xf]
      %v619 = vld [vmem:[%s495 + $0x34] sm:$0x1]
      %v620 = vld [vmem:[%s495 + $0x38] sm:$0xf]
      %v621 = vld [vmem:[%s495 + $0x3c] sm:$0x1]
      %v623 = vshrl.u32 %v606, 16
      %v625 = vrot.slane %v623, 4
      %v626 = vshll.u32 %v606, 16
      %v628 = vrot.slane %v626, 5
      %v629 = vor.u32 %v625, %v628
      %v630 = vrot.slane %v629, 4
      %v632 = vshll.u32 %v607, 16
      %v634 = vrot.slane %v632, 5
      %v635 = vsel %vm210, %v630, %v634
      %v637 = vshrl.u32 %v608, 16
      %v639 = vrot.slane %v637, 4
      %v640 = vshll.u32 %v608, 16
      %v642 = vrot.slane %v640, 5
      %v643 = vor.u32 %v639, %v642
      %v644 = vrot.slane %v643, 4
      %v646 = vshll.u32 %v609, 16
      %v648 = vrot.slane %v646, 5
      %v649 = vsel %vm210, %v644, %v648
      %v651 = vshrl.u32 %v610, 16
      %v653 = vrot.slane %v651, 4
      %v654 = vshll.u32 %v610, 16
      %v656 = vrot.slane %v654, 5
      %v657 = vor.u32 %v653, %v656
      %v658 = vrot.slane %v657, 4
      %v660 = vshll.u32 %v611, 16
      %v662 = vrot.slane %v660, 5
      %v663 = vsel %vm210, %v658, %v662
      %v665 = vshrl.u32 %v612, 16
      %v667 = vrot.slane %v665, 4
      %v668 = vshll.u32 %v612, 16
      %v670 = vrot.slane %v668, 5
      %v671 = vor.u32 %v667, %v670
      %v672 = vrot.slane %v671, 4
      %v674 = vshll.u32 %v613, 16
      %v676 = vrot.slane %v674, 5
      %v677 = vsel %vm210, %v672, %v676
      %v679 = vshrl.u32 %v614, 16
      %v681 = vrot.slane %v679, 4
      %v682 = vshll.u32 %v614, 16
      %v684 = vrot.slane %v682, 5
      %v685 = vor.u32 %v681, %v684
      %v686 = vrot.slane %v685, 4
      %v688 = vshll.u32 %v615, 16
      %v690 = vrot.slane %v688, 5
      %v691 = vsel %vm210, %v686, %v690
      %v693 = vshrl.u32 %v616, 16
      %v695 = vrot.slane %v693, 4
      %v696 = vshll.u32 %v616, 16
      %v698 = vrot.slane %v696, 5
      %v699 = vor.u32 %v695, %v698
      %v700 = vrot.slane %v699, 4
      %v702 = vshll.u32 %v617, 16
      %v704 = vrot.slane %v702, 5
      %v705 = vsel %vm210, %v700, %v704
      %v707 = vshrl.u32 %v618, 16
      %v709 = vrot.slane %v707, 4
      %v710 = vshll.u32 %v618, 16
      %v712 = vrot.slane %v710, 5
      %v713 = vor.u32 %v709, %v712
      %v714 = vrot.slane %v713, 4
      %v716 = vshll.u32 %v619, 16
      %v718 = vrot.slane %v716, 5
      %v719 = vsel %vm210, %v714, %v718
      %v721 = vshrl.u32 %v620, 16
      %v723 = vrot.slane %v721, 4
      %v724 = vshll.u32 %v620, 16
      %v726 = vrot.slane %v724, 5
      %v727 = vor.u32 %v723, %v726
      %v728 = vrot.slane %v727, 4
      %v730 = vshll.u32 %v621, 16
      %v732 = vrot.slane %v730, 5
      %v733 = vsel %vm210, %v728, %v732
      %s734 = scalar_lea.vmem %s1, 96
      %v735 = vld [vmem:[%s734] sm:$0xf]
      %v736 = vld [vmem:[%s734 + $0x4] sm:$0xf]
      %v737 = vld [vmem:[%s734 + $0x8] sm:$0xf]
      %v738 = vld [vmem:[%s734 + $0xc] sm:$0xf]
      %v739 = vld [vmem:[%s734 + $0x10] sm:$0xf]
      %v740 = vld [vmem:[%s734 + $0x14] sm:$0xf]
      %v741 = vld [vmem:[%s734 + $0x18] sm:$0xf]
      %v742 = vld [vmem:[%s734 + $0x1c] sm:$0xf]
      %v743 = vunpack.c.l.b16 %v635
      %v744 = vunpack.c.l.b16 %v649
      %v745 = vunpack.c.l.b16 %v663
      %v746 = vunpack.c.l.b16 %v677
      %v747 = vunpack.c.l.b16 %v691
      %v748 = vunpack.c.l.b16 %v705
      %v749 = vunpack.c.l.b16 %v719
      %v750 = vunpack.c.l.b16 %v733
      %v751 = vpack.c.b16 %v744, %v743
      %v752 = vpack.c.b16 %v746, %v745
      %v753 = vpack.c.b16 %v748, %v747
      %v754 = vpack.c.b16 %v750, %v749
      %v763 = vunpack.c.l.b16 %v735
      %v764 = vunpack.c.l.b16 %v736
      %v765 = vunpack.c.l.b16 %v737
      %v766 = vunpack.c.l.b16 %v738
      %v767 = vunpack.c.l.b16 %v739
      %v768 = vunpack.c.l.b16 %v740
      %v769 = vunpack.c.l.b16 %v741
      %v770 = vunpack.c.l.b16 %v742
      %v771 = vpack.c.b16 %v764, %v763
      %v772 = vpack.c.b16 %v766, %v765
      %v773 = vpack.c.b16 %v768, %v767
      %v774 = vpack.c.b16 %v770, %v769
      %v780 = vsel %vm368, %v751, 0
      %v783 = vsel %vm368, %v752, 0
      %v786 = vsel %vm368, %v753, 0
      %v789 = vsel %vm368, %v754, 0
      %791 = vmatpush.bf16.msra.mxu0 0
      %792 = vmatpush.bf16.msra.mxu0 0
      %793 = vmatpush.bf16.msra.mxu0 0
      %794 = vmatpush.bf16.msra.mxu0 0
      %795 = vmatpush.bf16.msra.mxu0 %v774
      %796 = vmatpush.bf16.msra.mxu0 %v773
      %797 = vmatpush.bf16.msra.mxu0 %v772
      %798 = vmatpush.bf16.msra.mxu0 %v771
      %799 = vmatmul.bf16.gmra.mxu0 %v780
      %v800 = vpop.f32.mrf.mxu0
      %v801 = vadd.f32 0.0, %v800
      %v802 = vpop.f32.mrf.mxu0
      %v803 = vadd.f32 0.0, %v802
      %804 = vmatmul.bf16.gmra.mxu0 %v783
      %v805 = vpop.f32.mrf.mxu0
      %v806 = vadd.f32 0.0, %v805
      %v807 = vpop.f32.mrf.mxu0
      %v808 = vadd.f32 0.0, %v807
      %809 = vmatmul.bf16.gmra.mxu0 %v786
      %v810 = vpop.f32.mrf.mxu0
      %v811 = vadd.f32 0.0, %v810
      %v812 = vpop.f32.mrf.mxu0
      %v813 = vadd.f32 0.0, %v812
      %814 = vmatmul.bf16.gmra.mxu0 %v789
      %v815 = vpop.f32.mrf.mxu0
      %v816 = vadd.f32 0.0, %v815
      %v817 = vpop.f32.mrf.mxu0
      %v818 = vadd.f32 0.0, %v817
      %819 = vdwg.mxu0
      %v820 = vadd.f32 %v598, %v801
      %v821 = vadd.f32 %v599, %v803
      %v822 = vadd.f32 %v600, %v806
      %v823 = vadd.f32 %v601, %v808
      %v824 = vadd.f32 %v602, %v811
      %v825 = vadd.f32 %v603, %v813
      %v826 = vadd.f32 %v604, %v816
      %v827 = vadd.f32 %v605, %v818
      %v828 = vpack.c.bf16 %v820, %v820
      %v829 = vpack.c.bf16 %v821, %v821
      %v830 = vpack.c.bf16 %v822, %v822
      %v831 = vpack.c.bf16 %v823, %v823
      %v832 = vpack.c.bf16 %v824, %v824
      %v833 = vpack.c.bf16 %v825, %v825
      %v834 = vpack.c.bf16 %v826, %v826
      %v835 = vpack.c.bf16 %v827, %v827
      %836 = vst [vmem:[%s177] sm:$0xf] %v828
      %837 = vst [vmem:[%s177 + $0x4] sm:$0xf] %v829
      %838 = vst [vmem:[%s177 + $0x8] sm:$0xf] %v830
      %839 = vst [vmem:[%s177 + $0xc] sm:$0xf] %v831
      %840 = vst [vmem:[%s177 + $0x10] sm:$0xf] %v832
      %841 = vst [vmem:[%s177 + $0x14] sm:$0xf] %v833
      %842 = vst [vmem:[%s177 + $0x18] sm:$0xf] %v834
      %843 = vst [vmem:[%s177 + $0x1c] sm:$0xf] %v835
      %844 = vst [vmem:[%s182] sm:$0xff] 0.0
      %v845 = vadd.f32 %v820, %v821
      %v846 = vadd.f32 %v845, %v822
      %v847 = vadd.f32 %v846, %v823
      %v848 = vadd.f32 %v847, %v824
      %v849 = vadd.f32 %v848, %v825
      %v850 = vadd.f32 %v849, %v826
      %v851 = vadd.f32 %v850, %v827
      %v852 = vrot.slane %v851, 4
      %v853 = vadd.f32 %v851, %v852
      %v854 = vrot.slane %v853, 2
      %v855 = vadd.f32 %v853, %v854
      %v856 = vrot.slane %v855, 1
      %v857 = vadd.f32 %v855, %v856
      %v858 = vmul.f32 %v820, %v820
      %v859 = vmul.f32 %v821, %v821
      %v860 = vmul.f32 %v822, %v822
      %v861 = vmul.f32 %v823, %v823
      %v862 = vmul.f32 %v824, %v824
      %v863 = vmul.f32 %v825, %v825
      %v864 = vmul.f32 %v826, %v826
      %v865 = vmul.f32 %v827, %v827
      %v866 = vadd.f32 %v858, %v859
      %v867 = vadd.f32 %v866, %v860
      %v868 = vadd.f32 %v867, %v861
      %v869 = vadd.f32 %v868, %v862
      %v870 = vadd.f32 %v869, %v863
      %v871 = vadd.f32 %v870, %v864
      %v872 = vadd.f32 %v871, %v865
      %v873 = vrot.slane %v872, 4
      %v874 = vadd.f32 %v872, %v873
      %v875 = vrot.slane %v874, 2
      %v876 = vadd.f32 %v874, %v875
      %v877 = vrot.slane %v876, 1
      %v878 = vadd.f32 %v876, %v877
      %879 = vst [vmem:[%s182] sm:$0x1] %v857
      %880 = vst [vmem:[%s182 + $0x1] sm:$0x1] %v878
      %s881 = smul.u32 8, %s15
      %p882 = scmp.lt.s32.totalorder %s881, 15
      %s883 = scalar_select %p882, %s881, 15
      %s884 = smul.addr %s883, 4
      %s885 = scalar_lea.vmem %s2, %s884
      %p886 = scmp.lt.s32.totalorder %s15, 1
      %s887 = scalar_select %p886, %s15, 1
      %s888 = smul.addr %s887, 8
      %s889 = scalar_lea.vmem %s3, %s888
      // Predicated region
      $region29: #{image_discriminator64_forward.11} parent=27 // pred_check
        %p890 = pneg %p80
      $region30: #{image_discriminator64_forward.11} parent=27 // pred_check_branch
        %892 = sbr.rel (%p890) target = $region32
      $region31: #{image_discriminator64_forward.11} parent=27 // pred_region
        %s893 = smul.u32 8, %s15
      $region32: #{image_discriminator64_forward.11} parent=27 // pred_fallthru
        _
      // Predicated region
      $region33: #{image_discriminator64_forward.11} parent=27 // pred_check
        %p894 = pneg %p106
      $region34: #{image_discriminator64_forward.11} parent=27 // pred_check_branch
        %896 = sbr.rel (%p894) target = $region36
      $region35: #{image_discriminator64_forward.11} parent=27 // pred_region
        _
      $region36: #{image_discriminator64_forward.11} parent=27 // pred_fallthru
        _
    $region28: #{image_discriminator64_forward.11} parent=5 // pred_fallthru
      _
    %p897 = scmp.le.s32.totalorder 2, %s10
    // Predicated region
    $region37: #{image_discriminator64_forward.11} parent=5 // pred_check
      %p898 = pneg %p897
    $region38: #{image_discriminator64_forward.11} parent=5 // pred_check_branch
      %900 = sbr.rel (%p898) target = $region40
    $region39: #{image_discriminator64_forward.11} parent=5 // pred_region
      %s901 = ssub.s32 %s10, 2
      // Predicated region
      $region41: #{image_discriminator64_forward.11} parent=39 // pred_check
        %p902 = pneg %p86
      $region42: #{image_discriminator64_forward.11} parent=39 // pred_check_branch
        %904 = sbr.rel (%p902) target = $region44
      $region43: #{image_discriminator64_forward.11} parent=39 // pred_region
        %s905 = smul.u32 8, %s16
        %p906 = scmp.lt.s32.totalorder %s905, 15
        %s907 = scalar_select %p906, %s905, 15
        %s908 = smul.addr %s907, 4
        %s909 = scalar_lea.vmem %s2, %s908
      $region44: #{image_discriminator64_forward.11} parent=39 // pred_fallthru
        _
      // Predicated region
      $region45: #{image_discriminator64_forward.11} parent=39 // pred_check
        %p910 = pneg %p112
      $region46: #{image_discriminator64_forward.11} parent=39 // pred_check_branch
        %912 = sbr.rel (%p910) target = $region48
      $region47: #{image_discriminator64_forward.11} parent=39 // pred_region
        %p913 = scmp.lt.s32.totalorder %s16, 1
        %s914 = scalar_select %p913, %s16, 1
        %s915 = smul.addr %s914, 8
        %s916 = scalar_lea.vmem %s3, %s915
      $region48: #{image_discriminator64_forward.11} parent=39 // pred_fallthru
        _
    $region40: #{image_discriminator64_forward.11} parent=5 // pred_fallthru
      _
  $region6: #{image_discriminator64_forward.11} parent=0 // loop_footer
    %s14 = sadd.s32 1, %s10
  $region7: #{image_discriminator64_forward.11} parent=0 // loop_footer_branch
    %9 = sbr.rel target = $region3
  $region8: #{image_discriminator64_forward.11} parent=0 // loop_exit
    _

// kernel: image_discriminator64_forward.14
$region0: #{image_discriminator64_forward.14}
  #allocation0 [shape = 'u32[]', space=smem, size = 0x4, offset = 0x4, fixed_abs, tag = 'smem constant byte address 0x4 - core index']
  #allocation1 [shape = 'u32[72,128]{1,0:T(1,128)}', space=vmem, size = 0x9000, scoped, tag = 'internal scratch']
  %s0 = inlined_call_operand.vmem [shape: f32[32,128], index: 0, kind: input, shape index: {}]
  %s1 = inlined_call_operand.vmem [shape: f32[1,128], index: 1, kind: input, shape index: {}]
  %s2 = inlined_call_operand.vmem [shape: f32[1,128], index: 2, kind: input, shape index: {}]
  %s3 = inlined_call_operand.vmem [shape: bf16[32,128], index: 3, kind: output, shape index: {}]
  %s4 = sld [smem:[#allocation0]]
  $region45: #{image_discriminator64_forward.14} parent=0
    _
  %s6 = ssub.s32 1, %s4
  %s7 = scalar_select 0, %s6, %s4
  loop: start=0, step=1, limit=4
  $region2: #{image_discriminator64_forward.14} parent=0 // loop_pre_header
    _
  $region3: #{image_discriminator64_forward.14} parent=0 // loop_header
    %s9 = sphi 0, %s13
    %p10 = scmp.ge.s32.totalorder %s9, 4
    %s19 = sphi 0, %s21
    %s22 = sphi 0, %s19
    %s23 = sphi 0, %s22
    %s39 = sphi 0, %s23
    %s43 = sphi 0, %s43
    %s45 = sphi 0, %s43
    %s46 = sphi 0, %s45
    %s60 = sphi 0, %s46
    %s64 = sphi 0, %s64
    %s66 = sphi 0, %s64
    %s67 = sphi 0, %s66
    %s81 = sphi 0, %s67
    %s87 = sphi 0, %s89
    %s90 = sphi 0, %s87
    %s91 = sphi 0, %s90
    %s107 = sphi 0, %s91
  $region4: #{image_discriminator64_forward.14} parent=0 // loop_header_branch
    %12 = sbr.rel (%p10) target = $region8
  $region5: #{image_discriminator64_forward.14} parent=0 // loop_body
    %s14 = ssub.s32 %s9, 1
    %s15 = ssub.s32 %s9, 2
    %s16 = sadd.s32 %s9, 1
    %s17 = ssub.s32 %s9, %s16
    %p18 = scmp.eq.s32.totalorder %s17, 0
    %s20 = sadd.s32 %s19, 1
    %s21 = scalar_select %p18, %s19, %s20
    %p24 = pneg %p18
    %p25 = scmp.eq.s32.totalorder %s9, 1
    %p26 = por %p24, %p25
    %p27 = scmp.ne.s32.totalorder %s19, %s22
    %p28 = scmp.eq.s32.totalorder %s9, 0
    %p29 = por %p27, %p28
    %p30 = scmp.ne.s32.totalorder %s19, %s22
    %p31 = scmp.eq.s32.totalorder %s14, 1
    %p32 = por %p30, %p31
    %p33 = scmp.ne.s32.totalorder %s22, %s23
    %p34 = scmp.eq.s32.totalorder %s14, 0
    %p35 = por %p33, %p34
    %p36 = scmp.ne.s32.totalorder %s22, %s23
    %p37 = scmp.eq.s32.totalorder %s15, 1
    %p38 = por %p36, %p37
    %p40 = scmp.ne.s32.totalorder %s23, %s39
    %p41 = scmp.eq.s32.totalorder %s15, 0
    %p42 = por %p40, %p41
    %s44 = sadd.s32 %s43, 1
    %p47 = scmp.eq.s32.totalorder %s9, 1
    %p48 = scmp.ne.s32.totalorder %s43, %s45
    %p49 = scmp.eq.s32.totalorder %s9, 0
    %p50 = por %p48, %p49
    %p51 = scmp.ne.s32.totalorder %s43, %s45
    %p52 = scmp.eq.s32.totalorder %s14, 1
    %p53 = por %p51, %p52
    %p54 = scmp.ne.s32.totalorder %s45, %s46
    %p55 = scmp.eq.s32.totalorder %s14, 0
    %p56 = por %p54, %p55
    %p57 = scmp.ne.s32.totalorder %s45, %s46
    %p58 = scmp.eq.s32.totalorder %s15, 1
    %p59 = por %p57, %p58
    %p61 = scmp.ne.s32.totalorder %s46, %s60
    %p62 = scmp.eq.s32.totalorder %s15, 0
    %p63 = por %p61, %p62
    %s65 = sadd.s32 %s64, 1
    %p68 = scmp.eq.s32.totalorder %s9, 1
    %p69 = scmp.ne.s32.totalorder %s64, %s66
    %p70 = scmp.eq.s32.totalorder %s9, 0
    %p71 = por %p69, %p70
    %p72 = scmp.ne.s32.totalorder %s64, %s66
    %p73 = scmp.eq.s32.totalorder %s14, 1
    %p74 = por %p72, %p73
    %p75 = scmp.ne.s32.totalorder %s66, %s67
    %p76 = scmp.eq.s32.totalorder %s14, 0
    %p77 = por %p75, %p76
    %p78 = scmp.ne.s32.totalorder %s66, %s67
    %p79 = scmp.eq.s32.totalorder %s15, 1
    %p80 = por %p78, %p79
    %p82 = scmp.ne.s32.totalorder %s67, %s81
    %p83 = scmp.eq.s32.totalorder %s15, 0
    %p84 = por %p82, %p83
    %s85 = ssub.s32 %s9, %s16
    %p86 = scmp.eq.s32.totalorder %s85, 0
    %s88 = sadd.s32 %s87, 1
    %s89 = scalar_select %p86, %s87, %s88
    %p92 = pneg %p86
    %p93 = scmp.eq.s32.totalorder %s9, 1
    %p94 = por %p92, %p93
    %p95 = scmp.ne.s32.totalorder %s87, %s90
    %p96 = scmp.eq.s32.totalorder %s9, 0
    %p97 = por %p95, %p96
    %p98 = scmp.ne.s32.totalorder %s87, %s90
    %p99 = scmp.eq.s32.totalorder %s14, 1
    %p100 = por %p98, %p99
    %p101 = scmp.ne.s32.totalorder %s90, %s91
    %p102 = scmp.eq.s32.totalorder %s14, 0
    %p103 = por %p101, %p102
    %p104 = scmp.ne.s32.totalorder %s90, %s91
    %p105 = scmp.eq.s32.totalorder %s15, 1
    %p106 = por %p104, %p105
    %p108 = scmp.ne.s32.totalorder %s91, %s107
    %p109 = scmp.eq.s32.totalorder %s15, 0
    %p110 = por %p108, %p109
    %p111 = scmp.le.s32.totalorder 1, %s9
    %p112 = scmp.lt.s32.totalorder %s9, 3
    %p113 = pnand %p111, %p112
    %p114 = pneg %p113
    // Predicated region
    $region9: #{image_discriminator64_forward.14} parent=5 // pred_check
      _
    $region10: #{image_discriminator64_forward.14} parent=5 // pred_check_branch
      %116 = sbr.rel (%p113) target = $region12
    $region11: #{image_discriminator64_forward.14} parent=5 // pred_region
      %s117 = ssub.s32 %s9, 1
      // Predicated region
      $region13: #{image_discriminator64_forward.14} parent=11 // pred_check
        %p118 = pneg %p56
      $region14: #{image_discriminator64_forward.14} parent=11 // pred_check_branch
        %120 = sbr.rel (%p118) target = $region16
      $region15: #{image_discriminator64_forward.14} parent=11 // pred_region
        _
      $region16: #{image_discriminator64_forward.14} parent=11 // pred_fallthru
        _
      // Predicated region
      $region17: #{image_discriminator64_forward.14} parent=11 // pred_check
        %p121 = pneg %p77
      $region18: #{image_discriminator64_forward.14} parent=11 // pred_check_branch
        %123 = sbr.rel (%p121) target = $region20
      $region19: #{image_discriminator64_forward.14} parent=11 // pred_region
        _
      $region20: #{image_discriminator64_forward.14} parent=11 // pred_fallthru
        _
    $region12: #{image_discriminator64_forward.14} parent=5 // pred_fallthru
      _
    %p124 = scmp.lt.s32.totalorder %s9, 2
    // Predicated region
    $region21: #{image_discriminator64_forward.14} parent=5 // pred_check
      %p125 = pneg %p124
    $region22: #{image_discriminator64_forward.14} parent=5 // pred_check_branch
      %127 = sbr.rel (%p125) target = $region24
    $region23: #{image_discriminator64_forward.14} parent=5 // pred_region
      // Predicated region
      $region25: #{image_discriminator64_forward.14} parent=23 // pred_check
        %p128 = pneg %p29
      $region26: #{image_discriminator64_forward.14} parent=23 // pred_check_branch
        %130 = sbr.rel (%p128) target = $region28
      $region27: #{image_discriminator64_forward.14} parent=23 // pred_region
        %s131 = smul.u32 2, %s9
        %p132 = scmp.lt.s32.totalorder %s131, 3
        %s133 = scalar_select %p132, %s131, 3
        %s134 = smul.addr %s133, 8
        %s135 = scalar_lea.vmem %s0, %s134
        %s136 = smul.u32 2, %s9
      $region28: #{image_discriminator64_forward.14} parent=23 // pred_fallthru
        _
    $region24: #{image_discriminator64_forward.14} parent=5 // pred_fallthru
      _
    %p137 = scmp.le.s32.totalorder 1, %s9
    %p138 = scmp.lt.s32.totalorder %s9, 3
    %p139 = pnand %p137, %p138
    %p140 = pneg %p139
    // Predicated region
    $region29: #{image_discriminator64_forward.14} parent=5 // pred_check
      _
    $region30: #{image_discriminator64_forward.14} parent=5 // pred_check_branch
      %142 = sbr.rel (%p139) target = $region32
    $region31: #{image_discriminator64_forward.14} parent=5 // pred_region
      %s143 = ssub.s32 %s9, 1
      %s144 = smul.u32 2, %s14
      %p145 = scmp.lt.s32.totalorder %s144, 3
      %s146 = scalar_select %p145, %s144, 3
      %s147 = smul.addr %s146, 8
      %s148 = scalar_lea.vmem %s0, %s147
      %p149 = pneg %p35
      %p150 = pneg %p32
      %p151 = pneg %p56
      %p152 = pneg %p53
      %p153 = pneg %p77
      %p154 = pneg %p74
      %p155 = pneg %p103
      %p156 = pneg %p100
      %s157 = smul.u32 2, %s14
      %p158 = scmp.lt.s32.totalorder %s157, 3
      %s159 = scalar_select %p158, %s157, 3
      %s160 = smul.addr %s159, 4
      %s161 = scalar_lea.vmem %s3, %s160
      %s162 = smul.u32 2, %s14
      %p163 = scmp.lt.s32.totalorder %s162, 3
      %s164 = scalar_select %p163, %s162, 3
      %s165 = smul.addr %s164, 8
      %s166 = scalar_lea.vmem %s0, %s165
      %s167 = smul.u32 2, %s14
      %s168 = smul.u32 2, %s14
      %p169 = scmp.lt.s32.totalorder %s168, 3
      %s170 = scalar_select %p169, %s168, 3
      %s171 = smul.addr %s170, 4
      %s172 = scalar_lea.vmem %s3, %s171
      %s173 = smul.u32 2, %s14
      %v174 = vld [vmem:[%s166] sm:$0xff]
      %v175 = vld [vmem:[%s166 + $0x8] sm:$0xff]
      %v176 = vld [vmem:[%s1] sm:$0x1]
      %v178 = vperm.slane %v176, 0
      %v180 = vmul.f32 %v174, %v178
      %v181 = vmul.f32 %v175, %v178
      %v182 = vld [vmem:[%s2] sm:$0x1]
      %v184 = vperm.slane %v182, 0
      %v186 = vadd.f32 %v180, %v184
      %v187 = vadd.f32 %v181, %v184
      %vm188 = vcmp.ge.f32.partialorder %v186, 0.0
      %vm189 = vcmp.ge.f32.partialorder %v187, 0.0
      %v190 = vmul.f32 %v186, 0.2
      %v191 = vmul.f32 %v187, 0.2
      %v192 = vsel %vm188, %v186, %v190
      %v193 = vsel %vm189, %v187, %v191
      %v194 = vpack.c.bf16 %v192, %v192
      %v195 = vpack.c.bf16 %v193, %v193
      %196 = vst [vmem:[%s172] sm:$0xf] %v194
      %197 = vst [vmem:[%s172 + $0x4] sm:$0xf] %v195
      %s198 = smul.u32 2, %s14
      %p199 = scmp.lt.s32.totalorder %s198, 3
      %s200 = scalar_select %p199, %s198, 3
      %s201 = smul.addr %s200, 4
      %s202 = scalar_lea.vmem %s3, %s201
      // Predicated region
      $region33: #{image_discriminator64_forward.14} parent=31 // pred_check
        %p203 = pneg %p100
      $region34: #{image_discriminator64_forward.14} parent=31 // pred_check_branch
        %205 = sbr.rel (%p203) target = $region36
      $region35: #{image_discriminator64_forward.14} parent=31 // pred_region
        %s206 = smul.u32 2, %s14
      $region36: #{image_discriminator64_forward.14} parent=31 // pred_fallthru
        _
    $region32: #{image_discriminator64_forward.14} parent=5 // pred_fallthru
      _
    %p207 = scmp.le.s32.totalorder 2, %s9
    // Predicated region
    $region37: #{image_discriminator64_forward.14} parent=5 // pred_check
      %p208 = pneg %p207
    $region38: #{image_discriminator64_forward.14} parent=5 // pred_check_branch
      %210 = sbr.rel (%p208) target = $region40
    $region39: #{image_discriminator64_forward.14} parent=5 // pred_region
      %s211 = ssub.s32 %s9, 2
      // Predicated region
      $region41: #{image_discriminator64_forward.14} parent=39 // pred_check
        %p212 = pneg %p106
      $region42: #{image_discriminator64_forward.14} parent=39 // pred_check_branch
        %214 = sbr.rel (%p212) target = $region44
      $region43: #{image_discriminator64_forward.14} parent=39 // pred_region
        %s215 = smul.u32 2, %s15
        %p216 = scmp.lt.s32.totalorder %s215, 3
        %s217 = scalar_select %p216, %s215, 3
        %s218 = smul.addr %s217, 4
        %s219 = scalar_lea.vmem %s3, %s218
      $region44: #{image_discriminator64_forward.14} parent=39 // pred_fallthru
        _
    $region40: #{image_discriminator64_forward.14} parent=5 // pred_fallthru
      _
  $region6: #{image_discriminator64_forward.14} parent=0 // loop_footer
    %s13 = sadd.s32 1, %s9
  $region7: #{image_discriminator64_forward.14} parent=0 // loop_footer_branch
    %8 = sbr.rel target = $region3
  $region8: #{image_discriminator64_forward.14} parent=0 // loop_exit
    _

// kernel: image_discriminator64_forward.13
$region0: #{image_discriminator64_forward.13}
  #allocation0 [shape = 'u32[]', space=smem, size = 0x4, offset = 0x4, fixed_abs, tag = 'smem constant byte address 0x4 - core index']
  #allocation1 [shape = 'u32[72,128]{1,0:T(1,128)}', space=vmem, size = 0x9000, scoped, tag = 'internal scratch']
  %s0 = inlined_call_operand.vmem [shape: bf16[32,512], index: 0, kind: input, shape index: {}]
  %s1 = inlined_call_operand.vmem [shape: bf16[512,128], index: 1, kind: input, shape index: {}]
  %s2 = inlined_call_operand.vmem [shape: f32[32,128], index: 2, kind: output, shape index: {0}]
  %s3 = inlined_call_operand.vmem [shape: f32[2,8,128], index: 3, kind: output, shape index: {1}]
  %4 = xla_tuple %s2, %s3
  %s5 = sld [smem:[#allocation0]]
  $region49: #{image_discriminator64_forward.13} parent=0
    _
  %s7 = ssub.s32 1, %s5
  %s8 = scalar_select 0, %s7, %s5
  loop: start=0, step=1, limit=4
  $region2: #{image_discriminator64_forward.13} parent=0 // loop_pre_header
    _
  $region3: #{image_discriminator64_forward.13} parent=0 // loop_header
    %s10 = sphi 0, %s14
    %p11 = scmp.ge.s32.totalorder %s10, 4
    %s20 = sphi 0, %s22
    %s23 = sphi 0, %s20
    %s24 = sphi 0, %s23
    %s40 = sphi 0, %s24
    %s44 = sphi 0, %s44
    %s46 = sphi 0, %s44
    %s47 = sphi 0, %s46
    %s61 = sphi 0, %s47
    %s67 = sphi 0, %s69
    %s70 = sphi 0, %s67
    %s71 = sphi 0, %s70
    %s87 = sphi 0, %s71
    %s93 = sphi 0, %s95
    %s96 = sphi 0, %s93
    %s97 = sphi 0, %s96
    %s113 = sphi 0, %s97
  $region4: #{image_discriminator64_forward.13} parent=0 // loop_header_branch
    %13 = sbr.rel (%p11) target = $region8
  $region5: #{image_discriminator64_forward.13} parent=0 // loop_body
    %s15 = ssub.s32 %s10, 1
    %s16 = ssub.s32 %s10, 2
    %s17 = sadd.s32 %s10, 1
    %s18 = ssub.s32 %s10, %s17
    %p19 = scmp.eq.s32.totalorder %s18, 0
    %s21 = sadd.s32 %s20, 1
    %s22 = scalar_select %p19, %s20, %s21
    %p25 = pneg %p19
    %p26 = scmp.eq.s32.totalorder %s10, 1
    %p27 = por %p25, %p26
    %p28 = scmp.ne.s32.totalorder %s20, %s23
    %p29 = scmp.eq.s32.totalorder %s10, 0
    %p30 = por %p28, %p29
    %p31 = scmp.ne.s32.totalorder %s20, %s23
    %p32 = scmp.eq.s32.totalorder %s15, 1
    %p33 = por %p31, %p32
    %p34 = scmp.ne.s32.totalorder %s23, %s24
    %p35 = scmp.eq.s32.totalorder %s15, 0
    %p36 = por %p34, %p35
    %p37 = scmp.ne.s32.totalorder %s23, %s24
    %p38 = scmp.eq.s32.totalorder %s16, 1
    %p39 = por %p37, %p38
    %p41 = scmp.ne.s32.totalorder %s24, %s40
    %p42 = scmp.eq.s32.totalorder %s16, 0
    %p43 = por %p41, %p42
    %s45 = sadd.s32 %s44, 1
    %p48 = scmp.eq.s32.totalorder %s10, 1
    %p49 = scmp.ne.s32.totalorder %s44, %s46
    %p50 = scmp.eq.s32.totalorder %s10, 0
    %p51 = por %p49, %p50
    %p52 = scmp.ne.s32.totalorder %s44, %s46
    %p53 = scmp.eq.s32.totalorder %s15, 1
    %p54 = por %p52, %p53
    %p55 = scmp.ne.s32.totalorder %s46, %s47
    %p56 = scmp.eq.s32.totalorder %s15, 0
    %p57 = por %p55, %p56
    %p58 = scmp.ne.s32.totalorder %s46, %s47
    %p59 = scmp.eq.s32.totalorder %s16, 1
    %p60 = por %p58, %p59
    %p62 = scmp.ne.s32.totalorder %s47, %s61
    %p63 = scmp.eq.s32.totalorder %s16, 0
    %p64 = por %p62, %p63
    %s65 = ssub.s32 %s10, %s17
    %p66 = scmp.eq.s32.totalorder %s65, 0
    %s68 = sadd.s32 %s67, 1
    %s69 = scalar_select %p66, %s67, %s68
    %p72 = pneg %p66
    %p73 = scmp.eq.s32.totalorder %s10, 1
    %p74 = por %p72, %p73
    %p75 = scmp.ne.s32.totalorder %s67, %s70
    %p76 = scmp.eq.s32.totalorder %s10, 0
    %p77 = por %p75, %p76
    %p78 = scmp.ne.s32.totalorder %s67, %s70
    %p79 = scmp.eq.s32.totalorder %s15, 1
    %p80 = por %p78, %p79
    %p81 = scmp.ne.s32.totalorder %s70, %s71
    %p82 = scmp.eq.s32.totalorder %s15, 0
    %p83 = por %p81, %p82
    %p84 = scmp.ne.s32.totalorder %s70, %s71
    %p85 = scmp.eq.s32.totalorder %s16, 1
    %p86 = por %p84, %p85
    %p88 = scmp.ne.s32.totalorder %s71, %s87
    %p89 = scmp.eq.s32.totalorder %s16, 0
    %p90 = por %p88, %p89
    %s91 = ssub.s32 %s10, %s17
    %p92 = scmp.eq.s32.totalorder %s91, 0
    %s94 = sadd.s32 %s93, 1
    %s95 = scalar_select %p92, %s93, %s94
    %p98 = pneg %p92
    %p99 = scmp.eq.s32.totalorder %s10, 1
    %p100 = por %p98, %p99
    %p101 = scmp.ne.s32.totalorder %s93, %s96
    %p102 = scmp.eq.s32.totalorder %s10, 0
    %p103 = por %p101, %p102
    %p104 = scmp.ne.s32.totalorder %s93, %s96
    %p105 = scmp.eq.s32.totalorder %s15, 1
    %p106 = por %p104, %p105
    %p107 = scmp.ne.s32.totalorder %s96, %s97
    %p108 = scmp.eq.s32.totalorder %s15, 0
    %p109 = por %p107, %p108
    %p110 = scmp.ne.s32.totalorder %s96, %s97
    %p111 = scmp.eq.s32.totalorder %s16, 1
    %p112 = por %p110, %p111
    %p114 = scmp.ne.s32.totalorder %s97, %s113
    %p115 = scmp.eq.s32.totalorder %s16, 0
    %p116 = por %p114, %p115
    %p117 = scmp.le.s32.totalorder 1, %s10
    %p118 = scmp.lt.s32.totalorder %s10, 3
    %p119 = pnand %p117, %p118
    %p120 = pneg %p119
    // Predicated region
    $region9: #{image_discriminator64_forward.13} parent=5 // pred_check
      _
    $region10: #{image_discriminator64_forward.13} parent=5 // pred_check_branch
      %122 = sbr.rel (%p119) target = $region12
    $region11: #{image_discriminator64_forward.13} parent=5 // pred_region
      %s123 = ssub.s32 %s10, 1
      // Predicated region
      $region13: #{image_discriminator64_forward.13} parent=11 // pred_check
        %p124 = pneg %p57
      $region14: #{image_discriminator64_forward.13} parent=11 // pred_check_branch
        %126 = sbr.rel (%p124) target = $region16
      $region15: #{image_discriminator64_forward.13} parent=11 // pred_region
        _
      $region16: #{image_discriminator64_forward.13} parent=11 // pred_fallthru
        _
    $region12: #{image_discriminator64_forward.13} parent=5 // pred_fallthru
      _
    %p127 = scmp.lt.s32.totalorder %s10, 2
    // Predicated region
    $region17: #{image_discriminator64_forward.13} parent=5 // pred_check
      %p128 = pneg %p127
    $region18: #{image_discriminator64_forward.13} parent=5 // pred_check_branch
      %130 = sbr.rel (%p128) target = $region20
    $region19: #{image_discriminator64_forward.13} parent=5 // pred_region
      // Predicated region
      $region21: #{image_discriminator64_forward.13} parent=19 // pred_check
        %p131 = pneg %p30
      $region22: #{image_discriminator64_forward.13} parent=19 // pred_check_branch
        %133 = sbr.rel (%p131) target = $region24
      $region23: #{image_discriminator64_forward.13} parent=19 // pred_region
        %s134 = smul.u32 2, %s10
        %p135 = scmp.lt.s32.totalorder %s134, 3
        %s136 = scalar_select %p135, %s134, 3
        %s137 = smul.addr %s136, 4
        %s138 = smul.addr %s137, 4
        %s139 = scalar_lea.vmem %s0, %s138
        %s140 = smul.u32 2, %s10
      $region24: #{image_discriminator64_forward.13} parent=19 // pred_fallthru
        _
    $region20: #{image_discriminator64_forward.13} parent=5 // pred_fallthru
      _
    %p141 = scmp.le.s32.totalorder 1, %s10
    %p142 = scmp.lt.s32.totalorder %s10, 3
    %p143 = pnand %p141, %p142
    %p144 = pneg %p143
    // Predicated region
    $region25: #{image_discriminator64_forward.13} parent=5 // pred_check
      _
    $region26: #{image_discriminator64_forward.13} parent=5 // pred_check_branch
      %146 = sbr.rel (%p143) target = $region28
    $region27: #{image_discriminator64_forward.13} parent=5 // pred_region
      %s147 = ssub.s32 %s10, 1
      %s148 = smul.u32 2, %s15
      %p149 = scmp.lt.s32.totalorder %s148, 3
      %s150 = scalar_select %p149, %s148, 3
      %s151 = smul.addr %s150, 4
      %s152 = smul.addr %s151, 4
      %s153 = scalar_lea.vmem %s0, %s152
      %p154 = pneg %p36
      %p155 = pneg %p33
      %p156 = pneg %p57
      %p157 = pneg %p54
      %p158 = pneg %p83
      %p159 = pneg %p80
      %s160 = smul.u32 2, %s15
      %p161 = scmp.lt.s32.totalorder %s160, 3
      %s162 = scalar_select %p161, %s160, 3
      %s163 = smul.addr %s162, 8
      %s164 = scalar_lea.vmem %s2, %s163
      %p165 = pneg %p109
      %p166 = pneg %p106
      %p167 = scmp.lt.s32.totalorder %s15, 1
      %s168 = scalar_select %p167, %s15, 1
      %s169 = smul.addr %s168, 8
      %s170 = scalar_lea.vmem %s3, %s169
      %s171 = smul.u32 2, %s15
      %p172 = scmp.lt.s32.totalorder %s171, 3
      %s173 = scalar_select %p172, %s171, 3
      %s174 = smul.addr %s173, 4
      %s175 = smul.addr %s174, 4
      %s176 = scalar_lea.vmem %s0, %s175
      %s177 = smul.u32 2, %s15
      %s178 = smul.u32 2, %s15
      %p179 = scmp.lt.s32.totalorder %s178, 3
      %s180 = scalar_select %p179, %s178, 3
      %s181 = smul.addr %s180, 8
      %s182 = scalar_lea.vmem %s2, %s181
      %s183 = smul.u32 2, %s15
      %p184 = scmp.lt.s32.totalorder %s15, 1
      %s185 = scalar_select %p184, %s15, 1
      %s186 = smul.addr %s185, 8
      %s187 = scalar_lea.vmem %s3, %s186
      %v188 = vld [vmem:[%s176] sm:$0xff]
      %v189 = vld [vmem:[%s176 + $0x8] sm:$0xff]
      %v190 = vld [vmem:[%s176 + $0x10] sm:$0xff]
      %v191 = vld [vmem:[%s176 + $0x18] sm:$0xff]
      %v192 = vld [vmem:[%s1] sm:$0xf]
      %v193 = vld [vmem:[%s1 + $0x4] sm:$0xf]
      %v194 = vld [vmem:[%s1 + $0x8] sm:$0xf]
      %v195 = vld [vmem:[%s1 + $0xc] sm:$0xf]
      %v196 = vld [vmem:[%s1 + $0x10] sm:$0xf]
      %v197 = vld [vmem:[%s1 + $0x14] sm:$0xf]
      %v198 = vld [vmem:[%s1 + $0x18] sm:$0xf]
      %v199 = vld [vmem:[%s1 + $0x1c] sm:$0xf]
      %v200 = vld [vmem:[%s1 + $0x20] sm:$0xf]
      %v201 = vld [vmem:[%s1 + $0x24] sm:$0xf]
      %v202 = vld [vmem:[%s1 + $0x28] sm:$0xf]
      %v203 = vld [vmem:[%s1 + $0x2c] sm:$0xf]
      %v204 = vld [vmem:[%s1 + $0x30] sm:$0xf]
      %v205 = vld [vmem:[%s1 + $0x34] sm:$0xf]
      %v206 = vld [vmem:[%s1 + $0x38] sm:$0xf]
      %v207 = vld [vmem:[%s1 + $0x3c] sm:$0xf]
      %v208 = vld [vmem:[%s1 + $0x40] sm:$0xf]
      %v209 = vld [vmem:[%s1 + $0x44] sm:$0xf]
      %v210 = vld [vmem:[%s1 + $0x48] sm:$0xf]
      %v211 = vld [vmem:[%s1 + $0x4c] sm:$0xf]
      %v212 = vld [vmem:[%s1 + $0x50] sm:$0xf]
      %v213 = vld [vmem:[%s1 + $0x54] sm:$0xf]
      %v214 = vld [vmem:[%s1 + $0x58] sm:$0xf]
      %v215 = vld [vmem:[%s1 + $0x5c] sm:$0xf]
      %v216 = vld [vmem:[%s1 + $0x60] sm:$0xf]
      %v217 = vld [vmem:[%s1 + $0x64] sm:$0xf]
      %v218 = vld [vmem:[%s1 + $0x68] sm:$0xf]
      %v219 = vld [vmem:[%s1 + $0x6c] sm:$0xf]
      %v220 = vld [vmem:[%s1 + $0x70] sm:$0xf]
      %v221 = vld [vmem:[%s1 + $0x74] sm:$0xf]
      %v222 = vld [vmem:[%s1 + $0x78] sm:$0xf]
      %v223 = vld [vmem:[%s1 + $0x7c] sm:$0xf]
      %v224 = vld [vmem:[%s1 + $0x80] sm:$0xf]
      %v225 = vld [vmem:[%s1 + $0x84] sm:$0xf]
      %v226 = vld [vmem:[%s1 + $0x88] sm:$0xf]
      %v227 = vld [vmem:[%s1 + $0x8c] sm:$0xf]
      %v228 = vld [vmem:[%s1 + $0x90] sm:$0xf]
      %v229 = vld [vmem:[%s1 + $0x94] sm:$0xf]
      %v230 = vld [vmem:[%s1 + $0x98] sm:$0xf]
      %v231 = vld [vmem:[%s1 + $0x9c] sm:$0xf]
      %v232 = vld [vmem:[%s1 + $0xa0] sm:$0xf]
      %v233 = vld [vmem:[%s1 + $0xa4] sm:$0xf]
      %v234 = vld [vmem:[%s1 + $0xa8] sm:$0xf]
      %v235 = vld [vmem:[%s1 + $0xac] sm:$0xf]
      %v236 = vld [vmem:[%s1 + $0xb0] sm:$0xf]
      %v237 = vld [vmem:[%s1 + $0xb4] sm:$0xf]
      %v238 = vld [vmem:[%s1 + $0xb8] sm:$0xf]
      %v239 = vld [vmem:[%s1 + $0xbc] sm:$0xf]
      %v240 = vld [vmem:[%s1 + $0xc0] sm:$0xf]
      %v241 = vld [vmem:[%s1 + $0xc4] sm:$0xf]
      %v242 = vld [vmem:[%s1 + $0xc8] sm:$0xf]
      %v243 = vld [vmem:[%s1 + $0xcc] sm:$0xf]
      %v244 = vld [vmem:[%s1 + $0xd0] sm:$0xf]
      %v245 = vld [vmem:[%s1 + $0xd4] sm:$0xf]
      %v246 = vld [vmem:[%s1 + $0xd8] sm:$0xf]
      %v247 = vld [vmem:[%s1 + $0xdc] sm:$0xf]
      %v248 = vld [vmem:[%s1 + $0xe0] sm:$0xf]
      %v249 = vld [vmem:[%s1 + $0xe4] sm:$0xf]
      %v250 = vld [vmem:[%s1 + $0xe8] sm:$0xf]
      %v251 = vld [vmem:[%s1 + $0xec] sm:$0xf]
      %v252 = vld [vmem:[%s1 + $0xf0] sm:$0xf]
      %v253 = vld [vmem:[%s1 + $0xf4] sm:$0xf]
      %v254 = vld [vmem:[%s1 + $0xf8] sm:$0xf]
      %v255 = vld [vmem:[%s1 + $0xfc] sm:$0xf]
      %v260 = vunpack.c.l.b16 %v188
      %v261 = vunpack.c.h.b16 %v188
      %v262 = vunpack.c.l.b16 %v189
      %v263 = vunpack.c.h.b16 %v189
      %v264 = vunpack.c.l.b16 %v190
      %v265 = vunpack.c.h.b16 %v190
      %v266 = vunpack.c.l.b16 %v191
      %v267 = vunpack.c.h.b16 %v191
      %v268 = vpack.c.b16 %v264, %v260
      %v269 = vpack.c.b16 %v265, %v261
      %v270 = vpack.c.b16 %v266, %v262
      %v271 = vpack.c.b16 %v267, %v263
      %v340 = vunpack.c.l.b16 %v192
      %v341 = vunpack.c.l.b16 %v193
      %v342 = vunpack.c.l.b16 %v194
      %v343 = vunpack.c.l.b16 %v195
      %v344 = vunpack.c.l.b16 %v196
      %v345 = vunpack.c.l.b16 %v197
      %v346 = vunpack.c.l.b16 %v198
      %v347 = vunpack.c.l.b16 %v199
      %v348 = vunpack.c.l.b16 %v200
      %v349 = vunpack.c.l.b16 %v201
      %v350 = vunpack.c.l.b16 %v202
      %v351 = vunpack.c.l.b16 %v203
      %v352 = vunpack.c.l.b16 %v204
      %v353 = vunpack.c.l.b16 %v205
      %v354 = vunpack.c.l.b16 %v206
      %v355 = vunpack.c.l.b16 %v207
      %v356 = vunpack.c.l.b16 %v208
      %v357 = vunpack.c.l.b16 %v209
      %v358 = vunpack.c.l.b16 %v210
      %v359 = vunpack.c.l.b16 %v211
      %v360 = vunpack.c.l.b16 %v212
      %v361 = vunpack.c.l.b16 %v213
      %v362 = vunpack.c.l.b16 %v214
      %v363 = vunpack.c.l.b16 %v215
      %v364 = vunpack.c.l.b16 %v216
      %v365 = vunpack.c.l.b16 %v217
      %v366 = vunpack.c.l.b16 %v218
      %v367 = vunpack.c.l.b16 %v219
      %v368 = vunpack.c.l.b16 %v220
      %v369 = vunpack.c.l.b16 %v221
      %v370 = vunpack.c.l.b16 %v222
      %v371 = vunpack.c.l.b16 %v223
      %v372 = vunpack.c.l.b16 %v224
      %v373 = vunpack.c.l.b16 %v225
      %v374 = vunpack.c.l.b16 %v226
      %v375 = vunpack.c.l.b16 %v227
      %v376 = vunpack.c.l.b16 %v228
      %v377 = vunpack.c.l.b16 %v229
      %v378 = vunpack.c.l.b16 %v230
      %v379 = vunpack.c.l.b16 %v231
      %v380 = vunpack.c.l.b16 %v232
      %v381 = vunpack.c.l.b16 %v233
      %v382 = vunpack.c.l.b16 %v234
      %v383 = vunpack.c.l.b16 %v235
      %v384 = vunpack.c.l.b16 %v236
      %v385 = vunpack.c.l.b16 %v237
      %v386 = vunpack.c.l.b16 %v238
      %v387 = vunpack.c.l.b16 %v239
      %v388 = vunpack.c.l.b16 %v240
      %v389 = vunpack.c.l.b16 %v241
      %v390 = vunpack.c.l.b16 %v242
      %v391 = vunpack.c.l.b16 %v243
      %v392 = vunpack.c.l.b16 %v244
      %v393 = vunpack.c.l.b16 %v245
      %v394 = vunpack.c.l.b16 %v246
      %v395 = vunpack.c.l.b16 %v247
      %v396 = vunpack.c.l.b16 %v248
      %v397 = vunpack.c.l.b16 %v249
      %v398 = vunpack.c.l.b16 %v250
      %v399 = vunpack.c.l.b16 %v251
      %v400 = vunpack.c.l.b16 %v252
      %v401 = vunpack.c.l.b16 %v253
      %v402 = vunpack.c.l.b16 %v254
      %v403 = vunpack.c.l.b16 %v255
      %v404 = vpack.c.b16 %v341, %v340
      %v405 = vpack.c.b16 %v343, %v342
      %v406 = vpack.c.b16 %v345, %v344
      %v407 = vpack.c.b16 %v347, %v346
      %v408 = vpack.c.b16 %v349, %v348
      %v409 = vpack.c.b16 %v351, %v350
      %v410 = vpack.c.b16 %v353, %v352
      %v411 = vpack.c.b16 %v355, %v354
      %v412 = vpack.c.b16 %v357, %v356
      %v413 = vpack.c.b16 %v359, %v358
      %v414 = vpack.c.b16 %v361, %v360
      %v415 = vpack.c.b16 %v363, %v362
      %v416 = vpack.c.b16 %v365, %v364
      %v417 = vpack.c.b16 %v367, %v366
      %v418 = vpack.c.b16 %v369, %v368
      %v419 = vpack.c.b16 %v371, %v370
      %v420 = vpack.c.b16 %v373, %v372
      %v421 = vpack.c.b16 %v375, %v374
      %v422 = vpack.c.b16 %v377, %v376
      %v423 = vpack.c.b16 %v379, %v378
      %v424 = vpack.c.b16 %v381, %v380
      %v425 = vpack.c.b16 %v383, %v382
      %v426 = vpack.c.b16 %v385, %v384
      %v427 = vpack.c.b16 %v387, %v386
      %v428 = vpack.c.b16 %v389, %v388
      %v429 = vpack.c.b16 %v391, %v390
      %v430 = vpack.c.b16 %v393, %v392
      %v431 = vpack.c.b16 %v395, %v394
      %v432 = vpack.c.b16 %v397, %v396
      %v433 = vpack.c.b16 %v399, %v398
      %v434 = vpack.c.b16 %v401, %v400
      %v435 = vpack.c.b16 %v403, %v402
      %468 = vmatpush.bf16.msra.mxu0 %v411
      %469 = vmatpush.bf16.msra.mxu0 %v410
      %470 = vmatpush.bf16.msra.mxu0 %v409
      %471 = vmatpush.bf16.msra.mxu0 %v408
      %472 = vmatpush.bf16.msra.mxu0 %v407
      %473 = vmatpush.bf16.msra.mxu0 %v406
      %474 = vmatpush.bf16.msra.mxu0 %v405
      %475 = vmatpush.bf16.msra.mxu0 %v404
      %476 = vmatmul.bf16.gmra.mxu0 %v268
      %v477 = vpop.f32.mrf.mxu0
      %v478 = vadd.f32 0.0, %v477
      %v479 = vpop.f32.mrf.mxu0
      %v480 = vadd.f32 0.0, %v479
      %481 = vdwg.mxu0
      %482 = vmatpush.bf16.msra.mxu0 %v419
      %483 = vmatpush.bf16.msra.mxu0 %v418
      %484 = vmatpush.bf16.msra.mxu0 %v417
      %485 = vmatpush.bf16.msra.mxu0 %v416
      %486 = vmatpush.bf16.msra.mxu0 %v415
      %487 = vmatpush.bf16.msra.mxu0 %v414
      %488 = vmatpush.bf16.msra.mxu0 %v413
      %489 = vmatpush.bf16.msra.mxu0 %v412
      %490 = vmatmul.bf16.gmra.mxu0 %v269
      %v491 = vpop.f32.mrf.mxu0
      %v492 = vadd.f32 %v478, %v491
      %v493 = vpop.f32.mrf.mxu0
      %v494 = vadd.f32 %v480, %v493
      %495 = vdwg.mxu0
      %496 = vmatpush.bf16.msra.mxu0 %v427
      %497 = vmatpush.bf16.msra.mxu0 %v426
      %498 = vmatpush.bf16.msra.mxu0 %v425
      %499 = vmatpush.bf16.msra.mxu0 %v424
      %500 = vmatpush.bf16.msra.mxu0 %v423
      %501 = vmatpush.bf16.msra.mxu0 %v422
      %502 = vmatpush.bf16.msra.mxu0 %v421
      %503 = vmatpush.bf16.msra.mxu0 %v420
      %504 = vmatmul.bf16.gmra.mxu0 %v270
      %v505 = vpop.f32.mrf.mxu0
      %v506 = vadd.f32 %v492, %v505
      %v507 = vpop.f32.mrf.mxu0
      %v508 = vadd.f32 %v494, %v507
      %509 = vdwg.mxu0
      %510 = vmatpush.bf16.msra.mxu0 %v435
      %511 = vmatpush.bf16.msra.mxu0 %v434
      %512 = vmatpush.bf16.msra.mxu0 %v433
      %513 = vmatpush.bf16.msra.mxu0 %v432
      %514 = vmatpush.bf16.msra.mxu0 %v431
      %515 = vmatpush.bf16.msra.mxu0 %v430
      %516 = vmatpush.bf16.msra.mxu0 %v429
      %517 = vmatpush.bf16.msra.mxu0 %v428
      %518 = vmatmul.bf16.gmra.mxu0 %v271
      %v519 = vpop.f32.mrf.mxu0
      %v520 = vadd.f32 %v506, %v519
      %v521 = vpop.f32.mrf.mxu0
      %v522 = vadd.f32 %v508, %v521
      %523 = vdwg.mxu0
      %524 = vst [vmem:[%s182] sm:$0xff] %v520
      %525 = vst [vmem:[%s182 + $0x8] sm:$0xff] %v522
      %526 = vst [vmem:[%s187] sm:$0xff] 0.0
      %v527 = vadd.f32 %v520, %v522
      %v528 = vrot.slane %v527, 4
      %v529 = vadd.f32 %v527, %v528
      %v530 = vrot.slane %v529, 2
      %v531 = vadd.f32 %v529, %v530
      %v532 = vrot.slane %v531, 1
      %v533 = vadd.f32 %v531, %v532
      %v534 = vmul.f32 %v520, %v520
      %v535 = vmul.f32 %v522, %v522
      %v536 = vadd.f32 %v534, %v535
      %v537 = vrot.slane %v536, 4
      %v538 = vadd.f32 %v536, %v537
      %v539 = vrot.slane %v538, 2
      %v540 = vadd.f32 %v538, %v539
      %v541 = vrot.slane %v540, 1
      %v542 = vadd.f32 %v540, %v541
      %543 = vst [vmem:[%s187] sm:$0x1] %v533
      %544 = vst [vmem:[%s187 + $0x1] sm:$0x1] %v542
      %s545 = smul.u32 2, %s15
      %p546 = scmp.lt.s32.totalorder %s545, 3
      %s547 = scalar_select %p546, %s545, 3
      %s548 = smul.addr %s547, 8
      %s549 = scalar_lea.vmem %s2, %s548
      %p550 = scmp.lt.s32.totalorder %s15, 1
      %s551 = scalar_select %p550, %s15, 1
      %s552 = smul.addr %s551, 8
      %s553 = scalar_lea.vmem %s3, %s552
      // Predicated region
      $region29: #{image_discriminator64_forward.13} parent=27 // pred_check
        %p554 = pneg %p80
      $region30: #{image_discriminator64_forward.13} parent=27 // pred_check_branch
        %556 = sbr.rel (%p554) target = $region32
      $region31: #{image_discriminator64_forward.13} parent=27 // pred_region
        %s557 = smul.u32 2, %s15
      $region32: #{image_discriminator64_forward.13} parent=27 // pred_fallthru
        _
      // Predicated region
      $region33: #{image_discriminator64_forward.13} parent=27 // pred_check
        %p558 = pneg %p106
      $region34: #{image_discriminator64_forward.13} parent=27 // pred_check_branch
        %560 = sbr.rel (%p558) target = $region36
      $region35: #{image_discriminator64_forward.13} parent=27 // pred_region
        _
      $region36: #{image_discriminator64_forward.13} parent=27 // pred_fallthru
        _
    $region28: #{image_discriminator64_forward.13} parent=5 // pred_fallthru
      _
    %p561 = scmp.le.s32.totalorder 2, %s10
    // Predicated region
    $region37: #{image_discriminator64_forward.13} parent=5 // pred_check
      %p562 = pneg %p561
    $region38: #{image_discriminator64_forward.13} parent=5 // pred_check_branch
      %564 = sbr.rel (%p562) target = $region40
    $region39: #{image_discriminator64_forward.13} parent=5 // pred_region
      %s565 = ssub.s32 %s10, 2
      // Predicated region
      $region41: #{image_discriminator64_forward.13} parent=39 // pred_check
        %p566 = pneg %p86
      $region42: #{image_discriminator64_forward.13} parent=39 // pred_check_branch
        %568 = sbr.rel (%p566) target = $region44
      $region43: #{image_discriminator64_forward.13} parent=39 // pred_region
        %s569 = smul.u32 2, %s16
        %p570 = scmp.lt.s32.totalorder %s569, 3
        %s571 = scalar_select %p570, %s569, 3
        %s572 = smul.addr %s571, 8
        %s573 = scalar_lea.vmem %s2, %s572
      $region44: #{image_discriminator64_forward.13} parent=39 // pred_fallthru
        _
      // Predicated region
      $region45: #{image_discriminator64_forward.13} parent=39 // pred_check
        %p574 = pneg %p112
      $region46: #{image_discriminator64_forward.13} parent=39 // pred_check_branch
        %576 = sbr.rel (%p574) target = $region48
      $region47: #{image_discriminator64_forward.13} parent=39 // pred_region
        %p577 = scmp.lt.s32.totalorder %s16, 1
        %s578 = scalar_select %p577, %s16, 1
        %s579 = smul.addr %s578, 8
        %s580 = scalar_lea.vmem %s3, %s579
      $region48: #{image_discriminator64_forward.13} parent=39 // pred_fallthru
        _
    $region40: #{image_discriminator64_forward.13} parent=5 // pred_fallthru
      _
  $region6: #{image_discriminator64_forward.13} parent=0 // loop_footer
    %s14 = sadd.s32 1, %s10
  $region7: #{image_discriminator64_forward.13} parent=0 // loop_footer_branch
    %9 = sbr.rel target = $region3
  $region8: #{image_discriminator64_forward.13} parent=0 // loop_exit
    _

// kernel: image_discriminator64_forward.15
$region0: #{image_discriminator64_forward.15}
  #allocation0 [shape = 'u32[]', space=smem, size = 0x4, offset = 0x4, fixed_abs, tag = 'smem constant byte address 0x4 - core index']
  #allocation1 [shape = 'u32[72,128]{1,0:T(1,128)}', space=vmem, size = 0x9000, scoped, tag = 'internal scratch']
  %s0 = inlined_call_operand.vmem [shape: bf16[8,1024], index: 0, kind: input, shape index: {}]
  %s1 = inlined_call_operand.vmem [shape: bf16[1024,128], index: 1, kind: input, shape index: {}]
  %s2 = inlined_call_operand.vmem [shape: f32[8,128], index: 2, kind: output, shape index: {}]
  %s3 = sld [smem:[#allocation0]]
  $region18: #{image_discriminator64_forward.15} parent=0
    _
  %s5 = ssub.s32 1, %s3
  %s6 = scalar_select 0, %s5, %s3
  // Predicated region
  $region2: #{image_discriminator64_forward.15} parent=0 // pred_check
    _
  $region3: #{image_discriminator64_forward.15} parent=0 // pred_check_branch
    %8 = sbr.rel (0) target = $region5
  $region4: #{image_discriminator64_forward.15} parent=0 // pred_region
    _
  $region5: #{image_discriminator64_forward.15} parent=0 // pred_fallthru
    _
  // Predicated region
  $region6: #{image_discriminator64_forward.15} parent=0 // pred_check
    _
  $region7: #{image_discriminator64_forward.15} parent=0 // pred_check_branch
    %10 = sbr.rel (0) target = $region9
  $region8: #{image_discriminator64_forward.15} parent=0 // pred_region
    _
  $region9: #{image_discriminator64_forward.15} parent=0 // pred_fallthru
    _
  %v11 = vld [vmem:[%s0] sm:$0xff]
  %v12 = vld [vmem:[%s0 + $0x8] sm:$0xff]
  %v13 = vld [vmem:[%s0 + $0x10] sm:$0xff]
  %v14 = vld [vmem:[%s0 + $0x18] sm:$0xff]
  %v15 = vld [vmem:[%s1] sm:$0xf]
  %v16 = vld [vmem:[%s1 + $0x4] sm:$0xf]
  %v17 = vld [vmem:[%s1 + $0x8] sm:$0xf]
  %v18 = vld [vmem:[%s1 + $0xc] sm:$0xf]
  %v19 = vld [vmem:[%s1 + $0x10] sm:$0xf]
  %v20 = vld [vmem:[%s1 + $0x14] sm:$0xf]
  %v21 = vld [vmem:[%s1 + $0x18] sm:$0xf]
  %v22 = vld [vmem:[%s1 + $0x1c] sm:$0xf]
  %v23 = vld [vmem:[%s1 + $0x20] sm:$0xf]
  %v24 = vld [vmem:[%s1 + $0x24] sm:$0xf]
  %v25 = vld [vmem:[%s1 + $0x28] sm:$0xf]
  %v26 = vld [vmem:[%s1 + $0x2c] sm:$0xf]
  %v27 = vld [vmem:[%s1 + $0x30] sm:$0xf]
  %v28 = vld [vmem:[%s1 + $0x34] sm:$0xf]
  %v29 = vld [vmem:[%s1 + $0x38] sm:$0xf]
  %v30 = vld [vmem:[%s1 + $0x3c] sm:$0xf]
  %v31 = vld [vmem:[%s1 + $0x40] sm:$0xf]
  %v32 = vld [vmem:[%s1 + $0x44] sm:$0xf]
  %v33 = vld [vmem:[%s1 + $0x48] sm:$0xf]
  %v34 = vld [vmem:[%s1 + $0x4c] sm:$0xf]
  %v35 = vld [vmem:[%s1 + $0x50] sm:$0xf]
  %v36 = vld [vmem:[%s1 + $0x54] sm:$0xf]
  %v37 = vld [vmem:[%s1 + $0x58] sm:$0xf]
  %v38 = vld [vmem:[%s1 + $0x5c] sm:$0xf]
  %v39 = vld [vmem:[%s1 + $0x60] sm:$0xf]
  %v40 = vld [vmem:[%s1 + $0x64] sm:$0xf]
  %v41 = vld [vmem:[%s1 + $0x68] sm:$0xf]
  %v42 = vld [vmem:[%s1 + $0x6c] sm:$0xf]
  %v43 = vld [vmem:[%s1 + $0x70] sm:$0xf]
  %v44 = vld [vmem:[%s1 + $0x74] sm:$0xf]
  %v45 = vld [vmem:[%s1 + $0x78] sm:$0xf]
  %v46 = vld [vmem:[%s1 + $0x7c] sm:$0xf]
  %v47 = vld [vmem:[%s1 + $0x80] sm:$0xf]
  %v48 = vld [vmem:[%s1 + $0x84] sm:$0xf]
  %v49 = vld [vmem:[%s1 + $0x88] sm:$0xf]
  %v50 = vld [vmem:[%s1 + $0x8c] sm:$0xf]
  %v51 = vld [vmem:[%s1 + $0x90] sm:$0xf]
  %v52 = vld [vmem:[%s1 + $0x94] sm:$0xf]
  %v53 = vld [vmem:[%s1 + $0x98] sm:$0xf]
  %v54 = vld [vmem:[%s1 + $0x9c] sm:$0xf]
  %v55 = vld [vmem:[%s1 + $0xa0] sm:$0xf]
  %v56 = vld [vmem:[%s1 + $0xa4] sm:$0xf]
  %v57 = vld [vmem:[%s1 + $0xa8] sm:$0xf]
  %v58 = vld [vmem:[%s1 + $0xac] sm:$0xf]
  %v59 = vld [vmem:[%s1 + $0xb0] sm:$0xf]
  %v60 = vld [vmem:[%s1 + $0xb4] sm:$0xf]
  %v61 = vld [vmem:[%s1 + $0xb8] sm:$0xf]
  %v62 = vld [vmem:[%s1 + $0xbc] sm:$0xf]
  %v63 = vld [vmem:[%s1 + $0xc0] sm:$0xf]
  %v64 = vld [vmem:[%s1 + $0xc4] sm:$0xf]
  %v65 = vld [vmem:[%s1 + $0xc8] sm:$0xf]
  %v66 = vld [vmem:[%s1 + $0xcc] sm:$0xf]
  %v67 = vld [vmem:[%s1 + $0xd0] sm:$0xf]
  %v68 = vld [vmem:[%s1 + $0xd4] sm:$0xf]
  %v69 = vld [vmem:[%s1 + $0xd8] sm:$0xf]
  %v70 = vld [vmem:[%s1 + $0xdc] sm:$0xf]
  %v71 = vld [vmem:[%s1 + $0xe0] sm:$0xf]
  %v72 = vld [vmem:[%s1 + $0xe4] sm:$0xf]
  %v73 = vld [vmem:[%s1 + $0xe8] sm:$0xf]
  %v74 = vld [vmem:[%s1 + $0xec] sm:$0xf]
  %v75 = vld [vmem:[%s1 + $0xf0] sm:$0xf]
  %v76 = vld [vmem:[%s1 + $0xf4] sm:$0xf]
  %v77 = vld [vmem:[%s1 + $0xf8] sm:$0xf]
  %v78 = vld [vmem:[%s1 + $0xfc] sm:$0xf]
  %v79 = vld [vmem:[%s1 + $0x100] sm:$0xf]
  %v80 = vld [vmem:[%s1 + $0x104] sm:$0xf]
  %v81 = vld [vmem:[%s1 + $0x108] sm:$0xf]
  %v82 = vld [vmem:[%s1 + $0x10c] sm:$0xf]
  %v83 = vld [vmem:[%s1 + $0x110] sm:$0xf]
  %v84 = vld [vmem:[%s1 + $0x114] sm:$0xf]
  %v85 = vld [vmem:[%s1 + $0x118] sm:$0xf]
  %v86 = vld [vmem:[%s1 + $0x11c] sm:$0xf]
  %v87 = vld [vmem:[%s1 + $0x120] sm:$0xf]
  %v88 = vld [vmem:[%s1 + $0x124] sm:$0xf]
  %v89 = vld [vmem:[%s1 + $0x128] sm:$0xf]
  %v90 = vld [vmem:[%s1 + $0x12c] sm:$0xf]
  %v91 = vld [vmem:[%s1 + $0x130] sm:$0xf]
  %v92 = vld [vmem:[%s1 + $0x134] sm:$0xf]
  %v93 = vld [vmem:[%s1 + $0x138] sm:$0xf]
  %v94 = vld [vmem:[%s1 + $0x13c] sm:$0xf]
  %v95 = vld [vmem:[%s1 + $0x140] sm:$0xf]
  %v96 = vld [vmem:[%s1 + $0x144] sm:$0xf]
  %v97 = vld [vmem:[%s1 + $0x148] sm:$0xf]
  %v98 = vld [vmem:[%s1 + $0x14c] sm:$0xf]
  %v99 = vld [vmem:[%s1 + $0x150] sm:$0xf]
  %v100 = vld [vmem:[%s1 + $0x154] sm:$0xf]
  %v101 = vld [vmem:[%s1 + $0x158] sm:$0xf]
  %v102 = vld [vmem:[%s1 + $0x15c] sm:$0xf]
  %v103 = vld [vmem:[%s1 + $0x160] sm:$0xf]
  %v104 = vld [vmem:[%s1 + $0x164] sm:$0xf]
  %v105 = vld [vmem:[%s1 + $0x168] sm:$0xf]
  %v106 = vld [vmem:[%s1 + $0x16c] sm:$0xf]
  %v107 = vld [vmem:[%s1 + $0x170] sm:$0xf]
  %v108 = vld [vmem:[%s1 + $0x174] sm:$0xf]
  %v109 = vld [vmem:[%s1 + $0x178] sm:$0xf]
  %v110 = vld [vmem:[%s1 + $0x17c] sm:$0xf]
  %v111 = vld [vmem:[%s1 + $0x180] sm:$0xf]
  %v112 = vld [vmem:[%s1 + $0x184] sm:$0xf]
  %v113 = vld [vmem:[%s1 + $0x188] sm:$0xf]
  %v114 = vld [vmem:[%s1 + $0x18c] sm:$0xf]
  %v115 = vld [vmem:[%s1 + $0x190] sm:$0xf]
  %v116 = vld [vmem:[%s1 + $0x194] sm:$0xf]
  %v117 = vld [vmem:[%s1 + $0x198] sm:$0xf]
  %v118 = vld [vmem:[%s1 + $0x19c] sm:$0xf]
  %v119 = vld [vmem:[%s1 + $0x1a0] sm:$0xf]
  %v120 = vld [vmem:[%s1 + $0x1a4] sm:$0xf]
  %v121 = vld [vmem:[%s1 + $0x1a8] sm:$0xf]
  %v122 = vld [vmem:[%s1 + $0x1ac] sm:$0xf]
  %v123 = vld [vmem:[%s1 + $0x1b0] sm:$0xf]
  %v124 = vld [vmem:[%s1 + $0x1b4] sm:$0xf]
  %v125 = vld [vmem:[%s1 + $0x1b8] sm:$0xf]
  %v126 = vld [vmem:[%s1 + $0x1bc] sm:$0xf]
  %v127 = vld [vmem:[%s1 + $0x1c0] sm:$0xf]
  %v128 = vld [vmem:[%s1 + $0x1c4] sm:$0xf]
  %v129 = vld [vmem:[%s1 + $0x1c8] sm:$0xf]
  %v130 = vld [vmem:[%s1 + $0x1cc] sm:$0xf]
  %v131 = vld [vmem:[%s1 + $0x1d0] sm:$0xf]
  %v132 = vld [vmem:[%s1 + $0x1d4] sm:$0xf]
  %v133 = vld [vmem:[%s1 + $0x1d8] sm:$0xf]
  %v134 = vld [vmem:[%s1 + $0x1dc] sm:$0xf]
  %v135 = vld [vmem:[%s1 + $0x1e0] sm:$0xf]
  %v136 = vld [vmem:[%s1 + $0x1e4] sm:$0xf]
  %v137 = vld [vmem:[%s1 + $0x1e8] sm:$0xf]
  %v138 = vld [vmem:[%s1 + $0x1ec] sm:$0xf]
  %v139 = vld [vmem:[%s1 + $0x1f0] sm:$0xf]
  %v140 = vld [vmem:[%s1 + $0x1f4] sm:$0xf]
  %v141 = vld [vmem:[%s1 + $0x1f8] sm:$0xf]
  %v142 = vld [vmem:[%s1 + $0x1fc] sm:$0xf]
  %v147 = vunpack.c.l.b16 %v11
  %v148 = vunpack.c.h.b16 %v11
  %v149 = vunpack.c.l.b16 %v12
  %v150 = vunpack.c.h.b16 %v12
  %v151 = vunpack.c.l.b16 %v13
  %v152 = vunpack.c.h.b16 %v13
  %v153 = vunpack.c.l.b16 %v14
  %v154 = vunpack.c.h.b16 %v14
  %v155 = vpack.c.b16 %v147, %v147
  %v156 = vpack.c.b16 %v148, %v148
  %v157 = vpack.c.b16 %v149, %v149
  %v158 = vpack.c.b16 %v150, %v150
  %v159 = vpack.c.b16 %v151, %v151
  %v160 = vpack.c.b16 %v152, %v152
  %v161 = vpack.c.b16 %v153, %v153
  %v162 = vpack.c.b16 %v154, %v154
  %v299 = vunpack.c.l.b16 %v15
  %v300 = vunpack.c.l.b16 %v16
  %v301 = vunpack.c.l.b16 %v17
  %v302 = vunpack.c.l.b16 %v18
  %v303 = vunpack.c.l.b16 %v19
  %v304 = vunpack.c.l.b16 %v20
  %v305 = vunpack.c.l.b16 %v21
  %v306 = vunpack.c.l.b16 %v22
  %v307 = vunpack.c.l.b16 %v23
  %v308 = vunpack.c.l.b16 %v24
  %v309 = vunpack.c.l.b16 %v25
  %v310 = vunpack.c.l.b16 %v26
  %v311 = vunpack.c.l.b16 %v27
  %v312 = vunpack.c.l.b16 %v28
  %v313 = vunpack.c.l.b16 %v29
  %v314 = vunpack.c.l.b16 %v30
  %v315 = vunpack.c.l.b16 %v31
  %v316 = vunpack.c.l.b16 %v32
  %v317 = vunpack.c.l.b16 %v33
  %v318 = vunpack.c.l.b16 %v34
  %v319 = vunpack.c.l.b16 %v35
  %v320 = vunpack.c.l.b16 %v36
  %v321 = vunpack.c.l.b16 %v37
  %v322 = vunpack.c.l.b16 %v38
  %v323 = vunpack.c.l.b16 %v39
  %v324 = vunpack.c.l.b16 %v40
  %v325 = vunpack.c.l.b16 %v41
  %v326 = vunpack.c.l.b16 %v42
  %v327 = vunpack.c.l.b16 %v43
  %v328 = vunpack.c.l.b16 %v44
  %v329 = vunpack.c.l.b16 %v45
  %v330 = vunpack.c.l.b16 %v46
  %v331 = vunpack.c.l.b16 %v47
  %v332 = vunpack.c.l.b16 %v48
  %v333 = vunpack.c.l.b16 %v49
  %v334 = vunpack.c.l.b16 %v50
  %v335 = vunpack.c.l.b16 %v51
  %v336 = vunpack.c.l.b16 %v52
  %v337 = vunpack.c.l.b16 %v53
  %v338 = vunpack.c.l.b16 %v54
  %v339 = vunpack.c.l.b16 %v55
  %v340 = vunpack.c.l.b16 %v56
  %v341 = vunpack.c.l.b16 %v57
  %v342 = vunpack.c.l.b16 %v58
  %v343 = vunpack.c.l.b16 %v59
  %v344 = vunpack.c.l.b16 %v60
  %v345 = vunpack.c.l.b16 %v61
  %v346 = vunpack.c.l.b16 %v62
  %v347 = vunpack.c.l.b16 %v63
  %v348 = vunpack.c.l.b16 %v64
  %v349 = vunpack.c.l.b16 %v65
  %v350 = vunpack.c.l.b16 %v66
  %v351 = vunpack.c.l.b16 %v67
  %v352 = vunpack.c.l.b16 %v68
  %v353 = vunpack.c.l.b16 %v69
  %v354 = vunpack.c.l.b16 %v70
  %v355 = vunpack.c.l.b16 %v71
  %v356 = vunpack.c.l.b16 %v72
  %v357 = vunpack.c.l.b16 %v73
  %v358 = vunpack.c.l.b16 %v74
  %v359 = vunpack.c.l.b16 %v75
  %v360 = vunpack.c.l.b16 %v76
  %v361 = vunpack.c.l.b16 %v77
  %v362 = vunpack.c.l.b16 %v78
  %v363 = vunpack.c.l.b16 %v79
  %v364 = vunpack.c.l.b16 %v80
  %v365 = vunpack.c.l.b16 %v81
  %v366 = vunpack.c.l.b16 %v82
  %v367 = vunpack.c.l.b16 %v83
  %v368 = vunpack.c.l.b16 %v84
  %v369 = vunpack.c.l.b16 %v85
  %v370 = vunpack.c.l.b16 %v86
  %v371 = vunpack.c.l.b16 %v87
  %v372 = vunpack.c.l.b16 %v88
  %v373 = vunpack.c.l.b16 %v89
  %v374 = vunpack.c.l.b16 %v90
  %v375 = vunpack.c.l.b16 %v91
  %v376 = vunpack.c.l.b16 %v92
  %v377 = vunpack.c.l.b16 %v93
  %v378 = vunpack.c.l.b16 %v94
  %v379 = vunpack.c.l.b16 %v95
  %v380 = vunpack.c.l.b16 %v96
  %v381 = vunpack.c.l.b16 %v97
  %v382 = vunpack.c.l.b16 %v98
  %v383 = vunpack.c.l.b16 %v99
  %v384 = vunpack.c.l.b16 %v100
  %v385 = vunpack.c.l.b16 %v101
  %v386 = vunpack.c.l.b16 %v102
  %v387 = vunpack.c.l.b16 %v103
  %v388 = vunpack.c.l.b16 %v104
  %v389 = vunpack.c.l.b16 %v105
  %v390 = vunpack.c.l.b16 %v106
  %v391 = vunpack.c.l.b16 %v107
  %v392 = vunpack.c.l.b16 %v108
  %v393 = vunpack.c.l.b16 %v109
  %v394 = vunpack.c.l.b16 %v110
  %v395 = vunpack.c.l.b16 %v111
  %v396 = vunpack.c.l.b16 %v112
  %v397 = vunpack.c.l.b16 %v113
  %v398 = vunpack.c.l.b16 %v114
  %v399 = vunpack.c.l.b16 %v115
  %v400 = vunpack.c.l.b16 %v116
  %v401 = vunpack.c.l.b16 %v117
  %v402 = vunpack.c.l.b16 %v118
  %v403 = vunpack.c.l.b16 %v119
  %v404 = vunpack.c.l.b16 %v120
  %v405 = vunpack.c.l.b16 %v121
  %v406 = vunpack.c.l.b16 %v122
  %v407 = vunpack.c.l.b16 %v123
  %v408 = vunpack.c.l.b16 %v124
  %v409 = vunpack.c.l.b16 %v125
  %v410 = vunpack.c.l.b16 %v126
  %v411 = vunpack.c.l.b16 %v127
  %v412 = vunpack.c.l.b16 %v128
  %v413 = vunpack.c.l.b16 %v129
  %v414 = vunpack.c.l.b16 %v130
  %v415 = vunpack.c.l.b16 %v131
  %v416 = vunpack.c.l.b16 %v132
  %v417 = vunpack.c.l.b16 %v133
  %v418 = vunpack.c.l.b16 %v134
  %v419 = vunpack.c.l.b16 %v135
  %v420 = vunpack.c.l.b16 %v136
  %v421 = vunpack.c.l.b16 %v137
  %v422 = vunpack.c.l.b16 %v138
  %v423 = vunpack.c.l.b16 %v139
  %v424 = vunpack.c.l.b16 %v140
  %v425 = vunpack.c.l.b16 %v141
  %v426 = vunpack.c.l.b16 %v142
  %v427 = vpack.c.b16 %v300, %v299
  %v428 = vpack.c.b16 %v302, %v301
  %v429 = vpack.c.b16 %v304, %v303
  %v430 = vpack.c.b16 %v306, %v305
  %v431 = vpack.c.b16 %v308, %v307
  %v432 = vpack.c.b16 %v310, %v309
  %v433 = vpack.c.b16 %v312, %v311
  %v434 = vpack.c.b16 %v314, %v313
  %v435 = vpack.c.b16 %v316, %v315
  %v436 = vpack.c.b16 %v318, %v317
  %v437 = vpack.c.b16 %v320, %v319
  %v438 = vpack.c.b16 %v322, %v321
  %v439 = vpack.c.b16 %v324, %v323
  %v440 = vpack.c.b16 %v326, %v325
  %v441 = vpack.c.b16 %v328, %v327
  %v442 = vpack.c.b16 %v330, %v329
  %v443 = vpack.c.b16 %v332, %v331
  %v444 = vpack.c.b16 %v334, %v333
  %v445 = vpack.c.b16 %v336, %v335
  %v446 = vpack.c.b16 %v338, %v337
  %v447 = vpack.c.b16 %v340, %v339
  %v448 = vpack.c.b16 %v342, %v341
  %v449 = vpack.c.b16 %v344, %v343
  %v450 = vpack.c.b16 %v346, %v345
  %v451 = vpack.c.b16 %v348, %v347
  %v452 = vpack.c.b16 %v350, %v349
  %v453 = vpack.c.b16 %v352, %v351
  %v454 = vpack.c.b16 %v354, %v353
  %v455 = vpack.c.b16 %v356, %v355
  %v456 = vpack.c.b16 %v358, %v357
  %v457 = vpack.c.b16 %v360, %v359
  %v458 = vpack.c.b16 %v362, %v361
  %v459 = vpack.c.b16 %v364, %v363
  %v460 = vpack.c.b16 %v366, %v365
  %v461 = vpack.c.b16 %v368, %v367
  %v462 = vpack.c.b16 %v370, %v369
  %v463 = vpack.c.b16 %v372, %v371
  %v464 = vpack.c.b16 %v374, %v373
  %v465 = vpack.c.b16 %v376, %v375
  %v466 = vpack.c.b16 %v378, %v377
  %v467 = vpack.c.b16 %v380, %v379
  %v468 = vpack.c.b16 %v382, %v381
  %v469 = vpack.c.b16 %v384, %v383
  %v470 = vpack.c.b16 %v386, %v385
  %v471 = vpack.c.b16 %v388, %v387
  %v472 = vpack.c.b16 %v390, %v389
  %v473 = vpack.c.b16 %v392, %v391
  %v474 = vpack.c.b16 %v394, %v393
  %v475 = vpack.c.b16 %v396, %v395
  %v476 = vpack.c.b16 %v398, %v397
  %v477 = vpack.c.b16 %v400, %v399
  %v478 = vpack.c.b16 %v402, %v401
  %v479 = vpack.c.b16 %v404, %v403
  %v480 = vpack.c.b16 %v406, %v405
  %v481 = vpack.c.b16 %v408, %v407
  %v482 = vpack.c.b16 %v410, %v409
  %v483 = vpack.c.b16 %v412, %v411
  %v484 = vpack.c.b16 %v414, %v413
  %v485 = vpack.c.b16 %v416, %v415
  %v486 = vpack.c.b16 %v418, %v417
  %v487 = vpack.c.b16 %v420, %v419
  %v488 = vpack.c.b16 %v422, %v421
  %v489 = vpack.c.b16 %v424, %v423
  %v490 = vpack.c.b16 %v426, %v425
  %555 = vmatpush.bf16.msra.mxu0 %v434
  %556 = vmatpush.bf16.msra.mxu0 %v433
  %557 = vmatpush.bf16.msra.mxu0 %v432
  %558 = vmatpush.bf16.msra.mxu0 %v431
  %559 = vmatpush.bf16.msra.mxu0 %v430
  %560 = vmatpush.bf16.msra.mxu0 %v429
  %561 = vmatpush.bf16.msra.mxu0 %v428
  %562 = vmatpush.bf16.msra.mxu0 %v427
  %563 = vmatmul.bf16.gmra.mxu0 %v155
  %v564 = vpop.f32.mrf.mxu0
  %v565 = vadd.f32 0.0, %v564
  %v566 = vpop.f32.mrf.mxu0
  %567 = vdwg.mxu0
  %568 = vmatpush.bf16.msra.mxu0 %v442
  %569 = vmatpush.bf16.msra.mxu0 %v441
  %570 = vmatpush.bf16.msra.mxu0 %v440
  %571 = vmatpush.bf16.msra.mxu0 %v439
  %572 = vmatpush.bf16.msra.mxu0 %v438
  %573 = vmatpush.bf16.msra.mxu0 %v437
  %574 = vmatpush.bf16.msra.mxu0 %v436
  %575 = vmatpush.bf16.msra.mxu0 %v435
  %576 = vmatmul.bf16.gmra.mxu0 %v156
  %v577 = vpop.f32.mrf.mxu0
  %v578 = vadd.f32 %v565, %v577
  %v579 = vpop.f32.mrf.mxu0
  %580 = vdwg.mxu0
  %581 = vmatpush.bf16.msra.mxu0 %v450
  %582 = vmatpush.bf16.msra.mxu0 %v449
  %583 = vmatpush.bf16.msra.mxu0 %v448
  %584 = vmatpush.bf16.msra.mxu0 %v447
  %585 = vmatpush.bf16.msra.mxu0 %v446
  %586 = vmatpush.bf16.msra.mxu0 %v445
  %587 = vmatpush.bf16.msra.mxu0 %v444
  %588 = vmatpush.bf16.msra.mxu0 %v443
  %589 = vmatmul.bf16.gmra.mxu0 %v157
  %v590 = vpop.f32.mrf.mxu0
  %v591 = vadd.f32 %v578, %v590
  %v592 = vpop.f32.mrf.mxu0
  %593 = vdwg.mxu0
  %594 = vmatpush.bf16.msra.mxu0 %v458
  %595 = vmatpush.bf16.msra.mxu0 %v457
  %596 = vmatpush.bf16.msra.mxu0 %v456
  %597 = vmatpush.bf16.msra.mxu0 %v455
  %598 = vmatpush.bf16.msra.mxu0 %v454
  %599 = vmatpush.bf16.msra.mxu0 %v453
  %600 = vmatpush.bf16.msra.mxu0 %v452
  %601 = vmatpush.bf16.msra.mxu0 %v451
  %602 = vmatmul.bf16.gmra.mxu0 %v158
  %v603 = vpop.f32.mrf.mxu0
  %v604 = vadd.f32 %v591, %v603
  %v605 = vpop.f32.mrf.mxu0
  %606 = vdwg.mxu0
  %607 = vmatpush.bf16.msra.mxu0 %v466
  %608 = vmatpush.bf16.msra.mxu0 %v465
  %609 = vmatpush.bf16.msra.mxu0 %v464
  %610 = vmatpush.bf16.msra.mxu0 %v463
  %611 = vmatpush.bf16.msra.mxu0 %v462
  %612 = vmatpush.bf16.msra.mxu0 %v461
  %613 = vmatpush.bf16.msra.mxu0 %v460
  %614 = vmatpush.bf16.msra.mxu0 %v459
  %615 = vmatmul.bf16.gmra.mxu0 %v159
  %v616 = vpop.f32.mrf.mxu0
  %v617 = vadd.f32 %v604, %v616
  %v618 = vpop.f32.mrf.mxu0
  %619 = vdwg.mxu0
  %620 = vmatpush.bf16.msra.mxu0 %v474
  %621 = vmatpush.bf16.msra.mxu0 %v473
  %622 = vmatpush.bf16.msra.mxu0 %v472
  %623 = vmatpush.bf16.msra.mxu0 %v471
  %624 = vmatpush.bf16.msra.mxu0 %v470
  %625 = vmatpush.bf16.msra.mxu0 %v469
  %626 = vmatpush.bf16.msra.mxu0 %v468
  %627 = vmatpush.bf16.msra.mxu0 %v467
  %628 = vmatmul.bf16.gmra.mxu0 %v160
  %v629 = vpop.f32.mrf.mxu0
  %v630 = vadd.f32 %v617, %v629
  %v631 = vpop.f32.mrf.mxu0
  %632 = vdwg.mxu0
  %633 = vmatpush.bf16.msra.mxu0 %v482
  %634 = vmatpush.bf16.msra.mxu0 %v481
  %635 = vmatpush.bf16.msra.mxu0 %v480
  %636 = vmatpush.bf16.msra.mxu0 %v479
  %637 = vmatpush.bf16.msra.mxu0 %v478
  %638 = vmatpush.bf16.msra.mxu0 %v477
  %639 = vmatpush.bf16.msra.mxu0 %v476
  %640 = vmatpush.bf16.msra.mxu0 %v475
  %641 = vmatmul.bf16.gmra.mxu0 %v161
  %v642 = vpop.f32.mrf.mxu0
  %v643 = vadd.f32 %v630, %v642
  %v644 = vpop.f32.mrf.mxu0
  %645 = vdwg.mxu0
  %646 = vmatpush.bf16.msra.mxu0 %v490
  %647 = vmatpush.bf16.msra.mxu0 %v489
  %648 = vmatpush.bf16.msra.mxu0 %v488
  %649 = vmatpush.bf16.msra.mxu0 %v487
  %650 = vmatpush.bf16.msra.mxu0 %v486
  %651 = vmatpush.bf16.msra.mxu0 %v485
  %652 = vmatpush.bf16.msra.mxu0 %v484
  %653 = vmatpush.bf16.msra.mxu0 %v483
  %654 = vmatmul.bf16.gmra.mxu0 %v162
  %v655 = vpop.f32.mrf.mxu0
  %v656 = vadd.f32 %v643, %v655
  %v657 = vpop.f32.mrf.mxu0
  %658 = vdwg.mxu0
  %659 = vst [vmem:[%s2] sm:$0xff] %v656
  // Predicated region
  $region10: #{image_discriminator64_forward.15} parent=0 // pred_check
    _
  $region11: #{image_discriminator64_forward.15} parent=0 // pred_check_branch
    %661 = sbr.rel (0) target = $region13
  $region12: #{image_discriminator64_forward.15} parent=0 // pred_region
    _
  $region13: #{image_discriminator64_forward.15} parent=0 // pred_fallthru
    _
  // Predicated region
  $region14: #{image_discriminator64_forward.15} parent=0 // pred_check
    _
  $region15: #{image_discriminator64_forward.15} parent=0 // pred_check_branch
    %663 = sbr.rel (0) target = $region17
  $region16: #{image_discriminator64_forward.15} parent=0 // pred_region
    _
  $region17: #{image_discriminator64_forward.15} parent=0 // pred_fallthru
    _

</llo_original>
